<compile_context>
chip_gen: v6e
topology: v6e:2x2x1
jax: 0.10.0
libtpu: 0.0.40
codegen_flags: <defaults>
</compile_context>

<pallas_src>
import functools

import jax
import jax.numpy as jnp
from jax.experimental import pallas as pl
from jax.experimental.pallas import tpu as pltpu

# ---------------------------- model hyper-params ----------------------------
B = 2
IN_C = 4             # in_c
SIG_LEN = 40         # img_size (1-D signal length; scaled down from 1000)
PATCH = 10           # patch_size
N_TOKENS = SIG_LEN // PATCH

INCEPTION_NF = 8     # per-branch filters -> CNN out channels = 4*NF = 32
INCEPTION_KS = (3, 5, 9)
CNN_OUT_C = 4 * INCEPTION_NF

ODER_DIM = 128       # stands in for self.oder_dim = 1280
V1_HEADS = 8         # stands in for 10 heads
V1_DEPTH = 2
V2_EMBED = 64        # stands in for encoder_embed_dim = 120
V2_HEADS = 4
V2_DEPTH = 2
MLP_RATIO = 4.0
CV_HEADS = 8
CV_DEPTH = 1
CV_MLP_RATIO = 2.0
LATENT = ODER_DIM // 2
LN_EPS = 1e-5

# above the 16/32 MiB default scoped limits, below v7x's 64 MiB physical.
VMEM_LIMIT = 48 * 1024 * 1024


# ------------------------------ in-kernel helpers ----------------------------
def _gelu_tanh(x):
    # TODO(synk): PyTorch nn.GELU default is exact erf; tanh approximation used
    # because tanh has a guaranteed EUP lowering in Mosaic.
    return 0.5 * x * (1.0 + jnp.tanh(0.7978845608028654 * (x + 0.044715 * x * x * x)))


def _softplus(x):
    # numerically stable softplus using only exp/log/abs/max (all Mosaic-safe)
    return jnp.maximum(x, 0.0) + jnp.log(1.0 + jnp.exp(-jnp.abs(x)))


def _ln(x, g, b, eps):
    mu = jnp.mean(x, axis=-1, keepdims=True)
    var = jnp.mean((x - mu) ** 2, axis=-1, keepdims=True)
    return (x - mu) * jax.lax.rsqrt(var + eps) * g + b


# --------------------- kernel 1: tiled matmul + bias + act -------------------
def _mm_kernel(*refs, act, nk, has_add):
    if has_add:
        a_ref, w_ref, b_ref, add_ref, o_ref, acc_ref = refs
    else:
        a_ref, w_ref, b_ref, o_ref, acc_ref = refs
        add_ref = None
    k = pl.program_id(2)

    @pl.when(k == 0)
    def _init():
        acc_ref[...] = jnp.zeros_like(acc_ref)

    acc_ref[...] += jnp.dot(a_ref[...], w_ref[...], preferred_element_type=jnp.float32)

    @pl.when(k == nk - 1)
    def _finalize():
        r = acc_ref[...] + b_ref[...]
        if add_ref is not None:
            r = r + add_ref[...].astype(jnp.float32)
        if act == "relu":
            r = jnp.maximum(r, 0.0)
        elif act == "gelu":
            r = _gelu_tanh(r)
        o_ref[...] = r.astype(o_ref.dtype)


def matmul_bias_act(a, w, b, act="none", add=None, out_dtype=jnp.bfloat16):
    """bf16 a:(M,K) @ bf16 w:(K,N) + f32 bias (+ add:(M,N)), fused activation.
    M/N/K grid-tiled with f32 accumulator scratch; at toy sizes the grid is a
    single step, at the real config (K,N up to 5120) tiles stay VMEM-safe and
    the 'parallel' M/N axes allow megacore / dual-TC sharding."""
    M, K = a.shape
    N = w.shape[1]
    a = a.astype(jnp.bfloat16)
    w = w.astype(jnp.bfloat16)
    bias = b.reshape(1, N).astype(jnp.float32)

    def pick(dim, cands):
        for c in cands:
            if dim > c and dim % c == 0:
                return c
        return dim

    tm = pick(M, (256, 128))
    tk = pick(K, (512,))
    tn = pick(N, (512, 256, 128))
    nm, nk, nn = M // tm, K // tk, N // tn

    args = [a, w, bias]
    in_specs = [
        pl.BlockSpec((tm, tk), lambda m, n, k: (m, k)),
        pl.BlockSpec((tk, tn), lambda m, n, k: (k, n)),
        pl.BlockSpec((1, tn), lambda m, n, k: (0, n)),
    ]
    has_add = add is not None
    if has_add:
        args.append(add.astype(jnp.bfloat16))
        in_specs.append(pl.BlockSpec((tm, tn), lambda m, n, k: (m, n)))

    return pl.pallas_call(
        functools.partial(_mm_kernel, act=act, nk=nk, has_add=has_add),
        out_shape=jax.ShapeDtypeStruct((M, N), out_dtype),
        grid=(nm, nn, nk),
        in_specs=in_specs,
        out_specs=pl.BlockSpec((tm, tn), lambda m, n, k: (m, n)),
        scratch_shapes=[pltpu.VMEM((tm, tn), jnp.float32)],
        compiler_params=pltpu.CompilerParams(
            dimension_semantics=("parallel", "parallel", "arbitrary"),
            vmem_limit_bytes=VMEM_LIMIT),
    )(*args)


# -------------- kernel 2: depth-pipelined pre-LN transformer blocks ----------
def _vit_blocks_kernel(tok_ref, qkvw_ref, projw_ref, fc1w_ref, fc2w_ref,
                       vec_ref, wide_ref, out_ref,
                       *, batch, tokens, heads, eps, scale):
    d = out_ref.shape[-1]
    dh = d // heads

    @pl.when(pl.program_id(0) == 0)
    def _seed():
        out_ref[...] = tok_ref[...]

    x = out_ref[...].astype(jnp.float32)
    vec = vec_ref[0]                      # (9, d)   f32: ln1 g/b, ln2 g/b, q/k/v bias, proj_b, fc2_b
    fc1_b = wide_ref[0]                   # (1, hid) f32

    # --- attention (pre-LN) ---
    xn = _ln(x, vec[0:1], vec[1:2], eps)
    qkv = jnp.dot(xn.astype(jnp.bfloat16), qkvw_ref[0],
                  preferred_element_type=jnp.float32)
    q = (qkv[:, 0 * d:1 * d] + vec[4:5]).reshape(batch, tokens, d)
    k = (qkv[:, 1 * d:2 * d] + vec[5:6]).reshape(batch, tokens, d)
    v = (qkv[:, 2 * d:3 * d] + vec[6:7]).reshape(batch, tokens, d)

    # TODO(synk): per-head rank-3 einsums (Mosaic dot_general supports a single
    # batch dim); at the real config dh=128 these slices are lane-aligned.
    head_outs = []
    for h in range(heads):
        sl = slice(h * dh, (h + 1) * dh)
        qh = q[:, :, sl].astype(jnp.bfloat16)
        kh = k[:, :, sl].astype(jnp.bfloat16)
        vh = v[:, :, sl].astype(jnp.bfloat16)
        s = jnp.einsum('bqd,bkd->bqk', qh, kh,
                       preferred_element_type=jnp.float32) * scale
        s = s - jnp.max(s, axis=-1, keepdims=True)
        p = jnp.exp(s)
        p = p * pl.reciprocal(jnp.sum(p, axis=-1, keepdims=True), approx=True)
        head_outs.append(jnp.einsum('bqk,bkd->bqd', p.astype(jnp.bfloat16), vh,
                                    preferred_element_type=jnp.float32))
    attn = jnp.concatenate(head_outs, axis=-1).reshape(batch * tokens, d)
    x = x + jnp.dot(attn.astype(jnp.bfloat16), projw_ref[0],
                    preferred_element_type=jnp.float32) + vec[7:8]

    # --- MLP ---
    # TODO(synk): at the real config (oder_dim=1280, mlp 4x) on v7x/v5e, route
    # fc1/fc2 through matmul_bias_act instead to keep peak VMEM under limit.
    xn2 = _ln(x, vec[2:3], vec[3:4], eps)
    h1 = jnp.dot(xn2.astype(jnp.bfloat16), fc1w_ref[0],
                 preferred_element_type=jnp.float32) + fc1_b
    h1 = _gelu_tanh(h1)
    x = x + jnp.dot(h1.astype(jnp.bfloat16), fc2w_ref[0],
                    preferred_element_type=jnp.float32) + vec[8:9]
    out_ref[...] = x.astype(out_ref.dtype)


def _stack_vit_blocks(blocks, d, hid):
    qkv_w = jnp.stack([b["attn"]["qkv_w"] for b in blocks]).astype(jnp.bfloat16)
    proj_w = jnp.stack([b["attn"]["proj_w"] for b in blocks]).astype(jnp.bfloat16)
    fc1_w = jnp.stack([b["mlp"]["fc1_w"] for b in blocks]).astype(jnp.bfloat16)
    fc2_w = jnp.stack([b["mlp"]["fc2_w"] for b in blocks]).astype(jnp.bfloat16)
    vecs = jnp.stack([jnp.stack([
        b["ln1_g"], b["ln1_b"], b["ln2_g"], b["ln2_b"],
        b["attn"]["qkv_b"][0 * d:1 * d],
        b["attn"]["qkv_b"][1 * d:2 * d],
        b["attn"]["qkv_b"][2 * d:3 * d],
        b["attn"]["proj_b"], b["mlp"]["fc2_b"]]) for b in blocks]).astype(jnp.float32)
    wide = jnp.stack([b["mlp"]["fc1_b"].reshape(1, hid)
                      for b in blocks]).astype(jnp.float32)
    return qkv_w, proj_w, fc1_w, fc2_w, vecs, wide


def vit_blocks(tok, stacked, num_heads, batch, tokens, d, hid, depth):
    qkv_w, proj_w, fc1_w, fc2_w, vecs, wide = stacked
    M = batch * tokens
    kernel = functools.partial(
        _vit_blocks_kernel, batch=batch, tokens=tokens, heads=num_heads,
        eps=LN_EPS, scale=(d // num_heads) ** -0.5)
    return pl.pallas_call(
        kernel,
        out_shape=jax.ShapeDtypeStruct((M, d), jnp.bfloat16),
        grid=(depth,),
        in_specs=[
            pl.BlockSpec((M, d), lambda i: (0, 0)),
            pl.BlockSpec((1, d, 3 * d), lambda i: (i, 0, 0)),
            pl.BlockSpec((1, d, d), lambda i: (i, 0, 0)),
            pl.BlockSpec((1, d, hid), lambda i: (i, 0, 0)),
            pl.BlockSpec((1, hid, d), lambda i: (i, 0, 0)),
            pl.BlockSpec((1, 9, d), lambda i: (i, 0, 0)),
            pl.BlockSpec((1, 1, hid), lambda i: (i, 0, 0)),
        ],
        out_specs=pl.BlockSpec((M, d), lambda i: (0, 0)),
        compiler_params=pltpu.CompilerParams(
            dimension_semantics=("arbitrary",),
            vmem_limit_bytes=VMEM_LIMIT),
    )(tok, qkv_w, proj_w, fc1_w, fc2_w, vecs, wide)


# --------- kernel 3: pooled LN + view2 fc + CrossView blocks (fused) ---------
def _cross_tail_kernel(*refs, depth, batch, tokens, eps):
    out_x_ref, out_y_ref = refs[-2:]
    it = iter(refs[:-2])

    tokx = next(it)[...].astype(jnp.float32)
    toky = next(it)[...].astype(jnp.float32)
    vec_x = next(it)[...]                         # (3, d1): fnx_g, fnx_b, v2fc_b
    vec_y = next(it)[...]                         # (2, d2): fny_g, fny_b
    v2w = next(it)[...]                           # (d2, d1) bf16

    # use_mean_pooling + fc_norm for both views, then view2 fc -> oder_dim
    x = _ln(jnp.mean(tokx.reshape(batch, tokens, -1), axis=1),
            vec_x[0:1], vec_x[1:2], eps)
    y = _ln(jnp.mean(toky.reshape(batch, tokens, -1), axis=1),
            vec_y[0:1], vec_y[1:2], eps)
    y = jnp.dot(y.astype(jnp.bfloat16), v2w,
                preferred_element_type=jnp.float32) + vec_x[2:3]

    # TODO(synk): CrossView source not provided; symmetric single-token pre-LN
    # cross-attention blocks with MLP (softmax over one key == 1, so the
    # attention output reduces to the V/proj path).  x/y paths are stacked on
    # a leading batch axis so each weight pair is one batched MXU issue.
    for _ in range(depth):
        wv = next(it)[...]                        # (2, d1, d1) bf16
        wp = next(it)[...]                        # (2, d1, d1) bf16
        wm1 = next(it)[...]                       # (2, d1, hid) bf16
        wm2 = next(it)[...]                       # (2, hid, d1) bf16
        vv = next(it)[...]                        # (2, 7, d1)  f32
        m1b = next(it)[...]                       # (2, 1, hid) f32

        xn = _ln(x, vv[0, 0:1], vv[0, 1:2], eps)
        yn = _ln(y, vv[1, 0:1], vv[1, 1:2], eps)
        src = jnp.stack([yn, xn]).astype(jnp.bfloat16)    # dest order [x, y]
        a = jnp.einsum('sbd,sde->sbe', src, wv,
                       preferred_element_type=jnp.float32) + vv[:, 2:3]
        a = jnp.einsum('sbd,sde->sbe', a.astype(jnp.bfloat16), wp,
                       preferred_element_type=jnp.float32) + vv[:, 3:4]
        x = x + a[0]
        y = y + a[1]

        zn = jnp.stack([_ln(x, vv[0, 4:5], vv[0, 5:6], eps),
                        _ln(y, vv[1, 4:5], vv[1, 5:6], eps)]).astype(jnp.bfloat16)
        h = jnp.einsum('sbd,sdh->sbh', zn, wm1,
                       preferred_element_type=jnp.float32) + m1b
        h = _gelu_tanh(h)
        o = jnp.einsum('sbh,shd->sbd', h.astype(jnp.bfloat16), wm2,
                       preferred_element_type=jnp.float32) + vv[:, 6:7]
        x = x + o[0]
        y = y + o[1]

    out_x_ref[...] = x.astype(out_x_ref.dtype)
    out_y_ref[...] = y.astype(out_y_ref.dtype)


def cross_tail(tok_x, tok_y, params, batch, tokens):
    v1 = params["view1_vit"]
    v2 = params["view2_vit"]
    d1 = v1["patch_w"].shape[1]
    vec_x = jnp.stack([v1["fc_norm_g"], v1["fc_norm_b"],
                       params["view2_fc_b"]]).astype(jnp.float32)
    vec_y = jnp.stack([v2["fc_norm_g"], v2["fc_norm_b"]]).astype(jnp.float32)
    flat = [tok_x, tok_y, vec_x, vec_y,
            params["view2_fc_w"].astype(jnp.bfloat16)]
    for blk in params["cross"]["blocks"]:
        axy, ayx = blk["attn_xy"], blk["attn_yx"]
        mx, my = blk["mlp_x"], blk["mlp_y"]
        hid = mx["fc1_w"].shape[1]
        flat += [
            jnp.stack([axy["v_w"], ayx["v_w"]]).astype(jnp.bfloat16),
            jnp.stack([axy["proj_w"], ayx["proj_w"]]).astype(jnp.bfloat16),
            jnp.stack([mx["fc1_w"], my["fc1_w"]]).astype(jnp.bfloat16),
            jnp.stack([mx["fc2_w"], my["fc2_w"]]).astype(jnp.bfloat16),
            jnp.stack([
                jnp.stack([blk["lnx_g"], blk["lnx_b"], axy["v_b"], axy["proj_b"],
                           blk["lnx2_g"], blk["lnx2_b"], mx["fc2_b"]]),
                jnp.stack([blk["lny_g"], blk["lny_b"], ayx["v_b"], ayx["proj_b"],
                           blk["lny2_g"], blk["lny2_b"], my["fc2_b"]]),
            ]).astype(jnp.float32),
            jnp.stack([mx["fc1_b"], my["fc1_b"]]).reshape(2, 1, hid).astype(jnp.float32),
        ]
    kernel = functools.partial(_cross_tail_kernel,
                               depth=len(params["cross"]["blocks"]),
                               batch=batch, tokens=tokens, eps=LN_EPS)
    return pl.pallas_call(
        kernel,
        out_shape=(jax.ShapeDtypeStruct((batch, d1), jnp.float32),
                   jax.ShapeDtypeStruct((batch, d1), jnp.float32)),
        compiler_params=pltpu.CompilerParams(vmem_limit_bytes=VMEM_LIMIT),
    )(*flat)


# -------- kernel 4: both EncoderDist heads + reparam + symmetric KL ----------
def _dist_skl_kernel(z_ref, eps_ref, w1_ref, b1_ref, wms_ref, bms_ref,
                     z1_ref, z2_ref, skl_ref, *, lat, var_eps):
    # TODO(synk): EncoderDist / compute_multi_view_skl1 sources not provided;
    # standard reparameterized Gaussian head + symmetric KL between diagonal
    # Gaussians averaged over batch and latent dims (same stand-in as before).
    z = z_ref[...].astype(jnp.bfloat16)                       # (2, B, d)
    h = jnp.einsum('sbd,sdh->sbh', z, w1_ref[...],
                   preferred_element_type=jnp.float32) + b1_ref[...]
    h = jnp.maximum(h, 0.0)
    ms = jnp.einsum('sbh,shk->sbk', h.astype(jnp.bfloat16), wms_ref[...],
                    preferred_element_type=jnp.float32) + bms_ref[...]
    mean = ms[:, :, :lat]
    std = _softplus(ms[:, :, lat:]) + 1e-6
    zz = mean + std * eps_ref[...]
    z1_ref[...] = zz[0].astype(z1_ref.dtype)
    z2_ref[...] = zz[1].astype(z2_ref.dtype)

    m1, m2 = mean[0], mean[1]
    v1 = std[0] * std[0] + var_eps
    v2 = std[1] * std[1] + var_eps
    kl12 = 0.5 * (jnp.log(v2) - jnp.log(v1)) + (v1 + (m1 - m2) ** 2) / (2.0 * v2) - 0.5
    kl21 = 0.5 * (jnp.log(v1) - jnp.log(v2)) + (v2 + (m2 - m1) ** 2) / (2.0 * v1) - 0.5
    skl_ref[...] = 0.5 * (jnp.mean(kl12, keepdims=True) + jnp.mean(kl21, keepdims=True))


def dist_skl(out_x, out_y, d1p, d2p, eps1, eps2):
    bsz = out_x.shape[0]
    lat = d1p["mean_w"].shape[1]
    hid = d1p["fc1_w"].shape[1]
    z_in = jnp.stack([out_x, out_y]).astype(jnp.float32)
    eps_in = jnp.stack([eps1, eps2]).astype(jnp.float32)
    w1 = jnp.stack([d1p["fc1_w"], d2p["fc1_w"]]).astype(jnp.bfloat16)
    b1 = jnp.stack([d1p["fc1_b"], d2p["fc1_b"]]).reshape(2, 1, hid).astype(jnp.float32)
    wms = jnp.stack([jnp.concatenate([d1p["mean_w"], d1p["std_w"]], axis=1),
                     jnp.concatenate([d2p["mean_w"], d2p["std_w"]], axis=1)]
                    ).astype(jnp.bfloat16)
    bms = jnp.stack([jnp.concatenate([d1p["mean_b"], d1p["std_b"]]),
                     jnp.concatenate([d2p["mean_b"], d2p["std_b"]])]
                    ).reshape(2, 1, 2 * lat).astype(jnp.float32)
    z1, z2, skl = pl.pallas_call(
        functools.partial(_dist_skl_kernel, lat=lat, var_eps=1e-8),
        out_shape=(jax.ShapeDtypeStruct((bsz, lat), jnp.float32),
                   jax.ShapeDtypeStruct((bsz, lat), jnp.float32),
                   jax.ShapeDtypeStruct((1, 1), jnp.float32)),
        compiler_params=pltpu.CompilerParams(vmem_limit_bytes=VMEM_LIMIT),
    )(z_in, eps_in, w1, b1, wms, bms)
    return z1, z2, skl[0, 0]


# ------------------------------ glue building blocks ------------------------
def maxpool1d_same(x):
    # MaxPool1d(kernel=3, stride=1, padding=1)
    xp = jnp.pad(x, ((0, 0), (1, 1), (0, 0)), constant_values=-jnp.inf)
    return jnp.maximum(jnp.maximum(xp[:, :-2], xp[:, 1:-1]), xp[:, 2:])


def inception_time(x, p):
    # TODO(synk): InceptionTime source not provided; single inception module
    # (bottleneck + 3 parallel convs + maxpool branch + BN + ReLU) stand-in.
    # BN folded into conv weights, the 3 parallel convs merged into one K=9
    # im2col matmul, bottleneck + maxpool-branch merged into one block-diagonal
    # matmul (2 MXU kernel calls for the whole CNN stage).
    # TODO(synk): im2col still materializes in HBM between the two matmuls;
    # acceptable at toy L=40, fold into the kernel with pl.ds at real L=1000.
    bx, length, cin = x.shape
    nf = INCEPTION_NF
    scale = p["bn_g"] * jax.lax.rsqrt(p["bn_var"] + 1e-5)
    shift = p["bn_b"] - p["bn_mean"] * scale

    # ---- stage 1: bottleneck (from x) + maxpool-branch conv (from mp(x)) ----
    mp = maxpool1d_same(x)
    a1 = jnp.concatenate([x, mp], axis=-1).reshape(bx * length, 2 * cin)
    wb = p["bottleneck_w"][0]                                  # (cin, nf)
    sc_mp = scale[3 * nf:4 * nf]
    wm = p["mp_w"][0] * sc_mp                                  # BN folded
    zeros = jnp.zeros((cin, nf), jnp.float32)
    w1 = jnp.concatenate([jnp.concatenate([wb, zeros], axis=1),
                          jnp.concatenate([zeros, wm], axis=1)], axis=0)
    b1 = jnp.concatenate([p["bottleneck_b"],
                          p["mp_b"] * sc_mp + shift[3 * nf:4 * nf]])
    s1 = matmul_bias_act(a1, w1, b1)                           # (B*L, 2*nf) bf16
    bott = s1[:, :nf].reshape(bx, length, nf)
    mp_bn = s1[:, nf:]

    # ---- stage 2: the 3 parallel convs merged into one K=9 matmul ----
    kmax = max(INCEPTION_KS)
    pad = kmax // 2
    bp = jnp.pad(bott, ((0, 0), (pad, pad), (0, 0)))
    cols = jnp.concatenate([bp[:, t:t + length, :] for t in range(kmax)],
                           axis=-1).reshape(bx * length, kmax * nf)
    ws, bs = [], []
    for i, k in enumerate(INCEPTION_KS):
        w = p[f"conv{i}_w"]                                    # (k, nf, nf)
        off = (kmax - k) // 2
        emb = jnp.zeros((kmax, nf, nf), jnp.float32).at[off:off + k].set(w)
        sc = scale[i * nf:(i + 1) * nf]
        ws.append(emb.reshape(kmax * nf, nf) * sc)
        bs.append(p[f"conv{i}_b"] * sc + shift[i * nf:(i + 1) * nf])
    w2 = jnp.concatenate(ws, axis=1)
    b2 = jnp.concatenate(bs)
    br_bn = matmul_bias_act(cols, w2, b2)                      # (B*L, 3*nf) bf16

    out = jnp.maximum(jnp.concatenate([br_bn, mp_bn], axis=-1), 0.0)
    return out.reshape(bx, length, 4 * nf)


def patch_tokens(x, vit_p):
    # Conv1d(kernel=stride=PATCH) == patch reshape + matmul; learnable pos
    # embedding added in the matmul epilogue (fused "add" operand).
    bx, length, c = x.shape
    n = length // PATCH
    d = vit_p["patch_w"].shape[1]
    cols = x.reshape(bx * n, PATCH * c)
    pos = jnp.broadcast_to(vit_p["pos_emb"], (bx, n, d)).reshape(bx * n, d)
    return matmul_bias_act(cols, vit_p["patch_w"], vit_p["patch_b"], add=pos)


def vit_tokens(x, vit_p, num_heads):
    bx = x.shape[0]
    n = x.shape[1] // PATCH
    d = vit_p["patch_w"].shape[1]
    hid = vit_p["blocks"][0]["mlp"]["fc1_w"].shape[1]
    depth = len(vit_p["blocks"])
    tok = patch_tokens(x, vit_p)                               # (B*N, D) bf16
    stacked = _stack_vit_blocks(vit_p["blocks"], d, hid)
    return vit_blocks(tok, stacked, num_heads, bx, n, d, hid, depth)


def multi_encoder_forward(params, x, y, eps1, eps2):
    x = jnp.transpose(x, (0, 2, 1))          # NCL -> NLC
    y = jnp.transpose(y, (0, 2, 1))
    # view1: InceptionTime CNN -> ViT(embed=ODER_DIM)
    feat = inception_time(x, params["inception"])
    tok_x = vit_tokens(feat, params["view1_vit"], V1_HEADS)    # (B*N, 128) bf16
    # view2: ViT(embed=V2_EMBED)
    tok_y = vit_tokens(y, params["view2_vit"], V2_HEADS)       # (B*N, 64) bf16
    # fused: mean-pool + fc_norm (both) + view2 fc + CrossView block(s)
    out_x, out_y = cross_tail(tok_x, tok_y, params, B, N_TOKENS)
    # fused: both dist heads + reparameterization + symmetric KL
    return dist_skl(out_x, out_y, params["dist1"], params["dist2"], eps1, eps2)


# ------------------------------ parameter init ------------------------------
class KeyGen:
    def __init__(self, seed):
        self._key = jax.random.PRNGKey(seed)

    def __call__(self):
        self._key, sub = jax.random.split(self._key)
        return sub


def _dense(kg, din, dout):
    return 0.02 * jax.random.normal(kg(), (din, dout), jnp.float32), jnp.zeros((dout,), jnp.float32)


def _ln_p(dim):
    return jnp.ones((dim,), jnp.float32), jnp.zeros((dim,), jnp.float32)


def _attn_params(kg, dim):
    qkv_w, qkv_b = _dense(kg, dim, 3 * dim)
    proj_w, proj_b = _dense(kg, dim, dim)
    return {"qkv_w": qkv_w, "qkv_b": qkv_b, "proj_w": proj_w, "proj_b": proj_b}


def _mlp_params(kg, dim, ratio):
    hid = int(dim * ratio)
    fc1_w, fc1_b = _dense(kg, dim, hid)
    fc2_w, fc2_b = _dense(kg, hid, dim)
    return {"fc1_w": fc1_w, "fc1_b": fc1_b, "fc2_w": fc2_w, "fc2_b": fc2_b}


def _vit_block_params(kg, dim, ratio):
    g1, b1 = _ln_p(dim)
    g2, b2 = _ln_p(dim)
    return {"ln1_g": g1, "ln1_b": b1, "attn": _attn_params(kg, dim),
            "ln2_g": g2, "ln2_b": b2, "mlp": _mlp_params(kg, dim, ratio)}


def _vit_params(kg, in_c, dim, depth, ratio):
    pw, pb = _dense(kg, PATCH * in_c, dim)
    fg, fb = _ln_p(dim)
    return {
        "patch_w": pw, "patch_b": pb,
        "pos_emb": 0.02 * jax.random.normal(kg(), (1, N_TOKENS, dim), jnp.float32),
        "blocks": [_vit_block_params(kg, dim, ratio) for _ in range(depth)],
        "fc_norm_g": fg, "fc_norm_b": fb,
    }


def _inception_params(kg):
    nf = INCEPTION_NF
    p = {}
    p["bottleneck_w"] = 0.02 * jax.random.normal(kg(), (1, IN_C, nf), jnp.float32)
    p["bottleneck_b"] = jnp.zeros((nf,), jnp.float32)
    for i, k in enumerate(INCEPTION_KS):
        p[f"conv{i}_w"] = 0.02 * jax.random.normal(kg(), (k, nf, nf), jnp.float32)
        p[f"conv{i}_b"] = jnp.zeros((nf,), jnp.float32)
    p["mp_w"] = 0.02 * jax.random.normal(kg(), (1, IN_C, nf), jnp.float32)
    p["mp_b"] = jnp.zeros((nf,), jnp.float32)
    p["bn_mean"] = jnp.zeros((CNN_OUT_C,), jnp.float32)
    p["bn_var"] = jnp.ones((CNN_OUT_C,), jnp.float32)
    p["bn_g"] = jnp.ones((CNN_OUT_C,), jnp.float32)
    p["bn_b"] = jnp.zeros((CNN_OUT_C,), jnp.float32)
    return p


def _cross_attn_params(kg, dim):
    # q/k projections are kept for structural fidelity but have no effect on a
    # single-token cross-attention (softmax over one key == 1), so the fused
    # kernel only consumes v/proj.
    qw, qb = _dense(kg, dim, dim)
    kw, kb = _dense(kg, dim, dim)
    vw, vb = _dense(kg, dim, dim)
    pw, pb = _dense(kg, dim, dim)
    return {"q_w": qw, "q_b": qb, "k_w": kw, "k_b": kb, "v_w": vw, "v_b": vb,
            "proj_w": pw, "proj_b": pb}


def _cross_block_params(kg, dim, ratio):
    gx, bx = _ln_p(dim); gy, by = _ln_p(dim); gx2, bx2 = _ln_p(dim); gy2, by2 = _ln_p(dim)
    return {"lnx_g": gx, "lnx_b": bx, "lny_g": gy, "lny_b": by,
            "attn_xy": _cross_attn_params(kg, dim), "attn_yx": _cross_attn_params(kg, dim),
            "lnx2_g": gx2, "lnx2_b": bx2, "lny2_g": gy2, "lny2_b": by2,
            "mlp_x": _mlp_params(kg, dim, ratio), "mlp_y": _mlp_params(kg, dim, ratio)}


def _dist_params(kg, din, hidden, dout):
    fw, fb = _dense(kg, din, hidden)
    mw, mb = _dense(kg, hidden, dout)
    sw, sb = _dense(kg, hidden, dout)
    return {"fc1_w": fw, "fc1_b": fb, "mean_w": mw, "mean_b": mb, "std_w": sw, "std_b": sb}


def init_params(seed=0):
    kg = KeyGen(seed)
    v2fc_w, v2fc_b = _dense(kg, V2_EMBED, ODER_DIM)
    return {
        "inception": _inception_params(kg),
        "view1_vit": _vit_params(kg, CNN_OUT_C, ODER_DIM, V1_DEPTH, MLP_RATIO),
        "view2_vit": _vit_params(kg, IN_C, V2_EMBED, V2_DEPTH, MLP_RATIO),
        "view2_fc_w": v2fc_w, "view2_fc_b": v2fc_b,
        "cross": {"blocks": [_cross_block_params(kg, ODER_DIM, CV_MLP_RATIO)
                             for _ in range(CV_DEPTH)]},
        "dist1": _dist_params(kg, ODER_DIM, ODER_DIM, LATENT),
        "dist2": _dist_params(kg, ODER_DIM, ODER_DIM, LATENT),
    }


# ----------------------------------- main ------------------------------------
if __name__ == "__main__":
    params = init_params(seed=0)

    key = jax.random.PRNGKey(0)
    kx, ky, ke1, ke2 = jax.random.split(key, 4)
    x = jax.random.normal(kx, (B, IN_C, SIG_LEN), jnp.float32)   # PyTorch NCL layout
    y = jax.random.normal(ky, (B, IN_C, SIG_LEN), jnp.float32)
    eps1 = jax.random.normal(ke1, (B, LATENT), jnp.float32)      # reparam noise (deterministic)
    eps2 = jax.random.normal(ke2, (B, LATENT), jnp.float32)

    fwd = jax.jit(multi_encoder_forward)
    out_x, out_y, skl = fwd(params, x, y, eps1, eps2)
    jax.block_until_ready((out_x, out_y, skl))

    assert out_x.shape == (B, LATENT)
    assert out_y.shape == (B, LATENT)
    assert skl.shape == ()
    assert jnp.all(jnp.isfinite(out_x)) and jnp.all(jnp.isfinite(out_y)) and jnp.isfinite(skl)
    print("KERNEL_OK")
</pallas_src>

<mosaic_0001>
module attributes {stable_mosaic.version = 11 : i64} {
  func.func @_mm_kernel(%arg0: i32, %arg1: i32, %arg2: i32, %arg3: memref<80x8xbf16, #tpu.memory_space<vmem>>, %arg4: memref<8x16xbf16, #tpu.memory_space<vmem>>, %arg5: memref<1x16xf32, #tpu.memory_space<vmem>>, %arg6: memref<80x16xbf16, #tpu.memory_space<vmem>>, %arg7: memref<80x16xf32, #tpu.memory_space<vmem>>) attributes {dimension_semantics = [#tpu.dimension_semantics<parallel>, #tpu.dimension_semantics<parallel>, #tpu.dimension_semantics<arbitrary>], iteration_bounds = array<i64: 1, 1, 1>, scalar_prefetch = 0 : i64, scratch_operands = 1 : i64, tpu.core_type = #tpu.core_type<tc>, window_params = [{transform_indices = @transform_0, window_bounds = array<i64: 80, 8>}, {transform_indices = @transform_1, window_bounds = array<i64: 8, 16>}, {transform_indices = @transform_2, window_bounds = array<i64: 1, 16>}, {transform_indices = @transform_3, window_bounds = array<i64: 80, 16>}]} {
    %c0_i32 = arith.constant 0 : i32
    %0 = arith.cmpi eq, %arg2, %c0_i32 : i32
    %1 = arith.extui %0 : i1 to i32
    %c0_i32_0 = arith.constant 0 : i32
    %2 = arith.cmpi ne, %1, %c0_i32_0 : i32
    scf.if %2 {
      %cst_10 = arith.constant 0.000000e+00 : f32
      %12 = vector.broadcast %cst_10 : f32 to vector<80x16xf32>
      %c0_11 = arith.constant 0 : index
      %c0_12 = arith.constant 0 : index
      %13 = vector.load %arg7[%c0_11, %c0_12] : memref<80x16xf32, #tpu.memory_space<vmem>>, vector<80x16xf32>
      tpu.vector_store %arg7[%c0_11, %c0_12], %12 {strides = array<i32>} : memref<80x16xf32, #tpu.memory_space<vmem>>, vector<80x16xf32>,
    } else {
    }
    %c0 = arith.constant 0 : index
    %c0_1 = arith.constant 0 : index
    %3 = vector.load %arg7[%c0, %c0_1] : memref<80x16xf32, #tpu.memory_space<vmem>>, vector<80x16xf32>
    %c0_2 = arith.constant 0 : index
    %c0_3 = arith.constant 0 : index
    %4 = vector.load %arg3[%c0_2, %c0_3] : memref<80x8xbf16, #tpu.memory_space<vmem>>, vector<80x8xbf16>
    %c0_4 = arith.constant 0 : index
    %c0_5 = arith.constant 0 : index
    %5 = vector.load %arg4[%c0_4, %c0_5] : memref<8x16xbf16, #tpu.memory_space<vmem>>, vector<8x16xbf16>
    %cst = arith.constant dense<0.000000e+00> : vector<80x16xf32>
    %6 = tpu.matmul %4, %5, %cst {dimension_numbers = #tpu.dot_dimension_numbers<[1], [0], [0], [1], [0, 0, 1, 1], [], []>} : vector<80x8xbf16>, vector<8x16xbf16>, vector<80x16xf32> -> vector<80x16xf32>
    %7 = arith.addf %3, %6 : vector<80x16xf32>
    %c0_6 = arith.constant 0 : index
    %c0_7 = arith.constant 0 : index
    %8 = vector.load %arg7[%c0_6, %c0_7] : memref<80x16xf32, #tpu.memory_space<vmem>>, vector<80x16xf32>
    tpu.vector_store %arg7[%c0_6, %c0_7], %7 {strides = array<i32>} : memref<80x16xf32, #tpu.memory_space<vmem>>, vector<80x16xf32>,
    %c0_i32_8 = arith.constant 0 : i32
    %9 = arith.cmpi eq, %arg2, %c0_i32_8 : i32
    %10 = arith.extui %9 : i1 to i32
    %c0_i32_9 = arith.constant 0 : i32
    %11 = arith.cmpi ne, %10, %c0_i32_9 : i32
    scf.if %11 {
      %c0_10 = arith.constant 0 : index
      %c0_11 = arith.constant 0 : index
      %12 = vector.load %arg7[%c0_10, %c0_11] : memref<80x16xf32, #tpu.memory_space<vmem>>, vector<80x16xf32>
      %c0_12 = arith.constant 0 : index
      %c0_13 = arith.constant 0 : index
      %13 = vector.load %arg5[%c0_12, %c0_13] : memref<1x16xf32, #tpu.memory_space<vmem>>, vector<1x16xf32>
      %14 = vector.broadcast %13 : vector<1x16xf32> to vector<80x16xf32>
      %15 = arith.addf %12, %14 : vector<80x16xf32>
      %16 = arith.truncf %15 : vector<80x16xf32> to vector<80x16xbf16>
      %c0_14 = arith.constant 0 : index
      %c0_15 = arith.constant 0 : index
      %17 = vector.load %arg6[%c0_14, %c0_15] : memref<80x16xbf16, #tpu.memory_space<vmem>>, vector<80x16xbf16>
      tpu.vector_store %arg6[%c0_14, %c0_15], %16 {strides = array<i32>} : memref<80x16xbf16, #tpu.memory_space<vmem>>, vector<80x16xbf16>,
    } else {
    }
    return
  }
  func.func @transform_0(%arg0: i32, %arg1: i32, %arg2: i32) -> (i32, i32) {
    %c0_i32 = arith.constant 0 : i32
    return %arg0, %arg2 : i32, i32
  }
  func.func @transform_1(%arg0: i32, %arg1: i32, %arg2: i32) -> (i32, i32) {
    %c0_i32 = arith.constant 0 : i32
    return %arg2, %arg1 : i32, i32
  }
  func.func @transform_2(%arg0: i32, %arg1: i32, %arg2: i32) -> (i32, i32) {
    %c0_i32 = arith.constant 0 : i32
    %c0_i32_0 = arith.constant 0 : i32
    return %c0_i32, %arg1 : i32, i32
  }
  func.func @transform_3(%arg0: i32, %arg1: i32, %arg2: i32) -> (i32, i32) {
    %c0_i32 = arith.constant 0 : i32
    return %arg0, %arg1 : i32, i32
  }
}

module attributes {stable_mosaic.version = 11 : i64} {
  func.func @_mm_kernel(%arg0: i32, %arg1: i32, %arg2: i32, %arg3: memref<80x72xbf16, #tpu.memory_space<vmem>>, %arg4: memref<72x24xbf16, #tpu.memory_space<vmem>>, %arg5: memref<1x24xf32, #tpu.memory_space<vmem>>, %arg6: memref<80x24xbf16, #tpu.memory_space<vmem>>, %arg7: memref<80x24xf32, #tpu.memory_space<vmem>>) attributes {dimension_semantics = [#tpu.dimension_semantics<parallel>, #tpu.dimension_semantics<parallel>, #tpu.dimension_semantics<arbitrary>], iteration_bounds = array<i64: 1, 1, 1>, scalar_prefetch = 0 : i64, scratch_operands = 1 : i64, tpu.core_type = #tpu.core_type<tc>, window_params = [{transform_indices = @transform_0, window_bounds = array<i64: 80, 72>}, {transform_indices = @transform_1, window_bounds = array<i64: 72, 24>}, {transform_indices = @transform_2, window_bounds = array<i64: 1, 24>}, {transform_indices = @transform_3, window_bounds = array<i64: 80, 24>}]} {
    %c0_i32 = arith.constant 0 : i32
    %0 = arith.cmpi eq, %arg2, %c0_i32 : i32
    %1 = arith.extui %0 : i1 to i32
    %c0_i32_0 = arith.constant 0 : i32
    %2 = arith.cmpi ne, %1, %c0_i32_0 : i32
    scf.if %2 {
      %cst_10 = arith.constant 0.000000e+00 : f32
      %12 = vector.broadcast %cst_10 : f32 to vector<80x24xf32>
      %c0_11 = arith.constant 0 : index
      %c0_12 = arith.constant 0 : index
      %13 = vector.load %arg7[%c0_11, %c0_12] : memref<80x24xf32, #tpu.memory_space<vmem>>, vector<80x24xf32>
      tpu.vector_store %arg7[%c0_11, %c0_12], %12 {strides = array<i32>} : memref<80x24xf32, #tpu.memory_space<vmem>>, vector<80x24xf32>,
    } else {
    }
    %c0 = arith.constant 0 : index
    %c0_1 = arith.constant 0 : index
    %3 = vector.load %arg7[%c0, %c0_1] : memref<80x24xf32, #tpu.memory_space<vmem>>, vector<80x24xf32>
    %c0_2 = arith.constant 0 : index
    %c0_3 = arith.constant 0 : index
    %4 = vector.load %arg3[%c0_2, %c0_3] : memref<80x72xbf16, #tpu.memory_space<vmem>>, vector<80x72xbf16>
    %c0_4 = arith.constant 0 : index
    %c0_5 = arith.constant 0 : index
    %5 = vector.load %arg4[%c0_4, %c0_5] : memref<72x24xbf16, #tpu.memory_space<vmem>>, vector<72x24xbf16>
    %cst = arith.constant dense<0.000000e+00> : vector<80x24xf32>
    %6 = tpu.matmul %4, %5, %cst {dimension_numbers = #tpu.dot_dimension_numbers<[1], [0], [0], [1], [0, 0, 1, 1], [], []>} : vector<80x72xbf16>, vector<72x24xbf16>, vector<80x24xf32> -> vector<80x24xf32>
    %7 = arith.addf %3, %6 : vector<80x24xf32>
    %c0_6 = arith.constant 0 : index
    %c0_7 = arith.constant 0 : index
    %8 = vector.load %arg7[%c0_6, %c0_7] : memref<80x24xf32, #tpu.memory_space<vmem>>, vector<80x24xf32>
    tpu.vector_store %arg7[%c0_6, %c0_7], %7 {strides = array<i32>} : memref<80x24xf32, #tpu.memory_space<vmem>>, vector<80x24xf32>,
    %c0_i32_8 = arith.constant 0 : i32
    %9 = arith.cmpi eq, %arg2, %c0_i32_8 : i32
    %10 = arith.extui %9 : i1 to i32
    %c0_i32_9 = arith.constant 0 : i32
    %11 = arith.cmpi ne, %10, %c0_i32_9 : i32
    scf.if %11 {
      %c0_10 = arith.constant 0 : index
      %c0_11 = arith.constant 0 : index
      %12 = vector.load %arg7[%c0_10, %c0_11] : memref<80x24xf32, #tpu.memory_space<vmem>>, vector<80x24xf32>
      %c0_12 = arith.constant 0 : index
      %c0_13 = arith.constant 0 : index
      %13 = vector.load %arg5[%c0_12, %c0_13] : memref<1x24xf32, #tpu.memory_space<vmem>>, vector<1x24xf32>
      %14 = vector.broadcast %13 : vector<1x24xf32> to vector<80x24xf32>
      %15 = arith.addf %12, %14 : vector<80x24xf32>
      %16 = arith.truncf %15 : vector<80x24xf32> to vector<80x24xbf16>
      %c0_14 = arith.constant 0 : index
      %c0_15 = arith.constant 0 : index
      %17 = vector.load %arg6[%c0_14, %c0_15] : memref<80x24xbf16, #tpu.memory_space<vmem>>, vector<80x24xbf16>
      tpu.vector_store %arg6[%c0_14, %c0_15], %16 {strides = array<i32>} : memref<80x24xbf16, #tpu.memory_space<vmem>>, vector<80x24xbf16>,
    } else {
    }
    return
  }
  func.func @transform_0(%arg0: i32, %arg1: i32, %arg2: i32) -> (i32, i32) {
    %c0_i32 = arith.constant 0 : i32
    return %arg0, %arg2 : i32, i32
  }
  func.func @transform_1(%arg0: i32, %arg1: i32, %arg2: i32) -> (i32, i32) {
    %c0_i32 = arith.constant 0 : i32
    return %arg2, %arg1 : i32, i32
  }
  func.func @transform_2(%arg0: i32, %arg1: i32, %arg2: i32) -> (i32, i32) {
    %c0_i32 = arith.constant 0 : i32
    %c0_i32_0 = arith.constant 0 : i32
    return %c0_i32, %arg1 : i32, i32
  }
  func.func @transform_3(%arg0: i32, %arg1: i32, %arg2: i32) -> (i32, i32) {
    %c0_i32 = arith.constant 0 : i32
    return %arg0, %arg1 : i32, i32
  }
}

module attributes {stable_mosaic.version = 11 : i64} {
  func.func @_mm_kernel(%arg0: i32, %arg1: i32, %arg2: i32, %arg3: memref<8x320xbf16, #tpu.memory_space<vmem>>, %arg4: memref<320x128xbf16, #tpu.memory_space<vmem>>, %arg5: memref<1x128xf32, #tpu.memory_space<vmem>>, %arg6: memref<8x128xbf16, #tpu.memory_space<vmem>>, %arg7: memref<8x128xbf16, #tpu.memory_space<vmem>>, %arg8: memref<8x128xf32, #tpu.memory_space<vmem>>) attributes {dimension_semantics = [#tpu.dimension_semantics<parallel>, #tpu.dimension_semantics<parallel>, #tpu.dimension_semantics<arbitrary>], iteration_bounds = array<i64: 1, 1, 1>, scalar_prefetch = 0 : i64, scratch_operands = 1 : i64, tpu.core_type = #tpu.core_type<tc>, window_params = [{transform_indices = @transform_0, window_bounds = array<i64: 8, 320>}, {transform_indices = @transform_1, window_bounds = array<i64: 320, 128>}, {transform_indices = @transform_2, window_bounds = array<i64: 1, 128>}, {transform_indices = @transform_3, window_bounds = array<i64: 8, 128>}, {transform_indices = @transform_4, window_bounds = array<i64: 8, 128>}]} {
    %c0_i32 = arith.constant 0 : i32
    %0 = arith.cmpi eq, %arg2, %c0_i32 : i32
    %1 = arith.extui %0 : i1 to i32
    %c0_i32_0 = arith.constant 0 : i32
    %2 = arith.cmpi ne, %1, %c0_i32_0 : i32
    scf.if %2 {
      %cst_10 = arith.constant 0.000000e+00 : f32
      %12 = vector.broadcast %cst_10 : f32 to vector<8x128xf32>
      %c0_11 = arith.constant 0 : index
      %c0_12 = arith.constant 0 : index
      %13 = vector.load %arg8[%c0_11, %c0_12] : memref<8x128xf32, #tpu.memory_space<vmem>>, vector<8x128xf32>
      tpu.vector_store %arg8[%c0_11, %c0_12], %12 {strides = array<i32>} : memref<8x128xf32, #tpu.memory_space<vmem>>, vector<8x128xf32>,
    } else {
    }
    %c0 = arith.constant 0 : index
    %c0_1 = arith.constant 0 : index
    %3 = vector.load %arg8[%c0, %c0_1] : memref<8x128xf32, #tpu.memory_space<vmem>>, vector<8x128xf32>
    %c0_2 = arith.constant 0 : index
    %c0_3 = arith.constant 0 : index
    %4 = vector.load %arg3[%c0_2, %c0_3] : memref<8x320xbf16, #tpu.memory_space<vmem>>, vector<8x320xbf16>
    %c0_4 = arith.constant 0 : index
    %c0_5 = arith.constant 0 : index
    %5 = vector.load %arg4[%c0_4, %c0_5] : memref<320x128xbf16, #tpu.memory_space<vmem>>, vector<320x128xbf16>
    %cst = arith.constant dense<0.000000e+00> : vector<8x128xf32>
    %6 = tpu.matmul %4, %5, %cst {dimension_numbers = #tpu.dot_dimension_numbers<[1], [0], [0], [1], [0, 0, 1, 1], [], []>} : vector<8x320xbf16>, vector<320x128xbf16>, vector<8x128xf32> -> vector<8x128xf32>
    %7 = arith.addf %3, %6 : vector<8x128xf32>
    %c0_6 = arith.constant 0 : index
    %c0_7 = arith.constant 0 : index
    %8 = vector.load %arg8[%c0_6, %c0_7] : memref<8x128xf32, #tpu.memory_space<vmem>>, vector<8x128xf32>
    tpu.vector_store %arg8[%c0_6, %c0_7], %7 {strides = array<i32>} : memref<8x128xf32, #tpu.memory_space<vmem>>, vector<8x128xf32>,
    %c0_i32_8 = arith.constant 0 : i32
    %9 = arith.cmpi eq, %arg2, %c0_i32_8 : i32
    %10 = arith.extui %9 : i1 to i32
    %c0_i32_9 = arith.constant 0 : i32
    %11 = arith.cmpi ne, %10, %c0_i32_9 : i32
    scf.if %11 {
      %c0_10 = arith.constant 0 : index
      %c0_11 = arith.constant 0 : index
      %12 = vector.load %arg8[%c0_10, %c0_11] : memref<8x128xf32, #tpu.memory_space<vmem>>, vector<8x128xf32>
      %c0_12 = arith.constant 0 : index
      %c0_13 = arith.constant 0 : index
      %13 = vector.load %arg5[%c0_12, %c0_13] : memref<1x128xf32, #tpu.memory_space<vmem>>, vector<1x128xf32>
      %14 = vector.broadcast %13 : vector<1x128xf32> to vector<8x128xf32>
      %15 = arith.addf %12, %14 : vector<8x128xf32>
      %c0_14 = arith.constant 0 : index
      %c0_15 = arith.constant 0 : index
      %16 = vector.load %arg6[%c0_14, %c0_15] : memref<8x128xbf16, #tpu.memory_space<vmem>>, vector<8x128xbf16>
      %17 = arith.extf %16 : vector<8x128xbf16> to vector<8x128xf32>
      %18 = arith.addf %15, %17 : vector<8x128xf32>
      %19 = arith.truncf %18 : vector<8x128xf32> to vector<8x128xbf16>
      %c0_16 = arith.constant 0 : index
      %c0_17 = arith.constant 0 : index
      %20 = vector.load %arg7[%c0_16, %c0_17] : memref<8x128xbf16, #tpu.memory_space<vmem>>, vector<8x128xbf16>
      tpu.vector_store %arg7[%c0_16, %c0_17], %19 {strides = array<i32>} : memref<8x128xbf16, #tpu.memory_space<vmem>>, vector<8x128xbf16>,
    } else {
    }
    return
  }
  func.func @transform_0(%arg0: i32, %arg1: i32, %arg2: i32) -> (i32, i32) {
    %c0_i32 = arith.constant 0 : i32
    return %arg0, %arg2 : i32, i32
  }
  func.func @transform_1(%arg0: i32, %arg1: i32, %arg2: i32) -> (i32, i32) {
    %c0_i32 = arith.constant 0 : i32
    return %arg2, %arg1 : i32, i32
  }
  func.func @transform_2(%arg0: i32, %arg1: i32, %arg2: i32) -> (i32, i32) {
    %c0_i32 = arith.constant 0 : i32
    %c0_i32_0 = arith.constant 0 : i32
    return %c0_i32, %arg1 : i32, i32
  }
  func.func @transform_3(%arg0: i32, %arg1: i32, %arg2: i32) -> (i32, i32) {
    %c0_i32 = arith.constant 0 : i32
    return %arg0, %arg1 : i32, i32
  }
  func.func @transform_4(%arg0: i32, %arg1: i32, %arg2: i32) -> (i32, i32) {
    %c0_i32 = arith.constant 0 : i32
    return %arg0, %arg1 : i32, i32
  }
}

module attributes {stable_mosaic.version = 11 : i64} {
  func.func @_vit_blocks_kernel(%arg0: i32, %arg1: memref<8x128xbf16, #tpu.memory_space<vmem>>, %arg2: memref<1x128x384xbf16, #tpu.memory_space<vmem>>, %arg3: memref<1x128x128xbf16, #tpu.memory_space<vmem>>, %arg4: memref<1x128x512xbf16, #tpu.memory_space<vmem>>, %arg5: memref<1x512x128xbf16, #tpu.memory_space<vmem>>, %arg6: memref<1x9x128xf32, #tpu.memory_space<vmem>>, %arg7: memref<1x1x512xf32, #tpu.memory_space<vmem>>, %arg8: memref<8x128xbf16, #tpu.memory_space<vmem>>) attributes {dimension_semantics = [#tpu.dimension_semantics<arbitrary>], iteration_bounds = array<i64: 2>, scalar_prefetch = 0 : i64, scratch_operands = 0 : i64, tpu.core_type = #tpu.core_type<tc>, window_params = [{pipeline_mode = #tpu.pipeline_mode<synchronous>, transform_indices = @transform_0, window_bounds = array<i64: 8, 128>}, {transform_indices = @transform_1, window_bounds = array<i64: 1, 128, 384>}, {transform_indices = @transform_2, window_bounds = array<i64: 1, 128, 128>}, {transform_indices = @transform_3, window_bounds = array<i64: 1, 128, 512>}, {transform_indices = @transform_4, window_bounds = array<i64: 1, 512, 128>}, {transform_indices = @transform_5, window_bounds = array<i64: 1, 9, 128>}, {transform_indices = @transform_6, window_bounds = array<i64: 1, 1, 512>}, {pipeline_mode = #tpu.pipeline_mode<synchronous>, transform_indices = @transform_7, window_bounds = array<i64: 8, 128>}]} {
    %c0_i32 = arith.constant 0 : i32
    %0 = arith.cmpi eq, %arg0, %c0_i32 : i32
    %1 = arith.extui %0 : i1 to i32
    %c0_i32_0 = arith.constant 0 : i32
    %2 = arith.cmpi ne, %1, %c0_i32_0 : i32
    scf.if %2 {
      %c0_79 = arith.constant 0 : index
      %c0_80 = arith.constant 0 : index
      %283 = vector.load %arg1[%c0_79, %c0_80] : memref<8x128xbf16, #tpu.memory_space<vmem>>, vector<8x128xbf16>
      %c0_81 = arith.constant 0 : index
      %c0_82 = arith.constant 0 : index
      %284 = vector.load %arg8[%c0_81, %c0_82] : memref<8x128xbf16, #tpu.memory_space<vmem>>, vector<8x128xbf16>
      tpu.vector_store %arg8[%c0_81, %c0_82], %283 {strides = array<i32>} : memref<8x128xbf16, #tpu.memory_space<vmem>>, vector<8x128xbf16>,
    } else {
    }
    %c0 = arith.constant 0 : index
    %c0_1 = arith.constant 0 : index
    %3 = vector.load %arg8[%c0, %c0_1] : memref<8x128xbf16, #tpu.memory_space<vmem>>, vector<8x128xbf16>
    %4 = arith.extf %3 : vector<8x128xbf16> to vector<8x128xf32>
    %c0_2 = arith.constant 0 : index
    %c0_3 = arith.constant 0 : index
    %c0_4 = arith.constant 0 : index
    %5 = vector.load %arg6[%c0_2, %c0_3, %c0_4] : memref<1x9x128xf32, #tpu.memory_space<vmem>>, vector<1x9x128xf32>
    %6 = vector.shape_cast %5 : vector<1x9x128xf32> to vector<9x128xf32>
    %c0_5 = arith.constant 0 : index
    %c0_6 = arith.constant 0 : index
    %c0_7 = arith.constant 0 : index
    %7 = vector.load %arg7[%c0_5, %c0_6, %c0_7] : memref<1x1x512xf32, #tpu.memory_space<vmem>>, vector<1x1x512xf32>
    %8 = vector.shape_cast %7 : vector<1x1x512xf32> to vector<1x512xf32>
    %9 = vector.extract_strided_slice %6 {offsets = [0, 0], sizes = [1, 128], strides = [1, 1]} : vector<9x128xf32> to vector<1x128xf32>
    %10 = vector.extract_strided_slice %6 {offsets = [1, 0], sizes = [1, 128], strides = [1, 1]} : vector<9x128xf32> to vector<1x128xf32>
    %cst = arith.constant dense<0.000000e+00> : vector<8xf32>
    %11 = vector.multi_reduction <add>, %4, %cst [1] : vector<8x128xf32> to vector<8xf32>
    %12 = vector.shape_cast %11 : vector<8xf32> to vector<8x1xf32>
    %cst_8 = arith.constant 1.280000e+02 : f32
    %13 = vector.broadcast %cst_8 : f32 to vector<8x1xf32>
    %14 = arith.divf %12, %13 : vector<8x1xf32>
    %15 = vector.broadcast %14 : vector<8x1xf32> to vector<8x128xf32>
    %16 = arith.subf %4, %15 : vector<8x128xf32>
    %17 = arith.mulf %16, %16 : vector<8x128xf32>
    %cst_9 = arith.constant dense<0.000000e+00> : vector<8xf32>
    %18 = vector.multi_reduction <add>, %17, %cst_9 [1] : vector<8x128xf32> to vector<8xf32>
    %19 = vector.shape_cast %18 : vector<8xf32> to vector<8x1xf32>
    %cst_10 = arith.constant 1.280000e+02 : f32
    %20 = vector.broadcast %cst_10 : f32 to vector<8x1xf32>
    %21 = arith.divf %19, %20 : vector<8x1xf32>
    %22 = vector.broadcast %14 : vector<8x1xf32> to vector<8x128xf32>
    %23 = arith.subf %4, %22 : vector<8x128xf32>
    %cst_11 = arith.constant 9.99999974E-6 : f32
    %24 = vector.broadcast %cst_11 : f32 to vector<8x1xf32>
    %25 = arith.addf %21, %24 : vector<8x1xf32>
    %26 = math.rsqrt %25 : vector<8x1xf32>
    %27 = vector.broadcast %26 : vector<8x1xf32> to vector<8x128xf32>
    %28 = arith.mulf %23, %27 : vector<8x128xf32>
    %29 = vector.broadcast %9 : vector<1x128xf32> to vector<8x128xf32>
    %30 = arith.mulf %28, %29 : vector<8x128xf32>
    %31 = vector.broadcast %10 : vector<1x128xf32> to vector<8x128xf32>
    %32 = arith.addf %30, %31 : vector<8x128xf32>
    %33 = arith.truncf %32 : vector<8x128xf32> to vector<8x128xbf16>
    %c0_12 = arith.constant 0 : index
    %c0_13 = arith.constant 0 : index
    %c0_14 = arith.constant 0 : index
    %34 = vector.load %arg2[%c0_12, %c0_13, %c0_14] : memref<1x128x384xbf16, #tpu.memory_space<vmem>>, vector<1x128x384xbf16>
    %35 = vector.shape_cast %34 : vector<1x128x384xbf16> to vector<128x384xbf16>
    %cst_15 = arith.constant dense<0.000000e+00> : vector<8x384xf32>
    %36 = tpu.matmul %33, %35, %cst_15 {dimension_numbers = #tpu.dot_dimension_numbers<[1], [0], [0], [1], [0, 0, 1, 1], [], []>} : vector<8x128xbf16>, vector<128x384xbf16>, vector<8x384xf32> -> vector<8x384xf32>
    %37 = vector.extract_strided_slice %36 {offsets = [0, 0], sizes = [8, 128], strides = [1, 1]} : vector<8x384xf32> to vector<8x128xf32>
    %38 = vector.extract_strided_slice %6 {offsets = [4, 0], sizes = [1, 128], strides = [1, 1]} : vector<9x128xf32> to vector<1x128xf32>
    %39 = vector.broadcast %38 : vector<1x128xf32> to vector<8x128xf32>
    %40 = arith.addf %37, %39 : vector<8x128xf32>
    %41 = vector.shape_cast %40 : vector<8x128xf32> to vector<2x4x128xf32>
    %42 = vector.extract_strided_slice %36 {offsets = [0, 128], sizes = [8, 128], strides = [1, 1]} : vector<8x384xf32> to vector<8x128xf32>
    %43 = vector.extract_strided_slice %6 {offsets = [5, 0], sizes = [1, 128], strides = [1, 1]} : vector<9x128xf32> to vector<1x128xf32>
    %44 = vector.broadcast %43 : vector<1x128xf32> to vector<8x128xf32>
    %45 = arith.addf %42, %44 : vector<8x128xf32>
    %46 = vector.shape_cast %45 : vector<8x128xf32> to vector<2x4x128xf32>
    %47 = vector.extract_strided_slice %36 {offsets = [0, 256], sizes = [8, 128], strides = [1, 1]} : vector<8x384xf32> to vector<8x128xf32>
    %48 = vector.extract_strided_slice %6 {offsets = [6, 0], sizes = [1, 128], strides = [1, 1]} : vector<9x128xf32> to vector<1x128xf32>
    %49 = vector.broadcast %48 : vector<1x128xf32> to vector<8x128xf32>
    %50 = arith.addf %47, %49 : vector<8x128xf32>
    %51 = vector.shape_cast %50 : vector<8x128xf32> to vector<2x4x128xf32>
    %52 = vector.extract_strided_slice %41 {offsets = [0, 0, 0], sizes = [2, 4, 16], strides = [1, 1, 1]} : vector<2x4x128xf32> to vector<2x4x16xf32>
    %53 = arith.truncf %52 : vector<2x4x16xf32> to vector<2x4x16xbf16>
    %54 = vector.extract_strided_slice %46 {offsets = [0, 0, 0], sizes = [2, 4, 16], strides = [1, 1, 1]} : vector<2x4x128xf32> to vector<2x4x16xf32>
    %55 = arith.truncf %54 : vector<2x4x16xf32> to vector<2x4x16xbf16>
    %56 = vector.extract_strided_slice %51 {offsets = [0, 0, 0], sizes = [2, 4, 16], strides = [1, 1, 1]} : vector<2x4x128xf32> to vector<2x4x16xf32>
    %57 = arith.truncf %56 : vector<2x4x16xf32> to vector<2x4x16xbf16>
    "tpu.trace_start"() <{level = 10 : i32, message = "bqd,bkd->bqk"}> : () -> ()
    %cst_16 = arith.constant dense<0.000000e+00> : vector<2x4x4xf32>
    %58 = tpu.matmul %53, %55, %cst_16 {dimension_numbers = #tpu.dot_dimension_numbers<[2], [2], [1], [1], [0, 0, 0, 1, 1, 1], [0], [0]>} : vector<2x4x16xbf16>, vector<2x4x16xbf16>, vector<2x4x4xf32> -> vector<2x4x4xf32>
    "tpu.trace_stop"() : () -> ()
    %cst_17 = arith.constant 2.500000e-01 : f32
    %59 = vector.broadcast %cst_17 : f32 to vector<2x4x4xf32>
    %60 = arith.mulf %58, %59 : vector<2x4x4xf32>
    %cst_18 = arith.constant dense<0xFF800000> : vector<2x4xf32>
    %61 = vector.multi_reduction <maximumf>, %60, %cst_18 [2] : vector<2x4x4xf32> to vector<2x4xf32>
    %62 = vector.shape_cast %61 : vector<2x4xf32> to vector<2x4x1xf32>
    %63 = vector.broadcast %62 : vector<2x4x1xf32> to vector<2x4x4xf32>
    %64 = arith.subf %60, %63 : vector<2x4x4xf32>
    %65 = math.exp %64 : vector<2x4x4xf32>
    %cst_19 = arith.constant dense<0.000000e+00> : vector<2x4xf32>
    %66 = vector.multi_reduction <add>, %65, %cst_19 [2] : vector<2x4x4xf32> to vector<2x4xf32>
    %67 = vector.shape_cast %66 : vector<2x4xf32> to vector<2x4x1xf32>
    %68 = tpu.reciprocal %67 {approx = true} : vector<2x4x1xf32> -> vector<2x4x1xf32>
    %69 = vector.broadcast %68 : vector<2x4x1xf32> to vector<2x4x4xf32>
    %70 = arith.mulf %65, %69 : vector<2x4x4xf32>
    %71 = arith.truncf %70 : vector<2x4x4xf32> to vector<2x4x4xbf16>
    "tpu.trace_start"() <{level = 10 : i32, message = "bqk,bkd->bqd"}> : () -> ()
    %cst_20 = arith.constant dense<0.000000e+00> : vector<2x4x16xf32>
    %72 = tpu.matmul %71, %57, %cst_20 {dimension_numbers = #tpu.dot_dimension_numbers<[2], [1], [1], [2], [0, 0, 0, 1, 1, 2], [0], [0]>} : vector<2x4x4xbf16>, vector<2x4x16xbf16>, vector<2x4x16xf32> -> vector<2x4x16xf32>
    "tpu.trace_stop"() : () -> ()
    %73 = vector.extract_strided_slice %41 {offsets = [0, 0, 16], sizes = [2, 4, 16], strides = [1, 1, 1]} : vector<2x4x128xf32> to vector<2x4x16xf32>
    %74 = arith.truncf %73 : vector<2x4x16xf32> to vector<2x4x16xbf16>
    %75 = vector.extract_strided_slice %46 {offsets = [0, 0, 16], sizes = [2, 4, 16], strides = [1, 1, 1]} : vector<2x4x128xf32> to vector<2x4x16xf32>
    %76 = arith.truncf %75 : vector<2x4x16xf32> to vector<2x4x16xbf16>
    %77 = vector.extract_strided_slice %51 {offsets = [0, 0, 16], sizes = [2, 4, 16], strides = [1, 1, 1]} : vector<2x4x128xf32> to vector<2x4x16xf32>
    %78 = arith.truncf %77 : vector<2x4x16xf32> to vector<2x4x16xbf16>
    "tpu.trace_start"() <{level = 10 : i32, message = "bqd,bkd->bqk"}> : () -> ()
    %cst_21 = arith.constant dense<0.000000e+00> : vector<2x4x4xf32>
    %79 = tpu.matmul %74, %76, %cst_21 {dimension_numbers = #tpu.dot_dimension_numbers<[2], [2], [1], [1], [0, 0, 0, 1, 1, 1], [0], [0]>} : vector<2x4x16xbf16>, vector<2x4x16xbf16>, vector<2x4x4xf32> -> vector<2x4x4xf32>
    "tpu.trace_stop"() : () -> ()
    %cst_22 = arith.constant 2.500000e-01 : f32
    %80 = vector.broadcast %cst_22 : f32 to vector<2x4x4xf32>
    %81 = arith.mulf %79, %80 : vector<2x4x4xf32>
    %cst_23 = arith.constant dense<0xFF800000> : vector<2x4xf32>
    %82 = vector.multi_reduction <maximumf>, %81, %cst_23 [2] : vector<2x4x4xf32> to vector<2x4xf32>
    %83 = vector.shape_cast %82 : vector<2x4xf32> to vector<2x4x1xf32>
    %84 = vector.broadcast %83 : vector<2x4x1xf32> to vector<2x4x4xf32>
    %85 = arith.subf %81, %84 : vector<2x4x4xf32>
    %86 = math.exp %85 : vector<2x4x4xf32>
    %cst_24 = arith.constant dense<0.000000e+00> : vector<2x4xf32>
    %87 = vector.multi_reduction <add>, %86, %cst_24 [2] : vector<2x4x4xf32> to vector<2x4xf32>
    %88 = vector.shape_cast %87 : vector<2x4xf32> to vector<2x4x1xf32>
    %89 = tpu.reciprocal %88 {approx = true} : vector<2x4x1xf32> -> vector<2x4x1xf32>
    %90 = vector.broadcast %89 : vector<2x4x1xf32> to vector<2x4x4xf32>
    %91 = arith.mulf %86, %90 : vector<2x4x4xf32>
    %92 = arith.truncf %91 : vector<2x4x4xf32> to vector<2x4x4xbf16>
    "tpu.trace_start"() <{level = 10 : i32, message = "bqk,bkd->bqd"}> : () -> ()
    %cst_25 = arith.constant dense<0.000000e+00> : vector<2x4x16xf32>
    %93 = tpu.matmul %92, %78, %cst_25 {dimension_numbers = #tpu.dot_dimension_numbers<[2], [1], [1], [2], [0, 0, 0, 1, 1, 2], [0], [0]>} : vector<2x4x4xbf16>, vector<2x4x16xbf16>, vector<2x4x16xf32> -> vector<2x4x16xf32>
    "tpu.trace_stop"() : () -> ()
    %94 = vector.extract_strided_slice %41 {offsets = [0, 0, 32], sizes = [2, 4, 16], strides = [1, 1, 1]} : vector<2x4x128xf32> to vector<2x4x16xf32>
    %95 = arith.truncf %94 : vector<2x4x16xf32> to vector<2x4x16xbf16>
    %96 = vector.extract_strided_slice %46 {offsets = [0, 0, 32], sizes = [2, 4, 16], strides = [1, 1, 1]} : vector<2x4x128xf32> to vector<2x4x16xf32>
    %97 = arith.truncf %96 : vector<2x4x16xf32> to vector<2x4x16xbf16>
    %98 = vector.extract_strided_slice %51 {offsets = [0, 0, 32], sizes = [2, 4, 16], strides = [1, 1, 1]} : vector<2x4x128xf32> to vector<2x4x16xf32>
    %99 = arith.truncf %98 : vector<2x4x16xf32> to vector<2x4x16xbf16>
    "tpu.trace_start"() <{level = 10 : i32, message = "bqd,bkd->bqk"}> : () -> ()
    %cst_26 = arith.constant dense<0.000000e+00> : vector<2x4x4xf32>
    %100 = tpu.matmul %95, %97, %cst_26 {dimension_numbers = #tpu.dot_dimension_numbers<[2], [2], [1], [1], [0, 0, 0, 1, 1, 1], [0], [0]>} : vector<2x4x16xbf16>, vector<2x4x16xbf16>, vector<2x4x4xf32> -> vector<2x4x4xf32>
    "tpu.trace_stop"() : () -> ()
    %cst_27 = arith.constant 2.500000e-01 : f32
    %101 = vector.broadcast %cst_27 : f32 to vector<2x4x4xf32>
    %102 = arith.mulf %100, %101 : vector<2x4x4xf32>
    %cst_28 = arith.constant dense<0xFF800000> : vector<2x4xf32>
    %103 = vector.multi_reduction <maximumf>, %102, %cst_28 [2] : vector<2x4x4xf32> to vector<2x4xf32>
    %104 = vector.shape_cast %103 : vector<2x4xf32> to vector<2x4x1xf32>
    %105 = vector.broadcast %104 : vector<2x4x1xf32> to vector<2x4x4xf32>
    %106 = arith.subf %102, %105 : vector<2x4x4xf32>
    %107 = math.exp %106 : vector<2x4x4xf32>
    %cst_29 = arith.constant dense<0.000000e+00> : vector<2x4xf32>
    %108 = vector.multi_reduction <add>, %107, %cst_29 [2] : vector<2x4x4xf32> to vector<2x4xf32>
    %109 = vector.shape_cast %108 : vector<2x4xf32> to vector<2x4x1xf32>
    %110 = tpu.reciprocal %109 {approx = true} : vector<2x4x1xf32> -> vector<2x4x1xf32>
    %111 = vector.broadcast %110 : vector<2x4x1xf32> to vector<2x4x4xf32>
    %112 = arith.mulf %107, %111 : vector<2x4x4xf32>
    %113 = arith.truncf %112 : vector<2x4x4xf32> to vector<2x4x4xbf16>
    "tpu.trace_start"() <{level = 10 : i32, message = "bqk,bkd->bqd"}> : () -> ()
    %cst_30 = arith.constant dense<0.000000e+00> : vector<2x4x16xf32>
    %114 = tpu.matmul %113, %99, %cst_30 {dimension_numbers = #tpu.dot_dimension_numbers<[2], [1], [1], [2], [0, 0, 0, 1, 1, 2], [0], [0]>} : vector<2x4x4xbf16>, vector<2x4x16xbf16>, vector<2x4x16xf32> -> vector<2x4x16xf32>
    "tpu.trace_stop"() : () -> ()
    %115 = vector.extract_strided_slice %41 {offsets = [0, 0, 48], sizes = [2, 4, 16], strides = [1, 1, 1]} : vector<2x4x128xf32> to vector<2x4x16xf32>
    %116 = arith.truncf %115 : vector<2x4x16xf32> to vector<2x4x16xbf16>
    %117 = vector.extract_strided_slice %46 {offsets = [0, 0, 48], sizes = [2, 4, 16], strides = [1, 1, 1]} : vector<2x4x128xf32> to vector<2x4x16xf32>
    %118 = arith.truncf %117 : vector<2x4x16xf32> to vector<2x4x16xbf16>
    %119 = vector.extract_strided_slice %51 {offsets = [0, 0, 48], sizes = [2, 4, 16], strides = [1, 1, 1]} : vector<2x4x128xf32> to vector<2x4x16xf32>
    %120 = arith.truncf %119 : vector<2x4x16xf32> to vector<2x4x16xbf16>
    "tpu.trace_start"() <{level = 10 : i32, message = "bqd,bkd->bqk"}> : () -> ()
    %cst_31 = arith.constant dense<0.000000e+00> : vector<2x4x4xf32>
    %121 = tpu.matmul %116, %118, %cst_31 {dimension_numbers = #tpu.dot_dimension_numbers<[2], [2], [1], [1], [0, 0, 0, 1, 1, 1], [0], [0]>} : vector<2x4x16xbf16>, vector<2x4x16xbf16>, vector<2x4x4xf32> -> vector<2x4x4xf32>
    "tpu.trace_stop"() : () -> ()
    %cst_32 = arith.constant 2.500000e-01 : f32
    %122 = vector.broadcast %cst_32 : f32 to vector<2x4x4xf32>
    %123 = arith.mulf %121, %122 : vector<2x4x4xf32>
    %cst_33 = arith.constant dense<0xFF800000> : vector<2x4xf32>
    %124 = vector.multi_reduction <maximumf>, %123, %cst_33 [2] : vector<2x4x4xf32> to vector<2x4xf32>
    %125 = vector.shape_cast %124 : vector<2x4xf32> to vector<2x4x1xf32>
    %126 = vector.broadcast %125 : vector<2x4x1xf32> to vector<2x4x4xf32>
    %127 = arith.subf %123, %126 : vector<2x4x4xf32>
    %128 = math.exp %127 : vector<2x4x4xf32>
    %cst_34 = arith.constant dense<0.000000e+00> : vector<2x4xf32>
    %129 = vector.multi_reduction <add>, %128, %cst_34 [2] : vector<2x4x4xf32> to vector<2x4xf32>
    %130 = vector.shape_cast %129 : vector<2x4xf32> to vector<2x4x1xf32>
    %131 = tpu.reciprocal %130 {approx = true} : vector<2x4x1xf32> -> vector<2x4x1xf32>
    %132 = vector.broadcast %131 : vector<2x4x1xf32> to vector<2x4x4xf32>
    %133 = arith.mulf %128, %132 : vector<2x4x4xf32>
    %134 = arith.truncf %133 : vector<2x4x4xf32> to vector<2x4x4xbf16>
    "tpu.trace_start"() <{level = 10 : i32, message = "bqk,bkd->bqd"}> : () -> ()
    %cst_35 = arith.constant dense<0.000000e+00> : vector<2x4x16xf32>
    %135 = tpu.matmul %134, %120, %cst_35 {dimension_numbers = #tpu.dot_dimension_numbers<[2], [1], [1], [2], [0, 0, 0, 1, 1, 2], [0], [0]>} : vector<2x4x4xbf16>, vector<2x4x16xbf16>, vector<2x4x16xf32> -> vector<2x4x16xf32>
    "tpu.trace_stop"() : () -> ()
    %136 = vector.extract_strided_slice %41 {offsets = [0, 0, 64], sizes = [2, 4, 16], strides = [1, 1, 1]} : vector<2x4x128xf32> to vector<2x4x16xf32>
    %137 = arith.truncf %136 : vector<2x4x16xf32> to vector<2x4x16xbf16>
    %138 = vector.extract_strided_slice %46 {offsets = [0, 0, 64], sizes = [2, 4, 16], strides = [1, 1, 1]} : vector<2x4x128xf32> to vector<2x4x16xf32>
    %139 = arith.truncf %138 : vector<2x4x16xf32> to vector<2x4x16xbf16>
    %140 = vector.extract_strided_slice %51 {offsets = [0, 0, 64], sizes = [2, 4, 16], strides = [1, 1, 1]} : vector<2x4x128xf32> to vector<2x4x16xf32>
    %141 = arith.truncf %140 : vector<2x4x16xf32> to vector<2x4x16xbf16>
    "tpu.trace_start"() <{level = 10 : i32, message = "bqd,bkd->bqk"}> : () -> ()
    %cst_36 = arith.constant dense<0.000000e+00> : vector<2x4x4xf32>
    %142 = tpu.matmul %137, %139, %cst_36 {dimension_numbers = #tpu.dot_dimension_numbers<[2], [2], [1], [1], [0, 0, 0, 1, 1, 1], [0], [0]>} : vector<2x4x16xbf16>, vector<2x4x16xbf16>, vector<2x4x4xf32> -> vector<2x4x4xf32>
    "tpu.trace_stop"() : () -> ()
    %cst_37 = arith.constant 2.500000e-01 : f32
    %143 = vector.broadcast %cst_37 : f32 to vector<2x4x4xf32>
    %144 = arith.mulf %142, %143 : vector<2x4x4xf32>
    %cst_38 = arith.constant dense<0xFF800000> : vector<2x4xf32>
    %145 = vector.multi_reduction <maximumf>, %144, %cst_38 [2] : vector<2x4x4xf32> to vector<2x4xf32>
    %146 = vector.shape_cast %145 : vector<2x4xf32> to vector<2x4x1xf32>
    %147 = vector.broadcast %146 : vector<2x4x1xf32> to vector<2x4x4xf32>
    %148 = arith.subf %144, %147 : vector<2x4x4xf32>
    %149 = math.exp %148 : vector<2x4x4xf32>
    %cst_39 = arith.constant dense<0.000000e+00> : vector<2x4xf32>
    %150 = vector.multi_reduction <add>, %149, %cst_39 [2] : vector<2x4x4xf32> to vector<2x4xf32>
    %151 = vector.shape_cast %150 : vector<2x4xf32> to vector<2x4x1xf32>
    %152 = tpu.reciprocal %151 {approx = true} : vector<2x4x1xf32> -> vector<2x4x1xf32>
    %153 = vector.broadcast %152 : vector<2x4x1xf32> to vector<2x4x4xf32>
    %154 = arith.mulf %149, %153 : vector<2x4x4xf32>
    %155 = arith.truncf %154 : vector<2x4x4xf32> to vector<2x4x4xbf16>
    "tpu.trace_start"() <{level = 10 : i32, message = "bqk,bkd->bqd"}> : () -> ()
    %cst_40 = arith.constant dense<0.000000e+00> : vector<2x4x16xf32>
    %156 = tpu.matmul %155, %141, %cst_40 {dimension_numbers = #tpu.dot_dimension_numbers<[2], [1], [1], [2], [0, 0, 0, 1, 1, 2], [0], [0]>} : vector<2x4x4xbf16>, vector<2x4x16xbf16>, vector<2x4x16xf32> -> vector<2x4x16xf32>
    "tpu.trace_stop"() : () -> ()
    %157 = vector.extract_strided_slice %41 {offsets = [0, 0, 80], sizes = [2, 4, 16], strides = [1, 1, 1]} : vector<2x4x128xf32> to vector<2x4x16xf32>
    %158 = arith.truncf %157 : vector<2x4x16xf32> to vector<2x4x16xbf16>
    %159 = vector.extract_strided_slice %46 {offsets = [0, 0, 80], sizes = [2, 4, 16], strides = [1, 1, 1]} : vector<2x4x128xf32> to vector<2x4x16xf32>
    %160 = arith.truncf %159 : vector<2x4x16xf32> to vector<2x4x16xbf16>
    %161 = vector.extract_strided_slice %51 {offsets = [0, 0, 80], sizes = [2, 4, 16], strides = [1, 1, 1]} : vector<2x4x128xf32> to vector<2x4x16xf32>
    %162 = arith.truncf %161 : vector<2x4x16xf32> to vector<2x4x16xbf16>
    "tpu.trace_start"() <{level = 10 : i32, message = "bqd,bkd->bqk"}> : () -> ()
    %cst_41 = arith.constant dense<0.000000e+00> : vector<2x4x4xf32>
    %163 = tpu.matmul %158, %160, %cst_41 {dimension_numbers = #tpu.dot_dimension_numbers<[2], [2], [1], [1], [0, 0, 0, 1, 1, 1], [0], [0]>} : vector<2x4x16xbf16>, vector<2x4x16xbf16>, vector<2x4x4xf32> -> vector<2x4x4xf32>
    "tpu.trace_stop"() : () -> ()
    %cst_42 = arith.constant 2.500000e-01 : f32
    %164 = vector.broadcast %cst_42 : f32 to vector<2x4x4xf32>
    %165 = arith.mulf %163, %164 : vector<2x4x4xf32>
    %cst_43 = arith.constant dense<0xFF800000> : vector<2x4xf32>
    %166 = vector.multi_reduction <maximumf>, %165, %cst_43 [2] : vector<2x4x4xf32> to vector<2x4xf32>
    %167 = vector.shape_cast %166 : vector<2x4xf32> to vector<2x4x1xf32>
    %168 = vector.broadcast %167 : vector<2x4x1xf32> to vector<2x4x4xf32>
    %169 = arith.subf %165, %168 : vector<2x4x4xf32>
    %170 = math.exp %169 : vector<2x4x4xf32>
    %cst_44 = arith.constant dense<0.000000e+00> : vector<2x4xf32>
    %171 = vector.multi_reduction <add>, %170, %cst_44 [2] : vector<2x4x4xf32> to vector<2x4xf32>
    %172 = vector.shape_cast %171 : vector<2x4xf32> to vector<2x4x1xf32>
    %173 = tpu.reciprocal %172 {approx = true} : vector<2x4x1xf32> -> vector<2x4x1xf32>
    %174 = vector.broadcast %173 : vector<2x4x1xf32> to vector<2x4x4xf32>
    %175 = arith.mulf %170, %174 : vector<2x4x4xf32>
    %176 = arith.truncf %175 : vector<2x4x4xf32> to vector<2x4x4xbf16>
    "tpu.trace_start"() <{level = 10 : i32, message = "bqk,bkd->bqd"}> : () -> ()
    %cst_45 = arith.constant dense<0.000000e+00> : vector<2x4x16xf32>
    %177 = tpu.matmul %176, %162, %cst_45 {dimension_numbers = #tpu.dot_dimension_numbers<[2], [1], [1], [2], [0, 0, 0, 1, 1, 2], [0], [0]>} : vector<2x4x4xbf16>, vector<2x4x16xbf16>, vector<2x4x16xf32> -> vector<2x4x16xf32>
    "tpu.trace_stop"() : () -> ()
    %178 = vector.extract_strided_slice %41 {offsets = [0, 0, 96], sizes = [2, 4, 16], strides = [1, 1, 1]} : vector<2x4x128xf32> to vector<2x4x16xf32>
    %179 = arith.truncf %178 : vector<2x4x16xf32> to vector<2x4x16xbf16>
    %180 = vector.extract_strided_slice %46 {offsets = [0, 0, 96], sizes = [2, 4, 16], strides = [1, 1, 1]} : vector<2x4x128xf32> to vector<2x4x16xf32>
    %181 = arith.truncf %180 : vector<2x4x16xf32> to vector<2x4x16xbf16>
    %182 = vector.extract_strided_slice %51 {offsets = [0, 0, 96], sizes = [2, 4, 16], strides = [1, 1, 1]} : vector<2x4x128xf32> to vector<2x4x16xf32>
    %183 = arith.truncf %182 : vector<2x4x16xf32> to vector<2x4x16xbf16>
    "tpu.trace_start"() <{level = 10 : i32, message = "bqd,bkd->bqk"}> : () -> ()
    %cst_46 = arith.constant dense<0.000000e+00> : vector<2x4x4xf32>
    %184 = tpu.matmul %179, %181, %cst_46 {dimension_numbers = #tpu.dot_dimension_numbers<[2], [2], [1], [1], [0, 0, 0, 1, 1, 1], [0], [0]>} : vector<2x4x16xbf16>, vector<2x4x16xbf16>, vector<2x4x4xf32> -> vector<2x4x4xf32>
    "tpu.trace_stop"() : () -> ()
    %cst_47 = arith.constant 2.500000e-01 : f32
    %185 = vector.broadcast %cst_47 : f32 to vector<2x4x4xf32>
    %186 = arith.mulf %184, %185 : vector<2x4x4xf32>
    %cst_48 = arith.constant dense<0xFF800000> : vector<2x4xf32>
    %187 = vector.multi_reduction <maximumf>, %186, %cst_48 [2] : vector<2x4x4xf32> to vector<2x4xf32>
    %188 = vector.shape_cast %187 : vector<2x4xf32> to vector<2x4x1xf32>
    %189 = vector.broadcast %188 : vector<2x4x1xf32> to vector<2x4x4xf32>
    %190 = arith.subf %186, %189 : vector<2x4x4xf32>
    %191 = math.exp %190 : vector<2x4x4xf32>
    %cst_49 = arith.constant dense<0.000000e+00> : vector<2x4xf32>
    %192 = vector.multi_reduction <add>, %191, %cst_49 [2] : vector<2x4x4xf32> to vector<2x4xf32>
    %193 = vector.shape_cast %192 : vector<2x4xf32> to vector<2x4x1xf32>
    %194 = tpu.reciprocal %193 {approx = true} : vector<2x4x1xf32> -> vector<2x4x1xf32>
    %195 = vector.broadcast %194 : vector<2x4x1xf32> to vector<2x4x4xf32>
    %196 = arith.mulf %191, %195 : vector<2x4x4xf32>
    %197 = arith.truncf %196 : vector<2x4x4xf32> to vector<2x4x4xbf16>
    "tpu.trace_start"() <{level = 10 : i32, message = "bqk,bkd->bqd"}> : () -> ()
    %cst_50 = arith.constant dense<0.000000e+00> : vector<2x4x16xf32>
    %198 = tpu.matmul %197, %183, %cst_50 {dimension_numbers = #tpu.dot_dimension_numbers<[2], [1], [1], [2], [0, 0, 0, 1, 1, 2], [0], [0]>} : vector<2x4x4xbf16>, vector<2x4x16xbf16>, vector<2x4x16xf32> -> vector<2x4x16xf32>
    "tpu.trace_stop"() : () -> ()
    %199 = vector.extract_strided_slice %41 {offsets = [0, 0, 112], sizes = [2, 4, 16], strides = [1, 1, 1]} : vector<2x4x128xf32> to vector<2x4x16xf32>
    %200 = arith.truncf %199 : vector<2x4x16xf32> to vector<2x4x16xbf16>
    %201 = vector.extract_strided_slice %46 {offsets = [0, 0, 112], sizes = [2, 4, 16], strides = [1, 1, 1]} : vector<2x4x128xf32> to vector<2x4x16xf32>
    %202 = arith.truncf %201 : vector<2x4x16xf32> to vector<2x4x16xbf16>
    %203 = vector.extract_strided_slice %51 {offsets = [0, 0, 112], sizes = [2, 4, 16], strides = [1, 1, 1]} : vector<2x4x128xf32> to vector<2x4x16xf32>
    %204 = arith.truncf %203 : vector<2x4x16xf32> to vector<2x4x16xbf16>
    "tpu.trace_start"() <{level = 10 : i32, message = "bqd,bkd->bqk"}> : () -> ()
    %cst_51 = arith.constant dense<0.000000e+00> : vector<2x4x4xf32>
    %205 = tpu.matmul %200, %202, %cst_51 {dimension_numbers = #tpu.dot_dimension_numbers<[2], [2], [1], [1], [0, 0, 0, 1, 1, 1], [0], [0]>} : vector<2x4x16xbf16>, vector<2x4x16xbf16>, vector<2x4x4xf32> -> vector<2x4x4xf32>
    "tpu.trace_stop"() : () -> ()
    %cst_52 = arith.constant 2.500000e-01 : f32
    %206 = vector.broadcast %cst_52 : f32 to vector<2x4x4xf32>
    %207 = arith.mulf %205, %206 : vector<2x4x4xf32>
    %cst_53 = arith.constant dense<0xFF800000> : vector<2x4xf32>
    %208 = vector.multi_reduction <maximumf>, %207, %cst_53 [2] : vector<2x4x4xf32> to vector<2x4xf32>
    %209 = vector.shape_cast %208 : vector<2x4xf32> to vector<2x4x1xf32>
    %210 = vector.broadcast %209 : vector<2x4x1xf32> to vector<2x4x4xf32>
    %211 = arith.subf %207, %210 : vector<2x4x4xf32>
    %212 = math.exp %211 : vector<2x4x4xf32>
    %cst_54 = arith.constant dense<0.000000e+00> : vector<2x4xf32>
    %213 = vector.multi_reduction <add>, %212, %cst_54 [2] : vector<2x4x4xf32> to vector<2x4xf32>
    %214 = vector.shape_cast %213 : vector<2x4xf32> to vector<2x4x1xf32>
    %215 = tpu.reciprocal %214 {approx = true} : vector<2x4x1xf32> -> vector<2x4x1xf32>
    %216 = vector.broadcast %215 : vector<2x4x1xf32> to vector<2x4x4xf32>
    %217 = arith.mulf %212, %216 : vector<2x4x4xf32>
    %218 = arith.truncf %217 : vector<2x4x4xf32> to vector<2x4x4xbf16>
    "tpu.trace_start"() <{level = 10 : i32, message = "bqk,bkd->bqd"}> : () -> ()
    %cst_55 = arith.constant dense<0.000000e+00> : vector<2x4x16xf32>
    %219 = tpu.matmul %218, %204, %cst_55 {dimension_numbers = #tpu.dot_dimension_numbers<[2], [1], [1], [2], [0, 0, 0, 1, 1, 2], [0], [0]>} : vector<2x4x4xbf16>, vector<2x4x16xbf16>, vector<2x4x16xf32> -> vector<2x4x16xf32>
    "tpu.trace_stop"() : () -> ()
    %220 = tpu.concatenate %72, %93, %114, %135, %156, %177, %198, %219 in 2 : vector<2x4x16xf32>, vector<2x4x16xf32>, vector<2x4x16xf32>, vector<2x4x16xf32>, vector<2x4x16xf32>, vector<2x4x16xf32>, vector<2x4x16xf32>, vector<2x4x16xf32> -> vector<2x4x128xf32>
    %221 = vector.shape_cast %220 : vector<2x4x128xf32> to vector<8x128xf32>
    %222 = arith.truncf %221 : vector<8x128xf32> to vector<8x128xbf16>
    %c0_56 = arith.constant 0 : index
    %c0_57 = arith.constant 0 : index
    %c0_58 = arith.constant 0 : index
    %223 = vector.load %arg3[%c0_56, %c0_57, %c0_58] : memref<1x128x128xbf16, #tpu.memory_space<vmem>>, vector<1x128x128xbf16>
    %224 = vector.shape_cast %223 : vector<1x128x128xbf16> to vector<128x128xbf16>
    %cst_59 = arith.constant dense<0.000000e+00> : vector<8x128xf32>
    %225 = tpu.matmul %222, %224, %cst_59 {dimension_numbers = #tpu.dot_dimension_numbers<[1], [0], [0], [1], [0, 0, 1, 1], [], []>} : vector<8x128xbf16>, vector<128x128xbf16>, vector<8x128xf32> -> vector<8x128xf32>
    %226 = arith.addf %4, %225 : vector<8x128xf32>
    %227 = vector.extract_strided_slice %6 {offsets = [7, 0], sizes = [1, 128], strides = [1, 1]} : vector<9x128xf32> to vector<1x128xf32>
    %228 = vector.broadcast %227 : vector<1x128xf32> to vector<8x128xf32>
    %229 = arith.addf %226, %228 : vector<8x128xf32>
    %230 = vector.extract_strided_slice %6 {offsets = [2, 0], sizes = [1, 128], strides = [1, 1]} : vector<9x128xf32> to vector<1x128xf32>
    %231 = vector.extract_strided_slice %6 {offsets = [3, 0], sizes = [1, 128], strides = [1, 1]} : vector<9x128xf32> to vector<1x128xf32>
    %cst_60 = arith.constant dense<0.000000e+00> : vector<8xf32>
    %232 = vector.multi_reduction <add>, %229, %cst_60 [1] : vector<8x128xf32> to vector<8xf32>
    %233 = vector.shape_cast %232 : vector<8xf32> to vector<8x1xf32>
    %cst_61 = arith.constant 1.280000e+02 : f32
    %234 = vector.broadcast %cst_61 : f32 to vector<8x1xf32>
    %235 = arith.divf %233, %234 : vector<8x1xf32>
    %236 = vector.broadcast %235 : vector<8x1xf32> to vector<8x128xf32>
    %237 = arith.subf %229, %236 : vector<8x128xf32>
    %238 = arith.mulf %237, %237 : vector<8x128xf32>
    %cst_62 = arith.constant dense<0.000000e+00> : vector<8xf32>
    %239 = vector.multi_reduction <add>, %238, %cst_62 [1] : vector<8x128xf32> to vector<8xf32>
    %240 = vector.shape_cast %239 : vector<8xf32> to vector<8x1xf32>
    %cst_63 = arith.constant 1.280000e+02 : f32
    %241 = vector.broadcast %cst_63 : f32 to vector<8x1xf32>
    %242 = arith.divf %240, %241 : vector<8x1xf32>
    %243 = vector.broadcast %235 : vector<8x1xf32> to vector<8x128xf32>
    %244 = arith.subf %229, %243 : vector<8x128xf32>
    %cst_64 = arith.constant 9.99999974E-6 : f32
    %245 = vector.broadcast %cst_64 : f32 to vector<8x1xf32>
    %246 = arith.addf %242, %245 : vector<8x1xf32>
    %247 = math.rsqrt %246 : vector<8x1xf32>
    %248 = vector.broadcast %247 : vector<8x1xf32> to vector<8x128xf32>
    %249 = arith.mulf %244, %248 : vector<8x128xf32>
    %250 = vector.broadcast %230 : vector<1x128xf32> to vector<8x128xf32>
    %251 = arith.mulf %249, %250 : vector<8x128xf32>
    %252 = vector.broadcast %231 : vector<1x128xf32> to vector<8x128xf32>
    %253 = arith.addf %251, %252 : vector<8x128xf32>
    %254 = arith.truncf %253 : vector<8x128xf32> to vector<8x128xbf16>
    %c0_65 = arith.constant 0 : index
    %c0_66 = arith.constant 0 : index
    %c0_67 = arith.constant 0 : index
    %255 = vector.load %arg4[%c0_65, %c0_66, %c0_67] : memref<1x128x512xbf16, #tpu.memory_space<vmem>>, vector<1x128x512xbf16>
    %256 = vector.shape_cast %255 : vector<1x128x512xbf16> to vector<128x512xbf16>
    %cst_68 = arith.constant dense<0.000000e+00> : vector<8x512xf32>
    %257 = tpu.matmul %254, %256, %cst_68 {dimension_numbers = #tpu.dot_dimension_numbers<[1], [0], [0], [1], [0, 0, 1, 1], [], []>} : vector<8x128xbf16>, vector<128x512xbf16>, vector<8x512xf32> -> vector<8x512xf32>
    %258 = vector.broadcast %8 : vector<1x512xf32> to vector<8x512xf32>
    %259 = arith.addf %257, %258 : vector<8x512xf32>
    %cst_69 = arith.constant 5.000000e-01 : f32
    %260 = vector.broadcast %cst_69 : f32 to vector<8x512xf32>
    %261 = arith.mulf %260, %259 : vector<8x512xf32>
    %cst_70 = arith.constant 4.471500e-02 : f32
    %262 = vector.broadcast %cst_70 : f32 to vector<8x512xf32>
    %263 = arith.mulf %262, %259 : vector<8x512xf32>
    %264 = arith.mulf %263, %259 : vector<8x512xf32>
    %265 = arith.mulf %264, %259 : vector<8x512xf32>
    %266 = arith.addf %259, %265 : vector<8x512xf32>
    %cst_71 = arith.constant 0.797884583 : f32
    %267 = vector.broadcast %cst_71 : f32 to vector<8x512xf32>
    %268 = arith.mulf %267, %266 : vector<8x512xf32>
    %269 = math.tanh %268 : vector<8x512xf32>
    %cst_72 = arith.constant 1.000000e+00 : f32
    %270 = vector.broadcast %cst_72 : f32 to vector<8x512xf32>
    %271 = arith.addf %270, %269 : vector<8x512xf32>
    %272 = arith.mulf %261, %271 : vector<8x512xf32>
    %273 = arith.truncf %272 : vector<8x512xf32> to vector<8x512xbf16>
    %c0_73 = arith.constant 0 : index
    %c0_74 = arith.constant 0 : index
    %c0_75 = arith.constant 0 : index
    %274 = vector.load %arg5[%c0_73, %c0_74, %c0_75] : memref<1x512x128xbf16, #tpu.memory_space<vmem>>, vector<1x512x128xbf16>
    %275 = vector.shape_cast %274 : vector<1x512x128xbf16> to vector<512x128xbf16>
    %cst_76 = arith.constant dense<0.000000e+00> : vector<8x128xf32>
    %276 = tpu.matmul %273, %275, %cst_76 {dimension_numbers = #tpu.dot_dimension_numbers<[1], [0], [0], [1], [0, 0, 1, 1], [], []>} : vector<8x512xbf16>, vector<512x128xbf16>, vector<8x128xf32> -> vector<8x128xf32>
    %277 = arith.addf %229, %276 : vector<8x128xf32>
    %278 = vector.extract_strided_slice %6 {offsets = [8, 0], sizes = [1, 128], strides = [1, 1]} : vector<9x128xf32> to vector<1x128xf32>
    %279 = vector.broadcast %278 : vector<1x128xf32> to vector<8x128xf32>
    %280 = arith.addf %277, %279 : vector<8x128xf32>
    %281 = arith.truncf %280 : vector<8x128xf32> to vector<8x128xbf16>
    %c0_77 = arith.constant 0 : index
    %c0_78 = arith.constant 0 : index
    %282 = vector.load %arg8[%c0_77, %c0_78] : memref<8x128xbf16, #tpu.memory_space<vmem>>, vector<8x128xbf16>
    tpu.vector_store %arg8[%c0_77, %c0_78], %281 {strides = array<i32>} : memref<8x128xbf16, #tpu.memory_space<vmem>>, vector<8x128xbf16>,
    return
  }
  func.func @transform_0(%arg0: i32) -> (i32, i32) {
    %c0_i32 = arith.constant 0 : i32
    %c0_i32_0 = arith.constant 0 : i32
    %c0_i32_1 = arith.constant 0 : i32
    return %c0_i32, %c0_i32_0 : i32, i32
  }
  func.func @transform_1(%arg0: i32) -> (i32, i32, i32) {
    %c0_i32 = arith.constant 0 : i32
    %c0_i32_0 = arith.constant 0 : i32
    %c0_i32_1 = arith.constant 0 : i32
    return %arg0, %c0_i32, %c0_i32_0 : i32, i32, i32
  }
  func.func @transform_2(%arg0: i32) -> (i32, i32, i32) {
    %c0_i32 = arith.constant 0 : i32
    %c0_i32_0 = arith.constant 0 : i32
    %c0_i32_1 = arith.constant 0 : i32
    return %arg0, %c0_i32, %c0_i32_0 : i32, i32, i32
  }
  func.func @transform_3(%arg0: i32) -> (i32, i32, i32) {
    %c0_i32 = arith.constant 0 : i32
    %c0_i32_0 = arith.constant 0 : i32
    %c0_i32_1 = arith.constant 0 : i32
    return %arg0, %c0_i32, %c0_i32_0 : i32, i32, i32
  }
  func.func @transform_4(%arg0: i32) -> (i32, i32, i32) {
    %c0_i32 = arith.constant 0 : i32
    %c0_i32_0 = arith.constant 0 : i32
    %c0_i32_1 = arith.constant 0 : i32
    return %arg0, %c0_i32, %c0_i32_0 : i32, i32, i32
  }
  func.func @transform_5(%arg0: i32) -> (i32, i32, i32) {
    %c0_i32 = arith.constant 0 : i32
    %c0_i32_0 = arith.constant 0 : i32
    %c0_i32_1 = arith.constant 0 : i32
    return %arg0, %c0_i32, %c0_i32_0 : i32, i32, i32
  }
  func.func @transform_6(%arg0: i32) -> (i32, i32, i32) {
    %c0_i32 = arith.constant 0 : i32
    %c0_i32_0 = arith.constant 0 : i32
    %c0_i32_1 = arith.constant 0 : i32
    return %arg0, %c0_i32, %c0_i32_0 : i32, i32, i32
  }
  func.func @transform_7(%arg0: i32) -> (i32, i32) {
    %c0_i32 = arith.constant 0 : i32
    %c0_i32_0 = arith.constant 0 : i32
    %c0_i32_1 = arith.constant 0 : i32
    return %c0_i32, %c0_i32_0 : i32, i32
  }
}

module attributes {stable_mosaic.version = 11 : i64} {
  func.func @_mm_kernel(%arg0: i32, %arg1: i32, %arg2: i32, %arg3: memref<8x40xbf16, #tpu.memory_space<vmem>>, %arg4: memref<40x64xbf16, #tpu.memory_space<vmem>>, %arg5: memref<1x64xf32, #tpu.memory_space<vmem>>, %arg6: memref<8x64xbf16, #tpu.memory_space<vmem>>, %arg7: memref<8x64xbf16, #tpu.memory_space<vmem>>, %arg8: memref<8x64xf32, #tpu.memory_space<vmem>>) attributes {dimension_semantics = [#tpu.dimension_semantics<parallel>, #tpu.dimension_semantics<parallel>, #tpu.dimension_semantics<arbitrary>], iteration_bounds = array<i64: 1, 1, 1>, scalar_prefetch = 0 : i64, scratch_operands = 1 : i64, tpu.core_type = #tpu.core_type<tc>, window_params = [{transform_indices = @transform_0, window_bounds = array<i64: 8, 40>}, {transform_indices = @transform_1, window_bounds = array<i64: 40, 64>}, {transform_indices = @transform_2, window_bounds = array<i64: 1, 64>}, {transform_indices = @transform_3, window_bounds = array<i64: 8, 64>}, {transform_indices = @transform_4, window_bounds = array<i64: 8, 64>}]} {
    %c0_i32 = arith.constant 0 : i32
    %0 = arith.cmpi eq, %arg2, %c0_i32 : i32
    %1 = arith.extui %0 : i1 to i32
    %c0_i32_0 = arith.constant 0 : i32
    %2 = arith.cmpi ne, %1, %c0_i32_0 : i32
    scf.if %2 {
      %cst_10 = arith.constant 0.000000e+00 : f32
      %12 = vector.broadcast %cst_10 : f32 to vector<8x64xf32>
      %c0_11 = arith.constant 0 : index
      %c0_12 = arith.constant 0 : index
      %13 = vector.load %arg8[%c0_11, %c0_12] : memref<8x64xf32, #tpu.memory_space<vmem>>, vector<8x64xf32>
      tpu.vector_store %arg8[%c0_11, %c0_12], %12 {strides = array<i32>} : memref<8x64xf32, #tpu.memory_space<vmem>>, vector<8x64xf32>,
    } else {
    }
    %c0 = arith.constant 0 : index
    %c0_1 = arith.constant 0 : index
    %3 = vector.load %arg8[%c0, %c0_1] : memref<8x64xf32, #tpu.memory_space<vmem>>, vector<8x64xf32>
    %c0_2 = arith.constant 0 : index
    %c0_3 = arith.constant 0 : index
    %4 = vector.load %arg3[%c0_2, %c0_3] : memref<8x40xbf16, #tpu.memory_space<vmem>>, vector<8x40xbf16>
    %c0_4 = arith.constant 0 : index
    %c0_5 = arith.constant 0 : index
    %5 = vector.load %arg4[%c0_4, %c0_5] : memref<40x64xbf16, #tpu.memory_space<vmem>>, vector<40x64xbf16>
    %cst = arith.constant dense<0.000000e+00> : vector<8x64xf32>
    %6 = tpu.matmul %4, %5, %cst {dimension_numbers = #tpu.dot_dimension_numbers<[1], [0], [0], [1], [0, 0, 1, 1], [], []>} : vector<8x40xbf16>, vector<40x64xbf16>, vector<8x64xf32> -> vector<8x64xf32>
    %7 = arith.addf %3, %6 : vector<8x64xf32>
    %c0_6 = arith.constant 0 : index
    %c0_7 = arith.constant 0 : index
    %8 = vector.load %arg8[%c0_6, %c0_7] : memref<8x64xf32, #tpu.memory_space<vmem>>, vector<8x64xf32>
    tpu.vector_store %arg8[%c0_6, %c0_7], %7 {strides = array<i32>} : memref<8x64xf32, #tpu.memory_space<vmem>>, vector<8x64xf32>,
    %c0_i32_8 = arith.constant 0 : i32
    %9 = arith.cmpi eq, %arg2, %c0_i32_8 : i32
    %10 = arith.extui %9 : i1 to i32
    %c0_i32_9 = arith.constant 0 : i32
    %11 = arith.cmpi ne, %10, %c0_i32_9 : i32
    scf.if %11 {
      %c0_10 = arith.constant 0 : index
      %c0_11 = arith.constant 0 : index
      %12 = vector.load %arg8[%c0_10, %c0_11] : memref<8x64xf32, #tpu.memory_space<vmem>>, vector<8x64xf32>
      %c0_12 = arith.constant 0 : index
      %c0_13 = arith.constant 0 : index
      %13 = vector.load %arg5[%c0_12, %c0_13] : memref<1x64xf32, #tpu.memory_space<vmem>>, vector<1x64xf32>
      %14 = vector.broadcast %13 : vector<1x64xf32> to vector<8x64xf32>
      %15 = arith.addf %12, %14 : vector<8x64xf32>
      %c0_14 = arith.constant 0 : index
      %c0_15 = arith.constant 0 : index
      %16 = vector.load %arg6[%c0_14, %c0_15] : memref<8x64xbf16, #tpu.memory_space<vmem>>, vector<8x64xbf16>
      %17 = arith.extf %16 : vector<8x64xbf16> to vector<8x64xf32>
      %18 = arith.addf %15, %17 : vector<8x64xf32>
      %19 = arith.truncf %18 : vector<8x64xf32> to vector<8x64xbf16>
      %c0_16 = arith.constant 0 : index
      %c0_17 = arith.constant 0 : index
      %20 = vector.load %arg7[%c0_16, %c0_17] : memref<8x64xbf16, #tpu.memory_space<vmem>>, vector<8x64xbf16>
      tpu.vector_store %arg7[%c0_16, %c0_17], %19 {strides = array<i32>} : memref<8x64xbf16, #tpu.memory_space<vmem>>, vector<8x64xbf16>,
    } else {
    }
    return
  }
  func.func @transform_0(%arg0: i32, %arg1: i32, %arg2: i32) -> (i32, i32) {
    %c0_i32 = arith.constant 0 : i32
    return %arg0, %arg2 : i32, i32
  }
  func.func @transform_1(%arg0: i32, %arg1: i32, %arg2: i32) -> (i32, i32) {
    %c0_i32 = arith.constant 0 : i32
    return %arg2, %arg1 : i32, i32
  }
  func.func @transform_2(%arg0: i32, %arg1: i32, %arg2: i32) -> (i32, i32) {
    %c0_i32 = arith.constant 0 : i32
    %c0_i32_0 = arith.constant 0 : i32
    return %c0_i32, %arg1 : i32, i32
  }
  func.func @transform_3(%arg0: i32, %arg1: i32, %arg2: i32) -> (i32, i32) {
    %c0_i32 = arith.constant 0 : i32
    return %arg0, %arg1 : i32, i32
  }
  func.func @transform_4(%arg0: i32, %arg1: i32, %arg2: i32) -> (i32, i32) {
    %c0_i32 = arith.constant 0 : i32
    return %arg0, %arg1 : i32, i32
  }
}

module attributes {stable_mosaic.version = 11 : i64} {
  func.func @_vit_blocks_kernel(%arg0: i32, %arg1: memref<8x64xbf16, #tpu.memory_space<vmem>>, %arg2: memref<1x64x192xbf16, #tpu.memory_space<vmem>>, %arg3: memref<1x64x64xbf16, #tpu.memory_space<vmem>>, %arg4: memref<1x64x256xbf16, #tpu.memory_space<vmem>>, %arg5: memref<1x256x64xbf16, #tpu.memory_space<vmem>>, %arg6: memref<1x9x64xf32, #tpu.memory_space<vmem>>, %arg7: memref<1x1x256xf32, #tpu.memory_space<vmem>>, %arg8: memref<8x64xbf16, #tpu.memory_space<vmem>>) attributes {dimension_semantics = [#tpu.dimension_semantics<arbitrary>], iteration_bounds = array<i64: 2>, scalar_prefetch = 0 : i64, scratch_operands = 0 : i64, tpu.core_type = #tpu.core_type<tc>, window_params = [{pipeline_mode = #tpu.pipeline_mode<synchronous>, transform_indices = @transform_0, window_bounds = array<i64: 8, 64>}, {transform_indices = @transform_1, window_bounds = array<i64: 1, 64, 192>}, {transform_indices = @transform_2, window_bounds = array<i64: 1, 64, 64>}, {transform_indices = @transform_3, window_bounds = array<i64: 1, 64, 256>}, {transform_indices = @transform_4, window_bounds = array<i64: 1, 256, 64>}, {transform_indices = @transform_5, window_bounds = array<i64: 1, 9, 64>}, {transform_indices = @transform_6, window_bounds = array<i64: 1, 1, 256>}, {pipeline_mode = #tpu.pipeline_mode<synchronous>, transform_indices = @transform_7, window_bounds = array<i64: 8, 64>}]} {
    %c0_i32 = arith.constant 0 : i32
    %0 = arith.cmpi eq, %arg0, %c0_i32 : i32
    %1 = arith.extui %0 : i1 to i32
    %c0_i32_0 = arith.constant 0 : i32
    %2 = arith.cmpi ne, %1, %c0_i32_0 : i32
    scf.if %2 {
      %c0_59 = arith.constant 0 : index
      %c0_60 = arith.constant 0 : index
      %199 = vector.load %arg1[%c0_59, %c0_60] : memref<8x64xbf16, #tpu.memory_space<vmem>>, vector<8x64xbf16>
      %c0_61 = arith.constant 0 : index
      %c0_62 = arith.constant 0 : index
      %200 = vector.load %arg8[%c0_61, %c0_62] : memref<8x64xbf16, #tpu.memory_space<vmem>>, vector<8x64xbf16>
      tpu.vector_store %arg8[%c0_61, %c0_62], %199 {strides = array<i32>} : memref<8x64xbf16, #tpu.memory_space<vmem>>, vector<8x64xbf16>,
    } else {
    }
    %c0 = arith.constant 0 : index
    %c0_1 = arith.constant 0 : index
    %3 = vector.load %arg8[%c0, %c0_1] : memref<8x64xbf16, #tpu.memory_space<vmem>>, vector<8x64xbf16>
    %4 = arith.extf %3 : vector<8x64xbf16> to vector<8x64xf32>
    %c0_2 = arith.constant 0 : index
    %c0_3 = arith.constant 0 : index
    %c0_4 = arith.constant 0 : index
    %5 = vector.load %arg6[%c0_2, %c0_3, %c0_4] : memref<1x9x64xf32, #tpu.memory_space<vmem>>, vector<1x9x64xf32>
    %6 = vector.shape_cast %5 : vector<1x9x64xf32> to vector<9x64xf32>
    %c0_5 = arith.constant 0 : index
    %c0_6 = arith.constant 0 : index
    %c0_7 = arith.constant 0 : index
    %7 = vector.load %arg7[%c0_5, %c0_6, %c0_7] : memref<1x1x256xf32, #tpu.memory_space<vmem>>, vector<1x1x256xf32>
    %8 = vector.shape_cast %7 : vector<1x1x256xf32> to vector<1x256xf32>
    %9 = vector.extract_strided_slice %6 {offsets = [0, 0], sizes = [1, 64], strides = [1, 1]} : vector<9x64xf32> to vector<1x64xf32>
    %10 = vector.extract_strided_slice %6 {offsets = [1, 0], sizes = [1, 64], strides = [1, 1]} : vector<9x64xf32> to vector<1x64xf32>
    %cst = arith.constant dense<0.000000e+00> : vector<8xf32>
    %11 = vector.multi_reduction <add>, %4, %cst [1] : vector<8x64xf32> to vector<8xf32>
    %12 = vector.shape_cast %11 : vector<8xf32> to vector<8x1xf32>
    %cst_8 = arith.constant 6.400000e+01 : f32
    %13 = vector.broadcast %cst_8 : f32 to vector<8x1xf32>
    %14 = arith.divf %12, %13 : vector<8x1xf32>
    %15 = vector.broadcast %14 : vector<8x1xf32> to vector<8x64xf32>
    %16 = arith.subf %4, %15 : vector<8x64xf32>
    %17 = arith.mulf %16, %16 : vector<8x64xf32>
    %cst_9 = arith.constant dense<0.000000e+00> : vector<8xf32>
    %18 = vector.multi_reduction <add>, %17, %cst_9 [1] : vector<8x64xf32> to vector<8xf32>
    %19 = vector.shape_cast %18 : vector<8xf32> to vector<8x1xf32>
    %cst_10 = arith.constant 6.400000e+01 : f32
    %20 = vector.broadcast %cst_10 : f32 to vector<8x1xf32>
    %21 = arith.divf %19, %20 : vector<8x1xf32>
    %22 = vector.broadcast %14 : vector<8x1xf32> to vector<8x64xf32>
    %23 = arith.subf %4, %22 : vector<8x64xf32>
    %cst_11 = arith.constant 9.99999974E-6 : f32
    %24 = vector.broadcast %cst_11 : f32 to vector<8x1xf32>
    %25 = arith.addf %21, %24 : vector<8x1xf32>
    %26 = math.rsqrt %25 : vector<8x1xf32>
    %27 = vector.broadcast %26 : vector<8x1xf32> to vector<8x64xf32>
    %28 = arith.mulf %23, %27 : vector<8x64xf32>
    %29 = vector.broadcast %9 : vector<1x64xf32> to vector<8x64xf32>
    %30 = arith.mulf %28, %29 : vector<8x64xf32>
    %31 = vector.broadcast %10 : vector<1x64xf32> to vector<8x64xf32>
    %32 = arith.addf %30, %31 : vector<8x64xf32>
    %33 = arith.truncf %32 : vector<8x64xf32> to vector<8x64xbf16>
    %c0_12 = arith.constant 0 : index
    %c0_13 = arith.constant 0 : index
    %c0_14 = arith.constant 0 : index
    %34 = vector.load %arg2[%c0_12, %c0_13, %c0_14] : memref<1x64x192xbf16, #tpu.memory_space<vmem>>, vector<1x64x192xbf16>
    %35 = vector.shape_cast %34 : vector<1x64x192xbf16> to vector<64x192xbf16>
    %cst_15 = arith.constant dense<0.000000e+00> : vector<8x192xf32>
    %36 = tpu.matmul %33, %35, %cst_15 {dimension_numbers = #tpu.dot_dimension_numbers<[1], [0], [0], [1], [0, 0, 1, 1], [], []>} : vector<8x64xbf16>, vector<64x192xbf16>, vector<8x192xf32> -> vector<8x192xf32>
    %37 = vector.extract_strided_slice %36 {offsets = [0, 0], sizes = [8, 64], strides = [1, 1]} : vector<8x192xf32> to vector<8x64xf32>
    %38 = vector.extract_strided_slice %6 {offsets = [4, 0], sizes = [1, 64], strides = [1, 1]} : vector<9x64xf32> to vector<1x64xf32>
    %39 = vector.broadcast %38 : vector<1x64xf32> to vector<8x64xf32>
    %40 = arith.addf %37, %39 : vector<8x64xf32>
    %41 = vector.shape_cast %40 : vector<8x64xf32> to vector<2x4x64xf32>
    %42 = vector.extract_strided_slice %36 {offsets = [0, 64], sizes = [8, 64], strides = [1, 1]} : vector<8x192xf32> to vector<8x64xf32>
    %43 = vector.extract_strided_slice %6 {offsets = [5, 0], sizes = [1, 64], strides = [1, 1]} : vector<9x64xf32> to vector<1x64xf32>
    %44 = vector.broadcast %43 : vector<1x64xf32> to vector<8x64xf32>
    %45 = arith.addf %42, %44 : vector<8x64xf32>
    %46 = vector.shape_cast %45 : vector<8x64xf32> to vector<2x4x64xf32>
    %47 = vector.extract_strided_slice %36 {offsets = [0, 128], sizes = [8, 64], strides = [1, 1]} : vector<8x192xf32> to vector<8x64xf32>
    %48 = vector.extract_strided_slice %6 {offsets = [6, 0], sizes = [1, 64], strides = [1, 1]} : vector<9x64xf32> to vector<1x64xf32>
    %49 = vector.broadcast %48 : vector<1x64xf32> to vector<8x64xf32>
    %50 = arith.addf %47, %49 : vector<8x64xf32>
    %51 = vector.shape_cast %50 : vector<8x64xf32> to vector<2x4x64xf32>
    %52 = vector.extract_strided_slice %41 {offsets = [0, 0, 0], sizes = [2, 4, 16], strides = [1, 1, 1]} : vector<2x4x64xf32> to vector<2x4x16xf32>
    %53 = arith.truncf %52 : vector<2x4x16xf32> to vector<2x4x16xbf16>
    %54 = vector.extract_strided_slice %46 {offsets = [0, 0, 0], sizes = [2, 4, 16], strides = [1, 1, 1]} : vector<2x4x64xf32> to vector<2x4x16xf32>
    %55 = arith.truncf %54 : vector<2x4x16xf32> to vector<2x4x16xbf16>
    %56 = vector.extract_strided_slice %51 {offsets = [0, 0, 0], sizes = [2, 4, 16], strides = [1, 1, 1]} : vector<2x4x64xf32> to vector<2x4x16xf32>
    %57 = arith.truncf %56 : vector<2x4x16xf32> to vector<2x4x16xbf16>
    "tpu.trace_start"() <{level = 10 : i32, message = "bqd,bkd->bqk"}> : () -> ()
    %cst_16 = arith.constant dense<0.000000e+00> : vector<2x4x4xf32>
    %58 = tpu.matmul %53, %55, %cst_16 {dimension_numbers = #tpu.dot_dimension_numbers<[2], [2], [1], [1], [0, 0, 0, 1, 1, 1], [0], [0]>} : vector<2x4x16xbf16>, vector<2x4x16xbf16>, vector<2x4x4xf32> -> vector<2x4x4xf32>
    "tpu.trace_stop"() : () -> ()
    %cst_17 = arith.constant 2.500000e-01 : f32
    %59 = vector.broadcast %cst_17 : f32 to vector<2x4x4xf32>
    %60 = arith.mulf %58, %59 : vector<2x4x4xf32>
    %cst_18 = arith.constant dense<0xFF800000> : vector<2x4xf32>
    %61 = vector.multi_reduction <maximumf>, %60, %cst_18 [2] : vector<2x4x4xf32> to vector<2x4xf32>
    %62 = vector.shape_cast %61 : vector<2x4xf32> to vector<2x4x1xf32>
    %63 = vector.broadcast %62 : vector<2x4x1xf32> to vector<2x4x4xf32>
    %64 = arith.subf %60, %63 : vector<2x4x4xf32>
    %65 = math.exp %64 : vector<2x4x4xf32>
    %cst_19 = arith.constant dense<0.000000e+00> : vector<2x4xf32>
    %66 = vector.multi_reduction <add>, %65, %cst_19 [2] : vector<2x4x4xf32> to vector<2x4xf32>
    %67 = vector.shape_cast %66 : vector<2x4xf32> to vector<2x4x1xf32>
    %68 = tpu.reciprocal %67 {approx = true} : vector<2x4x1xf32> -> vector<2x4x1xf32>
    %69 = vector.broadcast %68 : vector<2x4x1xf32> to vector<2x4x4xf32>
    %70 = arith.mulf %65, %69 : vector<2x4x4xf32>
    %71 = arith.truncf %70 : vector<2x4x4xf32> to vector<2x4x4xbf16>
    "tpu.trace_start"() <{level = 10 : i32, message = "bqk,bkd->bqd"}> : () -> ()
    %cst_20 = arith.constant dense<0.000000e+00> : vector<2x4x16xf32>
    %72 = tpu.matmul %71, %57, %cst_20 {dimension_numbers = #tpu.dot_dimension_numbers<[2], [1], [1], [2], [0, 0, 0, 1, 1, 2], [0], [0]>} : vector<2x4x4xbf16>, vector<2x4x16xbf16>, vector<2x4x16xf32> -> vector<2x4x16xf32>
    "tpu.trace_stop"() : () -> ()
    %73 = vector.extract_strided_slice %41 {offsets = [0, 0, 16], sizes = [2, 4, 16], strides = [1, 1, 1]} : vector<2x4x64xf32> to vector<2x4x16xf32>
    %74 = arith.truncf %73 : vector<2x4x16xf32> to vector<2x4x16xbf16>
    %75 = vector.extract_strided_slice %46 {offsets = [0, 0, 16], sizes = [2, 4, 16], strides = [1, 1, 1]} : vector<2x4x64xf32> to vector<2x4x16xf32>
    %76 = arith.truncf %75 : vector<2x4x16xf32> to vector<2x4x16xbf16>
    %77 = vector.extract_strided_slice %51 {offsets = [0, 0, 16], sizes = [2, 4, 16], strides = [1, 1, 1]} : vector<2x4x64xf32> to vector<2x4x16xf32>
    %78 = arith.truncf %77 : vector<2x4x16xf32> to vector<2x4x16xbf16>
    "tpu.trace_start"() <{level = 10 : i32, message = "bqd,bkd->bqk"}> : () -> ()
    %cst_21 = arith.constant dense<0.000000e+00> : vector<2x4x4xf32>
    %79 = tpu.matmul %74, %76, %cst_21 {dimension_numbers = #tpu.dot_dimension_numbers<[2], [2], [1], [1], [0, 0, 0, 1, 1, 1], [0], [0]>} : vector<2x4x16xbf16>, vector<2x4x16xbf16>, vector<2x4x4xf32> -> vector<2x4x4xf32>
    "tpu.trace_stop"() : () -> ()
    %cst_22 = arith.constant 2.500000e-01 : f32
    %80 = vector.broadcast %cst_22 : f32 to vector<2x4x4xf32>
    %81 = arith.mulf %79, %80 : vector<2x4x4xf32>
    %cst_23 = arith.constant dense<0xFF800000> : vector<2x4xf32>
    %82 = vector.multi_reduction <maximumf>, %81, %cst_23 [2] : vector<2x4x4xf32> to vector<2x4xf32>
    %83 = vector.shape_cast %82 : vector<2x4xf32> to vector<2x4x1xf32>
    %84 = vector.broadcast %83 : vector<2x4x1xf32> to vector<2x4x4xf32>
    %85 = arith.subf %81, %84 : vector<2x4x4xf32>
    %86 = math.exp %85 : vector<2x4x4xf32>
    %cst_24 = arith.constant dense<0.000000e+00> : vector<2x4xf32>
    %87 = vector.multi_reduction <add>, %86, %cst_24 [2] : vector<2x4x4xf32> to vector<2x4xf32>
    %88 = vector.shape_cast %87 : vector<2x4xf32> to vector<2x4x1xf32>
    %89 = tpu.reciprocal %88 {approx = true} : vector<2x4x1xf32> -> vector<2x4x1xf32>
    %90 = vector.broadcast %89 : vector<2x4x1xf32> to vector<2x4x4xf32>
    %91 = arith.mulf %86, %90 : vector<2x4x4xf32>
    %92 = arith.truncf %91 : vector<2x4x4xf32> to vector<2x4x4xbf16>
    "tpu.trace_start"() <{level = 10 : i32, message = "bqk,bkd->bqd"}> : () -> ()
    %cst_25 = arith.constant dense<0.000000e+00> : vector<2x4x16xf32>
    %93 = tpu.matmul %92, %78, %cst_25 {dimension_numbers = #tpu.dot_dimension_numbers<[2], [1], [1], [2], [0, 0, 0, 1, 1, 2], [0], [0]>} : vector<2x4x4xbf16>, vector<2x4x16xbf16>, vector<2x4x16xf32> -> vector<2x4x16xf32>
    "tpu.trace_stop"() : () -> ()
    %94 = vector.extract_strided_slice %41 {offsets = [0, 0, 32], sizes = [2, 4, 16], strides = [1, 1, 1]} : vector<2x4x64xf32> to vector<2x4x16xf32>
    %95 = arith.truncf %94 : vector<2x4x16xf32> to vector<2x4x16xbf16>
    %96 = vector.extract_strided_slice %46 {offsets = [0, 0, 32], sizes = [2, 4, 16], strides = [1, 1, 1]} : vector<2x4x64xf32> to vector<2x4x16xf32>
    %97 = arith.truncf %96 : vector<2x4x16xf32> to vector<2x4x16xbf16>
    %98 = vector.extract_strided_slice %51 {offsets = [0, 0, 32], sizes = [2, 4, 16], strides = [1, 1, 1]} : vector<2x4x64xf32> to vector<2x4x16xf32>
    %99 = arith.truncf %98 : vector<2x4x16xf32> to vector<2x4x16xbf16>
    "tpu.trace_start"() <{level = 10 : i32, message = "bqd,bkd->bqk"}> : () -> ()
    %cst_26 = arith.constant dense<0.000000e+00> : vector<2x4x4xf32>
    %100 = tpu.matmul %95, %97, %cst_26 {dimension_numbers = #tpu.dot_dimension_numbers<[2], [2], [1], [1], [0, 0, 0, 1, 1, 1], [0], [0]>} : vector<2x4x16xbf16>, vector<2x4x16xbf16>, vector<2x4x4xf32> -> vector<2x4x4xf32>
    "tpu.trace_stop"() : () -> ()
    %cst_27 = arith.constant 2.500000e-01 : f32
    %101 = vector.broadcast %cst_27 : f32 to vector<2x4x4xf32>
    %102 = arith.mulf %100, %101 : vector<2x4x4xf32>
    %cst_28 = arith.constant dense<0xFF800000> : vector<2x4xf32>
    %103 = vector.multi_reduction <maximumf>, %102, %cst_28 [2] : vector<2x4x4xf32> to vector<2x4xf32>
    %104 = vector.shape_cast %103 : vector<2x4xf32> to vector<2x4x1xf32>
    %105 = vector.broadcast %104 : vector<2x4x1xf32> to vector<2x4x4xf32>
    %106 = arith.subf %102, %105 : vector<2x4x4xf32>
    %107 = math.exp %106 : vector<2x4x4xf32>
    %cst_29 = arith.constant dense<0.000000e+00> : vector<2x4xf32>
    %108 = vector.multi_reduction <add>, %107, %cst_29 [2] : vector<2x4x4xf32> to vector<2x4xf32>
    %109 = vector.shape_cast %108 : vector<2x4xf32> to vector<2x4x1xf32>
    %110 = tpu.reciprocal %109 {approx = true} : vector<2x4x1xf32> -> vector<2x4x1xf32>
    %111 = vector.broadcast %110 : vector<2x4x1xf32> to vector<2x4x4xf32>
    %112 = arith.mulf %107, %111 : vector<2x4x4xf32>
    %113 = arith.truncf %112 : vector<2x4x4xf32> to vector<2x4x4xbf16>
    "tpu.trace_start"() <{level = 10 : i32, message = "bqk,bkd->bqd"}> : () -> ()
    %cst_30 = arith.constant dense<0.000000e+00> : vector<2x4x16xf32>
    %114 = tpu.matmul %113, %99, %cst_30 {dimension_numbers = #tpu.dot_dimension_numbers<[2], [1], [1], [2], [0, 0, 0, 1, 1, 2], [0], [0]>} : vector<2x4x4xbf16>, vector<2x4x16xbf16>, vector<2x4x16xf32> -> vector<2x4x16xf32>
    "tpu.trace_stop"() : () -> ()
    %115 = vector.extract_strided_slice %41 {offsets = [0, 0, 48], sizes = [2, 4, 16], strides = [1, 1, 1]} : vector<2x4x64xf32> to vector<2x4x16xf32>
    %116 = arith.truncf %115 : vector<2x4x16xf32> to vector<2x4x16xbf16>
    %117 = vector.extract_strided_slice %46 {offsets = [0, 0, 48], sizes = [2, 4, 16], strides = [1, 1, 1]} : vector<2x4x64xf32> to vector<2x4x16xf32>
    %118 = arith.truncf %117 : vector<2x4x16xf32> to vector<2x4x16xbf16>
    %119 = vector.extract_strided_slice %51 {offsets = [0, 0, 48], sizes = [2, 4, 16], strides = [1, 1, 1]} : vector<2x4x64xf32> to vector<2x4x16xf32>
    %120 = arith.truncf %119 : vector<2x4x16xf32> to vector<2x4x16xbf16>
    "tpu.trace_start"() <{level = 10 : i32, message = "bqd,bkd->bqk"}> : () -> ()
    %cst_31 = arith.constant dense<0.000000e+00> : vector<2x4x4xf32>
    %121 = tpu.matmul %116, %118, %cst_31 {dimension_numbers = #tpu.dot_dimension_numbers<[2], [2], [1], [1], [0, 0, 0, 1, 1, 1], [0], [0]>} : vector<2x4x16xbf16>, vector<2x4x16xbf16>, vector<2x4x4xf32> -> vector<2x4x4xf32>
    "tpu.trace_stop"() : () -> ()
    %cst_32 = arith.constant 2.500000e-01 : f32
    %122 = vector.broadcast %cst_32 : f32 to vector<2x4x4xf32>
    %123 = arith.mulf %121, %122 : vector<2x4x4xf32>
    %cst_33 = arith.constant dense<0xFF800000> : vector<2x4xf32>
    %124 = vector.multi_reduction <maximumf>, %123, %cst_33 [2] : vector<2x4x4xf32> to vector<2x4xf32>
    %125 = vector.shape_cast %124 : vector<2x4xf32> to vector<2x4x1xf32>
    %126 = vector.broadcast %125 : vector<2x4x1xf32> to vector<2x4x4xf32>
    %127 = arith.subf %123, %126 : vector<2x4x4xf32>
    %128 = math.exp %127 : vector<2x4x4xf32>
    %cst_34 = arith.constant dense<0.000000e+00> : vector<2x4xf32>
    %129 = vector.multi_reduction <add>, %128, %cst_34 [2] : vector<2x4x4xf32> to vector<2x4xf32>
    %130 = vector.shape_cast %129 : vector<2x4xf32> to vector<2x4x1xf32>
    %131 = tpu.reciprocal %130 {approx = true} : vector<2x4x1xf32> -> vector<2x4x1xf32>
    %132 = vector.broadcast %131 : vector<2x4x1xf32> to vector<2x4x4xf32>
    %133 = arith.mulf %128, %132 : vector<2x4x4xf32>
    %134 = arith.truncf %133 : vector<2x4x4xf32> to vector<2x4x4xbf16>
    "tpu.trace_start"() <{level = 10 : i32, message = "bqk,bkd->bqd"}> : () -> ()
    %cst_35 = arith.constant dense<0.000000e+00> : vector<2x4x16xf32>
    %135 = tpu.matmul %134, %120, %cst_35 {dimension_numbers = #tpu.dot_dimension_numbers<[2], [1], [1], [2], [0, 0, 0, 1, 1, 2], [0], [0]>} : vector<2x4x4xbf16>, vector<2x4x16xbf16>, vector<2x4x16xf32> -> vector<2x4x16xf32>
    "tpu.trace_stop"() : () -> ()
    %136 = tpu.concatenate %72, %93, %114, %135 in 2 : vector<2x4x16xf32>, vector<2x4x16xf32>, vector<2x4x16xf32>, vector<2x4x16xf32> -> vector<2x4x64xf32>
    %137 = vector.shape_cast %136 : vector<2x4x64xf32> to vector<8x64xf32>
    %138 = arith.truncf %137 : vector<8x64xf32> to vector<8x64xbf16>
    %c0_36 = arith.constant 0 : index
    %c0_37 = arith.constant 0 : index
    %c0_38 = arith.constant 0 : index
    %139 = vector.load %arg3[%c0_36, %c0_37, %c0_38] : memref<1x64x64xbf16, #tpu.memory_space<vmem>>, vector<1x64x64xbf16>
    %140 = vector.shape_cast %139 : vector<1x64x64xbf16> to vector<64x64xbf16>
    %cst_39 = arith.constant dense<0.000000e+00> : vector<8x64xf32>
    %141 = tpu.matmul %138, %140, %cst_39 {dimension_numbers = #tpu.dot_dimension_numbers<[1], [0], [0], [1], [0, 0, 1, 1], [], []>} : vector<8x64xbf16>, vector<64x64xbf16>, vector<8x64xf32> -> vector<8x64xf32>
    %142 = arith.addf %4, %141 : vector<8x64xf32>
    %143 = vector.extract_strided_slice %6 {offsets = [7, 0], sizes = [1, 64], strides = [1, 1]} : vector<9x64xf32> to vector<1x64xf32>
    %144 = vector.broadcast %143 : vector<1x64xf32> to vector<8x64xf32>
    %145 = arith.addf %142, %144 : vector<8x64xf32>
    %146 = vector.extract_strided_slice %6 {offsets = [2, 0], sizes = [1, 64], strides = [1, 1]} : vector<9x64xf32> to vector<1x64xf32>
    %147 = vector.extract_strided_slice %6 {offsets = [3, 0], sizes = [1, 64], strides = [1, 1]} : vector<9x64xf32> to vector<1x64xf32>
    %cst_40 = arith.constant dense<0.000000e+00> : vector<8xf32>
    %148 = vector.multi_reduction <add>, %145, %cst_40 [1] : vector<8x64xf32> to vector<8xf32>
    %149 = vector.shape_cast %148 : vector<8xf32> to vector<8x1xf32>
    %cst_41 = arith.constant 6.400000e+01 : f32
    %150 = vector.broadcast %cst_41 : f32 to vector<8x1xf32>
    %151 = arith.divf %149, %150 : vector<8x1xf32>
    %152 = vector.broadcast %151 : vector<8x1xf32> to vector<8x64xf32>
    %153 = arith.subf %145, %152 : vector<8x64xf32>
    %154 = arith.mulf %153, %153 : vector<8x64xf32>
    %cst_42 = arith.constant dense<0.000000e+00> : vector<8xf32>
    %155 = vector.multi_reduction <add>, %154, %cst_42 [1] : vector<8x64xf32> to vector<8xf32>
    %156 = vector.shape_cast %155 : vector<8xf32> to vector<8x1xf32>
    %cst_43 = arith.constant 6.400000e+01 : f32
    %157 = vector.broadcast %cst_43 : f32 to vector<8x1xf32>
    %158 = arith.divf %156, %157 : vector<8x1xf32>
    %159 = vector.broadcast %151 : vector<8x1xf32> to vector<8x64xf32>
    %160 = arith.subf %145, %159 : vector<8x64xf32>
    %cst_44 = arith.constant 9.99999974E-6 : f32
    %161 = vector.broadcast %cst_44 : f32 to vector<8x1xf32>
    %162 = arith.addf %158, %161 : vector<8x1xf32>
    %163 = math.rsqrt %162 : vector<8x1xf32>
    %164 = vector.broadcast %163 : vector<8x1xf32> to vector<8x64xf32>
    %165 = arith.mulf %160, %164 : vector<8x64xf32>
    %166 = vector.broadcast %146 : vector<1x64xf32> to vector<8x64xf32>
    %167 = arith.mulf %165, %166 : vector<8x64xf32>
    %168 = vector.broadcast %147 : vector<1x64xf32> to vector<8x64xf32>
    %169 = arith.addf %167, %168 : vector<8x64xf32>
    %170 = arith.truncf %169 : vector<8x64xf32> to vector<8x64xbf16>
    %c0_45 = arith.constant 0 : index
    %c0_46 = arith.constant 0 : index
    %c0_47 = arith.constant 0 : index
    %171 = vector.load %arg4[%c0_45, %c0_46, %c0_47] : memref<1x64x256xbf16, #tpu.memory_space<vmem>>, vector<1x64x256xbf16>
    %172 = vector.shape_cast %171 : vector<1x64x256xbf16> to vector<64x256xbf16>
    %cst_48 = arith.constant dense<0.000000e+00> : vector<8x256xf32>
    %173 = tpu.matmul %170, %172, %cst_48 {dimension_numbers = #tpu.dot_dimension_numbers<[1], [0], [0], [1], [0, 0, 1, 1], [], []>} : vector<8x64xbf16>, vector<64x256xbf16>, vector<8x256xf32> -> vector<8x256xf32>
    %174 = vector.broadcast %8 : vector<1x256xf32> to vector<8x256xf32>
    %175 = arith.addf %173, %174 : vector<8x256xf32>
    %cst_49 = arith.constant 5.000000e-01 : f32
    %176 = vector.broadcast %cst_49 : f32 to vector<8x256xf32>
    %177 = arith.mulf %176, %175 : vector<8x256xf32>
    %cst_50 = arith.constant 4.471500e-02 : f32
    %178 = vector.broadcast %cst_50 : f32 to vector<8x256xf32>
    %179 = arith.mulf %178, %175 : vector<8x256xf32>
    %180 = arith.mulf %179, %175 : vector<8x256xf32>
    %181 = arith.mulf %180, %175 : vector<8x256xf32>
    %182 = arith.addf %175, %181 : vector<8x256xf32>
    %cst_51 = arith.constant 0.797884583 : f32
    %183 = vector.broadcast %cst_51 : f32 to vector<8x256xf32>
    %184 = arith.mulf %183, %182 : vector<8x256xf32>
    %185 = math.tanh %184 : vector<8x256xf32>
    %cst_52 = arith.constant 1.000000e+00 : f32
    %186 = vector.broadcast %cst_52 : f32 to vector<8x256xf32>
    %187 = arith.addf %186, %185 : vector<8x256xf32>
    %188 = arith.mulf %177, %187 : vector<8x256xf32>
    %189 = arith.truncf %188 : vector<8x256xf32> to vector<8x256xbf16>
    %c0_53 = arith.constant 0 : index
    %c0_54 = arith.constant 0 : index
    %c0_55 = arith.constant 0 : index
    %190 = vector.load %arg5[%c0_53, %c0_54, %c0_55] : memref<1x256x64xbf16, #tpu.memory_space<vmem>>, vector<1x256x64xbf16>
    %191 = vector.shape_cast %190 : vector<1x256x64xbf16> to vector<256x64xbf16>
    %cst_56 = arith.constant dense<0.000000e+00> : vector<8x64xf32>
    %192 = tpu.matmul %189, %191, %cst_56 {dimension_numbers = #tpu.dot_dimension_numbers<[1], [0], [0], [1], [0, 0, 1, 1], [], []>} : vector<8x256xbf16>, vector<256x64xbf16>, vector<8x64xf32> -> vector<8x64xf32>
    %193 = arith.addf %145, %192 : vector<8x64xf32>
    %194 = vector.extract_strided_slice %6 {offsets = [8, 0], sizes = [1, 64], strides = [1, 1]} : vector<9x64xf32> to vector<1x64xf32>
    %195 = vector.broadcast %194 : vector<1x64xf32> to vector<8x64xf32>
    %196 = arith.addf %193, %195 : vector<8x64xf32>
    %197 = arith.truncf %196 : vector<8x64xf32> to vector<8x64xbf16>
    %c0_57 = arith.constant 0 : index
    %c0_58 = arith.constant 0 : index
    %198 = vector.load %arg8[%c0_57, %c0_58] : memref<8x64xbf16, #tpu.memory_space<vmem>>, vector<8x64xbf16>
    tpu.vector_store %arg8[%c0_57, %c0_58], %197 {strides = array<i32>} : memref<8x64xbf16, #tpu.memory_space<vmem>>, vector<8x64xbf16>,
    return
  }
  func.func @transform_0(%arg0: i32) -> (i32, i32) {
    %c0_i32 = arith.constant 0 : i32
    %c0_i32_0 = arith.constant 0 : i32
    %c0_i32_1 = arith.constant 0 : i32
    return %c0_i32, %c0_i32_0 : i32, i32
  }
  func.func @transform_1(%arg0: i32) -> (i32, i32, i32) {
    %c0_i32 = arith.constant 0 : i32
    %c0_i32_0 = arith.constant 0 : i32
    %c0_i32_1 = arith.constant 0 : i32
    return %arg0, %c0_i32, %c0_i32_0 : i32, i32, i32
  }
  func.func @transform_2(%arg0: i32) -> (i32, i32, i32) {
    %c0_i32 = arith.constant 0 : i32
    %c0_i32_0 = arith.constant 0 : i32
    %c0_i32_1 = arith.constant 0 : i32
    return %arg0, %c0_i32, %c0_i32_0 : i32, i32, i32
  }
  func.func @transform_3(%arg0: i32) -> (i32, i32, i32) {
    %c0_i32 = arith.constant 0 : i32
    %c0_i32_0 = arith.constant 0 : i32
    %c0_i32_1 = arith.constant 0 : i32
    return %arg0, %c0_i32, %c0_i32_0 : i32, i32, i32
  }
  func.func @transform_4(%arg0: i32) -> (i32, i32, i32) {
    %c0_i32 = arith.constant 0 : i32
    %c0_i32_0 = arith.constant 0 : i32
    %c0_i32_1 = arith.constant 0 : i32
    return %arg0, %c0_i32, %c0_i32_0 : i32, i32, i32
  }
  func.func @transform_5(%arg0: i32) -> (i32, i32, i32) {
    %c0_i32 = arith.constant 0 : i32
    %c0_i32_0 = arith.constant 0 : i32
    %c0_i32_1 = arith.constant 0 : i32
    return %arg0, %c0_i32, %c0_i32_0 : i32, i32, i32
  }
  func.func @transform_6(%arg0: i32) -> (i32, i32, i32) {
    %c0_i32 = arith.constant 0 : i32
    %c0_i32_0 = arith.constant 0 : i32
    %c0_i32_1 = arith.constant 0 : i32
    return %arg0, %c0_i32, %c0_i32_0 : i32, i32, i32
  }
  func.func @transform_7(%arg0: i32) -> (i32, i32) {
    %c0_i32 = arith.constant 0 : i32
    %c0_i32_0 = arith.constant 0 : i32
    %c0_i32_1 = arith.constant 0 : i32
    return %c0_i32, %c0_i32_0 : i32, i32
  }
}

module attributes {stable_mosaic.version = 11 : i64} {
  func.func @_cross_tail_kernel(%arg0: memref<8x128xbf16, #tpu.memory_space<vmem>>, %arg1: memref<8x64xbf16, #tpu.memory_space<vmem>>, %arg2: memref<3x128xf32, #tpu.memory_space<vmem>>, %arg3: memref<2x64xf32, #tpu.memory_space<vmem>>, %arg4: memref<64x128xbf16, #tpu.memory_space<vmem>>, %arg5: memref<2x128x128xbf16, #tpu.memory_space<vmem>>, %arg6: memref<2x128x128xbf16, #tpu.memory_space<vmem>>, %arg7: memref<2x128x256xbf16, #tpu.memory_space<vmem>>, %arg8: memref<2x256x128xbf16, #tpu.memory_space<vmem>>, %arg9: memref<2x7x128xf32, #tpu.memory_space<vmem>>, %arg10: memref<2x1x256xf32, #tpu.memory_space<vmem>>, %arg11: memref<2x128xf32, #tpu.memory_space<vmem>>, %arg12: memref<2x128xf32, #tpu.memory_space<vmem>>) attributes {dimension_semantics = [], scalar_prefetch = 0 : i64, scratch_operands = 0 : i64, tpu.core_type = #tpu.core_type<tc>} {
    %c0 = arith.constant 0 : index
    %c0_0 = arith.constant 0 : index
    %0 = vector.load %arg0[%c0, %c0_0] : memref<8x128xbf16, #tpu.memory_space<vmem>>, vector<8x128xbf16>
    %1 = arith.extf %0 : vector<8x128xbf16> to vector<8x128xf32>
    %c0_1 = arith.constant 0 : index
    %c0_2 = arith.constant 0 : index
    %2 = vector.load %arg1[%c0_1, %c0_2] : memref<8x64xbf16, #tpu.memory_space<vmem>>, vector<8x64xbf16>
    %3 = arith.extf %2 : vector<8x64xbf16> to vector<8x64xf32>
    %c0_3 = arith.constant 0 : index
    %c0_4 = arith.constant 0 : index
    %4 = vector.load %arg2[%c0_3, %c0_4] : memref<3x128xf32, #tpu.memory_space<vmem>>, vector<3x128xf32>
    %c0_5 = arith.constant 0 : index
    %c0_6 = arith.constant 0 : index
    %5 = vector.load %arg3[%c0_5, %c0_6] : memref<2x64xf32, #tpu.memory_space<vmem>>, vector<2x64xf32>
    %c0_7 = arith.constant 0 : index
    %c0_8 = arith.constant 0 : index
    %6 = vector.load %arg4[%c0_7, %c0_8] : memref<64x128xbf16, #tpu.memory_space<vmem>>, vector<64x128xbf16>
    %7 = vector.shape_cast %1 : vector<8x128xf32> to vector<2x4x128xf32>
    %cst = arith.constant dense<0.000000e+00> : vector<2x128xf32>
    %8 = vector.multi_reduction <add>, %7, %cst [1] : vector<2x4x128xf32> to vector<2x128xf32>
    %cst_9 = arith.constant 4.000000e+00 : f32
    %9 = vector.broadcast %cst_9 : f32 to vector<2x128xf32>
    %10 = arith.divf %8, %9 : vector<2x128xf32>
    %11 = vector.extract_strided_slice %4 {offsets = [0, 0], sizes = [1, 128], strides = [1, 1]} : vector<3x128xf32> to vector<1x128xf32>
    %12 = vector.extract_strided_slice %4 {offsets = [1, 0], sizes = [1, 128], strides = [1, 1]} : vector<3x128xf32> to vector<1x128xf32>
    %cst_10 = arith.constant dense<0.000000e+00> : vector<2xf32>
    %13 = vector.multi_reduction <add>, %10, %cst_10 [1] : vector<2x128xf32> to vector<2xf32>
    %14 = vector.shape_cast %13 : vector<2xf32> to vector<2x1xf32>
    %cst_11 = arith.constant 1.280000e+02 : f32
    %15 = vector.broadcast %cst_11 : f32 to vector<2x1xf32>
    %16 = arith.divf %14, %15 : vector<2x1xf32>
    %17 = vector.broadcast %16 : vector<2x1xf32> to vector<2x128xf32>
    %18 = arith.subf %10, %17 : vector<2x128xf32>
    %19 = arith.mulf %18, %18 : vector<2x128xf32>
    %cst_12 = arith.constant dense<0.000000e+00> : vector<2xf32>
    %20 = vector.multi_reduction <add>, %19, %cst_12 [1] : vector<2x128xf32> to vector<2xf32>
    %21 = vector.shape_cast %20 : vector<2xf32> to vector<2x1xf32>
    %cst_13 = arith.constant 1.280000e+02 : f32
    %22 = vector.broadcast %cst_13 : f32 to vector<2x1xf32>
    %23 = arith.divf %21, %22 : vector<2x1xf32>
    %24 = vector.broadcast %16 : vector<2x1xf32> to vector<2x128xf32>
    %25 = arith.subf %10, %24 : vector<2x128xf32>
    %cst_14 = arith.constant 9.99999974E-6 : f32
    %26 = vector.broadcast %cst_14 : f32 to vector<2x1xf32>
    %27 = arith.addf %23, %26 : vector<2x1xf32>
    %28 = math.rsqrt %27 : vector<2x1xf32>
    %29 = vector.broadcast %28 : vector<2x1xf32> to vector<2x128xf32>
    %30 = arith.mulf %25, %29 : vector<2x128xf32>
    %31 = vector.broadcast %11 : vector<1x128xf32> to vector<2x128xf32>
    %32 = arith.mulf %30, %31 : vector<2x128xf32>
    %33 = vector.broadcast %12 : vector<1x128xf32> to vector<2x128xf32>
    %34 = arith.addf %32, %33 : vector<2x128xf32>
    %35 = vector.shape_cast %3 : vector<8x64xf32> to vector<2x4x64xf32>
    %cst_15 = arith.constant dense<0.000000e+00> : vector<2x64xf32>
    %36 = vector.multi_reduction <add>, %35, %cst_15 [1] : vector<2x4x64xf32> to vector<2x64xf32>
    %cst_16 = arith.constant 4.000000e+00 : f32
    %37 = vector.broadcast %cst_16 : f32 to vector<2x64xf32>
    %38 = arith.divf %36, %37 : vector<2x64xf32>
    %39 = vector.extract_strided_slice %5 {offsets = [0, 0], sizes = [1, 64], strides = [1, 1]} : vector<2x64xf32> to vector<1x64xf32>
    %40 = vector.extract_strided_slice %5 {offsets = [1, 0], sizes = [1, 64], strides = [1, 1]} : vector<2x64xf32> to vector<1x64xf32>
    %cst_17 = arith.constant dense<0.000000e+00> : vector<2xf32>
    %41 = vector.multi_reduction <add>, %38, %cst_17 [1] : vector<2x64xf32> to vector<2xf32>
    %42 = vector.shape_cast %41 : vector<2xf32> to vector<2x1xf32>
    %cst_18 = arith.constant 6.400000e+01 : f32
    %43 = vector.broadcast %cst_18 : f32 to vector<2x1xf32>
    %44 = arith.divf %42, %43 : vector<2x1xf32>
    %45 = vector.broadcast %44 : vector<2x1xf32> to vector<2x64xf32>
    %46 = arith.subf %38, %45 : vector<2x64xf32>
    %47 = arith.mulf %46, %46 : vector<2x64xf32>
    %cst_19 = arith.constant dense<0.000000e+00> : vector<2xf32>
    %48 = vector.multi_reduction <add>, %47, %cst_19 [1] : vector<2x64xf32> to vector<2xf32>
    %49 = vector.shape_cast %48 : vector<2xf32> to vector<2x1xf32>
    %cst_20 = arith.constant 6.400000e+01 : f32
    %50 = vector.broadcast %cst_20 : f32 to vector<2x1xf32>
    %51 = arith.divf %49, %50 : vector<2x1xf32>
    %52 = vector.broadcast %44 : vector<2x1xf32> to vector<2x64xf32>
    %53 = arith.subf %38, %52 : vector<2x64xf32>
    %cst_21 = arith.constant 9.99999974E-6 : f32
    %54 = vector.broadcast %cst_21 : f32 to vector<2x1xf32>
    %55 = arith.addf %51, %54 : vector<2x1xf32>
    %56 = math.rsqrt %55 : vector<2x1xf32>
    %57 = vector.broadcast %56 : vector<2x1xf32> to vector<2x64xf32>
    %58 = arith.mulf %53, %57 : vector<2x64xf32>
    %59 = vector.broadcast %39 : vector<1x64xf32> to vector<2x64xf32>
    %60 = arith.mulf %58, %59 : vector<2x64xf32>
    %61 = vector.broadcast %40 : vector<1x64xf32> to vector<2x64xf32>
    %62 = arith.addf %60, %61 : vector<2x64xf32>
    %63 = arith.truncf %62 : vector<2x64xf32> to vector<2x64xbf16>
    %cst_22 = arith.constant dense<0.000000e+00> : vector<2x128xf32>
    %64 = tpu.matmul %63, %6, %cst_22 {dimension_numbers = #tpu.dot_dimension_numbers<[1], [0], [0], [1], [0, 0, 1, 1], [], []>} : vector<2x64xbf16>, vector<64x128xbf16>, vector<2x128xf32> -> vector<2x128xf32>
    %65 = vector.extract_strided_slice %4 {offsets = [2, 0], sizes = [1, 128], strides = [1, 1]} : vector<3x128xf32> to vector<1x128xf32>
    %66 = vector.broadcast %65 : vector<1x128xf32> to vector<2x128xf32>
    %67 = arith.addf %64, %66 : vector<2x128xf32>
    %c0_23 = arith.constant 0 : index
    %c0_24 = arith.constant 0 : index
    %c0_25 = arith.constant 0 : index
    %68 = vector.load %arg5[%c0_23, %c0_24, %c0_25] : memref<2x128x128xbf16, #tpu.memory_space<vmem>>, vector<2x128x128xbf16>
    %c0_26 = arith.constant 0 : index
    %c0_27 = arith.constant 0 : index
    %c0_28 = arith.constant 0 : index
    %69 = vector.load %arg6[%c0_26, %c0_27, %c0_28] : memref<2x128x128xbf16, #tpu.memory_space<vmem>>, vector<2x128x128xbf16>
    %c0_29 = arith.constant 0 : index
    %c0_30 = arith.constant 0 : index
    %c0_31 = arith.constant 0 : index
    %70 = vector.load %arg7[%c0_29, %c0_30, %c0_31] : memref<2x128x256xbf16, #tpu.memory_space<vmem>>, vector<2x128x256xbf16>
    %c0_32 = arith.constant 0 : index
    %c0_33 = arith.constant 0 : index
    %c0_34 = arith.constant 0 : index
    %71 = vector.load %arg8[%c0_32, %c0_33, %c0_34] : memref<2x256x128xbf16, #tpu.memory_space<vmem>>, vector<2x256x128xbf16>
    %c0_35 = arith.constant 0 : index
    %c0_36 = arith.constant 0 : index
    %c0_37 = arith.constant 0 : index
    %72 = vector.load %arg9[%c0_35, %c0_36, %c0_37] : memref<2x7x128xf32, #tpu.memory_space<vmem>>, vector<2x7x128xf32>
    %c0_38 = arith.constant 0 : index
    %c0_39 = arith.constant 0 : index
    %c0_40 = arith.constant 0 : index
    %73 = vector.load %arg10[%c0_38, %c0_39, %c0_40] : memref<2x1x256xf32, #tpu.memory_space<vmem>>, vector<2x1x256xf32>
    %74 = vector.extract_strided_slice %72 {offsets = [0, 0, 0], sizes = [1, 1, 128], strides = [1, 1, 1]} : vector<2x7x128xf32> to vector<1x1x128xf32>
    %75 = vector.shape_cast %74 : vector<1x1x128xf32> to vector<1x128xf32>
    %76 = vector.extract_strided_slice %72 {offsets = [0, 1, 0], sizes = [1, 1, 128], strides = [1, 1, 1]} : vector<2x7x128xf32> to vector<1x1x128xf32>
    %77 = vector.shape_cast %76 : vector<1x1x128xf32> to vector<1x128xf32>
    %cst_41 = arith.constant dense<0.000000e+00> : vector<2xf32>
    %78 = vector.multi_reduction <add>, %34, %cst_41 [1] : vector<2x128xf32> to vector<2xf32>
    %79 = vector.shape_cast %78 : vector<2xf32> to vector<2x1xf32>
    %cst_42 = arith.constant 1.280000e+02 : f32
    %80 = vector.broadcast %cst_42 : f32 to vector<2x1xf32>
    %81 = arith.divf %79, %80 : vector<2x1xf32>
    %82 = vector.broadcast %81 : vector<2x1xf32> to vector<2x128xf32>
    %83 = arith.subf %34, %82 : vector<2x128xf32>
    %84 = arith.mulf %83, %83 : vector<2x128xf32>
    %cst_43 = arith.constant dense<0.000000e+00> : vector<2xf32>
    %85 = vector.multi_reduction <add>, %84, %cst_43 [1] : vector<2x128xf32> to vector<2xf32>
    %86 = vector.shape_cast %85 : vector<2xf32> to vector<2x1xf32>
    %cst_44 = arith.constant 1.280000e+02 : f32
    %87 = vector.broadcast %cst_44 : f32 to vector<2x1xf32>
    %88 = arith.divf %86, %87 : vector<2x1xf32>
    %89 = vector.broadcast %81 : vector<2x1xf32> to vector<2x128xf32>
    %90 = arith.subf %34, %89 : vector<2x128xf32>
    %cst_45 = arith.constant 9.99999974E-6 : f32
    %91 = vector.broadcast %cst_45 : f32 to vector<2x1xf32>
    %92 = arith.addf %88, %91 : vector<2x1xf32>
    %93 = math.rsqrt %92 : vector<2x1xf32>
    %94 = vector.broadcast %93 : vector<2x1xf32> to vector<2x128xf32>
    %95 = arith.mulf %90, %94 : vector<2x128xf32>
    %96 = vector.broadcast %75 : vector<1x128xf32> to vector<2x128xf32>
    %97 = arith.mulf %95, %96 : vector<2x128xf32>
    %98 = vector.broadcast %77 : vector<1x128xf32> to vector<2x128xf32>
    %99 = arith.addf %97, %98 : vector<2x128xf32>
    %100 = vector.extract_strided_slice %72 {offsets = [1, 0, 0], sizes = [1, 1, 128], strides = [1, 1, 1]} : vector<2x7x128xf32> to vector<1x1x128xf32>
    %101 = vector.shape_cast %100 : vector<1x1x128xf32> to vector<1x128xf32>
    %102 = vector.extract_strided_slice %72 {offsets = [1, 1, 0], sizes = [1, 1, 128], strides = [1, 1, 1]} : vector<2x7x128xf32> to vector<1x1x128xf32>
    %103 = vector.shape_cast %102 : vector<1x1x128xf32> to vector<1x128xf32>
    %cst_46 = arith.constant dense<0.000000e+00> : vector<2xf32>
    %104 = vector.multi_reduction <add>, %67, %cst_46 [1] : vector<2x128xf32> to vector<2xf32>
    %105 = vector.shape_cast %104 : vector<2xf32> to vector<2x1xf32>
    %cst_47 = arith.constant 1.280000e+02 : f32
    %106 = vector.broadcast %cst_47 : f32 to vector<2x1xf32>
    %107 = arith.divf %105, %106 : vector<2x1xf32>
    %108 = vector.broadcast %107 : vector<2x1xf32> to vector<2x128xf32>
    %109 = arith.subf %67, %108 : vector<2x128xf32>
    %110 = arith.mulf %109, %109 : vector<2x128xf32>
    %cst_48 = arith.constant dense<0.000000e+00> : vector<2xf32>
    %111 = vector.multi_reduction <add>, %110, %cst_48 [1] : vector<2x128xf32> to vector<2xf32>
    %112 = vector.shape_cast %111 : vector<2xf32> to vector<2x1xf32>
    %cst_49 = arith.constant 1.280000e+02 : f32
    %113 = vector.broadcast %cst_49 : f32 to vector<2x1xf32>
    %114 = arith.divf %112, %113 : vector<2x1xf32>
    %115 = vector.broadcast %107 : vector<2x1xf32> to vector<2x128xf32>
    %116 = arith.subf %67, %115 : vector<2x128xf32>
    %cst_50 = arith.constant 9.99999974E-6 : f32
    %117 = vector.broadcast %cst_50 : f32 to vector<2x1xf32>
    %118 = arith.addf %114, %117 : vector<2x1xf32>
    %119 = math.rsqrt %118 : vector<2x1xf32>
    %120 = vector.broadcast %119 : vector<2x1xf32> to vector<2x128xf32>
    %121 = arith.mulf %116, %120 : vector<2x128xf32>
    %122 = vector.broadcast %101 : vector<1x128xf32> to vector<2x128xf32>
    %123 = arith.mulf %121, %122 : vector<2x128xf32>
    %124 = vector.broadcast %103 : vector<1x128xf32> to vector<2x128xf32>
    %125 = arith.addf %123, %124 : vector<2x128xf32>
    %126 = vector.shape_cast %125 : vector<2x128xf32> to vector<1x2x128xf32>
    %127 = vector.shape_cast %99 : vector<2x128xf32> to vector<1x2x128xf32>
    %128 = tpu.concatenate %126, %127 in 0 : vector<1x2x128xf32>, vector<1x2x128xf32> -> vector<2x2x128xf32>
    %129 = arith.truncf %128 : vector<2x2x128xf32> to vector<2x2x128xbf16>
    "tpu.trace_start"() <{level = 10 : i32, message = "sbd,sde->sbe"}> : () -> ()
    %cst_51 = arith.constant dense<0.000000e+00> : vector<2x2x128xf32>
    %130 = tpu.matmul %129, %68, %cst_51 {dimension_numbers = #tpu.dot_dimension_numbers<[2], [1], [1], [2], [0, 0, 0, 1, 1, 2], [0], [0]>} : vector<2x2x128xbf16>, vector<2x128x128xbf16>, vector<2x2x128xf32> -> vector<2x2x128xf32>
    "tpu.trace_stop"() : () -> ()
    %131 = vector.extract_strided_slice %72 {offsets = [0, 2, 0], sizes = [2, 1, 128], strides = [1, 1, 1]} : vector<2x7x128xf32> to vector<2x1x128xf32>
    %132 = vector.broadcast %131 : vector<2x1x128xf32> to vector<2x2x128xf32>
    %133 = arith.addf %130, %132 : vector<2x2x128xf32>
    %134 = arith.truncf %133 : vector<2x2x128xf32> to vector<2x2x128xbf16>
    "tpu.trace_start"() <{level = 10 : i32, message = "sbd,sde->sbe"}> : () -> ()
    %cst_52 = arith.constant dense<0.000000e+00> : vector<2x2x128xf32>
    %135 = tpu.matmul %134, %69, %cst_52 {dimension_numbers = #tpu.dot_dimension_numbers<[2], [1], [1], [2], [0, 0, 0, 1, 1, 2], [0], [0]>} : vector<2x2x128xbf16>, vector<2x128x128xbf16>, vector<2x2x128xf32> -> vector<2x2x128xf32>
    "tpu.trace_stop"() : () -> ()
    %136 = vector.extract_strided_slice %72 {offsets = [0, 3, 0], sizes = [2, 1, 128], strides = [1, 1, 1]} : vector<2x7x128xf32> to vector<2x1x128xf32>
    %137 = vector.broadcast %136 : vector<2x1x128xf32> to vector<2x2x128xf32>
    %138 = arith.addf %135, %137 : vector<2x2x128xf32>
    %139 = vector.extract_strided_slice %138 {offsets = [0, 0, 0], sizes = [1, 2, 128], strides = [1, 1, 1]} : vector<2x2x128xf32> to vector<1x2x128xf32>
    %140 = vector.shape_cast %139 : vector<1x2x128xf32> to vector<2x128xf32>
    %141 = arith.addf %34, %140 : vector<2x128xf32>
    %142 = vector.extract_strided_slice %138 {offsets = [1, 0, 0], sizes = [1, 2, 128], strides = [1, 1, 1]} : vector<2x2x128xf32> to vector<1x2x128xf32>
    %143 = vector.shape_cast %142 : vector<1x2x128xf32> to vector<2x128xf32>
    %144 = arith.addf %67, %143 : vector<2x128xf32>
    %145 = vector.extract_strided_slice %72 {offsets = [0, 4, 0], sizes = [1, 1, 128], strides = [1, 1, 1]} : vector<2x7x128xf32> to vector<1x1x128xf32>
    %146 = vector.shape_cast %145 : vector<1x1x128xf32> to vector<1x128xf32>
    %147 = vector.extract_strided_slice %72 {offsets = [0, 5, 0], sizes = [1, 1, 128], strides = [1, 1, 1]} : vector<2x7x128xf32> to vector<1x1x128xf32>
    %148 = vector.shape_cast %147 : vector<1x1x128xf32> to vector<1x128xf32>
    %cst_53 = arith.constant dense<0.000000e+00> : vector<2xf32>
    %149 = vector.multi_reduction <add>, %141, %cst_53 [1] : vector<2x128xf32> to vector<2xf32>
    %150 = vector.shape_cast %149 : vector<2xf32> to vector<2x1xf32>
    %cst_54 = arith.constant 1.280000e+02 : f32
    %151 = vector.broadcast %cst_54 : f32 to vector<2x1xf32>
    %152 = arith.divf %150, %151 : vector<2x1xf32>
    %153 = vector.broadcast %152 : vector<2x1xf32> to vector<2x128xf32>
    %154 = arith.subf %141, %153 : vector<2x128xf32>
    %155 = arith.mulf %154, %154 : vector<2x128xf32>
    %cst_55 = arith.constant dense<0.000000e+00> : vector<2xf32>
    %156 = vector.multi_reduction <add>, %155, %cst_55 [1] : vector<2x128xf32> to vector<2xf32>
    %157 = vector.shape_cast %156 : vector<2xf32> to vector<2x1xf32>
    %cst_56 = arith.constant 1.280000e+02 : f32
    %158 = vector.broadcast %cst_56 : f32 to vector<2x1xf32>
    %159 = arith.divf %157, %158 : vector<2x1xf32>
    %160 = vector.broadcast %152 : vector<2x1xf32> to vector<2x128xf32>
    %161 = arith.subf %141, %160 : vector<2x128xf32>
    %cst_57 = arith.constant 9.99999974E-6 : f32
    %162 = vector.broadcast %cst_57 : f32 to vector<2x1xf32>
    %163 = arith.addf %159, %162 : vector<2x1xf32>
    %164 = math.rsqrt %163 : vector<2x1xf32>
    %165 = vector.broadcast %164 : vector<2x1xf32> to vector<2x128xf32>
    %166 = arith.mulf %161, %165 : vector<2x128xf32>
    %167 = vector.broadcast %146 : vector<1x128xf32> to vector<2x128xf32>
    %168 = arith.mulf %166, %167 : vector<2x128xf32>
    %169 = vector.broadcast %148 : vector<1x128xf32> to vector<2x128xf32>
    %170 = arith.addf %168, %169 : vector<2x128xf32>
    %171 = vector.extract_strided_slice %72 {offsets = [1, 4, 0], sizes = [1, 1, 128], strides = [1, 1, 1]} : vector<2x7x128xf32> to vector<1x1x128xf32>
    %172 = vector.shape_cast %171 : vector<1x1x128xf32> to vector<1x128xf32>
    %173 = vector.extract_strided_slice %72 {offsets = [1, 5, 0], sizes = [1, 1, 128], strides = [1, 1, 1]} : vector<2x7x128xf32> to vector<1x1x128xf32>
    %174 = vector.shape_cast %173 : vector<1x1x128xf32> to vector<1x128xf32>
    %cst_58 = arith.constant dense<0.000000e+00> : vector<2xf32>
    %175 = vector.multi_reduction <add>, %144, %cst_58 [1] : vector<2x128xf32> to vector<2xf32>
    %176 = vector.shape_cast %175 : vector<2xf32> to vector<2x1xf32>
    %cst_59 = arith.constant 1.280000e+02 : f32
    %177 = vector.broadcast %cst_59 : f32 to vector<2x1xf32>
    %178 = arith.divf %176, %177 : vector<2x1xf32>
    %179 = vector.broadcast %178 : vector<2x1xf32> to vector<2x128xf32>
    %180 = arith.subf %144, %179 : vector<2x128xf32>
    %181 = arith.mulf %180, %180 : vector<2x128xf32>
    %cst_60 = arith.constant dense<0.000000e+00> : vector<2xf32>
    %182 = vector.multi_reduction <add>, %181, %cst_60 [1] : vector<2x128xf32> to vector<2xf32>
    %183 = vector.shape_cast %182 : vector<2xf32> to vector<2x1xf32>
    %cst_61 = arith.constant 1.280000e+02 : f32
    %184 = vector.broadcast %cst_61 : f32 to vector<2x1xf32>
    %185 = arith.divf %183, %184 : vector<2x1xf32>
    %186 = vector.broadcast %178 : vector<2x1xf32> to vector<2x128xf32>
    %187 = arith.subf %144, %186 : vector<2x128xf32>
    %cst_62 = arith.constant 9.99999974E-6 : f32
    %188 = vector.broadcast %cst_62 : f32 to vector<2x1xf32>
    %189 = arith.addf %185, %188 : vector<2x1xf32>
    %190 = math.rsqrt %189 : vector<2x1xf32>
    %191 = vector.broadcast %190 : vector<2x1xf32> to vector<2x128xf32>
    %192 = arith.mulf %187, %191 : vector<2x128xf32>
    %193 = vector.broadcast %172 : vector<1x128xf32> to vector<2x128xf32>
    %194 = arith.mulf %192, %193 : vector<2x128xf32>
    %195 = vector.broadcast %174 : vector<1x128xf32> to vector<2x128xf32>
    %196 = arith.addf %194, %195 : vector<2x128xf32>
    %197 = vector.shape_cast %170 : vector<2x128xf32> to vector<1x2x128xf32>
    %198 = vector.shape_cast %196 : vector<2x128xf32> to vector<1x2x128xf32>
    %199 = tpu.concatenate %197, %198 in 0 : vector<1x2x128xf32>, vector<1x2x128xf32> -> vector<2x2x128xf32>
    %200 = arith.truncf %199 : vector<2x2x128xf32> to vector<2x2x128xbf16>
    "tpu.trace_start"() <{level = 10 : i32, message = "sbd,sdh->sbh"}> : () -> ()
    %cst_63 = arith.constant dense<0.000000e+00> : vector<2x2x256xf32>
    %201 = tpu.matmul %200, %70, %cst_63 {dimension_numbers = #tpu.dot_dimension_numbers<[2], [1], [1], [2], [0, 0, 0, 1, 1, 2], [0], [0]>} : vector<2x2x128xbf16>, vector<2x128x256xbf16>, vector<2x2x256xf32> -> vector<2x2x256xf32>
    "tpu.trace_stop"() : () -> ()
    %202 = vector.broadcast %73 : vector<2x1x256xf32> to vector<2x2x256xf32>
    %203 = arith.addf %201, %202 : vector<2x2x256xf32>
    %cst_64 = arith.constant 5.000000e-01 : f32
    %204 = vector.broadcast %cst_64 : f32 to vector<2x2x256xf32>
    %205 = arith.mulf %204, %203 : vector<2x2x256xf32>
    %cst_65 = arith.constant 4.471500e-02 : f32
    %206 = vector.broadcast %cst_65 : f32 to vector<2x2x256xf32>
    %207 = arith.mulf %206, %203 : vector<2x2x256xf32>
    %208 = arith.mulf %207, %203 : vector<2x2x256xf32>
    %209 = arith.mulf %208, %203 : vector<2x2x256xf32>
    %210 = arith.addf %203, %209 : vector<2x2x256xf32>
    %cst_66 = arith.constant 0.797884583 : f32
    %211 = vector.broadcast %cst_66 : f32 to vector<2x2x256xf32>
    %212 = arith.mulf %211, %210 : vector<2x2x256xf32>
    %213 = math.tanh %212 : vector<2x2x256xf32>
    %cst_67 = arith.constant 1.000000e+00 : f32
    %214 = vector.broadcast %cst_67 : f32 to vector<2x2x256xf32>
    %215 = arith.addf %214, %213 : vector<2x2x256xf32>
    %216 = arith.mulf %205, %215 : vector<2x2x256xf32>
    %217 = arith.truncf %216 : vector<2x2x256xf32> to vector<2x2x256xbf16>
    "tpu.trace_start"() <{level = 10 : i32, message = "sbh,shd->sbd"}> : () -> ()
    %cst_68 = arith.constant dense<0.000000e+00> : vector<2x2x128xf32>
    %218 = tpu.matmul %217, %71, %cst_68 {dimension_numbers = #tpu.dot_dimension_numbers<[2], [1], [1], [2], [0, 0, 0, 1, 1, 2], [0], [0]>} : vector<2x2x256xbf16>, vector<2x256x128xbf16>, vector<2x2x128xf32> -> vector<2x2x128xf32>
    "tpu.trace_stop"() : () -> ()
    %219 = vector.extract_strided_slice %72 {offsets = [0, 6, 0], sizes = [2, 1, 128], strides = [1, 1, 1]} : vector<2x7x128xf32> to vector<2x1x128xf32>
    %220 = vector.broadcast %219 : vector<2x1x128xf32> to vector<2x2x128xf32>
    %221 = arith.addf %218, %220 : vector<2x2x128xf32>
    %222 = vector.extract_strided_slice %221 {offsets = [0, 0, 0], sizes = [1, 2, 128], strides = [1, 1, 1]} : vector<2x2x128xf32> to vector<1x2x128xf32>
    %223 = vector.shape_cast %222 : vector<1x2x128xf32> to vector<2x128xf32>
    %224 = arith.addf %141, %223 : vector<2x128xf32>
    %225 = vector.extract_strided_slice %221 {offsets = [1, 0, 0], sizes = [1, 2, 128], strides = [1, 1, 1]} : vector<2x2x128xf32> to vector<1x2x128xf32>
    %226 = vector.shape_cast %225 : vector<1x2x128xf32> to vector<2x128xf32>
    %227 = arith.addf %144, %226 : vector<2x128xf32>
    %c0_69 = arith.constant 0 : index
    %c0_70 = arith.constant 0 : index
    %228 = vector.load %arg11[%c0_69, %c0_70] : memref<2x128xf32, #tpu.memory_space<vmem>>, vector<2x128xf32>
    tpu.vector_store %arg11[%c0_69, %c0_70], %224 {strides = array<i32>} : memref<2x128xf32, #tpu.memory_space<vmem>>, vector<2x128xf32>,
    %c0_71 = arith.constant 0 : index
    %c0_72 = arith.constant 0 : index
    %229 = vector.load %arg12[%c0_71, %c0_72] : memref<2x128xf32, #tpu.memory_space<vmem>>, vector<2x128xf32>
    tpu.vector_store %arg12[%c0_71, %c0_72], %227 {strides = array<i32>} : memref<2x128xf32, #tpu.memory_space<vmem>>, vector<2x128xf32>,
    return
  }
}

module attributes {stable_mosaic.version = 11 : i64} {
  func.func @_dist_skl_kernel(%arg0: memref<2x2x128xf32, #tpu.memory_space<vmem>>, %arg1: memref<2x2x64xf32, #tpu.memory_space<vmem>>, %arg2: memref<2x128x128xbf16, #tpu.memory_space<vmem>>, %arg3: memref<2x1x128xf32, #tpu.memory_space<vmem>>, %arg4: memref<2x128x128xbf16, #tpu.memory_space<vmem>>, %arg5: memref<2x1x128xf32, #tpu.memory_space<vmem>>, %arg6: memref<2x64xf32, #tpu.memory_space<vmem>>, %arg7: memref<2x64xf32, #tpu.memory_space<vmem>>, %arg8: memref<1x1xf32, #tpu.memory_space<vmem>>) attributes {dimension_semantics = [], scalar_prefetch = 0 : i64, scratch_operands = 0 : i64, tpu.core_type = #tpu.core_type<tc>} {
    %c0 = arith.constant 0 : index
    %c0_0 = arith.constant 0 : index
    %c0_1 = arith.constant 0 : index
    %0 = vector.load %arg0[%c0, %c0_0, %c0_1] : memref<2x2x128xf32, #tpu.memory_space<vmem>>, vector<2x2x128xf32>
    %1 = arith.truncf %0 : vector<2x2x128xf32> to vector<2x2x128xbf16>
    %c0_2 = arith.constant 0 : index
    %c0_3 = arith.constant 0 : index
    %c0_4 = arith.constant 0 : index
    %2 = vector.load %arg2[%c0_2, %c0_3, %c0_4] : memref<2x128x128xbf16, #tpu.memory_space<vmem>>, vector<2x128x128xbf16>
    "tpu.trace_start"() <{level = 10 : i32, message = "sbd,sdh->sbh"}> : () -> ()
    %cst = arith.constant dense<0.000000e+00> : vector<2x2x128xf32>
    %3 = tpu.matmul %1, %2, %cst {dimension_numbers = #tpu.dot_dimension_numbers<[2], [1], [1], [2], [0, 0, 0, 1, 1, 2], [0], [0]>} : vector<2x2x128xbf16>, vector<2x128x128xbf16>, vector<2x2x128xf32> -> vector<2x2x128xf32>
    "tpu.trace_stop"() : () -> ()
    %c0_5 = arith.constant 0 : index
    %c0_6 = arith.constant 0 : index
    %c0_7 = arith.constant 0 : index
    %4 = vector.load %arg3[%c0_5, %c0_6, %c0_7] : memref<2x1x128xf32, #tpu.memory_space<vmem>>, vector<2x1x128xf32>
    %5 = vector.broadcast %4 : vector<2x1x128xf32> to vector<2x2x128xf32>
    %6 = arith.addf %3, %5 : vector<2x2x128xf32>
    %cst_8 = arith.constant 0.000000e+00 : f32
    %7 = vector.broadcast %cst_8 : f32 to vector<2x2x128xf32>
    %8 = arith.maximumf %6, %7 : vector<2x2x128xf32>
    %9 = arith.truncf %8 : vector<2x2x128xf32> to vector<2x2x128xbf16>
    %c0_9 = arith.constant 0 : index
    %c0_10 = arith.constant 0 : index
    %c0_11 = arith.constant 0 : index
    %10 = vector.load %arg4[%c0_9, %c0_10, %c0_11] : memref<2x128x128xbf16, #tpu.memory_space<vmem>>, vector<2x128x128xbf16>
    "tpu.trace_start"() <{level = 10 : i32, message = "sbh,shk->sbk"}> : () -> ()
    %cst_12 = arith.constant dense<0.000000e+00> : vector<2x2x128xf32>
    %11 = tpu.matmul %9, %10, %cst_12 {dimension_numbers = #tpu.dot_dimension_numbers<[2], [1], [1], [2], [0, 0, 0, 1, 1, 2], [0], [0]>} : vector<2x2x128xbf16>, vector<2x128x128xbf16>, vector<2x2x128xf32> -> vector<2x2x128xf32>
    "tpu.trace_stop"() : () -> ()
    %c0_13 = arith.constant 0 : index
    %c0_14 = arith.constant 0 : index
    %c0_15 = arith.constant 0 : index
    %12 = vector.load %arg5[%c0_13, %c0_14, %c0_15] : memref<2x1x128xf32, #tpu.memory_space<vmem>>, vector<2x1x128xf32>
    %13 = vector.broadcast %12 : vector<2x1x128xf32> to vector<2x2x128xf32>
    %14 = arith.addf %11, %13 : vector<2x2x128xf32>
    %15 = vector.extract_strided_slice %14 {offsets = [0, 0, 0], sizes = [2, 2, 64], strides = [1, 1, 1]} : vector<2x2x128xf32> to vector<2x2x64xf32>
    %16 = vector.extract_strided_slice %14 {offsets = [0, 0, 64], sizes = [2, 2, 64], strides = [1, 1, 1]} : vector<2x2x128xf32> to vector<2x2x64xf32>
    %cst_16 = arith.constant 0.000000e+00 : f32
    %17 = vector.broadcast %cst_16 : f32 to vector<2x2x64xf32>
    %18 = arith.maximumf %16, %17 : vector<2x2x64xf32>
    %19 = math.absf %16 : vector<2x2x64xf32>
    %cst_17 = arith.constant 0.000000e+00 : f32
    %20 = vector.broadcast %cst_17 : f32 to vector<2x2x64xf32>
    %21 = arith.subf %20, %19 : vector<2x2x64xf32>
    %22 = math.exp %21 : vector<2x2x64xf32>
    %cst_18 = arith.constant 1.000000e+00 : f32
    %23 = vector.broadcast %cst_18 : f32 to vector<2x2x64xf32>
    %24 = arith.addf %23, %22 : vector<2x2x64xf32>
    %25 = math.log %24 : vector<2x2x64xf32>
    %26 = arith.addf %18, %25 : vector<2x2x64xf32>
    %cst_19 = arith.constant 9.99999997E-7 : f32
    %27 = vector.broadcast %cst_19 : f32 to vector<2x2x64xf32>
    %28 = arith.addf %26, %27 : vector<2x2x64xf32>
    %c0_20 = arith.constant 0 : index
    %c0_21 = arith.constant 0 : index
    %c0_22 = arith.constant 0 : index
    %29 = vector.load %arg1[%c0_20, %c0_21, %c0_22] : memref<2x2x64xf32, #tpu.memory_space<vmem>>, vector<2x2x64xf32>
    %30 = arith.mulf %28, %29 : vector<2x2x64xf32>
    %31 = arith.addf %15, %30 : vector<2x2x64xf32>
    %32 = vector.extract_strided_slice %31 {offsets = [0, 0, 0], sizes = [1, 2, 64], strides = [1, 1, 1]} : vector<2x2x64xf32> to vector<1x2x64xf32>
    %33 = vector.shape_cast %32 : vector<1x2x64xf32> to vector<2x64xf32>
    %c0_23 = arith.constant 0 : index
    %c0_24 = arith.constant 0 : index
    %34 = vector.load %arg6[%c0_23, %c0_24] : memref<2x64xf32, #tpu.memory_space<vmem>>, vector<2x64xf32>
    tpu.vector_store %arg6[%c0_23, %c0_24], %33 {strides = array<i32>} : memref<2x64xf32, #tpu.memory_space<vmem>>, vector<2x64xf32>,
    %35 = vector.extract_strided_slice %31 {offsets = [1, 0, 0], sizes = [1, 2, 64], strides = [1, 1, 1]} : vector<2x2x64xf32> to vector<1x2x64xf32>
    %36 = vector.shape_cast %35 : vector<1x2x64xf32> to vector<2x64xf32>
    %c0_25 = arith.constant 0 : index
    %c0_26 = arith.constant 0 : index
    %37 = vector.load %arg7[%c0_25, %c0_26] : memref<2x64xf32, #tpu.memory_space<vmem>>, vector<2x64xf32>
    tpu.vector_store %arg7[%c0_25, %c0_26], %36 {strides = array<i32>} : memref<2x64xf32, #tpu.memory_space<vmem>>, vector<2x64xf32>,
    %38 = vector.extract_strided_slice %15 {offsets = [0, 0, 0], sizes = [1, 2, 64], strides = [1, 1, 1]} : vector<2x2x64xf32> to vector<1x2x64xf32>
    %39 = vector.shape_cast %38 : vector<1x2x64xf32> to vector<2x64xf32>
    %40 = vector.extract_strided_slice %15 {offsets = [1, 0, 0], sizes = [1, 2, 64], strides = [1, 1, 1]} : vector<2x2x64xf32> to vector<1x2x64xf32>
    %41 = vector.shape_cast %40 : vector<1x2x64xf32> to vector<2x64xf32>
    %42 = vector.extract_strided_slice %28 {offsets = [0, 0, 0], sizes = [1, 2, 64], strides = [1, 1, 1]} : vector<2x2x64xf32> to vector<1x2x64xf32>
    %43 = vector.shape_cast %42 : vector<1x2x64xf32> to vector<2x64xf32>
    %44 = vector.extract_strided_slice %28 {offsets = [0, 0, 0], sizes = [1, 2, 64], strides = [1, 1, 1]} : vector<2x2x64xf32> to vector<1x2x64xf32>
    %45 = vector.shape_cast %44 : vector<1x2x64xf32> to vector<2x64xf32>
    %46 = arith.mulf %43, %45 : vector<2x64xf32>
    %cst_27 = arith.constant 9.99999993E-9 : f32
    %47 = vector.broadcast %cst_27 : f32 to vector<2x64xf32>
    %48 = arith.addf %46, %47 : vector<2x64xf32>
    %49 = vector.extract_strided_slice %28 {offsets = [1, 0, 0], sizes = [1, 2, 64], strides = [1, 1, 1]} : vector<2x2x64xf32> to vector<1x2x64xf32>
    %50 = vector.shape_cast %49 : vector<1x2x64xf32> to vector<2x64xf32>
    %51 = vector.extract_strided_slice %28 {offsets = [1, 0, 0], sizes = [1, 2, 64], strides = [1, 1, 1]} : vector<2x2x64xf32> to vector<1x2x64xf32>
    %52 = vector.shape_cast %51 : vector<1x2x64xf32> to vector<2x64xf32>
    %53 = arith.mulf %50, %52 : vector<2x64xf32>
    %cst_28 = arith.constant 9.99999993E-9 : f32
    %54 = vector.broadcast %cst_28 : f32 to vector<2x64xf32>
    %55 = arith.addf %53, %54 : vector<2x64xf32>
    %56 = math.log %55 : vector<2x64xf32>
    %57 = math.log %48 : vector<2x64xf32>
    %58 = arith.subf %56, %57 : vector<2x64xf32>
    %cst_29 = arith.constant 5.000000e-01 : f32
    %59 = vector.broadcast %cst_29 : f32 to vector<2x64xf32>
    %60 = arith.mulf %59, %58 : vector<2x64xf32>
    %61 = arith.subf %39, %41 : vector<2x64xf32>
    %62 = arith.mulf %61, %61 : vector<2x64xf32>
    %63 = arith.addf %48, %62 : vector<2x64xf32>
    %cst_30 = arith.constant 2.000000e+00 : f32
    %64 = vector.broadcast %cst_30 : f32 to vector<2x64xf32>
    %65 = arith.mulf %64, %55 : vector<2x64xf32>
    %66 = arith.divf %63, %65 : vector<2x64xf32>
    %67 = arith.addf %60, %66 : vector<2x64xf32>
    %cst_31 = arith.constant 5.000000e-01 : f32
    %68 = vector.broadcast %cst_31 : f32 to vector<2x64xf32>
    %69 = arith.subf %67, %68 : vector<2x64xf32>
    %70 = math.log %48 : vector<2x64xf32>
    %71 = math.log %55 : vector<2x64xf32>
    %72 = arith.subf %70, %71 : vector<2x64xf32>
    %cst_32 = arith.constant 5.000000e-01 : f32
    %73 = vector.broadcast %cst_32 : f32 to vector<2x64xf32>
    %74 = arith.mulf %73, %72 : vector<2x64xf32>
    %75 = arith.subf %41, %39 : vector<2x64xf32>
    %76 = arith.mulf %75, %75 : vector<2x64xf32>
    %77 = arith.addf %55, %76 : vector<2x64xf32>
    %cst_33 = arith.constant 2.000000e+00 : f32
    %78 = vector.broadcast %cst_33 : f32 to vector<2x64xf32>
    %79 = arith.mulf %78, %48 : vector<2x64xf32>
    %80 = arith.divf %77, %79 : vector<2x64xf32>
    %81 = arith.addf %74, %80 : vector<2x64xf32>
    %cst_34 = arith.constant 5.000000e-01 : f32
    %82 = vector.broadcast %cst_34 : f32 to vector<2x64xf32>
    %83 = arith.subf %81, %82 : vector<2x64xf32>
    %84 = vector.shape_cast %69 : vector<2x64xf32> to vector<1x2x64xf32>
    %cst_35 = arith.constant dense<0.000000e+00> : vector<1xf32>
    %85 = vector.multi_reduction <add>, %84, %cst_35 [1, 2] : vector<1x2x64xf32> to vector<1xf32>
    %86 = vector.shape_cast %85 : vector<1xf32> to vector<1x1x1xf32>
    %87 = vector.extract %86[0, 0, 0] : f32 from vector<1x1x1xf32>
    %88 = vector.broadcast %87 : f32 to vector<1x1xf32>
    %cst_36 = arith.constant 1.280000e+02 : f32
    %89 = vector.broadcast %cst_36 : f32 to vector<1x1xf32>
    %90 = arith.divf %88, %89 : vector<1x1xf32>
    %91 = vector.shape_cast %83 : vector<2x64xf32> to vector<1x2x64xf32>
    %cst_37 = arith.constant dense<0.000000e+00> : vector<1xf32>
    %92 = vector.multi_reduction <add>, %91, %cst_37 [1, 2] : vector<1x2x64xf32> to vector<1xf32>
    %93 = vector.shape_cast %92 : vector<1xf32> to vector<1x1x1xf32>
    %94 = vector.extract %93[0, 0, 0] : f32 from vector<1x1x1xf32>
    %95 = vector.broadcast %94 : f32 to vector<1x1xf32>
    %cst_38 = arith.constant 1.280000e+02 : f32
    %96 = vector.broadcast %cst_38 : f32 to vector<1x1xf32>
    %97 = arith.divf %95, %96 : vector<1x1xf32>
    %98 = arith.addf %90, %97 : vector<1x1xf32>
    %cst_39 = arith.constant 5.000000e-01 : f32
    %99 = vector.broadcast %cst_39 : f32 to vector<1x1xf32>
    %100 = arith.mulf %99, %98 : vector<1x1xf32>
    %c0_40 = arith.constant 0 : index
    %c0_41 = arith.constant 0 : index
    %101 = vector.load %arg8[%c0_40, %c0_41] : memref<1x1xf32, #tpu.memory_space<vmem>>, vector<1x1xf32>
    tpu.vector_store %arg8[%c0_40, %c0_41], %100 {strides = array<i32>} : memref<1x1xf32, #tpu.memory_space<vmem>>, vector<1x1xf32>,
    return
  }
}

</mosaic_0001>

<llo_original>
// kernel: multi_encoder_forward.8
$region0: #{multi_encoder_forward.8}
  #allocation0 [shape = 'u32[]', space=smem, size = 0x4, offset = 0x4, fixed_abs, tag = 'smem constant byte address 0x4 - core index']
  #allocation1 [shape = 'u32[144,128]{1,0:T(1,128)}', space=vmem, size = 0x12000, scoped, tag = 'internal scratch']
  #allocation2 [shape = 'f32[80,16]{1,0:T(8,128)}', space=vmem, size = 0xa000, scoped, tag = 'scratch operand']
  %s0 = inlined_call_operand.vmem [shape: bf16[80,8], index: 0, kind: input, shape index: {}]
  %s1 = inlined_call_operand.vmem [shape: bf16[8,16], index: 1, kind: input, shape index: {}]
  %s2 = inlined_call_operand.vmem [shape: f32[1,16], index: 2, kind: input, shape index: {}]
  %s3 = inlined_call_operand.vmem [shape: bf16[80,16], index: 3, kind: output, shape index: {}]
  %s4 = sld [smem:[#allocation0]]
  $region30: #{multi_encoder_forward.8} parent=0
    _
  %s6 = ssub.s32 1, %s4
  %s7 = scalar_select 0, %s6, %s4
  // Predicated region
  $region2: #{multi_encoder_forward.8} parent=0 // pred_check
    _
  $region3: #{multi_encoder_forward.8} parent=0 // pred_check_branch
    %9 = sbr.rel (0) target = $region5
  $region4: #{multi_encoder_forward.8} parent=0 // pred_region
    _
  $region5: #{multi_encoder_forward.8} parent=0 // pred_fallthru
    _
  // Predicated region
  $region6: #{multi_encoder_forward.8} parent=0 // pred_check
    _
  $region7: #{multi_encoder_forward.8} parent=0 // pred_check_branch
    %11 = sbr.rel (0) target = $region9
  $region8: #{multi_encoder_forward.8} parent=0 // pred_region
    _
  $region9: #{multi_encoder_forward.8} parent=0 // pred_fallthru
    _
  // Predicated region
  $region10: #{multi_encoder_forward.8} parent=0 // pred_check
    _
  $region11: #{multi_encoder_forward.8} parent=0 // pred_check_branch
    %13 = sbr.rel (0) target = $region13
  $region12: #{multi_encoder_forward.8} parent=0 // pred_region
    _
  $region13: #{multi_encoder_forward.8} parent=0 // pred_fallthru
    _
  %p15 = scmp.eq.s32.totalorder 0, 0
  // Predicated region
  $region14: #{multi_encoder_forward.8} parent=0 // pred_check
    %p16 = pneg %p15
  $region15: #{multi_encoder_forward.8} parent=0 // pred_check_branch
    %18 = sbr.rel (%p16) target = $region17
  $region16: #{multi_encoder_forward.8} parent=0 // pred_region
    %vm19 = vcmask 130048
    %20 = vst.msk [vmem:[#allocation2] sm:$0xff] %vm19, 0.0
    %21 = vst.msk [vmem:[#allocation2 + $0x8] sm:$0xff] %vm19, 0.0
    %22 = vst.msk [vmem:[#allocation2 + $0x10] sm:$0xff] %vm19, 0.0
    %23 = vst.msk [vmem:[#allocation2 + $0x18] sm:$0xff] %vm19, 0.0
    %24 = vst.msk [vmem:[#allocation2 + $0x20] sm:$0xff] %vm19, 0.0
    %25 = vst.msk [vmem:[#allocation2 + $0x28] sm:$0xff] %vm19, 0.0
    %26 = vst.msk [vmem:[#allocation2 + $0x30] sm:$0xff] %vm19, 0.0
    %27 = vst.msk [vmem:[#allocation2 + $0x38] sm:$0xff] %vm19, 0.0
    %28 = vst.msk [vmem:[#allocation2 + $0x40] sm:$0xff] %vm19, 0.0
    %29 = vst.msk [vmem:[#allocation2 + $0x48] sm:$0xff] %vm19, 0.0
  $region17: #{multi_encoder_forward.8} parent=0 // pred_fallthru
    _
  %v30 = vld [vmem:[#allocation2] sm:$0xff]
  %v31 = vld [vmem:[#allocation2 + $0x8] sm:$0xff]
  %v32 = vld [vmem:[#allocation2 + $0x10] sm:$0xff]
  %v33 = vld [vmem:[#allocation2 + $0x18] sm:$0xff]
  %v34 = vld [vmem:[#allocation2 + $0x20] sm:$0xff]
  %v35 = vld [vmem:[#allocation2 + $0x28] sm:$0xff]
  %v36 = vld [vmem:[#allocation2 + $0x30] sm:$0xff]
  %v37 = vld [vmem:[#allocation2 + $0x38] sm:$0xff]
  %v38 = vld [vmem:[#allocation2 + $0x40] sm:$0xff]
  %v39 = vld [vmem:[#allocation2 + $0x48] sm:$0xff]
  %v40 = vld [vmem:[%s0] sm:$0xf]
  %v41 = vld [vmem:[%s0 + $0x4] sm:$0xf]
  %v42 = vld [vmem:[%s0 + $0x8] sm:$0xf]
  %v43 = vld [vmem:[%s0 + $0xc] sm:$0xf]
  %v44 = vld [vmem:[%s0 + $0x10] sm:$0xf]
  %v45 = vld [vmem:[%s0 + $0x14] sm:$0xf]
  %v46 = vld [vmem:[%s0 + $0x18] sm:$0xf]
  %v47 = vld [vmem:[%s0 + $0x1c] sm:$0xf]
  %v48 = vld [vmem:[%s0 + $0x20] sm:$0xf]
  %v49 = vld [vmem:[%s0 + $0x24] sm:$0xf]
  %v50 = vld [vmem:[%s1] sm:$0xf]
  %v61 = vunpack.c.l.b16 %v40
  %v62 = vunpack.c.l.b16 %v41
  %v63 = vunpack.c.l.b16 %v42
  %v64 = vunpack.c.l.b16 %v43
  %v65 = vunpack.c.l.b16 %v44
  %v66 = vunpack.c.l.b16 %v45
  %v67 = vunpack.c.l.b16 %v46
  %v68 = vunpack.c.l.b16 %v47
  %v69 = vunpack.c.l.b16 %v48
  %v70 = vunpack.c.l.b16 %v49
  %v71 = vpack.c.b16 %v62, %v61
  %v72 = vpack.c.b16 %v64, %v63
  %v73 = vpack.c.b16 %v66, %v65
  %v74 = vpack.c.b16 %v68, %v67
  %v75 = vpack.c.b16 %v70, %v69
  %vm76 = vcmask 64512
  %v78 = vsel %vm76, %v71, 0
  %v81 = vsel %vm76, %v72, 0
  %v84 = vsel %vm76, %v73, 0
  %v87 = vsel %vm76, %v74, 0
  %v90 = vsel %vm76, %v75, 0
  %vm92 = vcmask 1043456
  %v94 = vsel %vm92, %v50, 0
  %96 = vmatprep.subr.bf16.mxu0 0
  %97 = vmatpush1.bf16.msra.mxu0 0
  %98 = vmatprep.subr.bf16.mxu0 0
  %99 = vmatpush1.bf16.msra.mxu0 0
  %100 = vmatprep.subr.bf16.mxu0 0
  %101 = vmatpush1.bf16.msra.mxu0 0
  %102 = vmatprep.subr.bf16.mxu0 0
  %103 = vmatpush1.bf16.msra.mxu0 0
  %104 = vmatprep.subr.bf16.mxu0 0
  %105 = vmatpush1.bf16.msra.mxu0 0
  %106 = vmatprep.subr.bf16.mxu0 0
  %107 = vmatpush1.bf16.msra.mxu0 0
  %108 = vmatprep.subr.bf16.mxu0 0
  %109 = vmatpush1.bf16.msra.mxu0 0
  %110 = vmatprep.subr.bf16.mxu0 0
  %111 = vmatpush1.bf16.msra.mxu0 %v94
  %112 = vmatprep.subr.bf16.mxu0 0
  %113 = vmatpush2.bf16.msra.mxu0 0
  %114 = vmatprep.subr.bf16.mxu0 0
  %115 = vmatpush2.bf16.msra.mxu0 0
  %116 = vmatprep.subr.bf16.mxu0 0
  %117 = vmatpush2.bf16.msra.mxu0 0
  %118 = vmatprep.subr.bf16.mxu0 0
  %119 = vmatpush2.bf16.msra.mxu0 0
  %120 = vmatprep.subr.bf16.mxu0 0
  %121 = vmatpush2.bf16.msra.mxu0 0
  %122 = vmatprep.subr.bf16.mxu0 0
  %123 = vmatpush2.bf16.msra.mxu0 0
  %124 = vmatprep.subr.bf16.mxu0 0
  %125 = vmatpush2.bf16.msra.mxu0 0
  %126 = vmatprep.subr.bf16.mxu0 0
  %127 = vmatpush2.bf16.msra.mxu0 0
  %128 = vmatprep.mubr.bf16.mxu0 0
  %129 = vmatmul.mubr.bf16.gmra.mxu0 %v78
  %v130 = vpop.f32.mrf.mxu0
  %v131 = vadd.f32 0.0, %v130
  %v132 = vpop.f32.mrf.mxu0
  %v133 = vpop.f32.mrf.mxu0
  %v134 = vadd.f32 0.0, %v133
  %v135 = vpop.f32.mrf.mxu0
  %136 = vmatprep.mubr.bf16.mxu0 0
  %137 = vmatmul.mubr.bf16.gmra.mxu0 %v81
  %v138 = vpop.f32.mrf.mxu0
  %v139 = vadd.f32 0.0, %v138
  %v140 = vpop.f32.mrf.mxu0
  %v141 = vpop.f32.mrf.mxu0
  %v142 = vadd.f32 0.0, %v141
  %v143 = vpop.f32.mrf.mxu0
  %144 = vmatprep.mubr.bf16.mxu0 0
  %145 = vmatmul.mubr.bf16.gmra.mxu0 %v84
  %v146 = vpop.f32.mrf.mxu0
  %v147 = vadd.f32 0.0, %v146
  %v148 = vpop.f32.mrf.mxu0
  %v149 = vpop.f32.mrf.mxu0
  %v150 = vadd.f32 0.0, %v149
  %v151 = vpop.f32.mrf.mxu0
  %152 = vmatprep.mubr.bf16.mxu0 0
  %153 = vmatmul.mubr.bf16.gmra.mxu0 %v87
  %v154 = vpop.f32.mrf.mxu0
  %v155 = vadd.f32 0.0, %v154
  %v156 = vpop.f32.mrf.mxu0
  %v157 = vpop.f32.mrf.mxu0
  %v158 = vadd.f32 0.0, %v157
  %v159 = vpop.f32.mrf.mxu0
  %160 = vmatprep.mubr.bf16.mxu0 0
  %161 = vmatmul.mubr.bf16.gmra.mxu0 %v90
  %v162 = vpop.f32.mrf.mxu0
  %v163 = vadd.f32 0.0, %v162
  %v164 = vpop.f32.mrf.mxu0
  %v165 = vpop.f32.mrf.mxu0
  %v166 = vadd.f32 0.0, %v165
  %v167 = vpop.f32.mrf.mxu0
  %168 = vdwg.mxu0
  %v169 = vadd.f32 %v30, %v131
  %v170 = vadd.f32 %v31, %v134
  %v171 = vadd.f32 %v32, %v139
  %v172 = vadd.f32 %v33, %v142
  %v173 = vadd.f32 %v34, %v147
  %v174 = vadd.f32 %v35, %v150
  %v175 = vadd.f32 %v36, %v155
  %v176 = vadd.f32 %v37, %v158
  %v177 = vadd.f32 %v38, %v163
  %v178 = vadd.f32 %v39, %v166
  %vm179 = vcmask 130048
  %180 = vst.msk [vmem:[#allocation2] sm:$0xff] %vm179, %v169
  %181 = vst.msk [vmem:[#allocation2 + $0x8] sm:$0xff] %vm179, %v170
  %182 = vst.msk [vmem:[#allocation2 + $0x10] sm:$0xff] %vm179, %v171
  %183 = vst.msk [vmem:[#allocation2 + $0x18] sm:$0xff] %vm179, %v172
  %184 = vst.msk [vmem:[#allocation2 + $0x20] sm:$0xff] %vm179, %v173
  %185 = vst.msk [vmem:[#allocation2 + $0x28] sm:$0xff] %vm179, %v174
  %186 = vst.msk [vmem:[#allocation2 + $0x30] sm:$0xff] %vm179, %v175
  %187 = vst.msk [vmem:[#allocation2 + $0x38] sm:$0xff] %vm179, %v176
  %188 = vst.msk [vmem:[#allocation2 + $0x40] sm:$0xff] %vm179, %v177
  %189 = vst.msk [vmem:[#allocation2 + $0x48] sm:$0xff] %vm179, %v178
  // Predicated region
  $region18: #{multi_encoder_forward.8} parent=0 // pred_check
    %p190 = pneg %p15
  $region19: #{multi_encoder_forward.8} parent=0 // pred_check_branch
    %192 = sbr.rel (%p190) target = $region21
  $region20: #{multi_encoder_forward.8} parent=0 // pred_region
    %v193 = vld [vmem:[#allocation2] sm:$0xff]
    %v194 = vld [vmem:[#allocation2 + $0x8] sm:$0xff]
    %v195 = vld [vmem:[#allocation2 + $0x10] sm:$0xff]
    %v196 = vld [vmem:[#allocation2 + $0x18] sm:$0xff]
    %v197 = vld [vmem:[#allocation2 + $0x20] sm:$0xff]
    %v198 = vld [vmem:[#allocation2 + $0x28] sm:$0xff]
    %v199 = vld [vmem:[#allocation2 + $0x30] sm:$0xff]
    %v200 = vld [vmem:[#allocation2 + $0x38] sm:$0xff]
    %v201 = vld [vmem:[#allocation2 + $0x40] sm:$0xff]
    %v202 = vld [vmem:[#allocation2 + $0x48] sm:$0xff]
    %v203 = vld [vmem:[%s2] sm:$0x1]
    %v205 = vlaneseq
    %v206 = vshrl.u32 %v205, 7
    %v207 = vsub.s32 0, %v206
    %v208 = vrot.slane %v203, %v207
    %v210 = vadd.f32 %v193, %v208
    %v211 = vadd.f32 %v194, %v208
    %v212 = vadd.f32 %v195, %v208
    %v213 = vadd.f32 %v196, %v208
    %v214 = vadd.f32 %v197, %v208
    %v215 = vadd.f32 %v198, %v208
    %v216 = vadd.f32 %v199, %v208
    %v217 = vadd.f32 %v200, %v208
    %v218 = vadd.f32 %v201, %v208
    %v219 = vadd.f32 %v202, %v208
    %v220 = vpack.c.bf16 %v211, %v210
    %v221 = vpack.c.bf16 %v213, %v212
    %v222 = vpack.c.bf16 %v215, %v214
    %v223 = vpack.c.bf16 %v217, %v216
    %v224 = vpack.c.bf16 %v219, %v218
    %v230 = vunpack.c.l.b16 %v220
    %v231 = vunpack.c.h.b16 %v220
    %v232 = vunpack.c.l.b16 %v221
    %v233 = vunpack.c.h.b16 %v221
    %v234 = vunpack.c.l.b16 %v222
    %v235 = vunpack.c.h.b16 %v222
    %v236 = vunpack.c.l.b16 %v223
    %v237 = vunpack.c.h.b16 %v223
    %v238 = vunpack.c.l.b16 %v224
    %v239 = vunpack.c.h.b16 %v224
    %v240 = vpack.c.b16 %v230, %v230
    %v241 = vpack.c.b16 %v231, %v231
    %v242 = vpack.c.b16 %v232, %v232
    %v243 = vpack.c.b16 %v233, %v233
    %v244 = vpack.c.b16 %v234, %v234
    %v245 = vpack.c.b16 %v235, %v235
    %v246 = vpack.c.b16 %v236, %v236
    %v247 = vpack.c.b16 %v237, %v237
    %v248 = vpack.c.b16 %v238, %v238
    %v249 = vpack.c.b16 %v239, %v239
    %vm260 = vcmask 125952
    %261 = vst.msk [vmem:[%s3] sm:$0xf] %vm260, %v240
    %262 = vst.msk [vmem:[%s3 + $0x4] sm:$0xf] %vm260, %v241
    %263 = vst.msk [vmem:[%s3 + $0x8] sm:$0xf] %vm260, %v242
    %264 = vst.msk [vmem:[%s3 + $0xc] sm:$0xf] %vm260, %v243
    %265 = vst.msk [vmem:[%s3 + $0x10] sm:$0xf] %vm260, %v244
    %266 = vst.msk [vmem:[%s3 + $0x14] sm:$0xf] %vm260, %v245
    %267 = vst.msk [vmem:[%s3 + $0x18] sm:$0xf] %vm260, %v246
    %268 = vst.msk [vmem:[%s3 + $0x1c] sm:$0xf] %vm260, %v247
    %269 = vst.msk [vmem:[%s3 + $0x20] sm:$0xf] %vm260, %v248
    %270 = vst.msk [vmem:[%s3 + $0x24] sm:$0xf] %vm260, %v249
  $region21: #{multi_encoder_forward.8} parent=0 // pred_fallthru
    _
  // Predicated region
  $region22: #{multi_encoder_forward.8} parent=0 // pred_check
    _
  $region23: #{multi_encoder_forward.8} parent=0 // pred_check_branch
    %272 = sbr.rel (0) target = $region25
  $region24: #{multi_encoder_forward.8} parent=0 // pred_region
    _
  $region25: #{multi_encoder_forward.8} parent=0 // pred_fallthru
    _
  // Predicated region
  $region26: #{multi_encoder_forward.8} parent=0 // pred_check
    _
  $region27: #{multi_encoder_forward.8} parent=0 // pred_check_branch
    %274 = sbr.rel (0) target = $region29
  $region28: #{multi_encoder_forward.8} parent=0 // pred_region
    _
  $region29: #{multi_encoder_forward.8} parent=0 // pred_fallthru
    _

// kernel: multi_encoder_forward.10
$region0: #{multi_encoder_forward.10}
  #allocation0 [shape = 'u32[]', space=smem, size = 0x4, offset = 0x4, fixed_abs, tag = 'smem constant byte address 0x4 - core index']
  #allocation1 [shape = 'u32[144,128]{1,0:T(1,128)}', space=vmem, size = 0x12000, scoped, tag = 'internal scratch']
  #allocation2 [shape = 'f32[8,128]{1,0:T(8,128)}', space=vmem, size = 0x1000, scoped, tag = 'scratch operand']
  %s0 = inlined_call_operand.vmem [shape: bf16[8,320], index: 0, kind: input, shape index: {}]
  %s1 = inlined_call_operand.vmem [shape: bf16[320,128], index: 1, kind: input, shape index: {}]
  %s2 = inlined_call_operand.vmem [shape: f32[1,128], index: 2, kind: input, shape index: {}]
  %s3 = inlined_call_operand.vmem [shape: bf16[8,128], index: 3, kind: input, shape index: {}]
  %s4 = inlined_call_operand.vmem [shape: bf16[8,128], index: 4, kind: output, shape index: {}]
  %s5 = sld [smem:[#allocation0]]
  $region34: #{multi_encoder_forward.10} parent=0
    _
  %s7 = ssub.s32 1, %s5
  %s8 = scalar_select 0, %s7, %s5
  // Predicated region
  $region2: #{multi_encoder_forward.10} parent=0 // pred_check
    _
  $region3: #{multi_encoder_forward.10} parent=0 // pred_check_branch
    %10 = sbr.rel (0) target = $region5
  $region4: #{multi_encoder_forward.10} parent=0 // pred_region
    _
  $region5: #{multi_encoder_forward.10} parent=0 // pred_fallthru
    _
  // Predicated region
  $region6: #{multi_encoder_forward.10} parent=0 // pred_check
    _
  $region7: #{multi_encoder_forward.10} parent=0 // pred_check_branch
    %12 = sbr.rel (0) target = $region9
  $region8: #{multi_encoder_forward.10} parent=0 // pred_region
    _
  $region9: #{multi_encoder_forward.10} parent=0 // pred_fallthru
    _
  // Predicated region
  $region10: #{multi_encoder_forward.10} parent=0 // pred_check
    _
  $region11: #{multi_encoder_forward.10} parent=0 // pred_check_branch
    %14 = sbr.rel (0) target = $region13
  $region12: #{multi_encoder_forward.10} parent=0 // pred_region
    _
  $region13: #{multi_encoder_forward.10} parent=0 // pred_fallthru
    _
  // Predicated region
  $region14: #{multi_encoder_forward.10} parent=0 // pred_check
    _
  $region15: #{multi_encoder_forward.10} parent=0 // pred_check_branch
    %16 = sbr.rel (0) target = $region17
  $region16: #{multi_encoder_forward.10} parent=0 // pred_region
    _
  $region17: #{multi_encoder_forward.10} parent=0 // pred_fallthru
    _
  %p18 = scmp.eq.s32.totalorder 0, 0
  // Predicated region
  $region18: #{multi_encoder_forward.10} parent=0 // pred_check
    %p19 = pneg %p18
  $region19: #{multi_encoder_forward.10} parent=0 // pred_check_branch
    %21 = sbr.rel (%p19) target = $region21
  $region20: #{multi_encoder_forward.10} parent=0 // pred_region
    %22 = vst [vmem:[#allocation2] sm:$0xff] 0.0
  $region21: #{multi_encoder_forward.10} parent=0 // pred_fallthru
    _
  %v23 = vld [vmem:[#allocation2] sm:$0xff]
  %v24 = vld [vmem:[%s0] sm:$0xff]
  %v25 = vld [vmem:[%s0 + $0x8] sm:$0xf]
  %v26 = vld [vmem:[%s1] sm:$0xf]
  %v27 = vld [vmem:[%s1 + $0x4] sm:$0xf]
  %v28 = vld [vmem:[%s1 + $0x8] sm:$0xf]
  %v29 = vld [vmem:[%s1 + $0xc] sm:$0xf]
  %v30 = vld [vmem:[%s1 + $0x10] sm:$0xf]
  %v31 = vld [vmem:[%s1 + $0x14] sm:$0xf]
  %v32 = vld [vmem:[%s1 + $0x18] sm:$0xf]
  %v33 = vld [vmem:[%s1 + $0x1c] sm:$0xf]
  %v34 = vld [vmem:[%s1 + $0x20] sm:$0xf]
  %v35 = vld [vmem:[%s1 + $0x24] sm:$0xf]
  %v36 = vld [vmem:[%s1 + $0x28] sm:$0xf]
  %v37 = vld [vmem:[%s1 + $0x2c] sm:$0xf]
  %v38 = vld [vmem:[%s1 + $0x30] sm:$0xf]
  %v39 = vld [vmem:[%s1 + $0x34] sm:$0xf]
  %v40 = vld [vmem:[%s1 + $0x38] sm:$0xf]
  %v41 = vld [vmem:[%s1 + $0x3c] sm:$0xf]
  %v42 = vld [vmem:[%s1 + $0x40] sm:$0xf]
  %v43 = vld [vmem:[%s1 + $0x44] sm:$0xf]
  %v44 = vld [vmem:[%s1 + $0x48] sm:$0xf]
  %v45 = vld [vmem:[%s1 + $0x4c] sm:$0xf]
  %v46 = vld [vmem:[%s1 + $0x50] sm:$0xf]
  %v47 = vld [vmem:[%s1 + $0x54] sm:$0xf]
  %v48 = vld [vmem:[%s1 + $0x58] sm:$0xf]
  %v49 = vld [vmem:[%s1 + $0x5c] sm:$0xf]
  %v50 = vld [vmem:[%s1 + $0x60] sm:$0xf]
  %v51 = vld [vmem:[%s1 + $0x64] sm:$0xf]
  %v52 = vld [vmem:[%s1 + $0x68] sm:$0xf]
  %v53 = vld [vmem:[%s1 + $0x6c] sm:$0xf]
  %v54 = vld [vmem:[%s1 + $0x70] sm:$0xf]
  %v55 = vld [vmem:[%s1 + $0x74] sm:$0xf]
  %v56 = vld [vmem:[%s1 + $0x78] sm:$0xf]
  %v57 = vld [vmem:[%s1 + $0x7c] sm:$0xf]
  %v58 = vld [vmem:[%s1 + $0x80] sm:$0xf]
  %v59 = vld [vmem:[%s1 + $0x84] sm:$0xf]
  %v60 = vld [vmem:[%s1 + $0x88] sm:$0xf]
  %v61 = vld [vmem:[%s1 + $0x8c] sm:$0xf]
  %v62 = vld [vmem:[%s1 + $0x90] sm:$0xf]
  %v63 = vld [vmem:[%s1 + $0x94] sm:$0xf]
  %v64 = vld [vmem:[%s1 + $0x98] sm:$0xf]
  %v65 = vld [vmem:[%s1 + $0x9c] sm:$0xf]
  %v68 = vunpack.c.l.b16 %v24
  %v69 = vunpack.c.h.b16 %v24
  %v70 = vunpack.c.l.b16 %v25
  %v71 = vpack.c.b16 %v68, %v68
  %v72 = vpack.c.b16 %v69, %v69
  %v73 = vpack.c.b16 %v70, %v70
  %v116 = vunpack.c.l.b16 %v26
  %v117 = vunpack.c.l.b16 %v27
  %v118 = vunpack.c.l.b16 %v28
  %v119 = vunpack.c.l.b16 %v29
  %v120 = vunpack.c.l.b16 %v30
  %v121 = vunpack.c.l.b16 %v31
  %v122 = vunpack.c.l.b16 %v32
  %v123 = vunpack.c.l.b16 %v33
  %v124 = vunpack.c.l.b16 %v34
  %v125 = vunpack.c.l.b16 %v35
  %v126 = vunpack.c.l.b16 %v36
  %v127 = vunpack.c.l.b16 %v37
  %v128 = vunpack.c.l.b16 %v38
  %v129 = vunpack.c.l.b16 %v39
  %v130 = vunpack.c.l.b16 %v40
  %v131 = vunpack.c.l.b16 %v41
  %v132 = vunpack.c.l.b16 %v42
  %v133 = vunpack.c.l.b16 %v43
  %v134 = vunpack.c.l.b16 %v44
  %v135 = vunpack.c.l.b16 %v45
  %v136 = vunpack.c.l.b16 %v46
  %v137 = vunpack.c.l.b16 %v47
  %v138 = vunpack.c.l.b16 %v48
  %v139 = vunpack.c.l.b16 %v49
  %v140 = vunpack.c.l.b16 %v50
  %v141 = vunpack.c.l.b16 %v51
  %v142 = vunpack.c.l.b16 %v52
  %v143 = vunpack.c.l.b16 %v53
  %v144 = vunpack.c.l.b16 %v54
  %v145 = vunpack.c.l.b16 %v55
  %v146 = vunpack.c.l.b16 %v56
  %v147 = vunpack.c.l.b16 %v57
  %v148 = vunpack.c.l.b16 %v58
  %v149 = vunpack.c.l.b16 %v59
  %v150 = vunpack.c.l.b16 %v60
  %v151 = vunpack.c.l.b16 %v61
  %v152 = vunpack.c.l.b16 %v62
  %v153 = vunpack.c.l.b16 %v63
  %v154 = vunpack.c.l.b16 %v64
  %v155 = vunpack.c.l.b16 %v65
  %v156 = vpack.c.b16 %v117, %v116
  %v157 = vpack.c.b16 %v119, %v118
  %v158 = vpack.c.b16 %v121, %v120
  %v159 = vpack.c.b16 %v123, %v122
  %v160 = vpack.c.b16 %v125, %v124
  %v161 = vpack.c.b16 %v127, %v126
  %v162 = vpack.c.b16 %v129, %v128
  %v163 = vpack.c.b16 %v131, %v130
  %v164 = vpack.c.b16 %v133, %v132
  %v165 = vpack.c.b16 %v135, %v134
  %v166 = vpack.c.b16 %v137, %v136
  %v167 = vpack.c.b16 %v139, %v138
  %v168 = vpack.c.b16 %v141, %v140
  %v169 = vpack.c.b16 %v143, %v142
  %v170 = vpack.c.b16 %v145, %v144
  %v171 = vpack.c.b16 %v147, %v146
  %v172 = vpack.c.b16 %v149, %v148
  %v173 = vpack.c.b16 %v151, %v150
  %v174 = vpack.c.b16 %v153, %v152
  %v175 = vpack.c.b16 %v155, %v154
  %vm196 = vcmask 523264
  %v198 = vsel %vm196, %v73, 0
  %200 = vmatprep.subr.bf16.mxu0 0
  %201 = vmatpush1.bf16.msra.mxu0 %v163
  %202 = vmatprep.subr.bf16.mxu0 0
  %203 = vmatpush1.bf16.msra.mxu0 %v162
  %204 = vmatprep.subr.bf16.mxu0 0
  %205 = vmatpush1.bf16.msra.mxu0 %v161
  %206 = vmatprep.subr.bf16.mxu0 0
  %207 = vmatpush1.bf16.msra.mxu0 %v160
  %208 = vmatprep.subr.bf16.mxu0 0
  %209 = vmatpush1.bf16.msra.mxu0 %v159
  %210 = vmatprep.subr.bf16.mxu0 0
  %211 = vmatpush1.bf16.msra.mxu0 %v158
  %212 = vmatprep.subr.bf16.mxu0 0
  %213 = vmatpush1.bf16.msra.mxu0 %v157
  %214 = vmatprep.subr.bf16.mxu0 0
  %215 = vmatpush1.bf16.msra.mxu0 %v156
  %216 = vmatprep.subr.bf16.mxu0 0
  %217 = vmatpush2.bf16.msra.mxu0 %v171
  %218 = vmatprep.subr.bf16.mxu0 0
  %219 = vmatpush2.bf16.msra.mxu0 %v170
  %220 = vmatprep.subr.bf16.mxu0 0
  %221 = vmatpush2.bf16.msra.mxu0 %v169
  %222 = vmatprep.subr.bf16.mxu0 0
  %223 = vmatpush2.bf16.msra.mxu0 %v168
  %224 = vmatprep.subr.bf16.mxu0 0
  %225 = vmatpush2.bf16.msra.mxu0 %v167
  %226 = vmatprep.subr.bf16.mxu0 0
  %227 = vmatpush2.bf16.msra.mxu0 %v166
  %228 = vmatprep.subr.bf16.mxu0 0
  %229 = vmatpush2.bf16.msra.mxu0 %v165
  %230 = vmatprep.subr.bf16.mxu0 0
  %231 = vmatpush2.bf16.msra.mxu0 %v164
  %232 = vmatprep.mubr.bf16.mxu0 %v72
  %233 = vmatmul.mubr.bf16.gmra.mxu0 %v71
  %v234 = vpop.f32.mrf.mxu0
  %v235 = vadd.f32 0.0, %v234
  %v236 = vpop.f32.mrf.mxu0
  %v237 = vpop.f32.mrf.mxu0
  %v238 = vpop.f32.mrf.mxu0
  %239 = vdwg.mxu0
  %240 = vmatprep.subr.bf16.mxu0 0
  %241 = vmatpush1.bf16.msra.mxu0 0
  %242 = vmatprep.subr.bf16.mxu0 0
  %243 = vmatpush1.bf16.msra.mxu0 0
  %244 = vmatprep.subr.bf16.mxu0 0
  %245 = vmatpush1.bf16.msra.mxu0 0
  %246 = vmatprep.subr.bf16.mxu0 0
  %247 = vmatpush1.bf16.msra.mxu0 0
  %248 = vmatprep.subr.bf16.mxu0 0
  %249 = vmatpush1.bf16.msra.mxu0 %v175
  %250 = vmatprep.subr.bf16.mxu0 0
  %251 = vmatpush1.bf16.msra.mxu0 %v174
  %252 = vmatprep.subr.bf16.mxu0 0
  %253 = vmatpush1.bf16.msra.mxu0 %v173
  %254 = vmatprep.subr.bf16.mxu0 0
  %255 = vmatpush1.bf16.msra.mxu0 %v172
  %256 = vmatprep.subr.bf16.mxu0 0
  %257 = vmatpush2.bf16.msra.mxu0 0
  %258 = vmatprep.subr.bf16.mxu0 0
  %259 = vmatpush2.bf16.msra.mxu0 0
  %260 = vmatprep.subr.bf16.mxu0 0
  %261 = vmatpush2.bf16.msra.mxu0 0
  %262 = vmatprep.subr.bf16.mxu0 0
  %263 = vmatpush2.bf16.msra.mxu0 0
  %264 = vmatprep.subr.bf16.mxu0 0
  %265 = vmatpush2.bf16.msra.mxu0 0
  %266 = vmatprep.subr.bf16.mxu0 0
  %267 = vmatpush2.bf16.msra.mxu0 0
  %268 = vmatprep.subr.bf16.mxu0 0
  %269 = vmatpush2.bf16.msra.mxu0 0
  %270 = vmatprep.subr.bf16.mxu0 0
  %271 = vmatpush2.bf16.msra.mxu0 0
  %272 = vmatprep.mubr.bf16.mxu0 0
  %273 = vmatmul.mubr.bf16.gmra.mxu0 %v198
  %v274 = vpop.f32.mrf.mxu0
  %v275 = vadd.f32 %v235, %v274
  %v276 = vpop.f32.mrf.mxu0
  %v277 = vpop.f32.mrf.mxu0
  %v278 = vpop.f32.mrf.mxu0
  %279 = vdwg.mxu0
  %v280 = vadd.f32 %v23, %v275
  %281 = vst [vmem:[#allocation2] sm:$0xff] %v280
  // Predicated region
  $region22: #{multi_encoder_forward.10} parent=0 // pred_check
    %p282 = pneg %p18
  $region23: #{multi_encoder_forward.10} parent=0 // pred_check_branch
    %284 = sbr.rel (%p282) target = $region25
  $region24: #{multi_encoder_forward.10} parent=0 // pred_region
    %v285 = vld [vmem:[#allocation2] sm:$0xff]
    %v286 = vld [vmem:[%s2] sm:$0x1]
    %v288 = vlaneseq
    %v289 = vshrl.u32 %v288, 7
    %v290 = vsub.s32 0, %v289
    %v291 = vrot.slane %v286, %v290
    %v293 = vadd.f32 %v285, %v291
    %v294 = vld [vmem:[%s3] sm:$0xf]
    %v295 = vunpack.c.l.bf16 %v294
    %v296 = vadd.f32 %v293, %v295
    %v297 = vpack.c.bf16 %v296, %v296
    %298 = vst [vmem:[%s4] sm:$0xf] %v297
  $region25: #{multi_encoder_forward.10} parent=0 // pred_fallthru
    _
  // Predicated region
  $region26: #{multi_encoder_forward.10} parent=0 // pred_check
    _
  $region27: #{multi_encoder_forward.10} parent=0 // pred_check_branch
    %300 = sbr.rel (0) target = $region29
  $region28: #{multi_encoder_forward.10} parent=0 // pred_region
    _
  $region29: #{multi_encoder_forward.10} parent=0 // pred_fallthru
    _
  // Predicated region
  $region30: #{multi_encoder_forward.10} parent=0 // pred_check
    _
  $region31: #{multi_encoder_forward.10} parent=0 // pred_check_branch
    %302 = sbr.rel (0) target = $region33
  $region32: #{multi_encoder_forward.10} parent=0 // pred_region
    _
  $region33: #{multi_encoder_forward.10} parent=0 // pred_fallthru
    _

// kernel: multi_encoder_forward.9
$region0: #{multi_encoder_forward.9}
  #allocation0 [shape = 'u32[]', space=smem, size = 0x4, offset = 0x4, fixed_abs, tag = 'smem constant byte address 0x4 - core index']
  #allocation1 [shape = 'u32[144,128]{1,0:T(1,128)}', space=vmem, size = 0x12000, scoped, tag = 'internal scratch']
  #allocation2 [shape = 'f32[80,24]{1,0:T(8,128)}', space=vmem, size = 0xa000, scoped, tag = 'scratch operand']
  %s0 = inlined_call_operand.vmem [shape: bf16[80,72], index: 0, kind: input, shape index: {}]
  %s1 = inlined_call_operand.vmem [shape: bf16[72,24], index: 1, kind: input, shape index: {}]
  %s2 = inlined_call_operand.vmem [shape: f32[1,24], index: 2, kind: input, shape index: {}]
  %s3 = inlined_call_operand.vmem [shape: bf16[80,24], index: 3, kind: output, shape index: {}]
  %s4 = sld [smem:[#allocation0]]
  $region30: #{multi_encoder_forward.9} parent=0
    _
  %s6 = ssub.s32 1, %s4
  %s7 = scalar_select 0, %s6, %s4
  // Predicated region
  $region2: #{multi_encoder_forward.9} parent=0 // pred_check
    _
  $region3: #{multi_encoder_forward.9} parent=0 // pred_check_branch
    %9 = sbr.rel (0) target = $region5
  $region4: #{multi_encoder_forward.9} parent=0 // pred_region
    _
  $region5: #{multi_encoder_forward.9} parent=0 // pred_fallthru
    _
  // Predicated region
  $region6: #{multi_encoder_forward.9} parent=0 // pred_check
    _
  $region7: #{multi_encoder_forward.9} parent=0 // pred_check_branch
    %11 = sbr.rel (0) target = $region9
  $region8: #{multi_encoder_forward.9} parent=0 // pred_region
    _
  $region9: #{multi_encoder_forward.9} parent=0 // pred_fallthru
    _
  // Predicated region
  $region10: #{multi_encoder_forward.9} parent=0 // pred_check
    _
  $region11: #{multi_encoder_forward.9} parent=0 // pred_check_branch
    %13 = sbr.rel (0) target = $region13
  $region12: #{multi_encoder_forward.9} parent=0 // pred_region
    _
  $region13: #{multi_encoder_forward.9} parent=0 // pred_fallthru
    _
  %p15 = scmp.eq.s32.totalorder 0, 0
  // Predicated region
  $region14: #{multi_encoder_forward.9} parent=0 // pred_check
    %p16 = pneg %p15
  $region15: #{multi_encoder_forward.9} parent=0 // pred_check_branch
    %18 = sbr.rel (%p16) target = $region17
  $region16: #{multi_encoder_forward.9} parent=0 // pred_region
    %vm19 = vcmask 195584
    %20 = vst.msk [vmem:[#allocation2] sm:$0xff] %vm19, 0.0
    %21 = vst.msk [vmem:[#allocation2 + $0x8] sm:$0xff] %vm19, 0.0
    %22 = vst.msk [vmem:[#allocation2 + $0x10] sm:$0xff] %vm19, 0.0
    %23 = vst.msk [vmem:[#allocation2 + $0x18] sm:$0xff] %vm19, 0.0
    %24 = vst.msk [vmem:[#allocation2 + $0x20] sm:$0xff] %vm19, 0.0
    %25 = vst.msk [vmem:[#allocation2 + $0x28] sm:$0xff] %vm19, 0.0
    %26 = vst.msk [vmem:[#allocation2 + $0x30] sm:$0xff] %vm19, 0.0
    %27 = vst.msk [vmem:[#allocation2 + $0x38] sm:$0xff] %vm19, 0.0
    %28 = vst.msk [vmem:[#allocation2 + $0x40] sm:$0xff] %vm19, 0.0
    %29 = vst.msk [vmem:[#allocation2 + $0x48] sm:$0xff] %vm19, 0.0
  $region17: #{multi_encoder_forward.9} parent=0 // pred_fallthru
    _
  %v30 = vld [vmem:[#allocation2] sm:$0xff]
  %v31 = vld [vmem:[#allocation2 + $0x8] sm:$0xff]
  %v32 = vld [vmem:[#allocation2 + $0x10] sm:$0xff]
  %v33 = vld [vmem:[#allocation2 + $0x18] sm:$0xff]
  %v34 = vld [vmem:[#allocation2 + $0x20] sm:$0xff]
  %v35 = vld [vmem:[#allocation2 + $0x28] sm:$0xff]
  %v36 = vld [vmem:[#allocation2 + $0x30] sm:$0xff]
  %v37 = vld [vmem:[#allocation2 + $0x38] sm:$0xff]
  %v38 = vld [vmem:[#allocation2 + $0x40] sm:$0xff]
  %v39 = vld [vmem:[#allocation2 + $0x48] sm:$0xff]
  %v40 = vld [vmem:[%s0] sm:$0xf]
  %v41 = vld [vmem:[%s0 + $0x4] sm:$0xf]
  %v42 = vld [vmem:[%s0 + $0x8] sm:$0xf]
  %v43 = vld [vmem:[%s0 + $0xc] sm:$0xf]
  %v44 = vld [vmem:[%s0 + $0x10] sm:$0xf]
  %v45 = vld [vmem:[%s0 + $0x14] sm:$0xf]
  %v46 = vld [vmem:[%s0 + $0x18] sm:$0xf]
  %v47 = vld [vmem:[%s0 + $0x1c] sm:$0xf]
  %v48 = vld [vmem:[%s0 + $0x20] sm:$0xf]
  %v49 = vld [vmem:[%s0 + $0x24] sm:$0xf]
  %v50 = vld [vmem:[%s1] sm:$0xf]
  %v51 = vld [vmem:[%s1 + $0x4] sm:$0xf]
  %v52 = vld [vmem:[%s1 + $0x8] sm:$0xf]
  %v53 = vld [vmem:[%s1 + $0xc] sm:$0xf]
  %v54 = vld [vmem:[%s1 + $0x10] sm:$0xf]
  %v55 = vld [vmem:[%s1 + $0x14] sm:$0xf]
  %v56 = vld [vmem:[%s1 + $0x18] sm:$0xf]
  %v57 = vld [vmem:[%s1 + $0x1c] sm:$0xf]
  %v58 = vld [vmem:[%s1 + $0x20] sm:$0xf]
  %v69 = vunpack.c.l.b16 %v40
  %v70 = vunpack.c.l.b16 %v41
  %v71 = vunpack.c.l.b16 %v42
  %v72 = vunpack.c.l.b16 %v43
  %v73 = vunpack.c.l.b16 %v44
  %v74 = vunpack.c.l.b16 %v45
  %v75 = vunpack.c.l.b16 %v46
  %v76 = vunpack.c.l.b16 %v47
  %v77 = vunpack.c.l.b16 %v48
  %v78 = vunpack.c.l.b16 %v49
  %v79 = vpack.c.b16 %v70, %v69
  %v80 = vpack.c.b16 %v72, %v71
  %v81 = vpack.c.b16 %v74, %v73
  %v82 = vpack.c.b16 %v76, %v75
  %v83 = vpack.c.b16 %v78, %v77
  %v93 = vunpack.c.l.b16 %v50
  %v94 = vunpack.c.l.b16 %v51
  %v95 = vunpack.c.l.b16 %v52
  %v96 = vunpack.c.l.b16 %v53
  %v97 = vunpack.c.l.b16 %v54
  %v98 = vunpack.c.l.b16 %v55
  %v99 = vunpack.c.l.b16 %v56
  %v100 = vunpack.c.l.b16 %v57
  %v101 = vunpack.c.l.b16 %v58
  %v102 = vpack.c.b16 %v94, %v93
  %v103 = vpack.c.b16 %v96, %v95
  %v104 = vpack.c.b16 %v98, %v97
  %v105 = vpack.c.b16 %v100, %v99
  %v106 = vpack.c.b16 %v101, %v101
  %vm111 = vcmask 588800
  %v113 = vsel %vm111, %v79, 0
  %v116 = vsel %vm111, %v80, 0
  %v119 = vsel %vm111, %v81, 0
  %v122 = vsel %vm111, %v82, 0
  %v125 = vsel %vm111, %v83, 0
  %vm127 = vcmask 1043456
  %v129 = vsel %vm127, %v106, 0
  %131 = vmatprep.subr.bf16.mxu0 0
  %132 = vmatpush1.bf16.msra.mxu0 0
  %133 = vmatprep.subr.bf16.mxu0 0
  %134 = vmatpush1.bf16.msra.mxu0 0
  %135 = vmatprep.subr.bf16.mxu0 0
  %136 = vmatpush1.bf16.msra.mxu0 0
  %137 = vmatprep.subr.bf16.mxu0 0
  %138 = vmatpush1.bf16.msra.mxu0 %v129
  %139 = vmatprep.subr.bf16.mxu0 0
  %140 = vmatpush1.bf16.msra.mxu0 %v105
  %141 = vmatprep.subr.bf16.mxu0 0
  %142 = vmatpush1.bf16.msra.mxu0 %v104
  %143 = vmatprep.subr.bf16.mxu0 0
  %144 = vmatpush1.bf16.msra.mxu0 %v103
  %145 = vmatprep.subr.bf16.mxu0 0
  %146 = vmatpush1.bf16.msra.mxu0 %v102
  %147 = vmatprep.subr.bf16.mxu0 0
  %148 = vmatpush2.bf16.msra.mxu0 0
  %149 = vmatprep.subr.bf16.mxu0 0
  %150 = vmatpush2.bf16.msra.mxu0 0
  %151 = vmatprep.subr.bf16.mxu0 0
  %152 = vmatpush2.bf16.msra.mxu0 0
  %153 = vmatprep.subr.bf16.mxu0 0
  %154 = vmatpush2.bf16.msra.mxu0 0
  %155 = vmatprep.subr.bf16.mxu0 0
  %156 = vmatpush2.bf16.msra.mxu0 0
  %157 = vmatprep.subr.bf16.mxu0 0
  %158 = vmatpush2.bf16.msra.mxu0 0
  %159 = vmatprep.subr.bf16.mxu0 0
  %160 = vmatpush2.bf16.msra.mxu0 0
  %161 = vmatprep.subr.bf16.mxu0 0
  %162 = vmatpush2.bf16.msra.mxu0 0
  %163 = vmatprep.mubr.bf16.mxu0 0
  %164 = vmatmul.mubr.bf16.gmra.mxu0 %v113
  %v165 = vpop.f32.mrf.mxu0
  %v166 = vadd.f32 0.0, %v165
  %v167 = vpop.f32.mrf.mxu0
  %v168 = vpop.f32.mrf.mxu0
  %v169 = vadd.f32 0.0, %v168
  %v170 = vpop.f32.mrf.mxu0
  %171 = vmatprep.mubr.bf16.mxu0 0
  %172 = vmatmul.mubr.bf16.gmra.mxu0 %v116
  %v173 = vpop.f32.mrf.mxu0
  %v174 = vadd.f32 0.0, %v173
  %v175 = vpop.f32.mrf.mxu0
  %v176 = vpop.f32.mrf.mxu0
  %v177 = vadd.f32 0.0, %v176
  %v178 = vpop.f32.mrf.mxu0
  %179 = vmatprep.mubr.bf16.mxu0 0
  %180 = vmatmul.mubr.bf16.gmra.mxu0 %v119
  %v181 = vpop.f32.mrf.mxu0
  %v182 = vadd.f32 0.0, %v181
  %v183 = vpop.f32.mrf.mxu0
  %v184 = vpop.f32.mrf.mxu0
  %v185 = vadd.f32 0.0, %v184
  %v186 = vpop.f32.mrf.mxu0
  %187 = vmatprep.mubr.bf16.mxu0 0
  %188 = vmatmul.mubr.bf16.gmra.mxu0 %v122
  %v189 = vpop.f32.mrf.mxu0
  %v190 = vadd.f32 0.0, %v189
  %v191 = vpop.f32.mrf.mxu0
  %v192 = vpop.f32.mrf.mxu0
  %v193 = vadd.f32 0.0, %v192
  %v194 = vpop.f32.mrf.mxu0
  %195 = vmatprep.mubr.bf16.mxu0 0
  %196 = vmatmul.mubr.bf16.gmra.mxu0 %v125
  %v197 = vpop.f32.mrf.mxu0
  %v198 = vadd.f32 0.0, %v197
  %v199 = vpop.f32.mrf.mxu0
  %v200 = vpop.f32.mrf.mxu0
  %v201 = vadd.f32 0.0, %v200
  %v202 = vpop.f32.mrf.mxu0
  %203 = vdwg.mxu0
  %v204 = vadd.f32 %v30, %v166
  %v205 = vadd.f32 %v31, %v169
  %v206 = vadd.f32 %v32, %v174
  %v207 = vadd.f32 %v33, %v177
  %v208 = vadd.f32 %v34, %v182
  %v209 = vadd.f32 %v35, %v185
  %v210 = vadd.f32 %v36, %v190
  %v211 = vadd.f32 %v37, %v193
  %v212 = vadd.f32 %v38, %v198
  %v213 = vadd.f32 %v39, %v201
  %vm214 = vcmask 195584
  %215 = vst.msk [vmem:[#allocation2] sm:$0xff] %vm214, %v204
  %216 = vst.msk [vmem:[#allocation2 + $0x8] sm:$0xff] %vm214, %v205
  %217 = vst.msk [vmem:[#allocation2 + $0x10] sm:$0xff] %vm214, %v206
  %218 = vst.msk [vmem:[#allocation2 + $0x18] sm:$0xff] %vm214, %v207
  %219 = vst.msk [vmem:[#allocation2 + $0x20] sm:$0xff] %vm214, %v208
  %220 = vst.msk [vmem:[#allocation2 + $0x28] sm:$0xff] %vm214, %v209
  %221 = vst.msk [vmem:[#allocation2 + $0x30] sm:$0xff] %vm214, %v210
  %222 = vst.msk [vmem:[#allocation2 + $0x38] sm:$0xff] %vm214, %v211
  %223 = vst.msk [vmem:[#allocation2 + $0x40] sm:$0xff] %vm214, %v212
  %224 = vst.msk [vmem:[#allocation2 + $0x48] sm:$0xff] %vm214, %v213
  // Predicated region
  $region18: #{multi_encoder_forward.9} parent=0 // pred_check
    %p225 = pneg %p15
  $region19: #{multi_encoder_forward.9} parent=0 // pred_check_branch
    %227 = sbr.rel (%p225) target = $region21
  $region20: #{multi_encoder_forward.9} parent=0 // pred_region
    %v228 = vld [vmem:[#allocation2] sm:$0xff]
    %v229 = vld [vmem:[#allocation2 + $0x8] sm:$0xff]
    %v230 = vld [vmem:[#allocation2 + $0x10] sm:$0xff]
    %v231 = vld [vmem:[#allocation2 + $0x18] sm:$0xff]
    %v232 = vld [vmem:[#allocation2 + $0x20] sm:$0xff]
    %v233 = vld [vmem:[#allocation2 + $0x28] sm:$0xff]
    %v234 = vld [vmem:[#allocation2 + $0x30] sm:$0xff]
    %v235 = vld [vmem:[#allocation2 + $0x38] sm:$0xff]
    %v236 = vld [vmem:[#allocation2 + $0x40] sm:$0xff]
    %v237 = vld [vmem:[#allocation2 + $0x48] sm:$0xff]
    %v238 = vld [vmem:[%s2] sm:$0x1]
    %v240 = vlaneseq
    %v241 = vshrl.u32 %v240, 7
    %v242 = vsub.s32 0, %v241
    %v243 = vrot.slane %v238, %v242
    %v245 = vadd.f32 %v228, %v243
    %v246 = vadd.f32 %v229, %v243
    %v247 = vadd.f32 %v230, %v243
    %v248 = vadd.f32 %v231, %v243
    %v249 = vadd.f32 %v232, %v243
    %v250 = vadd.f32 %v233, %v243
    %v251 = vadd.f32 %v234, %v243
    %v252 = vadd.f32 %v235, %v243
    %v253 = vadd.f32 %v236, %v243
    %v254 = vadd.f32 %v237, %v243
    %v255 = vpack.c.bf16 %v246, %v245
    %v256 = vpack.c.bf16 %v248, %v247
    %v257 = vpack.c.bf16 %v250, %v249
    %v258 = vpack.c.bf16 %v252, %v251
    %v259 = vpack.c.bf16 %v254, %v253
    %v265 = vunpack.c.l.b16 %v255
    %v266 = vunpack.c.h.b16 %v255
    %v267 = vunpack.c.l.b16 %v256
    %v268 = vunpack.c.h.b16 %v256
    %v269 = vunpack.c.l.b16 %v257
    %v270 = vunpack.c.h.b16 %v257
    %v271 = vunpack.c.l.b16 %v258
    %v272 = vunpack.c.h.b16 %v258
    %v273 = vunpack.c.l.b16 %v259
    %v274 = vunpack.c.h.b16 %v259
    %v275 = vpack.c.b16 %v265, %v265
    %v276 = vpack.c.b16 %v266, %v266
    %v277 = vpack.c.b16 %v267, %v267
    %v278 = vpack.c.b16 %v268, %v268
    %v279 = vpack.c.b16 %v269, %v269
    %v280 = vpack.c.b16 %v270, %v270
    %v281 = vpack.c.b16 %v271, %v271
    %v282 = vpack.c.b16 %v272, %v272
    %v283 = vpack.c.b16 %v273, %v273
    %v284 = vpack.c.b16 %v274, %v274
    %vm295 = vcmask 191488
    %296 = vst.msk [vmem:[%s3] sm:$0xf] %vm295, %v275
    %297 = vst.msk [vmem:[%s3 + $0x4] sm:$0xf] %vm295, %v276
    %298 = vst.msk [vmem:[%s3 + $0x8] sm:$0xf] %vm295, %v277
    %299 = vst.msk [vmem:[%s3 + $0xc] sm:$0xf] %vm295, %v278
    %300 = vst.msk [vmem:[%s3 + $0x10] sm:$0xf] %vm295, %v279
    %301 = vst.msk [vmem:[%s3 + $0x14] sm:$0xf] %vm295, %v280
    %302 = vst.msk [vmem:[%s3 + $0x18] sm:$0xf] %vm295, %v281
    %303 = vst.msk [vmem:[%s3 + $0x1c] sm:$0xf] %vm295, %v282
    %304 = vst.msk [vmem:[%s3 + $0x20] sm:$0xf] %vm295, %v283
    %305 = vst.msk [vmem:[%s3 + $0x24] sm:$0xf] %vm295, %v284
  $region21: #{multi_encoder_forward.9} parent=0 // pred_fallthru
    _
  // Predicated region
  $region22: #{multi_encoder_forward.9} parent=0 // pred_check
    _
  $region23: #{multi_encoder_forward.9} parent=0 // pred_check_branch
    %307 = sbr.rel (0) target = $region25
  $region24: #{multi_encoder_forward.9} parent=0 // pred_region
    _
  $region25: #{multi_encoder_forward.9} parent=0 // pred_fallthru
    _
  // Predicated region
  $region26: #{multi_encoder_forward.9} parent=0 // pred_check
    _
  $region27: #{multi_encoder_forward.9} parent=0 // pred_check_branch
    %309 = sbr.rel (0) target = $region29
  $region28: #{multi_encoder_forward.9} parent=0 // pred_region
    _
  $region29: #{multi_encoder_forward.9} parent=0 // pred_fallthru
    _

// kernel: multi_encoder_forward.12
$region0: #{multi_encoder_forward.12}
  #allocation0 [shape = 'u32[]', space=smem, size = 0x4, offset = 0x4, fixed_abs, tag = 'smem constant byte address 0x4 - core index']
  #allocation1 [shape = 'u32[144,128]{1,0:T(1,128)}', space=vmem, size = 0x12000, scoped, tag = 'internal scratch']
  #allocation2 [shape = 'f32[8,64]{1,0:T(8,128)}', space=vmem, size = 0x1000, scoped, tag = 'scratch operand']
  %s0 = inlined_call_operand.vmem [shape: bf16[8,40], index: 0, kind: input, shape index: {}]
  %s1 = inlined_call_operand.vmem [shape: bf16[40,64], index: 1, kind: input, shape index: {}]
  %s2 = inlined_call_operand.vmem [shape: f32[1,64], index: 2, kind: input, shape index: {}]
  %s3 = inlined_call_operand.vmem [shape: bf16[8,64], index: 3, kind: input, shape index: {}]
  %s4 = inlined_call_operand.vmem [shape: bf16[8,64], index: 4, kind: output, shape index: {}]
  %s5 = sld [smem:[#allocation0]]
  $region34: #{multi_encoder_forward.12} parent=0
    _
  %s7 = ssub.s32 1, %s5
  %s8 = scalar_select 0, %s7, %s5
  // Predicated region
  $region2: #{multi_encoder_forward.12} parent=0 // pred_check
    _
  $region3: #{multi_encoder_forward.12} parent=0 // pred_check_branch
    %10 = sbr.rel (0) target = $region5
  $region4: #{multi_encoder_forward.12} parent=0 // pred_region
    _
  $region5: #{multi_encoder_forward.12} parent=0 // pred_fallthru
    _
  // Predicated region
  $region6: #{multi_encoder_forward.12} parent=0 // pred_check
    _
  $region7: #{multi_encoder_forward.12} parent=0 // pred_check_branch
    %12 = sbr.rel (0) target = $region9
  $region8: #{multi_encoder_forward.12} parent=0 // pred_region
    _
  $region9: #{multi_encoder_forward.12} parent=0 // pred_fallthru
    _
  // Predicated region
  $region10: #{multi_encoder_forward.12} parent=0 // pred_check
    _
  $region11: #{multi_encoder_forward.12} parent=0 // pred_check_branch
    %14 = sbr.rel (0) target = $region13
  $region12: #{multi_encoder_forward.12} parent=0 // pred_region
    _
  $region13: #{multi_encoder_forward.12} parent=0 // pred_fallthru
    _
  // Predicated region
  $region14: #{multi_encoder_forward.12} parent=0 // pred_check
    _
  $region15: #{multi_encoder_forward.12} parent=0 // pred_check_branch
    %16 = sbr.rel (0) target = $region17
  $region16: #{multi_encoder_forward.12} parent=0 // pred_region
    _
  $region17: #{multi_encoder_forward.12} parent=0 // pred_fallthru
    _
  %p18 = scmp.eq.s32.totalorder 0, 0
  // Predicated region
  $region18: #{multi_encoder_forward.12} parent=0 // pred_check
    %p19 = pneg %p18
  $region19: #{multi_encoder_forward.12} parent=0 // pred_check_branch
    %21 = sbr.rel (%p19) target = $region21
  $region20: #{multi_encoder_forward.12} parent=0 // pred_region
    %vm22 = vcmask 523264
    %23 = vst.msk [vmem:[#allocation2] sm:$0xff] %vm22, 0.0
  $region21: #{multi_encoder_forward.12} parent=0 // pred_fallthru
    _
  %v24 = vld [vmem:[#allocation2] sm:$0xff]
  %v25 = vld [vmem:[%s0] sm:$0xf]
  %v26 = vld [vmem:[%s1] sm:$0xf]
  %v27 = vld [vmem:[%s1 + $0x4] sm:$0xf]
  %v28 = vld [vmem:[%s1 + $0x8] sm:$0xf]
  %v29 = vld [vmem:[%s1 + $0xc] sm:$0xf]
  %v30 = vld [vmem:[%s1 + $0x10] sm:$0xf]
  %v36 = vunpack.c.l.b16 %v26
  %v37 = vunpack.c.l.b16 %v27
  %v38 = vunpack.c.l.b16 %v28
  %v39 = vunpack.c.l.b16 %v29
  %v40 = vunpack.c.l.b16 %v30
  %v41 = vpack.c.b16 %v37, %v36
  %v42 = vpack.c.b16 %v39, %v38
  %v43 = vpack.c.b16 %v40, %v40
  %vm46 = vcmask 326656
  %v48 = vsel %vm46, %v25, 0
  %vm50 = vcmask 1043456
  %v52 = vsel %vm50, %v43, 0
  %54 = vmatprep.subr.bf16.mxu0 0
  %55 = vmatpush1.bf16.msra.mxu0 0
  %56 = vmatprep.subr.bf16.mxu0 0
  %57 = vmatpush1.bf16.msra.mxu0 0
  %58 = vmatprep.subr.bf16.mxu0 0
  %59 = vmatpush1.bf16.msra.mxu0 0
  %60 = vmatprep.subr.bf16.mxu0 0
  %61 = vmatpush1.bf16.msra.mxu0 0
  %62 = vmatprep.subr.bf16.mxu0 0
  %63 = vmatpush1.bf16.msra.mxu0 0
  %64 = vmatprep.subr.bf16.mxu0 0
  %65 = vmatpush1.bf16.msra.mxu0 %v52
  %66 = vmatprep.subr.bf16.mxu0 0
  %67 = vmatpush1.bf16.msra.mxu0 %v42
  %68 = vmatprep.subr.bf16.mxu0 0
  %69 = vmatpush1.bf16.msra.mxu0 %v41
  %70 = vmatprep.subr.bf16.mxu0 0
  %71 = vmatpush2.bf16.msra.mxu0 0
  %72 = vmatprep.subr.bf16.mxu0 0
  %73 = vmatpush2.bf16.msra.mxu0 0
  %74 = vmatprep.subr.bf16.mxu0 0
  %75 = vmatpush2.bf16.msra.mxu0 0
  %76 = vmatprep.subr.bf16.mxu0 0
  %77 = vmatpush2.bf16.msra.mxu0 0
  %78 = vmatprep.subr.bf16.mxu0 0
  %79 = vmatpush2.bf16.msra.mxu0 0
  %80 = vmatprep.subr.bf16.mxu0 0
  %81 = vmatpush2.bf16.msra.mxu0 0
  %82 = vmatprep.subr.bf16.mxu0 0
  %83 = vmatpush2.bf16.msra.mxu0 0
  %84 = vmatprep.subr.bf16.mxu0 0
  %85 = vmatpush2.bf16.msra.mxu0 0
  %86 = vmatprep.mubr.bf16.mxu0 0
  %87 = vmatmul.mubr.bf16.gmra.mxu0 %v48
  %v88 = vpop.f32.mrf.mxu0
  %v89 = vadd.f32 0.0, %v88
  %v90 = vpop.f32.mrf.mxu0
  %v91 = vpop.f32.mrf.mxu0
  %v92 = vpop.f32.mrf.mxu0
  %93 = vdwg.mxu0
  %v94 = vadd.f32 %v24, %v89
  %vm95 = vcmask 523264
  %96 = vst.msk [vmem:[#allocation2] sm:$0xff] %vm95, %v94
  // Predicated region
  $region22: #{multi_encoder_forward.12} parent=0 // pred_check
    %p97 = pneg %p18
  $region23: #{multi_encoder_forward.12} parent=0 // pred_check_branch
    %99 = sbr.rel (%p97) target = $region25
  $region24: #{multi_encoder_forward.12} parent=0 // pred_region
    %v100 = vld [vmem:[#allocation2] sm:$0xff]
    %v101 = vld [vmem:[%s2] sm:$0x1]
    %v103 = vlaneseq
    %v104 = vshrl.u32 %v103, 7
    %v105 = vsub.s32 0, %v104
    %v106 = vrot.slane %v101, %v105
    %v108 = vadd.f32 %v100, %v106
    %v109 = vld [vmem:[%s3] sm:$0xf]
    %v110 = vunpack.c.l.bf16 %v109
    %v111 = vadd.f32 %v108, %v110
    %v112 = vpack.c.bf16 %v111, %v111
    %vm113 = vcmask 519168
    %114 = vst.msk [vmem:[%s4] sm:$0xf] %vm113, %v112
  $region25: #{multi_encoder_forward.12} parent=0 // pred_fallthru
    _
  // Predicated region
  $region26: #{multi_encoder_forward.12} parent=0 // pred_check
    _
  $region27: #{multi_encoder_forward.12} parent=0 // pred_check_branch
    %116 = sbr.rel (0) target = $region29
  $region28: #{multi_encoder_forward.12} parent=0 // pred_region
    _
  $region29: #{multi_encoder_forward.12} parent=0 // pred_fallthru
    _
  // Predicated region
  $region30: #{multi_encoder_forward.12} parent=0 // pred_check
    _
  $region31: #{multi_encoder_forward.12} parent=0 // pred_check_branch
    %118 = sbr.rel (0) target = $region33
  $region32: #{multi_encoder_forward.12} parent=0 // pred_region
    _
  $region33: #{multi_encoder_forward.12} parent=0 // pred_fallthru
    _

// kernel: multi_encoder_forward.11
$region0: #{multi_encoder_forward.11}
  #allocation0 [shape = 'u32[]', space=smem, size = 0x4, offset = 0x4, fixed_abs, tag = 'smem constant byte address 0x4 - core index']
  #allocation1 [shape = 'u32[144,128]{1,0:T(1,128)}', space=vmem, size = 0x12000, scoped, tag = 'internal scratch']
  %s0 = inlined_call_operand.vmem [shape: bf16[8,128], index: 0, kind: input, shape index: {}]
  %s1 = inlined_call_operand.vmem [shape: bf16[2,128,384], index: 1, kind: input, shape index: {}]
  %s2 = inlined_call_operand.vmem [shape: bf16[2,128,128], index: 2, kind: input, shape index: {}]
  %s3 = inlined_call_operand.vmem [shape: bf16[2,128,512], index: 3, kind: input, shape index: {}]
  %s4 = inlined_call_operand.vmem [shape: bf16[2,512,128], index: 4, kind: input, shape index: {}]
  %s5 = inlined_call_operand.vmem [shape: f32[2,9,128], index: 5, kind: input, shape index: {}]
  %s6 = inlined_call_operand.vmem [shape: f32[2,1,512], index: 6, kind: input, shape index: {}]
  %s7 = inlined_call_operand.vmem [shape: bf16[8,128], index: 7, kind: output, shape index: {}]
  %s8 = sld [smem:[#allocation0]]
  $region65: #{multi_encoder_forward.11} parent=0
    _
  %s10 = ssub.s32 1, %s8
  %s11 = scalar_select 0, %s10, %s8
  loop: start=0, step=1, limit=4
  $region2: #{multi_encoder_forward.11} parent=0 // loop_pre_header
    _
  $region3: #{multi_encoder_forward.11} parent=0 // loop_header
    %s13 = sphi 0, %s17
    %p14 = scmp.ge.s32.totalorder %s13, 4
    %s21 = sphi 0, %s21
    %s23 = sphi 0, %s21
    %s24 = sphi 0, %s23
    %s38 = sphi 0, %s24
    %s44 = sphi 0, %s46
    %s47 = sphi 0, %s44
    %s48 = sphi 0, %s47
    %s64 = sphi 0, %s48
    %s70 = sphi 0, %s72
    %s73 = sphi 0, %s70
    %s74 = sphi 0, %s73
    %s90 = sphi 0, %s74
    %s96 = sphi 0, %s98
    %s99 = sphi 0, %s96
    %s100 = sphi 0, %s99
    %s116 = sphi 0, %s100
    %s122 = sphi 0, %s124
    %s125 = sphi 0, %s122
    %s126 = sphi 0, %s125
    %s142 = sphi 0, %s126
    %s148 = sphi 0, %s150
    %s151 = sphi 0, %s148
    %s152 = sphi 0, %s151
    %s168 = sphi 0, %s152
    %s174 = sphi 0, %s176
    %s177 = sphi 0, %s174
    %s178 = sphi 0, %s177
    %s194 = sphi 0, %s178
    %s198 = sphi 0, %s198
    %s200 = sphi 0, %s198
    %s201 = sphi 0, %s200
    %s215 = sphi 0, %s201
  $region4: #{multi_encoder_forward.11} parent=0 // loop_header_branch
    %16 = sbr.rel (%p14) target = $region8
  $region5: #{multi_encoder_forward.11} parent=0 // loop_body
    %s18 = ssub.s32 %s13, 1
    %s19 = ssub.s32 %s13, 2
    %s20 = sadd.s32 %s13, 1
    %s22 = sadd.s32 %s21, 1
    %p25 = scmp.eq.s32.totalorder %s13, 1
    %p26 = scmp.ne.s32.totalorder %s21, %s23
    %p27 = scmp.eq.s32.totalorder %s13, 0
    %p28 = por %p26, %p27
    %p29 = scmp.ne.s32.totalorder %s21, %s23
    %p30 = scmp.eq.s32.totalorder %s18, 1
    %p31 = por %p29, %p30
    %p32 = scmp.ne.s32.totalorder %s23, %s24
    %p33 = scmp.eq.s32.totalorder %s18, 0
    %p34 = por %p32, %p33
    %p35 = scmp.ne.s32.totalorder %s23, %s24
    %p36 = scmp.eq.s32.totalorder %s19, 1
    %p37 = por %p35, %p36
    %p39 = scmp.ne.s32.totalorder %s24, %s38
    %p40 = scmp.eq.s32.totalorder %s19, 0
    %p41 = por %p39, %p40
    %s42 = ssub.s32 %s13, %s20
    %p43 = scmp.eq.s32.totalorder %s42, 0
    %s45 = sadd.s32 %s44, 1
    %s46 = scalar_select %p43, %s44, %s45
    %p49 = pneg %p43
    %p50 = scmp.eq.s32.totalorder %s13, 1
    %p51 = por %p49, %p50
    %p52 = scmp.ne.s32.totalorder %s44, %s47
    %p53 = scmp.eq.s32.totalorder %s13, 0
    %p54 = por %p52, %p53
    %p55 = scmp.ne.s32.totalorder %s44, %s47
    %p56 = scmp.eq.s32.totalorder %s18, 1
    %p57 = por %p55, %p56
    %p58 = scmp.ne.s32.totalorder %s47, %s48
    %p59 = scmp.eq.s32.totalorder %s18, 0
    %p60 = por %p58, %p59
    %p61 = scmp.ne.s32.totalorder %s47, %s48
    %p62 = scmp.eq.s32.totalorder %s19, 1
    %p63 = por %p61, %p62
    %p65 = scmp.ne.s32.totalorder %s48, %s64
    %p66 = scmp.eq.s32.totalorder %s19, 0
    %p67 = por %p65, %p66
    %s68 = ssub.s32 %s13, %s20
    %p69 = scmp.eq.s32.totalorder %s68, 0
    %s71 = sadd.s32 %s70, 1
    %s72 = scalar_select %p69, %s70, %s71
    %p75 = pneg %p69
    %p76 = scmp.eq.s32.totalorder %s13, 1
    %p77 = por %p75, %p76
    %p78 = scmp.ne.s32.totalorder %s70, %s73
    %p79 = scmp.eq.s32.totalorder %s13, 0
    %p80 = por %p78, %p79
    %p81 = scmp.ne.s32.totalorder %s70, %s73
    %p82 = scmp.eq.s32.totalorder %s18, 1
    %p83 = por %p81, %p82
    %p84 = scmp.ne.s32.totalorder %s73, %s74
    %p85 = scmp.eq.s32.totalorder %s18, 0
    %p86 = por %p84, %p85
    %p87 = scmp.ne.s32.totalorder %s73, %s74
    %p88 = scmp.eq.s32.totalorder %s19, 1
    %p89 = por %p87, %p88
    %p91 = scmp.ne.s32.totalorder %s74, %s90
    %p92 = scmp.eq.s32.totalorder %s19, 0
    %p93 = por %p91, %p92
    %s94 = ssub.s32 %s13, %s20
    %p95 = scmp.eq.s32.totalorder %s94, 0
    %s97 = sadd.s32 %s96, 1
    %s98 = scalar_select %p95, %s96, %s97
    %p101 = pneg %p95
    %p102 = scmp.eq.s32.totalorder %s13, 1
    %p103 = por %p101, %p102
    %p104 = scmp.ne.s32.totalorder %s96, %s99
    %p105 = scmp.eq.s32.totalorder %s13, 0
    %p106 = por %p104, %p105
    %p107 = scmp.ne.s32.totalorder %s96, %s99
    %p108 = scmp.eq.s32.totalorder %s18, 1
    %p109 = por %p107, %p108
    %p110 = scmp.ne.s32.totalorder %s99, %s100
    %p111 = scmp.eq.s32.totalorder %s18, 0
    %p112 = por %p110, %p111
    %p113 = scmp.ne.s32.totalorder %s99, %s100
    %p114 = scmp.eq.s32.totalorder %s19, 1
    %p115 = por %p113, %p114
    %p117 = scmp.ne.s32.totalorder %s100, %s116
    %p118 = scmp.eq.s32.totalorder %s19, 0
    %p119 = por %p117, %p118
    %s120 = ssub.s32 %s13, %s20
    %p121 = scmp.eq.s32.totalorder %s120, 0
    %s123 = sadd.s32 %s122, 1
    %s124 = scalar_select %p121, %s122, %s123
    %p127 = pneg %p121
    %p128 = scmp.eq.s32.totalorder %s13, 1
    %p129 = por %p127, %p128
    %p130 = scmp.ne.s32.totalorder %s122, %s125
    %p131 = scmp.eq.s32.totalorder %s13, 0
    %p132 = por %p130, %p131
    %p133 = scmp.ne.s32.totalorder %s122, %s125
    %p134 = scmp.eq.s32.totalorder %s18, 1
    %p135 = por %p133, %p134
    %p136 = scmp.ne.s32.totalorder %s125, %s126
    %p137 = scmp.eq.s32.totalorder %s18, 0
    %p138 = por %p136, %p137
    %p139 = scmp.ne.s32.totalorder %s125, %s126
    %p140 = scmp.eq.s32.totalorder %s19, 1
    %p141 = por %p139, %p140
    %p143 = scmp.ne.s32.totalorder %s126, %s142
    %p144 = scmp.eq.s32.totalorder %s19, 0
    %p145 = por %p143, %p144
    %s146 = ssub.s32 %s13, %s20
    %p147 = scmp.eq.s32.totalorder %s146, 0
    %s149 = sadd.s32 %s148, 1
    %s150 = scalar_select %p147, %s148, %s149
    %p153 = pneg %p147
    %p154 = scmp.eq.s32.totalorder %s13, 1
    %p155 = por %p153, %p154
    %p156 = scmp.ne.s32.totalorder %s148, %s151
    %p157 = scmp.eq.s32.totalorder %s13, 0
    %p158 = por %p156, %p157
    %p159 = scmp.ne.s32.totalorder %s148, %s151
    %p160 = scmp.eq.s32.totalorder %s18, 1
    %p161 = por %p159, %p160
    %p162 = scmp.ne.s32.totalorder %s151, %s152
    %p163 = scmp.eq.s32.totalorder %s18, 0
    %p164 = por %p162, %p163
    %p165 = scmp.ne.s32.totalorder %s151, %s152
    %p166 = scmp.eq.s32.totalorder %s19, 1
    %p167 = por %p165, %p166
    %p169 = scmp.ne.s32.totalorder %s152, %s168
    %p170 = scmp.eq.s32.totalorder %s19, 0
    %p171 = por %p169, %p170
    %s172 = ssub.s32 %s13, %s20
    %p173 = scmp.eq.s32.totalorder %s172, 0
    %s175 = sadd.s32 %s174, 1
    %s176 = scalar_select %p173, %s174, %s175
    %p179 = pneg %p173
    %p180 = scmp.eq.s32.totalorder %s13, 1
    %p181 = por %p179, %p180
    %p182 = scmp.ne.s32.totalorder %s174, %s177
    %p183 = scmp.eq.s32.totalorder %s13, 0
    %p184 = por %p182, %p183
    %p185 = scmp.ne.s32.totalorder %s174, %s177
    %p186 = scmp.eq.s32.totalorder %s18, 1
    %p187 = por %p185, %p186
    %p188 = scmp.ne.s32.totalorder %s177, %s178
    %p189 = scmp.eq.s32.totalorder %s18, 0
    %p190 = por %p188, %p189
    %p191 = scmp.ne.s32.totalorder %s177, %s178
    %p192 = scmp.eq.s32.totalorder %s19, 1
    %p193 = por %p191, %p192
    %p195 = scmp.ne.s32.totalorder %s178, %s194
    %p196 = scmp.eq.s32.totalorder %s19, 0
    %p197 = por %p195, %p196
    %s199 = sadd.s32 %s198, 1
    %p202 = scmp.eq.s32.totalorder %s13, 1
    %p203 = scmp.ne.s32.totalorder %s198, %s200
    %p204 = scmp.eq.s32.totalorder %s13, 0
    %p205 = por %p203, %p204
    %p206 = scmp.ne.s32.totalorder %s198, %s200
    %p207 = scmp.eq.s32.totalorder %s18, 1
    %p208 = por %p206, %p207
    %p209 = scmp.ne.s32.totalorder %s200, %s201
    %p210 = scmp.eq.s32.totalorder %s18, 0
    %p211 = por %p209, %p210
    %p212 = scmp.ne.s32.totalorder %s200, %s201
    %p213 = scmp.eq.s32.totalorder %s19, 1
    %p214 = por %p212, %p213
    %p216 = scmp.ne.s32.totalorder %s201, %s215
    %p217 = scmp.eq.s32.totalorder %s19, 0
    %p218 = por %p216, %p217
    %p219 = scmp.le.s32.totalorder 1, %s13
    %p220 = scmp.lt.s32.totalorder %s13, 3
    %p221 = pnand %p219, %p220
    %p222 = pneg %p221
    // Predicated region
    $region9: #{multi_encoder_forward.11} parent=5 // pred_check
      _
    $region10: #{multi_encoder_forward.11} parent=5 // pred_check_branch
      %224 = sbr.rel (%p221) target = $region12
    $region11: #{multi_encoder_forward.11} parent=5 // pred_region
      %s225 = ssub.s32 %s13, 1
      // Predicated region
      $region13: #{multi_encoder_forward.11} parent=11 // pred_check
        %p226 = pneg %p34
      $region14: #{multi_encoder_forward.11} parent=11 // pred_check_branch
        %228 = sbr.rel (%p226) target = $region16
      $region15: #{multi_encoder_forward.11} parent=11 // pred_region
        _
      $region16: #{multi_encoder_forward.11} parent=11 // pred_fallthru
        _
    $region12: #{multi_encoder_forward.11} parent=5 // pred_fallthru
      _
    %p229 = scmp.lt.s32.totalorder %s13, 2
    // Predicated region
    $region17: #{multi_encoder_forward.11} parent=5 // pred_check
      %p230 = pneg %p229
    $region18: #{multi_encoder_forward.11} parent=5 // pred_check_branch
      %232 = sbr.rel (%p230) target = $region20
    $region19: #{multi_encoder_forward.11} parent=5 // pred_region
      // Predicated region
      $region21: #{multi_encoder_forward.11} parent=19 // pred_check
        %p233 = pneg %p54
      $region22: #{multi_encoder_forward.11} parent=19 // pred_check_branch
        %235 = sbr.rel (%p233) target = $region24
      $region23: #{multi_encoder_forward.11} parent=19 // pred_region
        %p236 = scmp.lt.s32.totalorder %s13, 1
        %s237 = scalar_select %p236, %s13, 1
        %s238 = smul.addr %s237, 48
        %s239 = smul.addr %s238, 4
        %s240 = scalar_lea.vmem %s1, %s239
      $region24: #{multi_encoder_forward.11} parent=19 // pred_fallthru
        _
      // Predicated region
      $region25: #{multi_encoder_forward.11} parent=19 // pred_check
        %p241 = pneg %p80
      $region26: #{multi_encoder_forward.11} parent=19 // pred_check_branch
        %243 = sbr.rel (%p241) target = $region28
      $region27: #{multi_encoder_forward.11} parent=19 // pred_region
        %p244 = scmp.lt.s32.totalorder %s13, 1
        %s245 = scalar_select %p244, %s13, 1
        %s246 = smul.addr %s245, 16
        %s247 = smul.addr %s246, 4
        %s248 = scalar_lea.vmem %s2, %s247
      $region28: #{multi_encoder_forward.11} parent=19 // pred_fallthru
        _
      // Predicated region
      $region29: #{multi_encoder_forward.11} parent=19 // pred_check
        %p249 = pneg %p106
      $region30: #{multi_encoder_forward.11} parent=19 // pred_check_branch
        %251 = sbr.rel (%p249) target = $region32
      $region31: #{multi_encoder_forward.11} parent=19 // pred_region
        %p252 = scmp.lt.s32.totalorder %s13, 1
        %s253 = scalar_select %p252, %s13, 1
        %s254 = smul.addr %s253, 64
        %s255 = smul.addr %s254, 4
        %s256 = scalar_lea.vmem %s3, %s255
      $region32: #{multi_encoder_forward.11} parent=19 // pred_fallthru
        _
      // Predicated region
      $region33: #{multi_encoder_forward.11} parent=19 // pred_check
        %p257 = pneg %p132
      $region34: #{multi_encoder_forward.11} parent=19 // pred_check_branch
        %259 = sbr.rel (%p257) target = $region36
      $region35: #{multi_encoder_forward.11} parent=19 // pred_region
        %p260 = scmp.lt.s32.totalorder %s13, 1
        %s261 = scalar_select %p260, %s13, 1
        %s262 = smul.addr %s261, 64
        %s263 = smul.addr %s262, 4
        %s264 = scalar_lea.vmem %s4, %s263
      $region36: #{multi_encoder_forward.11} parent=19 // pred_fallthru
        _
      // Predicated region
      $region37: #{multi_encoder_forward.11} parent=19 // pred_check
        %p265 = pneg %p158
      $region38: #{multi_encoder_forward.11} parent=19 // pred_check_branch
        %267 = sbr.rel (%p265) target = $region40
      $region39: #{multi_encoder_forward.11} parent=19 // pred_region
        %p268 = scmp.lt.s32.totalorder %s13, 1
        %s269 = scalar_select %p268, %s13, 1
        %s270 = smul.addr %s269, 2
        %s271 = smul.addr %s270, 8
        %s272 = scalar_lea.vmem %s5, %s271
      $region40: #{multi_encoder_forward.11} parent=19 // pred_fallthru
        _
      // Predicated region
      $region41: #{multi_encoder_forward.11} parent=19 // pred_check
        %p273 = pneg %p184
      $region42: #{multi_encoder_forward.11} parent=19 // pred_check_branch
        %275 = sbr.rel (%p273) target = $region44
      $region43: #{multi_encoder_forward.11} parent=19 // pred_region
        %p276 = scmp.lt.s32.totalorder %s13, 1
        %s277 = scalar_select %p276, %s13, 1
        %s278 = smul.addr %s277, 4
        %s279 = scalar_lea.vmem %s6, %s278
      $region44: #{multi_encoder_forward.11} parent=19 // pred_fallthru
        _
    $region20: #{multi_encoder_forward.11} parent=5 // pred_fallthru
      _
    %p280 = scmp.le.s32.totalorder 1, %s13
    %p281 = scmp.lt.s32.totalorder %s13, 3
    %p282 = pnand %p280, %p281
    %p283 = pneg %p282
    // Predicated region
    $region45: #{multi_encoder_forward.11} parent=5 // pred_check
      _
    $region46: #{multi_encoder_forward.11} parent=5 // pred_check_branch
      %285 = sbr.rel (%p282) target = $region48
    $region47: #{multi_encoder_forward.11} parent=5 // pred_region
      %s286 = ssub.s32 %s13, 1
      %p287 = pneg %p34
      %p288 = pneg %p31
      %p289 = scmp.lt.s32.totalorder %s18, 1
      %s290 = scalar_select %p289, %s18, 1
      %s291 = smul.addr %s290, 48
      %s292 = smul.addr %s291, 4
      %s293 = scalar_lea.vmem %s1, %s292
      %p294 = pneg %p60
      %p295 = pneg %p57
      %p296 = scmp.lt.s32.totalorder %s18, 1
      %s297 = scalar_select %p296, %s18, 1
      %s298 = smul.addr %s297, 16
      %s299 = smul.addr %s298, 4
      %s300 = scalar_lea.vmem %s2, %s299
      %p301 = pneg %p86
      %p302 = pneg %p83
      %p303 = scmp.lt.s32.totalorder %s18, 1
      %s304 = scalar_select %p303, %s18, 1
      %s305 = smul.addr %s304, 64
      %s306 = smul.addr %s305, 4
      %s307 = scalar_lea.vmem %s3, %s306
      %p308 = pneg %p112
      %p309 = pneg %p109
      %p310 = scmp.lt.s32.totalorder %s18, 1
      %s311 = scalar_select %p310, %s18, 1
      %s312 = smul.addr %s311, 64
      %s313 = smul.addr %s312, 4
      %s314 = scalar_lea.vmem %s4, %s313
      %p315 = pneg %p138
      %p316 = pneg %p135
      %p317 = scmp.lt.s32.totalorder %s18, 1
      %s318 = scalar_select %p317, %s18, 1
      %s319 = smul.addr %s318, 2
      %s320 = smul.addr %s319, 8
      %s321 = scalar_lea.vmem %s5, %s320
      %p322 = pneg %p164
      %p323 = pneg %p161
      %p324 = scmp.lt.s32.totalorder %s18, 1
      %s325 = scalar_select %p324, %s18, 1
      %s326 = smul.addr %s325, 4
      %s327 = scalar_lea.vmem %s6, %s326
      %p328 = pneg %p190
      %p329 = pneg %p187
      %p330 = pneg %p211
      %p331 = pneg %p208
      %p332 = scmp.lt.s32.totalorder %s18, 1
      %s333 = scalar_select %p332, %s18, 1
      %s334 = smul.addr %s333, 48
      %s335 = smul.addr %s334, 4
      %s336 = scalar_lea.vmem %s1, %s335
      %p337 = scmp.lt.s32.totalorder %s18, 1
      %s338 = scalar_select %p337, %s18, 1
      %s339 = smul.addr %s338, 16
      %s340 = smul.addr %s339, 4
      %s341 = scalar_lea.vmem %s2, %s340
      %p342 = scmp.lt.s32.totalorder %s18, 1
      %s343 = scalar_select %p342, %s18, 1
      %s344 = smul.addr %s343, 64
      %s345 = smul.addr %s344, 4
      %s346 = scalar_lea.vmem %s3, %s345
      %p347 = scmp.lt.s32.totalorder %s18, 1
      %s348 = scalar_select %p347, %s18, 1
      %s349 = smul.addr %s348, 64
      %s350 = smul.addr %s349, 4
      %s351 = scalar_lea.vmem %s4, %s350
      %p352 = scmp.lt.s32.totalorder %s18, 1
      %s353 = scalar_select %p352, %s18, 1
      %s354 = smul.addr %s353, 2
      %s355 = smul.addr %s354, 8
      %s356 = scalar_lea.vmem %s5, %s355
      %p357 = scmp.lt.s32.totalorder %s18, 1
      %s358 = scalar_select %p357, %s18, 1
      %s359 = smul.addr %s358, 4
      %s360 = scalar_lea.vmem %s6, %s359
      %p362 = scmp.eq.s32.totalorder %s18, 0
      // Predicated region
      $region49: #{multi_encoder_forward.11} parent=47 // pred_check
        %p363 = pneg %p362
      $region50: #{multi_encoder_forward.11} parent=47 // pred_check_branch
        %365 = sbr.rel (%p363) target = $region52
      $region51: #{multi_encoder_forward.11} parent=47 // pred_region
        %v366 = vld [vmem:[%s0] sm:$0xf]
        %367 = vst [vmem:[%s7] sm:$0xf] %v366
      $region52: #{multi_encoder_forward.11} parent=47 // pred_fallthru
        _
      %v368 = vld [vmem:[%s7] sm:$0xf]
      %v369 = vunpack.c.l.bf16 %v368
      %v370 = vld [vmem:[%s356] sm:$0xff]
      %v371 = vld [vmem:[%s356 + $0x8] sm:$0x1]
      %v372 = vld [vmem:[%s360] sm:$0xf]
      %373 = vadd.xlane.f32.xlu0 %v369
      %v374 = vpop.xlane.xlu0 %373
      %v375 = vrcp.pop 128.0
      %v376 = vmul.f32 %v374, %v375
      %v377 = vsub.f32 %v369, %v376
      %v378 = vmul.f32 %v377, %v377
      %379 = vadd.xlane.f32.xlu0 %v378
      %v380 = vpop.xlane.xlu0 %379
      %v381 = vmul.f32 %v380, %v375
      %v382 = vadd.f32 %v381, 1e-05
      %v383 = vrsqrt.pop %v382
      %v384 = vmul.f32 %v377, %v383
      %v385 = vlaneseq
      %v386 = vshrl.u32 %v385, 7
      %v387 = vsub.s32 0, %v386
      %v388 = vrot.slane %v370, %v387
      %v389 = vmul.f32 %v384, %v388
      %v390 = vlaneseq
      %v391 = vshrl.u32 %v390, 7
      %v392 = vsub.s32 1, %v391
      %v393 = vrot.slane %v370, %v392
      %v394 = vadd.f32 %v389, %v393
      %v395 = vpack.c.bf16 %v394, %v394
      %v396 = vld [vmem:[%s336] sm:$0xff]
      %v397 = vld [vmem:[%s336 + $0x8] sm:$0xf]
      %v398 = vld [vmem:[%s336 + $0xc] sm:$0xff]
      %v399 = vld [vmem:[%s336 + $0x14] sm:$0xf]
      %v400 = vld [vmem:[%s336 + $0x18] sm:$0xff]
      %v401 = vld [vmem:[%s336 + $0x20] sm:$0xf]
      %v402 = vld [vmem:[%s336 + $0x24] sm:$0xff]
      %v403 = vld [vmem:[%s336 + $0x2c] sm:$0xf]
      %v404 = vld [vmem:[%s336 + $0x30] sm:$0xff]
      %v405 = vld [vmem:[%s336 + $0x38] sm:$0xf]
      %v406 = vld [vmem:[%s336 + $0x3c] sm:$0xff]
      %v407 = vld [vmem:[%s336 + $0x44] sm:$0xf]
      %v408 = vld [vmem:[%s336 + $0x48] sm:$0xff]
      %v409 = vld [vmem:[%s336 + $0x50] sm:$0xf]
      %v410 = vld [vmem:[%s336 + $0x54] sm:$0xff]
      %v411 = vld [vmem:[%s336 + $0x5c] sm:$0xf]
      %v412 = vld [vmem:[%s336 + $0x60] sm:$0xff]
      %v413 = vld [vmem:[%s336 + $0x68] sm:$0xf]
      %v414 = vld [vmem:[%s336 + $0x6c] sm:$0xff]
      %v415 = vld [vmem:[%s336 + $0x74] sm:$0xf]
      %v416 = vld [vmem:[%s336 + $0x78] sm:$0xff]
      %v417 = vld [vmem:[%s336 + $0x80] sm:$0xf]
      %v418 = vld [vmem:[%s336 + $0x84] sm:$0xff]
      %v419 = vld [vmem:[%s336 + $0x8c] sm:$0xf]
      %v420 = vld [vmem:[%s336 + $0x90] sm:$0xff]
      %v421 = vld [vmem:[%s336 + $0x98] sm:$0xf]
      %v422 = vld [vmem:[%s336 + $0x9c] sm:$0xff]
      %v423 = vld [vmem:[%s336 + $0xa4] sm:$0xf]
      %v424 = vld [vmem:[%s336 + $0xa8] sm:$0xff]
      %v425 = vld [vmem:[%s336 + $0xb0] sm:$0xf]
      %v426 = vld [vmem:[%s336 + $0xb4] sm:$0xff]
      %v427 = vld [vmem:[%s336 + $0xbc] sm:$0xf]
      %v460 = vunpack.c.l.b16 %v396
      %v461 = vunpack.c.h.b16 %v396
      %v462 = vunpack.c.l.b16 %v397
      %v463 = vunpack.c.l.b16 %v398
      %v464 = vunpack.c.h.b16 %v398
      %v465 = vunpack.c.l.b16 %v399
      %v466 = vunpack.c.l.b16 %v400
      %v467 = vunpack.c.h.b16 %v400
      %v468 = vunpack.c.l.b16 %v401
      %v469 = vunpack.c.l.b16 %v402
      %v470 = vunpack.c.h.b16 %v402
      %v471 = vunpack.c.l.b16 %v403
      %v472 = vunpack.c.l.b16 %v404
      %v473 = vunpack.c.h.b16 %v404
      %v474 = vunpack.c.l.b16 %v405
      %v475 = vunpack.c.l.b16 %v406
      %v476 = vunpack.c.h.b16 %v406
      %v477 = vunpack.c.l.b16 %v407
      %v478 = vunpack.c.l.b16 %v408
      %v479 = vunpack.c.h.b16 %v408
      %v480 = vunpack.c.l.b16 %v409
      %v481 = vunpack.c.l.b16 %v410
      %v482 = vunpack.c.h.b16 %v410
      %v483 = vunpack.c.l.b16 %v411
      %v484 = vunpack.c.l.b16 %v412
      %v485 = vunpack.c.h.b16 %v412
      %v486 = vunpack.c.l.b16 %v413
      %v487 = vunpack.c.l.b16 %v414
      %v488 = vunpack.c.h.b16 %v414
      %v489 = vunpack.c.l.b16 %v415
      %v490 = vunpack.c.l.b16 %v416
      %v491 = vunpack.c.h.b16 %v416
      %v492 = vunpack.c.l.b16 %v417
      %v493 = vunpack.c.l.b16 %v418
      %v494 = vunpack.c.h.b16 %v418
      %v495 = vunpack.c.l.b16 %v419
      %v496 = vunpack.c.l.b16 %v420
      %v497 = vunpack.c.h.b16 %v420
      %v498 = vunpack.c.l.b16 %v421
      %v499 = vunpack.c.l.b16 %v422
      %v500 = vunpack.c.h.b16 %v422
      %v501 = vunpack.c.l.b16 %v423
      %v502 = vunpack.c.l.b16 %v424
      %v503 = vunpack.c.h.b16 %v424
      %v504 = vunpack.c.l.b16 %v425
      %v505 = vunpack.c.l.b16 %v426
      %v506 = vunpack.c.h.b16 %v426
      %v507 = vunpack.c.l.b16 %v427
      %v508 = vpack.c.b16 %v463, %v460
      %v509 = vpack.c.b16 %v464, %v461
      %v510 = vpack.c.b16 %v465, %v462
      %v511 = vpack.c.b16 %v469, %v466
      %v512 = vpack.c.b16 %v470, %v467
      %v513 = vpack.c.b16 %v471, %v468
      %v514 = vpack.c.b16 %v475, %v472
      %v515 = vpack.c.b16 %v476, %v473
      %v516 = vpack.c.b16 %v477, %v474
      %v517 = vpack.c.b16 %v481, %v478
      %v518 = vpack.c.b16 %v482, %v479
      %v519 = vpack.c.b16 %v483, %v480
      %v520 = vpack.c.b16 %v487, %v484
      %v521 = vpack.c.b16 %v488, %v485
      %v522 = vpack.c.b16 %v489, %v486
      %v523 = vpack.c.b16 %v493, %v490
      %v524 = vpack.c.b16 %v494, %v491
      %v525 = vpack.c.b16 %v495, %v492
      %v526 = vpack.c.b16 %v499, %v496
      %v527 = vpack.c.b16 %v500, %v497
      %v528 = vpack.c.b16 %v501, %v498
      %v529 = vpack.c.b16 %v505, %v502
      %v530 = vpack.c.b16 %v506, %v503
      %v531 = vpack.c.b16 %v507, %v504
      %556 = vmatprep.subr.bf16.mxu0 %v530
      %557 = vmatpush1.bf16.msra.mxu0 %v529
      %558 = vmatprep.subr.bf16.mxu0 %v527
      %559 = vmatpush1.bf16.msra.mxu0 %v526
      %560 = vmatprep.subr.bf16.mxu0 %v524
      %561 = vmatpush1.bf16.msra.mxu0 %v523
      %562 = vmatprep.subr.bf16.mxu0 %v521
      %563 = vmatpush1.bf16.msra.mxu0 %v520
      %564 = vmatprep.subr.bf16.mxu0 %v518
      %565 = vmatpush1.bf16.msra.mxu0 %v517
      %566 = vmatprep.subr.bf16.mxu0 %v515
      %567 = vmatpush1.bf16.msra.mxu0 %v514
      %568 = vmatprep.subr.bf16.mxu0 %v512
      %569 = vmatpush1.bf16.msra.mxu0 %v511
      %570 = vmatprep.subr.bf16.mxu0 %v509
      %571 = vmatpush1.bf16.msra.mxu0 %v508
      %572 = vmatprep.subr.bf16.mxu0 0
      %573 = vmatpush2.bf16.msra.mxu0 0
      %574 = vmatprep.subr.bf16.mxu0 0
      %575 = vmatpush2.bf16.msra.mxu0 0
      %576 = vmatprep.subr.bf16.mxu0 0
      %577 = vmatpush2.bf16.msra.mxu0 0
      %578 = vmatprep.subr.bf16.mxu0 0
      %579 = vmatpush2.bf16.msra.mxu0 0
      %580 = vmatprep.subr.bf16.mxu0 0
      %581 = vmatpush2.bf16.msra.mxu0 0
      %582 = vmatprep.subr.bf16.mxu0 0
      %583 = vmatpush2.bf16.msra.mxu0 0
      %584 = vmatprep.subr.bf16.mxu0 0
      %585 = vmatpush2.bf16.msra.mxu0 0
      %586 = vmatprep.subr.bf16.mxu0 0
      %587 = vmatpush2.bf16.msra.mxu0 0
      %588 = vmatprep.mubr.bf16.mxu0 0
      %589 = vmatmul.mubr.bf16.gmra.mxu0 %v395
      %v590 = vpop.f32.mrf.mxu0
      %v591 = vadd.f32 0.0, %v590
      %v592 = vpop.f32.mrf.mxu0
      %v593 = vadd.f32 0.0, %v592
      %v594 = vpop.f32.mrf.mxu0
      %v595 = vpop.f32.mrf.mxu0
      %596 = vdwg.mxu0
      %597 = vmatprep.subr.bf16.mxu0 0
      %598 = vmatpush1.bf16.msra.mxu0 %v531
      %599 = vmatprep.subr.bf16.mxu0 0
      %600 = vmatpush1.bf16.msra.mxu0 %v528
      %601 = vmatprep.subr.bf16.mxu0 0
      %602 = vmatpush1.bf16.msra.mxu0 %v525
      %603 = vmatprep.subr.bf16.mxu0 0
      %604 = vmatpush1.bf16.msra.mxu0 %v522
      %605 = vmatprep.subr.bf16.mxu0 0
      %606 = vmatpush1.bf16.msra.mxu0 %v519
      %607 = vmatprep.subr.bf16.mxu0 0
      %608 = vmatpush1.bf16.msra.mxu0 %v516
      %609 = vmatprep.subr.bf16.mxu0 0
      %610 = vmatpush1.bf16.msra.mxu0 %v513
      %611 = vmatprep.subr.bf16.mxu0 0
      %612 = vmatpush1.bf16.msra.mxu0 %v510
      %613 = vmatprep.subr.bf16.mxu0 0
      %614 = vmatpush2.bf16.msra.mxu0 0
      %615 = vmatprep.subr.bf16.mxu0 0
      %616 = vmatpush2.bf16.msra.mxu0 0
      %617 = vmatprep.subr.bf16.mxu0 0
      %618 = vmatpush2.bf16.msra.mxu0 0
      %619 = vmatprep.subr.bf16.mxu0 0
      %620 = vmatpush2.bf16.msra.mxu0 0
      %621 = vmatprep.subr.bf16.mxu0 0
      %622 = vmatpush2.bf16.msra.mxu0 0
      %623 = vmatprep.subr.bf16.mxu0 0
      %624 = vmatpush2.bf16.msra.mxu0 0
      %625 = vmatprep.subr.bf16.mxu0 0
      %626 = vmatpush2.bf16.msra.mxu0 0
      %627 = vmatprep.subr.bf16.mxu0 0
      %628 = vmatpush2.bf16.msra.mxu0 0
      %629 = vmatprep.mubr.bf16.mxu0 0
      %630 = vmatmul.mubr.bf16.gmra.mxu0 %v395
      %v631 = vpop.f32.mrf.mxu0
      %v632 = vadd.f32 0.0, %v631
      %v633 = vpop.f32.mrf.mxu0
      %v634 = vpop.f32.mrf.mxu0
      %v635 = vpop.f32.mrf.mxu0
      %636 = vdwg.mxu0
      %v637 = vlaneseq
      %v638 = vshrl.u32 %v637, 7
      %v639 = vsub.s32 4, %v638
      %v640 = vrot.slane %v370, %v639
      %v641 = vadd.f32 %v591, %v640
      %v643 = vcombine.high %v641, %v641
      %v645 = vlaneseq
      %v646 = vshrl.u32 %v645, 7
      %v647 = vsub.s32 5, %v646
      %v648 = vrot.slane %v370, %v647
      %v649 = vadd.f32 %v593, %v648
      %v651 = vcombine.high %v649, %v649
      %v653 = vlaneseq
      %v654 = vshrl.u32 %v653, 7
      %v655 = vsub.s32 6, %v654
      %v656 = vrot.slane %v370, %v655
      %v657 = vadd.f32 %v632, %v656
      %v659 = vcombine.high %v657, %v657
      %v661 = vpack.c.bf16 %v641, %v641
      %v662 = vpack.c.bf16 %v643, %v643
      %v663 = vpack.c.bf16 %v649, %v649
      %v664 = vpack.c.bf16 %v651, %v651
      %v665 = vpack.c.bf16 %v657, %v657
      %v666 = vpack.c.bf16 %v659, %v659
      %vm667 = vcmask 130048
      %v669 = vsel %vm667, %v661, 0
      %v672 = vsel %vm667, %v663, 0
      %674 = vmatprep.subr.bf16.mxu0 0
      %675 = vmatpush1.bf16.xpose.msra.mxu0 0
      %676 = vmatprep.subr.bf16.mxu0 0
      %677 = vmatpush1.bf16.xpose.msra.mxu0 0
      %678 = vmatprep.subr.bf16.mxu0 0
      %679 = vmatpush1.bf16.xpose.msra.mxu0 0
      %680 = vmatprep.subr.bf16.mxu0 0
      %681 = vmatpush1.bf16.xpose.msra.mxu0 0
      %682 = vmatprep.subr.bf16.mxu0 0
      %683 = vmatpush1.bf16.xpose.msra.mxu0 0
      %684 = vmatprep.subr.bf16.mxu0 0
      %685 = vmatpush1.bf16.xpose.msra.mxu0 0
      %686 = vmatprep.subr.bf16.mxu0 0
      %687 = vmatpush1.bf16.xpose.msra.mxu0 0
      %688 = vmatprep.subr.bf16.mxu0 0
      %689 = vmatpush1.bf16.xpose.msra.mxu0 %v672
      %690 = vmatprep.subr.bf16.mxu0 0
      %691 = vmatpush2.bf16.xpose.msra.mxu0 0
      %692 = vmatprep.subr.bf16.mxu0 0
      %693 = vmatpush2.bf16.xpose.msra.mxu0 0
      %694 = vmatprep.subr.bf16.mxu0 0
      %695 = vmatpush2.bf16.xpose.msra.mxu0 0
      %696 = vmatprep.subr.bf16.mxu0 0
      %697 = vmatpush2.bf16.xpose.msra.mxu0 0
      %698 = vmatprep.subr.bf16.mxu0 0
      %699 = vmatpush2.bf16.xpose.msra.mxu0 0
      %700 = vmatprep.subr.bf16.mxu0 0
      %701 = vmatpush2.bf16.xpose.msra.mxu0 0
      %702 = vmatprep.subr.bf16.mxu0 0
      %703 = vmatpush2.bf16.xpose.msra.mxu0 0
      %704 = vmatprep.subr.bf16.mxu0 0
      %705 = vmatpush2.bf16.xpose.msra.mxu0 0
      %706 = vmatprep.mubr.bf16.mxu0 0
      %707 = vmatmul.mubr.bf16.gmra.mxu0 %v669
      %v708 = vpop.f32.mrf.mxu0
      %v709 = vadd.f32 0.0, %v708
      %v710 = vpop.f32.mrf.mxu0
      %v711 = vpop.f32.mrf.mxu0
      %v712 = vpop.f32.mrf.mxu0
      %713 = vdwg.mxu0
      %v715 = vsel %vm667, %v662, 0
      %v718 = vsel %vm667, %v664, 0
      %720 = vmatprep.subr.bf16.mxu0 0
      %721 = vmatpush1.bf16.xpose.msra.mxu0 0
      %722 = vmatprep.subr.bf16.mxu0 0
      %723 = vmatpush1.bf16.xpose.msra.mxu0 0
      %724 = vmatprep.subr.bf16.mxu0 0
      %725 = vmatpush1.bf16.xpose.msra.mxu0 0
      %726 = vmatprep.subr.bf16.mxu0 0
      %727 = vmatpush1.bf16.xpose.msra.mxu0 0
      %728 = vmatprep.subr.bf16.mxu0 0
      %729 = vmatpush1.bf16.xpose.msra.mxu0 0
      %730 = vmatprep.subr.bf16.mxu0 0
      %731 = vmatpush1.bf16.xpose.msra.mxu0 0
      %732 = vmatprep.subr.bf16.mxu0 0
      %733 = vmatpush1.bf16.xpose.msra.mxu0 0
      %734 = vmatprep.subr.bf16.mxu0 0
      %735 = vmatpush1.bf16.xpose.msra.mxu0 %v718
      %736 = vmatprep.subr.bf16.mxu0 0
      %737 = vmatpush2.bf16.xpose.msra.mxu0 0
      %738 = vmatprep.subr.bf16.mxu0 0
      %739 = vmatpush2.bf16.xpose.msra.mxu0 0
      %740 = vmatprep.subr.bf16.mxu0 0
      %741 = vmatpush2.bf16.xpose.msra.mxu0 0
      %742 = vmatprep.subr.bf16.mxu0 0
      %743 = vmatpush2.bf16.xpose.msra.mxu0 0
      %744 = vmatprep.subr.bf16.mxu0 0
      %745 = vmatpush2.bf16.xpose.msra.mxu0 0
      %746 = vmatprep.subr.bf16.mxu0 0
      %747 = vmatpush2.bf16.xpose.msra.mxu0 0
      %748 = vmatprep.subr.bf16.mxu0 0
      %749 = vmatpush2.bf16.xpose.msra.mxu0 0
      %750 = vmatprep.subr.bf16.mxu0 0
      %751 = vmatpush2.bf16.xpose.msra.mxu0 0
      %752 = vmatprep.mubr.bf16.mxu0 0
      %753 = vmatmul.mubr.bf16.gmra.mxu0 %v715
      %v754 = vpop.f32.mrf.mxu0
      %v755 = vadd.f32 0.0, %v754
      %v756 = vpop.f32.mrf.mxu0
      %v757 = vpop.f32.mrf.mxu0
      %v758 = vpop.f32.mrf.mxu0
      %759 = vdwg.mxu0
      %v760 = vmul.f32 %v709, 0.25
      %v761 = vmul.f32 %v755, 0.25
      %vm762 = vcmask 27648
      %v763 = vsel %vm762, %v760, -inf
      %764 = vmax.xlane.f32.xlu0 %v763
      %v765 = vpop.xlane.xlu0 %764
      %v766 = vsel %vm762, %v761, -inf
      %767 = vmax.xlane.f32.xlu0 %v766
      %v768 = vpop.xlane.xlu0 %767
      %v769 = vsub.f32 %v760, %v765
      %v770 = vsub.f32 %v761, %v768
      %v771 = vmul.f32 %v769, 1.442695
      %v772 = vpow.pop %v771
      %v773 = vmul.f32 %v770, 1.442695
      %v774 = vpow.pop %v773
      %v775 = vsel %vm762, %v772, 0.0
      %776 = vadd.xlane.f32.xlu0 %v775
      %v777 = vpop.xlane.xlu0 %776
      %v778 = vsel %vm762, %v774, 0.0
      %779 = vadd.xlane.f32.xlu0 %v778
      %v780 = vpop.xlane.xlu0 %779
      %v781 = vrcp.pop %v777
      %v782 = vrcp.pop %v780
      %v783 = vmul.f32 %v772, %v781
      %v784 = vmul.f32 %v774, %v782
      %v785 = vpack.c.bf16 %v783, %v783
      %v786 = vpack.c.bf16 %v784, %v784
      %vm787 = vcmask 31744
      %v789 = vsel %vm787, %v785, 0
      %vm791 = vcmask 1041408
      %v793 = vsel %vm791, %v665, 0
      %795 = vmatprep.subr.bf16.mxu0 0
      %796 = vmatpush1.bf16.msra.mxu0 0
      %797 = vmatprep.subr.bf16.mxu0 0
      %798 = vmatpush1.bf16.msra.mxu0 0
      %799 = vmatprep.subr.bf16.mxu0 0
      %800 = vmatpush1.bf16.msra.mxu0 0
      %801 = vmatprep.subr.bf16.mxu0 0
      %802 = vmatpush1.bf16.msra.mxu0 0
      %803 = vmatprep.subr.bf16.mxu0 0
      %804 = vmatpush1.bf16.msra.mxu0 0
      %805 = vmatprep.subr.bf16.mxu0 0
      %806 = vmatpush1.bf16.msra.mxu0 0
      %807 = vmatprep.subr.bf16.mxu0 0
      %808 = vmatpush1.bf16.msra.mxu0 0
      %809 = vmatprep.subr.bf16.mxu0 0
      %810 = vmatpush1.bf16.msra.mxu0 %v793
      %811 = vmatprep.subr.bf16.mxu0 0
      %812 = vmatpush2.bf16.msra.mxu0 0
      %813 = vmatprep.subr.bf16.mxu0 0
      %814 = vmatpush2.bf16.msra.mxu0 0
      %815 = vmatprep.subr.bf16.mxu0 0
      %816 = vmatpush2.bf16.msra.mxu0 0
      %817 = vmatprep.subr.bf16.mxu0 0
      %818 = vmatpush2.bf16.msra.mxu0 0
      %819 = vmatprep.subr.bf16.mxu0 0
      %820 = vmatpush2.bf16.msra.mxu0 0
      %821 = vmatprep.subr.bf16.mxu0 0
      %822 = vmatpush2.bf16.msra.mxu0 0
      %823 = vmatprep.subr.bf16.mxu0 0
      %824 = vmatpush2.bf16.msra.mxu0 0
      %825 = vmatprep.subr.bf16.mxu0 0
      %826 = vmatpush2.bf16.msra.mxu0 0
      %827 = vmatprep.mubr.bf16.mxu0 0
      %828 = vmatmul.mubr.bf16.gmra.mxu0 %v789
      %v829 = vpop.f32.mrf.mxu0
      %v830 = vadd.f32 0.0, %v829
      %v831 = vpop.f32.mrf.mxu0
      %v832 = vpop.f32.mrf.mxu0
      %v833 = vpop.f32.mrf.mxu0
      %834 = vdwg.mxu0
      %v836 = vsel %vm787, %v786, 0
      %v839 = vsel %vm791, %v666, 0
      %841 = vmatprep.subr.bf16.mxu0 0
      %842 = vmatpush1.bf16.msra.mxu0 0
      %843 = vmatprep.subr.bf16.mxu0 0
      %844 = vmatpush1.bf16.msra.mxu0 0
      %845 = vmatprep.subr.bf16.mxu0 0
      %846 = vmatpush1.bf16.msra.mxu0 0
      %847 = vmatprep.subr.bf16.mxu0 0
      %848 = vmatpush1.bf16.msra.mxu0 0
      %849 = vmatprep.subr.bf16.mxu0 0
      %850 = vmatpush1.bf16.msra.mxu0 0
      %851 = vmatprep.subr.bf16.mxu0 0
      %852 = vmatpush1.bf16.msra.mxu0 0
      %853 = vmatprep.subr.bf16.mxu0 0
      %854 = vmatpush1.bf16.msra.mxu0 0
      %855 = vmatprep.subr.bf16.mxu0 0
      %856 = vmatpush1.bf16.msra.mxu0 %v839
      %857 = vmatprep.subr.bf16.mxu0 0
      %858 = vmatpush2.bf16.msra.mxu0 0
      %859 = vmatprep.subr.bf16.mxu0 0
      %860 = vmatpush2.bf16.msra.mxu0 0
      %861 = vmatprep.subr.bf16.mxu0 0
      %862 = vmatpush2.bf16.msra.mxu0 0
      %863 = vmatprep.subr.bf16.mxu0 0
      %864 = vmatpush2.bf16.msra.mxu0 0
      %865 = vmatprep.subr.bf16.mxu0 0
      %866 = vmatpush2.bf16.msra.mxu0 0
      %867 = vmatprep.subr.bf16.mxu0 0
      %868 = vmatpush2.bf16.msra.mxu0 0
      %869 = vmatprep.subr.bf16.mxu0 0
      %870 = vmatpush2.bf16.msra.mxu0 0
      %871 = vmatprep.subr.bf16.mxu0 0
      %872 = vmatpush2.bf16.msra.mxu0 0
      %873 = vmatprep.mubr.bf16.mxu0 0
      %874 = vmatmul.mubr.bf16.gmra.mxu0 %v836
      %v875 = vpop.f32.mrf.mxu0
      %v876 = vadd.f32 0.0, %v875
      %v877 = vpop.f32.mrf.mxu0
      %v878 = vpop.f32.mrf.mxu0
      %v879 = vpop.f32.mrf.mxu0
      %880 = vdwg.mxu0
      %882 = vrot.lane.b32.xlu0 %v661, 112
      %v883 = vpop.permute.xlu0 %882
      %885 = vrot.lane.b32.xlu0 %v663, 112
      %v886 = vpop.permute.xlu0 %885
      %v888 = vsel %vm667, %v883, 0
      %v891 = vsel %vm667, %v886, 0
      %893 = vmatprep.subr.bf16.mxu0 0
      %894 = vmatpush1.bf16.xpose.msra.mxu0 0
      %895 = vmatprep.subr.bf16.mxu0 0
      %896 = vmatpush1.bf16.xpose.msra.mxu0 0
      %897 = vmatprep.subr.bf16.mxu0 0
      %898 = vmatpush1.bf16.xpose.msra.mxu0 0
      %899 = vmatprep.subr.bf16.mxu0 0
      %900 = vmatpush1.bf16.xpose.msra.mxu0 0
      %901 = vmatprep.subr.bf16.mxu0 0
      %902 = vmatpush1.bf16.xpose.msra.mxu0 0
      %903 = vmatprep.subr.bf16.mxu0 0
      %904 = vmatpush1.bf16.xpose.msra.mxu0 0
      %905 = vmatprep.subr.bf16.mxu0 0
      %906 = vmatpush1.bf16.xpose.msra.mxu0 0
      %907 = vmatprep.subr.bf16.mxu0 0
      %908 = vmatpush1.bf16.xpose.msra.mxu0 %v891
      %909 = vmatprep.subr.bf16.mxu0 0
      %910 = vmatpush2.bf16.xpose.msra.mxu0 0
      %911 = vmatprep.subr.bf16.mxu0 0
      %912 = vmatpush2.bf16.xpose.msra.mxu0 0
      %913 = vmatprep.subr.bf16.mxu0 0
      %914 = vmatpush2.bf16.xpose.msra.mxu0 0
      %915 = vmatprep.subr.bf16.mxu0 0
      %916 = vmatpush2.bf16.xpose.msra.mxu0 0
      %917 = vmatprep.subr.bf16.mxu0 0
      %918 = vmatpush2.bf16.xpose.msra.mxu0 0
      %919 = vmatprep.subr.bf16.mxu0 0
      %920 = vmatpush2.bf16.xpose.msra.mxu0 0
      %921 = vmatprep.subr.bf16.mxu0 0
      %922 = vmatpush2.bf16.xpose.msra.mxu0 0
      %923 = vmatprep.subr.bf16.mxu0 0
      %924 = vmatpush2.bf16.xpose.msra.mxu0 0
      %925 = vmatprep.mubr.bf16.mxu0 0
      %926 = vmatmul.mubr.bf16.gmra.mxu0 %v888
      %v927 = vpop.f32.mrf.mxu0
      %v928 = vadd.f32 0.0, %v927
      %v929 = vpop.f32.mrf.mxu0
      %v930 = vpop.f32.mrf.mxu0
      %v931 = vpop.f32.mrf.mxu0
      %932 = vdwg.mxu0
      %934 = vrot.lane.b32.xlu0 %v662, 112
      %v935 = vpop.permute.xlu0 %934
      %937 = vrot.lane.b32.xlu0 %v664, 112
      %v938 = vpop.permute.xlu0 %937
      %v940 = vsel %vm667, %v935, 0
      %v943 = vsel %vm667, %v938, 0
      %945 = vmatprep.subr.bf16.mxu0 0
      %946 = vmatpush1.bf16.xpose.msra.mxu0 0
      %947 = vmatprep.subr.bf16.mxu0 0
      %948 = vmatpush1.bf16.xpose.msra.mxu0 0
      %949 = vmatprep.subr.bf16.mxu0 0
      %950 = vmatpush1.bf16.xpose.msra.mxu0 0
      %951 = vmatprep.subr.bf16.mxu0 0
      %952 = vmatpush1.bf16.xpose.msra.mxu0 0
      %953 = vmatprep.subr.bf16.mxu0 0
      %954 = vmatpush1.bf16.xpose.msra.mxu0 0
      %955 = vmatprep.subr.bf16.mxu0 0
      %956 = vmatpush1.bf16.xpose.msra.mxu0 0
      %957 = vmatprep.subr.bf16.mxu0 0
      %958 = vmatpush1.bf16.xpose.msra.mxu0 0
      %959 = vmatprep.subr.bf16.mxu0 0
      %960 = vmatpush1.bf16.xpose.msra.mxu0 %v943
      %961 = vmatprep.subr.bf16.mxu0 0
      %962 = vmatpush2.bf16.xpose.msra.mxu0 0
      %963 = vmatprep.subr.bf16.mxu0 0
      %964 = vmatpush2.bf16.xpose.msra.mxu0 0
      %965 = vmatprep.subr.bf16.mxu0 0
      %966 = vmatpush2.bf16.xpose.msra.mxu0 0
      %967 = vmatprep.subr.bf16.mxu0 0
      %968 = vmatpush2.bf16.xpose.msra.mxu0 0
      %969 = vmatprep.subr.bf16.mxu0 0
      %970 = vmatpush2.bf16.xpose.msra.mxu0 0
      %971 = vmatprep.subr.bf16.mxu0 0
      %972 = vmatpush2.bf16.xpose.msra.mxu0 0
      %973 = vmatprep.subr.bf16.mxu0 0
      %974 = vmatpush2.bf16.xpose.msra.mxu0 0
      %975 = vmatprep.subr.bf16.mxu0 0
      %976 = vmatpush2.bf16.xpose.msra.mxu0 0
      %977 = vmatprep.mubr.bf16.mxu0 0
      %978 = vmatmul.mubr.bf16.gmra.mxu0 %v940
      %v979 = vpop.f32.mrf.mxu0
      %v980 = vadd.f32 0.0, %v979
      %v981 = vpop.f32.mrf.mxu0
      %v982 = vpop.f32.mrf.mxu0
      %v983 = vpop.f32.mrf.mxu0
      %984 = vdwg.mxu0
      %v985 = vmul.f32 %v928, 0.25
      %v986 = vmul.f32 %v980, 0.25
      %v987 = vsel %vm762, %v985, -inf
      %988 = vmax.xlane.f32.xlu0 %v987
      %v989 = vpop.xlane.xlu0 %988
      %v990 = vsel %vm762, %v986, -inf
      %991 = vmax.xlane.f32.xlu0 %v990
      %v992 = vpop.xlane.xlu0 %991
      %v993 = vsub.f32 %v985, %v989
      %v994 = vsub.f32 %v986, %v992
      %v995 = vmul.f32 %v993, 1.442695
      %v996 = vpow.pop %v995
      %v997 = vmul.f32 %v994, 1.442695
      %v998 = vpow.pop %v997
      %v999 = vsel %vm762, %v996, 0.0
      %1000 = vadd.xlane.f32.xlu0 %v999
      %v1001 = vpop.xlane.xlu0 %1000
      %v1002 = vsel %vm762, %v998, 0.0
      %1003 = vadd.xlane.f32.xlu0 %v1002
      %v1004 = vpop.xlane.xlu0 %1003
      %v1005 = vrcp.pop %v1001
      %v1006 = vrcp.pop %v1004
      %v1007 = vmul.f32 %v996, %v1005
      %v1008 = vmul.f32 %v998, %v1006
      %v1009 = vpack.c.bf16 %v1007, %v1007
      %v1010 = vpack.c.bf16 %v1008, %v1008
      %1012 = vrot.lane.b32.xlu0 %v665, 112
      %v1013 = vpop.permute.xlu0 %1012
      %v1015 = vsel %vm787, %v1009, 0
      %v1018 = vsel %vm791, %v1013, 0
      %1020 = vmatprep.subr.bf16.mxu0 0
      %1021 = vmatpush1.bf16.msra.mxu0 0
      %1022 = vmatprep.subr.bf16.mxu0 0
      %1023 = vmatpush1.bf16.msra.mxu0 0
      %1024 = vmatprep.subr.bf16.mxu0 0
      %1025 = vmatpush1.bf16.msra.mxu0 0
      %1026 = vmatprep.subr.bf16.mxu0 0
      %1027 = vmatpush1.bf16.msra.mxu0 0
      %1028 = vmatprep.subr.bf16.mxu0 0
      %1029 = vmatpush1.bf16.msra.mxu0 0
      %1030 = vmatprep.subr.bf16.mxu0 0
      %1031 = vmatpush1.bf16.msra.mxu0 0
      %1032 = vmatprep.subr.bf16.mxu0 0
      %1033 = vmatpush1.bf16.msra.mxu0 0
      %1034 = vmatprep.subr.bf16.mxu0 0
      %1035 = vmatpush1.bf16.msra.mxu0 %v1018
      %1036 = vmatprep.subr.bf16.mxu0 0
      %1037 = vmatpush2.bf16.msra.mxu0 0
      %1038 = vmatprep.subr.bf16.mxu0 0
      %1039 = vmatpush2.bf16.msra.mxu0 0
      %1040 = vmatprep.subr.bf16.mxu0 0
      %1041 = vmatpush2.bf16.msra.mxu0 0
      %1042 = vmatprep.subr.bf16.mxu0 0
      %1043 = vmatpush2.bf16.msra.mxu0 0
      %1044 = vmatprep.subr.bf16.mxu0 0
      %1045 = vmatpush2.bf16.msra.mxu0 0
      %1046 = vmatprep.subr.bf16.mxu0 0
      %1047 = vmatpush2.bf16.msra.mxu0 0
      %1048 = vmatprep.subr.bf16.mxu0 0
      %1049 = vmatpush2.bf16.msra.mxu0 0
      %1050 = vmatprep.subr.bf16.mxu0 0
      %1051 = vmatpush2.bf16.msra.mxu0 0
      %1052 = vmatprep.mubr.bf16.mxu0 0
      %1053 = vmatmul.mubr.bf16.gmra.mxu0 %v1015
      %v1054 = vpop.f32.mrf.mxu0
      %v1055 = vadd.f32 0.0, %v1054
      %v1056 = vpop.f32.mrf.mxu0
      %v1057 = vpop.f32.mrf.mxu0
      %v1058 = vpop.f32.mrf.mxu0
      %1059 = vdwg.mxu0
      %1061 = vrot.lane.b32.xlu0 %v666, 112
      %v1062 = vpop.permute.xlu0 %1061
      %v1064 = vsel %vm787, %v1010, 0
      %v1067 = vsel %vm791, %v1062, 0
      %1069 = vmatprep.subr.bf16.mxu0 0
      %1070 = vmatpush1.bf16.msra.mxu0 0
      %1071 = vmatprep.subr.bf16.mxu0 0
      %1072 = vmatpush1.bf16.msra.mxu0 0
      %1073 = vmatprep.subr.bf16.mxu0 0
      %1074 = vmatpush1.bf16.msra.mxu0 0
      %1075 = vmatprep.subr.bf16.mxu0 0
      %1076 = vmatpush1.bf16.msra.mxu0 0
      %1077 = vmatprep.subr.bf16.mxu0 0
      %1078 = vmatpush1.bf16.msra.mxu0 0
      %1079 = vmatprep.subr.bf16.mxu0 0
      %1080 = vmatpush1.bf16.msra.mxu0 0
      %1081 = vmatprep.subr.bf16.mxu0 0
      %1082 = vmatpush1.bf16.msra.mxu0 0
      %1083 = vmatprep.subr.bf16.mxu0 0
      %1084 = vmatpush1.bf16.msra.mxu0 %v1067
      %1085 = vmatprep.subr.bf16.mxu0 0
      %1086 = vmatpush2.bf16.msra.mxu0 0
      %1087 = vmatprep.subr.bf16.mxu0 0
      %1088 = vmatpush2.bf16.msra.mxu0 0
      %1089 = vmatprep.subr.bf16.mxu0 0
      %1090 = vmatpush2.bf16.msra.mxu0 0
      %1091 = vmatprep.subr.bf16.mxu0 0
      %1092 = vmatpush2.bf16.msra.mxu0 0
      %1093 = vmatprep.subr.bf16.mxu0 0
      %1094 = vmatpush2.bf16.msra.mxu0 0
      %1095 = vmatprep.subr.bf16.mxu0 0
      %1096 = vmatpush2.bf16.msra.mxu0 0
      %1097 = vmatprep.subr.bf16.mxu0 0
      %1098 = vmatpush2.bf16.msra.mxu0 0
      %1099 = vmatprep.subr.bf16.mxu0 0
      %1100 = vmatpush2.bf16.msra.mxu0 0
      %1101 = vmatprep.mubr.bf16.mxu0 0
      %1102 = vmatmul.mubr.bf16.gmra.mxu0 %v1064
      %v1103 = vpop.f32.mrf.mxu0
      %v1104 = vadd.f32 0.0, %v1103
      %v1105 = vpop.f32.mrf.mxu0
      %v1106 = vpop.f32.mrf.mxu0
      %v1107 = vpop.f32.mrf.mxu0
      %1108 = vdwg.mxu0
      %1109 = vrot.lane.b32.xlu0 %v661, 96
      %v1110 = vpop.permute.xlu0 %1109
      %1111 = vrot.lane.b32.xlu0 %v663, 96
      %v1112 = vpop.permute.xlu0 %1111
      %v1114 = vsel %vm667, %v1110, 0
      %v1117 = vsel %vm667, %v1112, 0
      %1119 = vmatprep.subr.bf16.mxu0 0
      %1120 = vmatpush1.bf16.xpose.msra.mxu0 0
      %1121 = vmatprep.subr.bf16.mxu0 0
      %1122 = vmatpush1.bf16.xpose.msra.mxu0 0
      %1123 = vmatprep.subr.bf16.mxu0 0
      %1124 = vmatpush1.bf16.xpose.msra.mxu0 0
      %1125 = vmatprep.subr.bf16.mxu0 0
      %1126 = vmatpush1.bf16.xpose.msra.mxu0 0
      %1127 = vmatprep.subr.bf16.mxu0 0
      %1128 = vmatpush1.bf16.xpose.msra.mxu0 0
      %1129 = vmatprep.subr.bf16.mxu0 0
      %1130 = vmatpush1.bf16.xpose.msra.mxu0 0
      %1131 = vmatprep.subr.bf16.mxu0 0
      %1132 = vmatpush1.bf16.xpose.msra.mxu0 0
      %1133 = vmatprep.subr.bf16.mxu0 0
      %1134 = vmatpush1.bf16.xpose.msra.mxu0 %v1117
      %1135 = vmatprep.subr.bf16.mxu0 0
      %1136 = vmatpush2.bf16.xpose.msra.mxu0 0
      %1137 = vmatprep.subr.bf16.mxu0 0
      %1138 = vmatpush2.bf16.xpose.msra.mxu0 0
      %1139 = vmatprep.subr.bf16.mxu0 0
      %1140 = vmatpush2.bf16.xpose.msra.mxu0 0
      %1141 = vmatprep.subr.bf16.mxu0 0
      %1142 = vmatpush2.bf16.xpose.msra.mxu0 0
      %1143 = vmatprep.subr.bf16.mxu0 0
      %1144 = vmatpush2.bf16.xpose.msra.mxu0 0
      %1145 = vmatprep.subr.bf16.mxu0 0
      %1146 = vmatpush2.bf16.xpose.msra.mxu0 0
      %1147 = vmatprep.subr.bf16.mxu0 0
      %1148 = vmatpush2.bf16.xpose.msra.mxu0 0
      %1149 = vmatprep.subr.bf16.mxu0 0
      %1150 = vmatpush2.bf16.xpose.msra.mxu0 0
      %1151 = vmatprep.mubr.bf16.mxu0 0
      %1152 = vmatmul.mubr.bf16.gmra.mxu0 %v1114
      %v1153 = vpop.f32.mrf.mxu0
      %v1154 = vadd.f32 0.0, %v1153
      %v1155 = vpop.f32.mrf.mxu0
      %v1156 = vpop.f32.mrf.mxu0
      %v1157 = vpop.f32.mrf.mxu0
      %1158 = vdwg.mxu0
      %1159 = vrot.lane.b32.xlu0 %v662, 96
      %v1160 = vpop.permute.xlu0 %1159
      %1161 = vrot.lane.b32.xlu0 %v664, 96
      %v1162 = vpop.permute.xlu0 %1161
      %v1164 = vsel %vm667, %v1160, 0
      %v1167 = vsel %vm667, %v1162, 0
      %1169 = vmatprep.subr.bf16.mxu0 0
      %1170 = vmatpush1.bf16.xpose.msra.mxu0 0
      %1171 = vmatprep.subr.bf16.mxu0 0
      %1172 = vmatpush1.bf16.xpose.msra.mxu0 0
      %1173 = vmatprep.subr.bf16.mxu0 0
      %1174 = vmatpush1.bf16.xpose.msra.mxu0 0
      %1175 = vmatprep.subr.bf16.mxu0 0
      %1176 = vmatpush1.bf16.xpose.msra.mxu0 0
      %1177 = vmatprep.subr.bf16.mxu0 0
      %1178 = vmatpush1.bf16.xpose.msra.mxu0 0
      %1179 = vmatprep.subr.bf16.mxu0 0
      %1180 = vmatpush1.bf16.xpose.msra.mxu0 0
      %1181 = vmatprep.subr.bf16.mxu0 0
      %1182 = vmatpush1.bf16.xpose.msra.mxu0 0
      %1183 = vmatprep.subr.bf16.mxu0 0
      %1184 = vmatpush1.bf16.xpose.msra.mxu0 %v1167
      %1185 = vmatprep.subr.bf16.mxu0 0
      %1186 = vmatpush2.bf16.xpose.msra.mxu0 0
      %1187 = vmatprep.subr.bf16.mxu0 0
      %1188 = vmatpush2.bf16.xpose.msra.mxu0 0
      %1189 = vmatprep.subr.bf16.mxu0 0
      %1190 = vmatpush2.bf16.xpose.msra.mxu0 0
      %1191 = vmatprep.subr.bf16.mxu0 0
      %1192 = vmatpush2.bf16.xpose.msra.mxu0 0
      %1193 = vmatprep.subr.bf16.mxu0 0
      %1194 = vmatpush2.bf16.xpose.msra.mxu0 0
      %1195 = vmatprep.subr.bf16.mxu0 0
      %1196 = vmatpush2.bf16.xpose.msra.mxu0 0
      %1197 = vmatprep.subr.bf16.mxu0 0
      %1198 = vmatpush2.bf16.xpose.msra.mxu0 0
      %1199 = vmatprep.subr.bf16.mxu0 0
      %1200 = vmatpush2.bf16.xpose.msra.mxu0 0
      %1201 = vmatprep.mubr.bf16.mxu0 0
      %1202 = vmatmul.mubr.bf16.gmra.mxu0 %v1164
      %v1203 = vpop.f32.mrf.mxu0
      %v1204 = vadd.f32 0.0, %v1203
      %v1205 = vpop.f32.mrf.mxu0
      %v1206 = vpop.f32.mrf.mxu0
      %v1207 = vpop.f32.mrf.mxu0
      %1208 = vdwg.mxu0
      %v1209 = vmul.f32 %v1154, 0.25
      %v1210 = vmul.f32 %v1204, 0.25
      %v1211 = vsel %vm762, %v1209, -inf
      %1212 = vmax.xlane.f32.xlu0 %v1211
      %v1213 = vpop.xlane.xlu0 %1212
      %v1214 = vsel %vm762, %v1210, -inf
      %1215 = vmax.xlane.f32.xlu0 %v1214
      %v1216 = vpop.xlane.xlu0 %1215
      %v1217 = vsub.f32 %v1209, %v1213
      %v1218 = vsub.f32 %v1210, %v1216
      %v1219 = vmul.f32 %v1217, 1.442695
      %v1220 = vpow.pop %v1219
      %v1221 = vmul.f32 %v1218, 1.442695
      %v1222 = vpow.pop %v1221
      %v1223 = vsel %vm762, %v1220, 0.0
      %1224 = vadd.xlane.f32.xlu0 %v1223
      %v1225 = vpop.xlane.xlu0 %1224
      %v1226 = vsel %vm762, %v1222, 0.0
      %1227 = vadd.xlane.f32.xlu0 %v1226
      %v1228 = vpop.xlane.xlu0 %1227
      %v1229 = vrcp.pop %v1225
      %v1230 = vrcp.pop %v1228
      %v1231 = vmul.f32 %v1220, %v1229
      %v1232 = vmul.f32 %v1222, %v1230
      %v1233 = vpack.c.bf16 %v1231, %v1231
      %v1234 = vpack.c.bf16 %v1232, %v1232
      %1235 = vrot.lane.b32.xlu0 %v665, 96
      %v1236 = vpop.permute.xlu0 %1235
      %v1238 = vsel %vm787, %v1233, 0
      %v1241 = vsel %vm791, %v1236, 0
      %1243 = vmatprep.subr.bf16.mxu0 0
      %1244 = vmatpush1.bf16.msra.mxu0 0
      %1245 = vmatprep.subr.bf16.mxu0 0
      %1246 = vmatpush1.bf16.msra.mxu0 0
      %1247 = vmatprep.subr.bf16.mxu0 0
      %1248 = vmatpush1.bf16.msra.mxu0 0
      %1249 = vmatprep.subr.bf16.mxu0 0
      %1250 = vmatpush1.bf16.msra.mxu0 0
      %1251 = vmatprep.subr.bf16.mxu0 0
      %1252 = vmatpush1.bf16.msra.mxu0 0
      %1253 = vmatprep.subr.bf16.mxu0 0
      %1254 = vmatpush1.bf16.msra.mxu0 0
      %1255 = vmatprep.subr.bf16.mxu0 0
      %1256 = vmatpush1.bf16.msra.mxu0 0
      %1257 = vmatprep.subr.bf16.mxu0 0
      %1258 = vmatpush1.bf16.msra.mxu0 %v1241
      %1259 = vmatprep.subr.bf16.mxu0 0
      %1260 = vmatpush2.bf16.msra.mxu0 0
      %1261 = vmatprep.subr.bf16.mxu0 0
      %1262 = vmatpush2.bf16.msra.mxu0 0
      %1263 = vmatprep.subr.bf16.mxu0 0
      %1264 = vmatpush2.bf16.msra.mxu0 0
      %1265 = vmatprep.subr.bf16.mxu0 0
      %1266 = vmatpush2.bf16.msra.mxu0 0
      %1267 = vmatprep.subr.bf16.mxu0 0
      %1268 = vmatpush2.bf16.msra.mxu0 0
      %1269 = vmatprep.subr.bf16.mxu0 0
      %1270 = vmatpush2.bf16.msra.mxu0 0
      %1271 = vmatprep.subr.bf16.mxu0 0
      %1272 = vmatpush2.bf16.msra.mxu0 0
      %1273 = vmatprep.subr.bf16.mxu0 0
      %1274 = vmatpush2.bf16.msra.mxu0 0
      %1275 = vmatprep.mubr.bf16.mxu0 0
      %1276 = vmatmul.mubr.bf16.gmra.mxu0 %v1238
      %v1277 = vpop.f32.mrf.mxu0
      %v1278 = vadd.f32 0.0, %v1277
      %v1279 = vpop.f32.mrf.mxu0
      %v1280 = vpop.f32.mrf.mxu0
      %v1281 = vpop.f32.mrf.mxu0
      %1282 = vdwg.mxu0
      %1283 = vrot.lane.b32.xlu0 %v666, 96
      %v1284 = vpop.permute.xlu0 %1283
      %v1286 = vsel %vm787, %v1234, 0
      %v1289 = vsel %vm791, %v1284, 0
      %1291 = vmatprep.subr.bf16.mxu0 0
      %1292 = vmatpush1.bf16.msra.mxu0 0
      %1293 = vmatprep.subr.bf16.mxu0 0
      %1294 = vmatpush1.bf16.msra.mxu0 0
      %1295 = vmatprep.subr.bf16.mxu0 0
      %1296 = vmatpush1.bf16.msra.mxu0 0
      %1297 = vmatprep.subr.bf16.mxu0 0
      %1298 = vmatpush1.bf16.msra.mxu0 0
      %1299 = vmatprep.subr.bf16.mxu0 0
      %1300 = vmatpush1.bf16.msra.mxu0 0
      %1301 = vmatprep.subr.bf16.mxu0 0
      %1302 = vmatpush1.bf16.msra.mxu0 0
      %1303 = vmatprep.subr.bf16.mxu0 0
      %1304 = vmatpush1.bf16.msra.mxu0 0
      %1305 = vmatprep.subr.bf16.mxu0 0
      %1306 = vmatpush1.bf16.msra.mxu0 %v1289
      %1307 = vmatprep.subr.bf16.mxu0 0
      %1308 = vmatpush2.bf16.msra.mxu0 0
      %1309 = vmatprep.subr.bf16.mxu0 0
      %1310 = vmatpush2.bf16.msra.mxu0 0
      %1311 = vmatprep.subr.bf16.mxu0 0
      %1312 = vmatpush2.bf16.msra.mxu0 0
      %1313 = vmatprep.subr.bf16.mxu0 0
      %1314 = vmatpush2.bf16.msra.mxu0 0
      %1315 = vmatprep.subr.bf16.mxu0 0
      %1316 = vmatpush2.bf16.msra.mxu0 0
      %1317 = vmatprep.subr.bf16.mxu0 0
      %1318 = vmatpush2.bf16.msra.mxu0 0
      %1319 = vmatprep.subr.bf16.mxu0 0
      %1320 = vmatpush2.bf16.msra.mxu0 0
      %1321 = vmatprep.subr.bf16.mxu0 0
      %1322 = vmatpush2.bf16.msra.mxu0 0
      %1323 = vmatprep.mubr.bf16.mxu0 0
      %1324 = vmatmul.mubr.bf16.gmra.mxu0 %v1286
      %v1325 = vpop.f32.mrf.mxu0
      %v1326 = vadd.f32 0.0, %v1325
      %v1327 = vpop.f32.mrf.mxu0
      %v1328 = vpop.f32.mrf.mxu0
      %v1329 = vpop.f32.mrf.mxu0
      %1330 = vdwg.mxu0
      %1331 = vrot.lane.b32.xlu0 %v661, 80
      %v1332 = vpop.permute.xlu0 %1331
      %1333 = vrot.lane.b32.xlu0 %v663, 80
      %v1334 = vpop.permute.xlu0 %1333
      %v1336 = vsel %vm667, %v1332, 0
      %v1339 = vsel %vm667, %v1334, 0
      %1341 = vmatprep.subr.bf16.mxu0 0
      %1342 = vmatpush1.bf16.xpose.msra.mxu0 0
      %1343 = vmatprep.subr.bf16.mxu0 0
      %1344 = vmatpush1.bf16.xpose.msra.mxu0 0
      %1345 = vmatprep.subr.bf16.mxu0 0
      %1346 = vmatpush1.bf16.xpose.msra.mxu0 0
      %1347 = vmatprep.subr.bf16.mxu0 0
      %1348 = vmatpush1.bf16.xpose.msra.mxu0 0
      %1349 = vmatprep.subr.bf16.mxu0 0
      %1350 = vmatpush1.bf16.xpose.msra.mxu0 0
      %1351 = vmatprep.subr.bf16.mxu0 0
      %1352 = vmatpush1.bf16.xpose.msra.mxu0 0
      %1353 = vmatprep.subr.bf16.mxu0 0
      %1354 = vmatpush1.bf16.xpose.msra.mxu0 0
      %1355 = vmatprep.subr.bf16.mxu0 0
      %1356 = vmatpush1.bf16.xpose.msra.mxu0 %v1339
      %1357 = vmatprep.subr.bf16.mxu0 0
      %1358 = vmatpush2.bf16.xpose.msra.mxu0 0
      %1359 = vmatprep.subr.bf16.mxu0 0
      %1360 = vmatpush2.bf16.xpose.msra.mxu0 0
      %1361 = vmatprep.subr.bf16.mxu0 0
      %1362 = vmatpush2.bf16.xpose.msra.mxu0 0
      %1363 = vmatprep.subr.bf16.mxu0 0
      %1364 = vmatpush2.bf16.xpose.msra.mxu0 0
      %1365 = vmatprep.subr.bf16.mxu0 0
      %1366 = vmatpush2.bf16.xpose.msra.mxu0 0
      %1367 = vmatprep.subr.bf16.mxu0 0
      %1368 = vmatpush2.bf16.xpose.msra.mxu0 0
      %1369 = vmatprep.subr.bf16.mxu0 0
      %1370 = vmatpush2.bf16.xpose.msra.mxu0 0
      %1371 = vmatprep.subr.bf16.mxu0 0
      %1372 = vmatpush2.bf16.xpose.msra.mxu0 0
      %1373 = vmatprep.mubr.bf16.mxu0 0
      %1374 = vmatmul.mubr.bf16.gmra.mxu0 %v1336
      %v1375 = vpop.f32.mrf.mxu0
      %v1376 = vadd.f32 0.0, %v1375
      %v1377 = vpop.f32.mrf.mxu0
      %v1378 = vpop.f32.mrf.mxu0
      %v1379 = vpop.f32.mrf.mxu0
      %1380 = vdwg.mxu0
      %1381 = vrot.lane.b32.xlu0 %v662, 80
      %v1382 = vpop.permute.xlu0 %1381
      %1383 = vrot.lane.b32.xlu0 %v664, 80
      %v1384 = vpop.permute.xlu0 %1383
      %v1386 = vsel %vm667, %v1382, 0
      %v1389 = vsel %vm667, %v1384, 0
      %1391 = vmatprep.subr.bf16.mxu0 0
      %1392 = vmatpush1.bf16.xpose.msra.mxu0 0
      %1393 = vmatprep.subr.bf16.mxu0 0
      %1394 = vmatpush1.bf16.xpose.msra.mxu0 0
      %1395 = vmatprep.subr.bf16.mxu0 0
      %1396 = vmatpush1.bf16.xpose.msra.mxu0 0
      %1397 = vmatprep.subr.bf16.mxu0 0
      %1398 = vmatpush1.bf16.xpose.msra.mxu0 0
      %1399 = vmatprep.subr.bf16.mxu0 0
      %1400 = vmatpush1.bf16.xpose.msra.mxu0 0
      %1401 = vmatprep.subr.bf16.mxu0 0
      %1402 = vmatpush1.bf16.xpose.msra.mxu0 0
      %1403 = vmatprep.subr.bf16.mxu0 0
      %1404 = vmatpush1.bf16.xpose.msra.mxu0 0
      %1405 = vmatprep.subr.bf16.mxu0 0
      %1406 = vmatpush1.bf16.xpose.msra.mxu0 %v1389
      %1407 = vmatprep.subr.bf16.mxu0 0
      %1408 = vmatpush2.bf16.xpose.msra.mxu0 0
      %1409 = vmatprep.subr.bf16.mxu0 0
      %1410 = vmatpush2.bf16.xpose.msra.mxu0 0
      %1411 = vmatprep.subr.bf16.mxu0 0
      %1412 = vmatpush2.bf16.xpose.msra.mxu0 0
      %1413 = vmatprep.subr.bf16.mxu0 0
      %1414 = vmatpush2.bf16.xpose.msra.mxu0 0
      %1415 = vmatprep.subr.bf16.mxu0 0
      %1416 = vmatpush2.bf16.xpose.msra.mxu0 0
      %1417 = vmatprep.subr.bf16.mxu0 0
      %1418 = vmatpush2.bf16.xpose.msra.mxu0 0
      %1419 = vmatprep.subr.bf16.mxu0 0
      %1420 = vmatpush2.bf16.xpose.msra.mxu0 0
      %1421 = vmatprep.subr.bf16.mxu0 0
      %1422 = vmatpush2.bf16.xpose.msra.mxu0 0
      %1423 = vmatprep.mubr.bf16.mxu0 0
      %1424 = vmatmul.mubr.bf16.gmra.mxu0 %v1386
      %v1425 = vpop.f32.mrf.mxu0
      %v1426 = vadd.f32 0.0, %v1425
      %v1427 = vpop.f32.mrf.mxu0
      %v1428 = vpop.f32.mrf.mxu0
      %v1429 = vpop.f32.mrf.mxu0
      %1430 = vdwg.mxu0
      %v1431 = vmul.f32 %v1376, 0.25
      %v1432 = vmul.f32 %v1426, 0.25
      %v1433 = vsel %vm762, %v1431, -inf
      %1434 = vmax.xlane.f32.xlu0 %v1433
      %v1435 = vpop.xlane.xlu0 %1434
      %v1436 = vsel %vm762, %v1432, -inf
      %1437 = vmax.xlane.f32.xlu0 %v1436
      %v1438 = vpop.xlane.xlu0 %1437
      %v1439 = vsub.f32 %v1431, %v1435
      %v1440 = vsub.f32 %v1432, %v1438
      %v1441 = vmul.f32 %v1439, 1.442695
      %v1442 = vpow.pop %v1441
      %v1443 = vmul.f32 %v1440, 1.442695
      %v1444 = vpow.pop %v1443
      %v1445 = vsel %vm762, %v1442, 0.0
      %1446 = vadd.xlane.f32.xlu0 %v1445
      %v1447 = vpop.xlane.xlu0 %1446
      %v1448 = vsel %vm762, %v1444, 0.0
      %1449 = vadd.xlane.f32.xlu0 %v1448
      %v1450 = vpop.xlane.xlu0 %1449
      %v1451 = vrcp.pop %v1447
      %v1452 = vrcp.pop %v1450
      %v1453 = vmul.f32 %v1442, %v1451
      %v1454 = vmul.f32 %v1444, %v1452
      %v1455 = vpack.c.bf16 %v1453, %v1453
      %v1456 = vpack.c.bf16 %v1454, %v1454
      %1457 = vrot.lane.b32.xlu0 %v665, 80
      %v1458 = vpop.permute.xlu0 %1457
      %v1460 = vsel %vm787, %v1455, 0
      %v1463 = vsel %vm791, %v1458, 0
      %1465 = vmatprep.subr.bf16.mxu0 0
      %1466 = vmatpush1.bf16.msra.mxu0 0
      %1467 = vmatprep.subr.bf16.mxu0 0
      %1468 = vmatpush1.bf16.msra.mxu0 0
      %1469 = vmatprep.subr.bf16.mxu0 0
      %1470 = vmatpush1.bf16.msra.mxu0 0
      %1471 = vmatprep.subr.bf16.mxu0 0
      %1472 = vmatpush1.bf16.msra.mxu0 0
      %1473 = vmatprep.subr.bf16.mxu0 0
      %1474 = vmatpush1.bf16.msra.mxu0 0
      %1475 = vmatprep.subr.bf16.mxu0 0
      %1476 = vmatpush1.bf16.msra.mxu0 0
      %1477 = vmatprep.subr.bf16.mxu0 0
      %1478 = vmatpush1.bf16.msra.mxu0 0
      %1479 = vmatprep.subr.bf16.mxu0 0
      %1480 = vmatpush1.bf16.msra.mxu0 %v1463
      %1481 = vmatprep.subr.bf16.mxu0 0
      %1482 = vmatpush2.bf16.msra.mxu0 0
      %1483 = vmatprep.subr.bf16.mxu0 0
      %1484 = vmatpush2.bf16.msra.mxu0 0
      %1485 = vmatprep.subr.bf16.mxu0 0
      %1486 = vmatpush2.bf16.msra.mxu0 0
      %1487 = vmatprep.subr.bf16.mxu0 0
      %1488 = vmatpush2.bf16.msra.mxu0 0
      %1489 = vmatprep.subr.bf16.mxu0 0
      %1490 = vmatpush2.bf16.msra.mxu0 0
      %1491 = vmatprep.subr.bf16.mxu0 0
      %1492 = vmatpush2.bf16.msra.mxu0 0
      %1493 = vmatprep.subr.bf16.mxu0 0
      %1494 = vmatpush2.bf16.msra.mxu0 0
      %1495 = vmatprep.subr.bf16.mxu0 0
      %1496 = vmatpush2.bf16.msra.mxu0 0
      %1497 = vmatprep.mubr.bf16.mxu0 0
      %1498 = vmatmul.mubr.bf16.gmra.mxu0 %v1460
      %v1499 = vpop.f32.mrf.mxu0
      %v1500 = vadd.f32 0.0, %v1499
      %v1501 = vpop.f32.mrf.mxu0
      %v1502 = vpop.f32.mrf.mxu0
      %v1503 = vpop.f32.mrf.mxu0
      %1504 = vdwg.mxu0
      %1505 = vrot.lane.b32.xlu0 %v666, 80
      %v1506 = vpop.permute.xlu0 %1505
      %v1508 = vsel %vm787, %v1456, 0
      %v1511 = vsel %vm791, %v1506, 0
      %1513 = vmatprep.subr.bf16.mxu0 0
      %1514 = vmatpush1.bf16.msra.mxu0 0
      %1515 = vmatprep.subr.bf16.mxu0 0
      %1516 = vmatpush1.bf16.msra.mxu0 0
      %1517 = vmatprep.subr.bf16.mxu0 0
      %1518 = vmatpush1.bf16.msra.mxu0 0
      %1519 = vmatprep.subr.bf16.mxu0 0
      %1520 = vmatpush1.bf16.msra.mxu0 0
      %1521 = vmatprep.subr.bf16.mxu0 0
      %1522 = vmatpush1.bf16.msra.mxu0 0
      %1523 = vmatprep.subr.bf16.mxu0 0
      %1524 = vmatpush1.bf16.msra.mxu0 0
      %1525 = vmatprep.subr.bf16.mxu0 0
      %1526 = vmatpush1.bf16.msra.mxu0 0
      %1527 = vmatprep.subr.bf16.mxu0 0
      %1528 = vmatpush1.bf16.msra.mxu0 %v1511
      %1529 = vmatprep.subr.bf16.mxu0 0
      %1530 = vmatpush2.bf16.msra.mxu0 0
      %1531 = vmatprep.subr.bf16.mxu0 0
      %1532 = vmatpush2.bf16.msra.mxu0 0
      %1533 = vmatprep.subr.bf16.mxu0 0
      %1534 = vmatpush2.bf16.msra.mxu0 0
      %1535 = vmatprep.subr.bf16.mxu0 0
      %1536 = vmatpush2.bf16.msra.mxu0 0
      %1537 = vmatprep.subr.bf16.mxu0 0
      %1538 = vmatpush2.bf16.msra.mxu0 0
      %1539 = vmatprep.subr.bf16.mxu0 0
      %1540 = vmatpush2.bf16.msra.mxu0 0
      %1541 = vmatprep.subr.bf16.mxu0 0
      %1542 = vmatpush2.bf16.msra.mxu0 0
      %1543 = vmatprep.subr.bf16.mxu0 0
      %1544 = vmatpush2.bf16.msra.mxu0 0
      %1545 = vmatprep.mubr.bf16.mxu0 0
      %1546 = vmatmul.mubr.bf16.gmra.mxu0 %v1508
      %v1547 = vpop.f32.mrf.mxu0
      %v1548 = vadd.f32 0.0, %v1547
      %v1549 = vpop.f32.mrf.mxu0
      %v1550 = vpop.f32.mrf.mxu0
      %v1551 = vpop.f32.mrf.mxu0
      %1552 = vdwg.mxu0
      %1553 = vrot.lane.b32.xlu0 %v661, 64
      %v1554 = vpop.permute.xlu0 %1553
      %1555 = vrot.lane.b32.xlu0 %v663, 64
      %v1556 = vpop.permute.xlu0 %1555
      %v1558 = vsel %vm667, %v1554, 0
      %v1561 = vsel %vm667, %v1556, 0
      %1563 = vmatprep.subr.bf16.mxu0 0
      %1564 = vmatpush1.bf16.xpose.msra.mxu0 0
      %1565 = vmatprep.subr.bf16.mxu0 0
      %1566 = vmatpush1.bf16.xpose.msra.mxu0 0
      %1567 = vmatprep.subr.bf16.mxu0 0
      %1568 = vmatpush1.bf16.xpose.msra.mxu0 0
      %1569 = vmatprep.subr.bf16.mxu0 0
      %1570 = vmatpush1.bf16.xpose.msra.mxu0 0
      %1571 = vmatprep.subr.bf16.mxu0 0
      %1572 = vmatpush1.bf16.xpose.msra.mxu0 0
      %1573 = vmatprep.subr.bf16.mxu0 0
      %1574 = vmatpush1.bf16.xpose.msra.mxu0 0
      %1575 = vmatprep.subr.bf16.mxu0 0
      %1576 = vmatpush1.bf16.xpose.msra.mxu0 0
      %1577 = vmatprep.subr.bf16.mxu0 0
      %1578 = vmatpush1.bf16.xpose.msra.mxu0 %v1561
      %1579 = vmatprep.subr.bf16.mxu0 0
      %1580 = vmatpush2.bf16.xpose.msra.mxu0 0
      %1581 = vmatprep.subr.bf16.mxu0 0
      %1582 = vmatpush2.bf16.xpose.msra.mxu0 0
      %1583 = vmatprep.subr.bf16.mxu0 0
      %1584 = vmatpush2.bf16.xpose.msra.mxu0 0
      %1585 = vmatprep.subr.bf16.mxu0 0
      %1586 = vmatpush2.bf16.xpose.msra.mxu0 0
      %1587 = vmatprep.subr.bf16.mxu0 0
      %1588 = vmatpush2.bf16.xpose.msra.mxu0 0
      %1589 = vmatprep.subr.bf16.mxu0 0
      %1590 = vmatpush2.bf16.xpose.msra.mxu0 0
      %1591 = vmatprep.subr.bf16.mxu0 0
      %1592 = vmatpush2.bf16.xpose.msra.mxu0 0
      %1593 = vmatprep.subr.bf16.mxu0 0
      %1594 = vmatpush2.bf16.xpose.msra.mxu0 0
      %1595 = vmatprep.mubr.bf16.mxu0 0
      %1596 = vmatmul.mubr.bf16.gmra.mxu0 %v1558
      %v1597 = vpop.f32.mrf.mxu0
      %v1598 = vadd.f32 0.0, %v1597
      %v1599 = vpop.f32.mrf.mxu0
      %v1600 = vpop.f32.mrf.mxu0
      %v1601 = vpop.f32.mrf.mxu0
      %1602 = vdwg.mxu0
      %1603 = vrot.lane.b32.xlu0 %v662, 64
      %v1604 = vpop.permute.xlu0 %1603
      %1605 = vrot.lane.b32.xlu0 %v664, 64
      %v1606 = vpop.permute.xlu0 %1605
      %v1608 = vsel %vm667, %v1604, 0
      %v1611 = vsel %vm667, %v1606, 0
      %1613 = vmatprep.subr.bf16.mxu0 0
      %1614 = vmatpush1.bf16.xpose.msra.mxu0 0
      %1615 = vmatprep.subr.bf16.mxu0 0
      %1616 = vmatpush1.bf16.xpose.msra.mxu0 0
      %1617 = vmatprep.subr.bf16.mxu0 0
      %1618 = vmatpush1.bf16.xpose.msra.mxu0 0
      %1619 = vmatprep.subr.bf16.mxu0 0
      %1620 = vmatpush1.bf16.xpose.msra.mxu0 0
      %1621 = vmatprep.subr.bf16.mxu0 0
      %1622 = vmatpush1.bf16.xpose.msra.mxu0 0
      %1623 = vmatprep.subr.bf16.mxu0 0
      %1624 = vmatpush1.bf16.xpose.msra.mxu0 0
      %1625 = vmatprep.subr.bf16.mxu0 0
      %1626 = vmatpush1.bf16.xpose.msra.mxu0 0
      %1627 = vmatprep.subr.bf16.mxu0 0
      %1628 = vmatpush1.bf16.xpose.msra.mxu0 %v1611
      %1629 = vmatprep.subr.bf16.mxu0 0
      %1630 = vmatpush2.bf16.xpose.msra.mxu0 0
      %1631 = vmatprep.subr.bf16.mxu0 0
      %1632 = vmatpush2.bf16.xpose.msra.mxu0 0
      %1633 = vmatprep.subr.bf16.mxu0 0
      %1634 = vmatpush2.bf16.xpose.msra.mxu0 0
      %1635 = vmatprep.subr.bf16.mxu0 0
      %1636 = vmatpush2.bf16.xpose.msra.mxu0 0
      %1637 = vmatprep.subr.bf16.mxu0 0
      %1638 = vmatpush2.bf16.xpose.msra.mxu0 0
      %1639 = vmatprep.subr.bf16.mxu0 0
      %1640 = vmatpush2.bf16.xpose.msra.mxu0 0
      %1641 = vmatprep.subr.bf16.mxu0 0
      %1642 = vmatpush2.bf16.xpose.msra.mxu0 0
      %1643 = vmatprep.subr.bf16.mxu0 0
      %1644 = vmatpush2.bf16.xpose.msra.mxu0 0
      %1645 = vmatprep.mubr.bf16.mxu0 0
      %1646 = vmatmul.mubr.bf16.gmra.mxu0 %v1608
      %v1647 = vpop.f32.mrf.mxu0
      %v1648 = vadd.f32 0.0, %v1647
      %v1649 = vpop.f32.mrf.mxu0
      %v1650 = vpop.f32.mrf.mxu0
      %v1651 = vpop.f32.mrf.mxu0
      %1652 = vdwg.mxu0
      %v1653 = vmul.f32 %v1598, 0.25
      %v1654 = vmul.f32 %v1648, 0.25
      %v1655 = vsel %vm762, %v1653, -inf
      %1656 = vmax.xlane.f32.xlu0 %v1655
      %v1657 = vpop.xlane.xlu0 %1656
      %v1658 = vsel %vm762, %v1654, -inf
      %1659 = vmax.xlane.f32.xlu0 %v1658
      %v1660 = vpop.xlane.xlu0 %1659
      %v1661 = vsub.f32 %v1653, %v1657
      %v1662 = vsub.f32 %v1654, %v1660
      %v1663 = vmul.f32 %v1661, 1.442695
      %v1664 = vpow.pop %v1663
      %v1665 = vmul.f32 %v1662, 1.442695
      %v1666 = vpow.pop %v1665
      %v1667 = vsel %vm762, %v1664, 0.0
      %1668 = vadd.xlane.f32.xlu0 %v1667
      %v1669 = vpop.xlane.xlu0 %1668
      %v1670 = vsel %vm762, %v1666, 0.0
      %1671 = vadd.xlane.f32.xlu0 %v1670
      %v1672 = vpop.xlane.xlu0 %1671
      %v1673 = vrcp.pop %v1669
      %v1674 = vrcp.pop %v1672
      %v1675 = vmul.f32 %v1664, %v1673
      %v1676 = vmul.f32 %v1666, %v1674
      %v1677 = vpack.c.bf16 %v1675, %v1675
      %v1678 = vpack.c.bf16 %v1676, %v1676
      %1679 = vrot.lane.b32.xlu0 %v665, 64
      %v1680 = vpop.permute.xlu0 %1679
      %v1682 = vsel %vm787, %v1677, 0
      %v1685 = vsel %vm791, %v1680, 0
      %1687 = vmatprep.subr.bf16.mxu0 0
      %1688 = vmatpush1.bf16.msra.mxu0 0
      %1689 = vmatprep.subr.bf16.mxu0 0
      %1690 = vmatpush1.bf16.msra.mxu0 0
      %1691 = vmatprep.subr.bf16.mxu0 0
      %1692 = vmatpush1.bf16.msra.mxu0 0
      %1693 = vmatprep.subr.bf16.mxu0 0
      %1694 = vmatpush1.bf16.msra.mxu0 0
      %1695 = vmatprep.subr.bf16.mxu0 0
      %1696 = vmatpush1.bf16.msra.mxu0 0
      %1697 = vmatprep.subr.bf16.mxu0 0
      %1698 = vmatpush1.bf16.msra.mxu0 0
      %1699 = vmatprep.subr.bf16.mxu0 0
      %1700 = vmatpush1.bf16.msra.mxu0 0
      %1701 = vmatprep.subr.bf16.mxu0 0
      %1702 = vmatpush1.bf16.msra.mxu0 %v1685
      %1703 = vmatprep.subr.bf16.mxu0 0
      %1704 = vmatpush2.bf16.msra.mxu0 0
      %1705 = vmatprep.subr.bf16.mxu0 0
      %1706 = vmatpush2.bf16.msra.mxu0 0
      %1707 = vmatprep.subr.bf16.mxu0 0
      %1708 = vmatpush2.bf16.msra.mxu0 0
      %1709 = vmatprep.subr.bf16.mxu0 0
      %1710 = vmatpush2.bf16.msra.mxu0 0
      %1711 = vmatprep.subr.bf16.mxu0 0
      %1712 = vmatpush2.bf16.msra.mxu0 0
      %1713 = vmatprep.subr.bf16.mxu0 0
      %1714 = vmatpush2.bf16.msra.mxu0 0
      %1715 = vmatprep.subr.bf16.mxu0 0
      %1716 = vmatpush2.bf16.msra.mxu0 0
      %1717 = vmatprep.subr.bf16.mxu0 0
      %1718 = vmatpush2.bf16.msra.mxu0 0
      %1719 = vmatprep.mubr.bf16.mxu0 0
      %1720 = vmatmul.mubr.bf16.gmra.mxu0 %v1682
      %v1721 = vpop.f32.mrf.mxu0
      %v1722 = vadd.f32 0.0, %v1721
      %v1723 = vpop.f32.mrf.mxu0
      %v1724 = vpop.f32.mrf.mxu0
      %v1725 = vpop.f32.mrf.mxu0
      %1726 = vdwg.mxu0
      %1727 = vrot.lane.b32.xlu0 %v666, 64
      %v1728 = vpop.permute.xlu0 %1727
      %v1730 = vsel %vm787, %v1678, 0
      %v1733 = vsel %vm791, %v1728, 0
      %1735 = vmatprep.subr.bf16.mxu0 0
      %1736 = vmatpush1.bf16.msra.mxu0 0
      %1737 = vmatprep.subr.bf16.mxu0 0
      %1738 = vmatpush1.bf16.msra.mxu0 0
      %1739 = vmatprep.subr.bf16.mxu0 0
      %1740 = vmatpush1.bf16.msra.mxu0 0
      %1741 = vmatprep.subr.bf16.mxu0 0
      %1742 = vmatpush1.bf16.msra.mxu0 0
      %1743 = vmatprep.subr.bf16.mxu0 0
      %1744 = vmatpush1.bf16.msra.mxu0 0
      %1745 = vmatprep.subr.bf16.mxu0 0
      %1746 = vmatpush1.bf16.msra.mxu0 0
      %1747 = vmatprep.subr.bf16.mxu0 0
      %1748 = vmatpush1.bf16.msra.mxu0 0
      %1749 = vmatprep.subr.bf16.mxu0 0
      %1750 = vmatpush1.bf16.msra.mxu0 %v1733
      %1751 = vmatprep.subr.bf16.mxu0 0
      %1752 = vmatpush2.bf16.msra.mxu0 0
      %1753 = vmatprep.subr.bf16.mxu0 0
      %1754 = vmatpush2.bf16.msra.mxu0 0
      %1755 = vmatprep.subr.bf16.mxu0 0
      %1756 = vmatpush2.bf16.msra.mxu0 0
      %1757 = vmatprep.subr.bf16.mxu0 0
      %1758 = vmatpush2.bf16.msra.mxu0 0
      %1759 = vmatprep.subr.bf16.mxu0 0
      %1760 = vmatpush2.bf16.msra.mxu0 0
      %1761 = vmatprep.subr.bf16.mxu0 0
      %1762 = vmatpush2.bf16.msra.mxu0 0
      %1763 = vmatprep.subr.bf16.mxu0 0
      %1764 = vmatpush2.bf16.msra.mxu0 0
      %1765 = vmatprep.subr.bf16.mxu0 0
      %1766 = vmatpush2.bf16.msra.mxu0 0
      %1767 = vmatprep.mubr.bf16.mxu0 0
      %1768 = vmatmul.mubr.bf16.gmra.mxu0 %v1730
      %v1769 = vpop.f32.mrf.mxu0
      %v1770 = vadd.f32 0.0, %v1769
      %v1771 = vpop.f32.mrf.mxu0
      %v1772 = vpop.f32.mrf.mxu0
      %v1773 = vpop.f32.mrf.mxu0
      %1774 = vdwg.mxu0
      %1775 = vrot.lane.b32.xlu0 %v661, 48
      %v1776 = vpop.permute.xlu0 %1775
      %1777 = vrot.lane.b32.xlu0 %v663, 48
      %v1778 = vpop.permute.xlu0 %1777
      %v1780 = vsel %vm667, %v1776, 0
      %v1783 = vsel %vm667, %v1778, 0
      %1785 = vmatprep.subr.bf16.mxu0 0
      %1786 = vmatpush1.bf16.xpose.msra.mxu0 0
      %1787 = vmatprep.subr.bf16.mxu0 0
      %1788 = vmatpush1.bf16.xpose.msra.mxu0 0
      %1789 = vmatprep.subr.bf16.mxu0 0
      %1790 = vmatpush1.bf16.xpose.msra.mxu0 0
      %1791 = vmatprep.subr.bf16.mxu0 0
      %1792 = vmatpush1.bf16.xpose.msra.mxu0 0
      %1793 = vmatprep.subr.bf16.mxu0 0
      %1794 = vmatpush1.bf16.xpose.msra.mxu0 0
      %1795 = vmatprep.subr.bf16.mxu0 0
      %1796 = vmatpush1.bf16.xpose.msra.mxu0 0
      %1797 = vmatprep.subr.bf16.mxu0 0
      %1798 = vmatpush1.bf16.xpose.msra.mxu0 0
      %1799 = vmatprep.subr.bf16.mxu0 0
      %1800 = vmatpush1.bf16.xpose.msra.mxu0 %v1783
      %1801 = vmatprep.subr.bf16.mxu0 0
      %1802 = vmatpush2.bf16.xpose.msra.mxu0 0
      %1803 = vmatprep.subr.bf16.mxu0 0
      %1804 = vmatpush2.bf16.xpose.msra.mxu0 0
      %1805 = vmatprep.subr.bf16.mxu0 0
      %1806 = vmatpush2.bf16.xpose.msra.mxu0 0
      %1807 = vmatprep.subr.bf16.mxu0 0
      %1808 = vmatpush2.bf16.xpose.msra.mxu0 0
      %1809 = vmatprep.subr.bf16.mxu0 0
      %1810 = vmatpush2.bf16.xpose.msra.mxu0 0
      %1811 = vmatprep.subr.bf16.mxu0 0
      %1812 = vmatpush2.bf16.xpose.msra.mxu0 0
      %1813 = vmatprep.subr.bf16.mxu0 0
      %1814 = vmatpush2.bf16.xpose.msra.mxu0 0
      %1815 = vmatprep.subr.bf16.mxu0 0
      %1816 = vmatpush2.bf16.xpose.msra.mxu0 0
      %1817 = vmatprep.mubr.bf16.mxu0 0
      %1818 = vmatmul.mubr.bf16.gmra.mxu0 %v1780
      %v1819 = vpop.f32.mrf.mxu0
      %v1820 = vadd.f32 0.0, %v1819
      %v1821 = vpop.f32.mrf.mxu0
      %v1822 = vpop.f32.mrf.mxu0
      %v1823 = vpop.f32.mrf.mxu0
      %1824 = vdwg.mxu0
      %1825 = vrot.lane.b32.xlu0 %v662, 48
      %v1826 = vpop.permute.xlu0 %1825
      %1827 = vrot.lane.b32.xlu0 %v664, 48
      %v1828 = vpop.permute.xlu0 %1827
      %v1830 = vsel %vm667, %v1826, 0
      %v1833 = vsel %vm667, %v1828, 0
      %1835 = vmatprep.subr.bf16.mxu0 0
      %1836 = vmatpush1.bf16.xpose.msra.mxu0 0
      %1837 = vmatprep.subr.bf16.mxu0 0
      %1838 = vmatpush1.bf16.xpose.msra.mxu0 0
      %1839 = vmatprep.subr.bf16.mxu0 0
      %1840 = vmatpush1.bf16.xpose.msra.mxu0 0
      %1841 = vmatprep.subr.bf16.mxu0 0
      %1842 = vmatpush1.bf16.xpose.msra.mxu0 0
      %1843 = vmatprep.subr.bf16.mxu0 0
      %1844 = vmatpush1.bf16.xpose.msra.mxu0 0
      %1845 = vmatprep.subr.bf16.mxu0 0
      %1846 = vmatpush1.bf16.xpose.msra.mxu0 0
      %1847 = vmatprep.subr.bf16.mxu0 0
      %1848 = vmatpush1.bf16.xpose.msra.mxu0 0
      %1849 = vmatprep.subr.bf16.mxu0 0
      %1850 = vmatpush1.bf16.xpose.msra.mxu0 %v1833
      %1851 = vmatprep.subr.bf16.mxu0 0
      %1852 = vmatpush2.bf16.xpose.msra.mxu0 0
      %1853 = vmatprep.subr.bf16.mxu0 0
      %1854 = vmatpush2.bf16.xpose.msra.mxu0 0
      %1855 = vmatprep.subr.bf16.mxu0 0
      %1856 = vmatpush2.bf16.xpose.msra.mxu0 0
      %1857 = vmatprep.subr.bf16.mxu0 0
      %1858 = vmatpush2.bf16.xpose.msra.mxu0 0
      %1859 = vmatprep.subr.bf16.mxu0 0
      %1860 = vmatpush2.bf16.xpose.msra.mxu0 0
      %1861 = vmatprep.subr.bf16.mxu0 0
      %1862 = vmatpush2.bf16.xpose.msra.mxu0 0
      %1863 = vmatprep.subr.bf16.mxu0 0
      %1864 = vmatpush2.bf16.xpose.msra.mxu0 0
      %1865 = vmatprep.subr.bf16.mxu0 0
      %1866 = vmatpush2.bf16.xpose.msra.mxu0 0
      %1867 = vmatprep.mubr.bf16.mxu0 0
      %1868 = vmatmul.mubr.bf16.gmra.mxu0 %v1830
      %v1869 = vpop.f32.mrf.mxu0
      %v1870 = vadd.f32 0.0, %v1869
      %v1871 = vpop.f32.mrf.mxu0
      %v1872 = vpop.f32.mrf.mxu0
      %v1873 = vpop.f32.mrf.mxu0
      %1874 = vdwg.mxu0
      %v1875 = vmul.f32 %v1820, 0.25
      %v1876 = vmul.f32 %v1870, 0.25
      %v1877 = vsel %vm762, %v1875, -inf
      %1878 = vmax.xlane.f32.xlu0 %v1877
      %v1879 = vpop.xlane.xlu0 %1878
      %v1880 = vsel %vm762, %v1876, -inf
      %1881 = vmax.xlane.f32.xlu0 %v1880
      %v1882 = vpop.xlane.xlu0 %1881
      %v1883 = vsub.f32 %v1875, %v1879
      %v1884 = vsub.f32 %v1876, %v1882
      %v1885 = vmul.f32 %v1883, 1.442695
      %v1886 = vpow.pop %v1885
      %v1887 = vmul.f32 %v1884, 1.442695
      %v1888 = vpow.pop %v1887
      %v1889 = vsel %vm762, %v1886, 0.0
      %1890 = vadd.xlane.f32.xlu0 %v1889
      %v1891 = vpop.xlane.xlu0 %1890
      %v1892 = vsel %vm762, %v1888, 0.0
      %1893 = vadd.xlane.f32.xlu0 %v1892
      %v1894 = vpop.xlane.xlu0 %1893
      %v1895 = vrcp.pop %v1891
      %v1896 = vrcp.pop %v1894
      %v1897 = vmul.f32 %v1886, %v1895
      %v1898 = vmul.f32 %v1888, %v1896
      %v1899 = vpack.c.bf16 %v1897, %v1897
      %v1900 = vpack.c.bf16 %v1898, %v1898
      %1901 = vrot.lane.b32.xlu0 %v665, 48
      %v1902 = vpop.permute.xlu0 %1901
      %v1904 = vsel %vm787, %v1899, 0
      %v1907 = vsel %vm791, %v1902, 0
      %1909 = vmatprep.subr.bf16.mxu0 0
      %1910 = vmatpush1.bf16.msra.mxu0 0
      %1911 = vmatprep.subr.bf16.mxu0 0
      %1912 = vmatpush1.bf16.msra.mxu0 0
      %1913 = vmatprep.subr.bf16.mxu0 0
      %1914 = vmatpush1.bf16.msra.mxu0 0
      %1915 = vmatprep.subr.bf16.mxu0 0
      %1916 = vmatpush1.bf16.msra.mxu0 0
      %1917 = vmatprep.subr.bf16.mxu0 0
      %1918 = vmatpush1.bf16.msra.mxu0 0
      %1919 = vmatprep.subr.bf16.mxu0 0
      %1920 = vmatpush1.bf16.msra.mxu0 0
      %1921 = vmatprep.subr.bf16.mxu0 0
      %1922 = vmatpush1.bf16.msra.mxu0 0
      %1923 = vmatprep.subr.bf16.mxu0 0
      %1924 = vmatpush1.bf16.msra.mxu0 %v1907
      %1925 = vmatprep.subr.bf16.mxu0 0
      %1926 = vmatpush2.bf16.msra.mxu0 0
      %1927 = vmatprep.subr.bf16.mxu0 0
      %1928 = vmatpush2.bf16.msra.mxu0 0
      %1929 = vmatprep.subr.bf16.mxu0 0
      %1930 = vmatpush2.bf16.msra.mxu0 0
      %1931 = vmatprep.subr.bf16.mxu0 0
      %1932 = vmatpush2.bf16.msra.mxu0 0
      %1933 = vmatprep.subr.bf16.mxu0 0
      %1934 = vmatpush2.bf16.msra.mxu0 0
      %1935 = vmatprep.subr.bf16.mxu0 0
      %1936 = vmatpush2.bf16.msra.mxu0 0
      %1937 = vmatprep.subr.bf16.mxu0 0
      %1938 = vmatpush2.bf16.msra.mxu0 0
      %1939 = vmatprep.subr.bf16.mxu0 0
      %1940 = vmatpush2.bf16.msra.mxu0 0
      %1941 = vmatprep.mubr.bf16.mxu0 0
      %1942 = vmatmul.mubr.bf16.gmra.mxu0 %v1904
      %v1943 = vpop.f32.mrf.mxu0
      %v1944 = vadd.f32 0.0, %v1943
      %v1945 = vpop.f32.mrf.mxu0
      %v1946 = vpop.f32.mrf.mxu0
      %v1947 = vpop.f32.mrf.mxu0
      %1948 = vdwg.mxu0
      %1949 = vrot.lane.b32.xlu0 %v666, 48
      %v1950 = vpop.permute.xlu0 %1949
      %v1952 = vsel %vm787, %v1900, 0
      %v1955 = vsel %vm791, %v1950, 0
      %1957 = vmatprep.subr.bf16.mxu0 0
      %1958 = vmatpush1.bf16.msra.mxu0 0
      %1959 = vmatprep.subr.bf16.mxu0 0
      %1960 = vmatpush1.bf16.msra.mxu0 0
      %1961 = vmatprep.subr.bf16.mxu0 0
      %1962 = vmatpush1.bf16.msra.mxu0 0
      %1963 = vmatprep.subr.bf16.mxu0 0
      %1964 = vmatpush1.bf16.msra.mxu0 0
      %1965 = vmatprep.subr.bf16.mxu0 0
      %1966 = vmatpush1.bf16.msra.mxu0 0
      %1967 = vmatprep.subr.bf16.mxu0 0
      %1968 = vmatpush1.bf16.msra.mxu0 0
      %1969 = vmatprep.subr.bf16.mxu0 0
      %1970 = vmatpush1.bf16.msra.mxu0 0
      %1971 = vmatprep.subr.bf16.mxu0 0
      %1972 = vmatpush1.bf16.msra.mxu0 %v1955
      %1973 = vmatprep.subr.bf16.mxu0 0
      %1974 = vmatpush2.bf16.msra.mxu0 0
      %1975 = vmatprep.subr.bf16.mxu0 0
      %1976 = vmatpush2.bf16.msra.mxu0 0
      %1977 = vmatprep.subr.bf16.mxu0 0
      %1978 = vmatpush2.bf16.msra.mxu0 0
      %1979 = vmatprep.subr.bf16.mxu0 0
      %1980 = vmatpush2.bf16.msra.mxu0 0
      %1981 = vmatprep.subr.bf16.mxu0 0
      %1982 = vmatpush2.bf16.msra.mxu0 0
      %1983 = vmatprep.subr.bf16.mxu0 0
      %1984 = vmatpush2.bf16.msra.mxu0 0
      %1985 = vmatprep.subr.bf16.mxu0 0
      %1986 = vmatpush2.bf16.msra.mxu0 0
      %1987 = vmatprep.subr.bf16.mxu0 0
      %1988 = vmatpush2.bf16.msra.mxu0 0
      %1989 = vmatprep.mubr.bf16.mxu0 0
      %1990 = vmatmul.mubr.bf16.gmra.mxu0 %v1952
      %v1991 = vpop.f32.mrf.mxu0
      %v1992 = vadd.f32 0.0, %v1991
      %v1993 = vpop.f32.mrf.mxu0
      %v1994 = vpop.f32.mrf.mxu0
      %v1995 = vpop.f32.mrf.mxu0
      %1996 = vdwg.mxu0
      %1997 = vrot.lane.b32.xlu0 %v661, 32
      %v1998 = vpop.permute.xlu0 %1997
      %1999 = vrot.lane.b32.xlu0 %v663, 32
      %v2000 = vpop.permute.xlu0 %1999
      %v2002 = vsel %vm667, %v1998, 0
      %v2005 = vsel %vm667, %v2000, 0
      %2007 = vmatprep.subr.bf16.mxu0 0
      %2008 = vmatpush1.bf16.xpose.msra.mxu0 0
      %2009 = vmatprep.subr.bf16.mxu0 0
      %2010 = vmatpush1.bf16.xpose.msra.mxu0 0
      %2011 = vmatprep.subr.bf16.mxu0 0
      %2012 = vmatpush1.bf16.xpose.msra.mxu0 0
      %2013 = vmatprep.subr.bf16.mxu0 0
      %2014 = vmatpush1.bf16.xpose.msra.mxu0 0
      %2015 = vmatprep.subr.bf16.mxu0 0
      %2016 = vmatpush1.bf16.xpose.msra.mxu0 0
      %2017 = vmatprep.subr.bf16.mxu0 0
      %2018 = vmatpush1.bf16.xpose.msra.mxu0 0
      %2019 = vmatprep.subr.bf16.mxu0 0
      %2020 = vmatpush1.bf16.xpose.msra.mxu0 0
      %2021 = vmatprep.subr.bf16.mxu0 0
      %2022 = vmatpush1.bf16.xpose.msra.mxu0 %v2005
      %2023 = vmatprep.subr.bf16.mxu0 0
      %2024 = vmatpush2.bf16.xpose.msra.mxu0 0
      %2025 = vmatprep.subr.bf16.mxu0 0
      %2026 = vmatpush2.bf16.xpose.msra.mxu0 0
      %2027 = vmatprep.subr.bf16.mxu0 0
      %2028 = vmatpush2.bf16.xpose.msra.mxu0 0
      %2029 = vmatprep.subr.bf16.mxu0 0
      %2030 = vmatpush2.bf16.xpose.msra.mxu0 0
      %2031 = vmatprep.subr.bf16.mxu0 0
      %2032 = vmatpush2.bf16.xpose.msra.mxu0 0
      %2033 = vmatprep.subr.bf16.mxu0 0
      %2034 = vmatpush2.bf16.xpose.msra.mxu0 0
      %2035 = vmatprep.subr.bf16.mxu0 0
      %2036 = vmatpush2.bf16.xpose.msra.mxu0 0
      %2037 = vmatprep.subr.bf16.mxu0 0
      %2038 = vmatpush2.bf16.xpose.msra.mxu0 0
      %2039 = vmatprep.mubr.bf16.mxu0 0
      %2040 = vmatmul.mubr.bf16.gmra.mxu0 %v2002
      %v2041 = vpop.f32.mrf.mxu0
      %v2042 = vadd.f32 0.0, %v2041
      %v2043 = vpop.f32.mrf.mxu0
      %v2044 = vpop.f32.mrf.mxu0
      %v2045 = vpop.f32.mrf.mxu0
      %2046 = vdwg.mxu0
      %2047 = vrot.lane.b32.xlu0 %v662, 32
      %v2048 = vpop.permute.xlu0 %2047
      %2049 = vrot.lane.b32.xlu0 %v664, 32
      %v2050 = vpop.permute.xlu0 %2049
      %v2052 = vsel %vm667, %v2048, 0
      %v2055 = vsel %vm667, %v2050, 0
      %2057 = vmatprep.subr.bf16.mxu0 0
      %2058 = vmatpush1.bf16.xpose.msra.mxu0 0
      %2059 = vmatprep.subr.bf16.mxu0 0
      %2060 = vmatpush1.bf16.xpose.msra.mxu0 0
      %2061 = vmatprep.subr.bf16.mxu0 0
      %2062 = vmatpush1.bf16.xpose.msra.mxu0 0
      %2063 = vmatprep.subr.bf16.mxu0 0
      %2064 = vmatpush1.bf16.xpose.msra.mxu0 0
      %2065 = vmatprep.subr.bf16.mxu0 0
      %2066 = vmatpush1.bf16.xpose.msra.mxu0 0
      %2067 = vmatprep.subr.bf16.mxu0 0
      %2068 = vmatpush1.bf16.xpose.msra.mxu0 0
      %2069 = vmatprep.subr.bf16.mxu0 0
      %2070 = vmatpush1.bf16.xpose.msra.mxu0 0
      %2071 = vmatprep.subr.bf16.mxu0 0
      %2072 = vmatpush1.bf16.xpose.msra.mxu0 %v2055
      %2073 = vmatprep.subr.bf16.mxu0 0
      %2074 = vmatpush2.bf16.xpose.msra.mxu0 0
      %2075 = vmatprep.subr.bf16.mxu0 0
      %2076 = vmatpush2.bf16.xpose.msra.mxu0 0
      %2077 = vmatprep.subr.bf16.mxu0 0
      %2078 = vmatpush2.bf16.xpose.msra.mxu0 0
      %2079 = vmatprep.subr.bf16.mxu0 0
      %2080 = vmatpush2.bf16.xpose.msra.mxu0 0
      %2081 = vmatprep.subr.bf16.mxu0 0
      %2082 = vmatpush2.bf16.xpose.msra.mxu0 0
      %2083 = vmatprep.subr.bf16.mxu0 0
      %2084 = vmatpush2.bf16.xpose.msra.mxu0 0
      %2085 = vmatprep.subr.bf16.mxu0 0
      %2086 = vmatpush2.bf16.xpose.msra.mxu0 0
      %2087 = vmatprep.subr.bf16.mxu0 0
      %2088 = vmatpush2.bf16.xpose.msra.mxu0 0
      %2089 = vmatprep.mubr.bf16.mxu0 0
      %2090 = vmatmul.mubr.bf16.gmra.mxu0 %v2052
      %v2091 = vpop.f32.mrf.mxu0
      %v2092 = vadd.f32 0.0, %v2091
      %v2093 = vpop.f32.mrf.mxu0
      %v2094 = vpop.f32.mrf.mxu0
      %v2095 = vpop.f32.mrf.mxu0
      %2096 = vdwg.mxu0
      %v2097 = vmul.f32 %v2042, 0.25
      %v2098 = vmul.f32 %v2092, 0.25
      %v2099 = vsel %vm762, %v2097, -inf
      %2100 = vmax.xlane.f32.xlu0 %v2099
      %v2101 = vpop.xlane.xlu0 %2100
      %v2102 = vsel %vm762, %v2098, -inf
      %2103 = vmax.xlane.f32.xlu0 %v2102
      %v2104 = vpop.xlane.xlu0 %2103
      %v2105 = vsub.f32 %v2097, %v2101
      %v2106 = vsub.f32 %v2098, %v2104
      %v2107 = vmul.f32 %v2105, 1.442695
      %v2108 = vpow.pop %v2107
      %v2109 = vmul.f32 %v2106, 1.442695
      %v2110 = vpow.pop %v2109
      %v2111 = vsel %vm762, %v2108, 0.0
      %2112 = vadd.xlane.f32.xlu0 %v2111
      %v2113 = vpop.xlane.xlu0 %2112
      %v2114 = vsel %vm762, %v2110, 0.0
      %2115 = vadd.xlane.f32.xlu0 %v2114
      %v2116 = vpop.xlane.xlu0 %2115
      %v2117 = vrcp.pop %v2113
      %v2118 = vrcp.pop %v2116
      %v2119 = vmul.f32 %v2108, %v2117
      %v2120 = vmul.f32 %v2110, %v2118
      %v2121 = vpack.c.bf16 %v2119, %v2119
      %v2122 = vpack.c.bf16 %v2120, %v2120
      %2123 = vrot.lane.b32.xlu0 %v665, 32
      %v2124 = vpop.permute.xlu0 %2123
      %v2126 = vsel %vm787, %v2121, 0
      %v2129 = vsel %vm791, %v2124, 0
      %2131 = vmatprep.subr.bf16.mxu0 0
      %2132 = vmatpush1.bf16.msra.mxu0 0
      %2133 = vmatprep.subr.bf16.mxu0 0
      %2134 = vmatpush1.bf16.msra.mxu0 0
      %2135 = vmatprep.subr.bf16.mxu0 0
      %2136 = vmatpush1.bf16.msra.mxu0 0
      %2137 = vmatprep.subr.bf16.mxu0 0
      %2138 = vmatpush1.bf16.msra.mxu0 0
      %2139 = vmatprep.subr.bf16.mxu0 0
      %2140 = vmatpush1.bf16.msra.mxu0 0
      %2141 = vmatprep.subr.bf16.mxu0 0
      %2142 = vmatpush1.bf16.msra.mxu0 0
      %2143 = vmatprep.subr.bf16.mxu0 0
      %2144 = vmatpush1.bf16.msra.mxu0 0
      %2145 = vmatprep.subr.bf16.mxu0 0
      %2146 = vmatpush1.bf16.msra.mxu0 %v2129
      %2147 = vmatprep.subr.bf16.mxu0 0
      %2148 = vmatpush2.bf16.msra.mxu0 0
      %2149 = vmatprep.subr.bf16.mxu0 0
      %2150 = vmatpush2.bf16.msra.mxu0 0
      %2151 = vmatprep.subr.bf16.mxu0 0
      %2152 = vmatpush2.bf16.msra.mxu0 0
      %2153 = vmatprep.subr.bf16.mxu0 0
      %2154 = vmatpush2.bf16.msra.mxu0 0
      %2155 = vmatprep.subr.bf16.mxu0 0
      %2156 = vmatpush2.bf16.msra.mxu0 0
      %2157 = vmatprep.subr.bf16.mxu0 0
      %2158 = vmatpush2.bf16.msra.mxu0 0
      %2159 = vmatprep.subr.bf16.mxu0 0
      %2160 = vmatpush2.bf16.msra.mxu0 0
      %2161 = vmatprep.subr.bf16.mxu0 0
      %2162 = vmatpush2.bf16.msra.mxu0 0
      %2163 = vmatprep.mubr.bf16.mxu0 0
      %2164 = vmatmul.mubr.bf16.gmra.mxu0 %v2126
      %v2165 = vpop.f32.mrf.mxu0
      %v2166 = vadd.f32 0.0, %v2165
      %v2167 = vpop.f32.mrf.mxu0
      %v2168 = vpop.f32.mrf.mxu0
      %v2169 = vpop.f32.mrf.mxu0
      %2170 = vdwg.mxu0
      %2171 = vrot.lane.b32.xlu0 %v666, 32
      %v2172 = vpop.permute.xlu0 %2171
      %v2174 = vsel %vm787, %v2122, 0
      %v2177 = vsel %vm791, %v2172, 0
      %2179 = vmatprep.subr.bf16.mxu0 0
      %2180 = vmatpush1.bf16.msra.mxu0 0
      %2181 = vmatprep.subr.bf16.mxu0 0
      %2182 = vmatpush1.bf16.msra.mxu0 0
      %2183 = vmatprep.subr.bf16.mxu0 0
      %2184 = vmatpush1.bf16.msra.mxu0 0
      %2185 = vmatprep.subr.bf16.mxu0 0
      %2186 = vmatpush1.bf16.msra.mxu0 0
      %2187 = vmatprep.subr.bf16.mxu0 0
      %2188 = vmatpush1.bf16.msra.mxu0 0
      %2189 = vmatprep.subr.bf16.mxu0 0
      %2190 = vmatpush1.bf16.msra.mxu0 0
      %2191 = vmatprep.subr.bf16.mxu0 0
      %2192 = vmatpush1.bf16.msra.mxu0 0
      %2193 = vmatprep.subr.bf16.mxu0 0
      %2194 = vmatpush1.bf16.msra.mxu0 %v2177
      %2195 = vmatprep.subr.bf16.mxu0 0
      %2196 = vmatpush2.bf16.msra.mxu0 0
      %2197 = vmatprep.subr.bf16.mxu0 0
      %2198 = vmatpush2.bf16.msra.mxu0 0
      %2199 = vmatprep.subr.bf16.mxu0 0
      %2200 = vmatpush2.bf16.msra.mxu0 0
      %2201 = vmatprep.subr.bf16.mxu0 0
      %2202 = vmatpush2.bf16.msra.mxu0 0
      %2203 = vmatprep.subr.bf16.mxu0 0
      %2204 = vmatpush2.bf16.msra.mxu0 0
      %2205 = vmatprep.subr.bf16.mxu0 0
      %2206 = vmatpush2.bf16.msra.mxu0 0
      %2207 = vmatprep.subr.bf16.mxu0 0
      %2208 = vmatpush2.bf16.msra.mxu0 0
      %2209 = vmatprep.subr.bf16.mxu0 0
      %2210 = vmatpush2.bf16.msra.mxu0 0
      %2211 = vmatprep.mubr.bf16.mxu0 0
      %2212 = vmatmul.mubr.bf16.gmra.mxu0 %v2174
      %v2213 = vpop.f32.mrf.mxu0
      %v2214 = vadd.f32 0.0, %v2213
      %v2215 = vpop.f32.mrf.mxu0
      %v2216 = vpop.f32.mrf.mxu0
      %v2217 = vpop.f32.mrf.mxu0
      %2218 = vdwg.mxu0
      %2219 = vrot.lane.b32.xlu0 %v661, 16
      %v2220 = vpop.permute.xlu0 %2219
      %2221 = vrot.lane.b32.xlu0 %v663, 16
      %v2222 = vpop.permute.xlu0 %2221
      %v2224 = vsel %vm667, %v2220, 0
      %v2227 = vsel %vm667, %v2222, 0
      %2229 = vmatprep.subr.bf16.mxu0 0
      %2230 = vmatpush1.bf16.xpose.msra.mxu0 0
      %2231 = vmatprep.subr.bf16.mxu0 0
      %2232 = vmatpush1.bf16.xpose.msra.mxu0 0
      %2233 = vmatprep.subr.bf16.mxu0 0
      %2234 = vmatpush1.bf16.xpose.msra.mxu0 0
      %2235 = vmatprep.subr.bf16.mxu0 0
      %2236 = vmatpush1.bf16.xpose.msra.mxu0 0
      %2237 = vmatprep.subr.bf16.mxu0 0
      %2238 = vmatpush1.bf16.xpose.msra.mxu0 0
      %2239 = vmatprep.subr.bf16.mxu0 0
      %2240 = vmatpush1.bf16.xpose.msra.mxu0 0
      %2241 = vmatprep.subr.bf16.mxu0 0
      %2242 = vmatpush1.bf16.xpose.msra.mxu0 0
      %2243 = vmatprep.subr.bf16.mxu0 0
      %2244 = vmatpush1.bf16.xpose.msra.mxu0 %v2227
      %2245 = vmatprep.subr.bf16.mxu0 0
      %2246 = vmatpush2.bf16.xpose.msra.mxu0 0
      %2247 = vmatprep.subr.bf16.mxu0 0
      %2248 = vmatpush2.bf16.xpose.msra.mxu0 0
      %2249 = vmatprep.subr.bf16.mxu0 0
      %2250 = vmatpush2.bf16.xpose.msra.mxu0 0
      %2251 = vmatprep.subr.bf16.mxu0 0
      %2252 = vmatpush2.bf16.xpose.msra.mxu0 0
      %2253 = vmatprep.subr.bf16.mxu0 0
      %2254 = vmatpush2.bf16.xpose.msra.mxu0 0
      %2255 = vmatprep.subr.bf16.mxu0 0
      %2256 = vmatpush2.bf16.xpose.msra.mxu0 0
      %2257 = vmatprep.subr.bf16.mxu0 0
      %2258 = vmatpush2.bf16.xpose.msra.mxu0 0
      %2259 = vmatprep.subr.bf16.mxu0 0
      %2260 = vmatpush2.bf16.xpose.msra.mxu0 0
      %2261 = vmatprep.mubr.bf16.mxu0 0
      %2262 = vmatmul.mubr.bf16.gmra.mxu0 %v2224
      %v2263 = vpop.f32.mrf.mxu0
      %v2264 = vadd.f32 0.0, %v2263
      %v2265 = vpop.f32.mrf.mxu0
      %v2266 = vpop.f32.mrf.mxu0
      %v2267 = vpop.f32.mrf.mxu0
      %2268 = vdwg.mxu0
      %2269 = vrot.lane.b32.xlu0 %v662, 16
      %v2270 = vpop.permute.xlu0 %2269
      %2271 = vrot.lane.b32.xlu0 %v664, 16
      %v2272 = vpop.permute.xlu0 %2271
      %v2274 = vsel %vm667, %v2270, 0
      %v2277 = vsel %vm667, %v2272, 0
      %2279 = vmatprep.subr.bf16.mxu0 0
      %2280 = vmatpush1.bf16.xpose.msra.mxu0 0
      %2281 = vmatprep.subr.bf16.mxu0 0
      %2282 = vmatpush1.bf16.xpose.msra.mxu0 0
      %2283 = vmatprep.subr.bf16.mxu0 0
      %2284 = vmatpush1.bf16.xpose.msra.mxu0 0
      %2285 = vmatprep.subr.bf16.mxu0 0
      %2286 = vmatpush1.bf16.xpose.msra.mxu0 0
      %2287 = vmatprep.subr.bf16.mxu0 0
      %2288 = vmatpush1.bf16.xpose.msra.mxu0 0
      %2289 = vmatprep.subr.bf16.mxu0 0
      %2290 = vmatpush1.bf16.xpose.msra.mxu0 0
      %2291 = vmatprep.subr.bf16.mxu0 0
      %2292 = vmatpush1.bf16.xpose.msra.mxu0 0
      %2293 = vmatprep.subr.bf16.mxu0 0
      %2294 = vmatpush1.bf16.xpose.msra.mxu0 %v2277
      %2295 = vmatprep.subr.bf16.mxu0 0
      %2296 = vmatpush2.bf16.xpose.msra.mxu0 0
      %2297 = vmatprep.subr.bf16.mxu0 0
      %2298 = vmatpush2.bf16.xpose.msra.mxu0 0
      %2299 = vmatprep.subr.bf16.mxu0 0
      %2300 = vmatpush2.bf16.xpose.msra.mxu0 0
      %2301 = vmatprep.subr.bf16.mxu0 0
      %2302 = vmatpush2.bf16.xpose.msra.mxu0 0
      %2303 = vmatprep.subr.bf16.mxu0 0
      %2304 = vmatpush2.bf16.xpose.msra.mxu0 0
      %2305 = vmatprep.subr.bf16.mxu0 0
      %2306 = vmatpush2.bf16.xpose.msra.mxu0 0
      %2307 = vmatprep.subr.bf16.mxu0 0
      %2308 = vmatpush2.bf16.xpose.msra.mxu0 0
      %2309 = vmatprep.subr.bf16.mxu0 0
      %2310 = vmatpush2.bf16.xpose.msra.mxu0 0
      %2311 = vmatprep.mubr.bf16.mxu0 0
      %2312 = vmatmul.mubr.bf16.gmra.mxu0 %v2274
      %v2313 = vpop.f32.mrf.mxu0
      %v2314 = vadd.f32 0.0, %v2313
      %v2315 = vpop.f32.mrf.mxu0
      %v2316 = vpop.f32.mrf.mxu0
      %v2317 = vpop.f32.mrf.mxu0
      %2318 = vdwg.mxu0
      %v2319 = vmul.f32 %v2264, 0.25
      %v2320 = vmul.f32 %v2314, 0.25
      %v2321 = vsel %vm762, %v2319, -inf
      %2322 = vmax.xlane.f32.xlu0 %v2321
      %v2323 = vpop.xlane.xlu0 %2322
      %v2324 = vsel %vm762, %v2320, -inf
      %2325 = vmax.xlane.f32.xlu0 %v2324
      %v2326 = vpop.xlane.xlu0 %2325
      %v2327 = vsub.f32 %v2319, %v2323
      %v2328 = vsub.f32 %v2320, %v2326
      %v2329 = vmul.f32 %v2327, 1.442695
      %v2330 = vpow.pop %v2329
      %v2331 = vmul.f32 %v2328, 1.442695
      %v2332 = vpow.pop %v2331
      %v2333 = vsel %vm762, %v2330, 0.0
      %2334 = vadd.xlane.f32.xlu0 %v2333
      %v2335 = vpop.xlane.xlu0 %2334
      %v2336 = vsel %vm762, %v2332, 0.0
      %2337 = vadd.xlane.f32.xlu0 %v2336
      %v2338 = vpop.xlane.xlu0 %2337
      %v2339 = vrcp.pop %v2335
      %v2340 = vrcp.pop %v2338
      %v2341 = vmul.f32 %v2330, %v2339
      %v2342 = vmul.f32 %v2332, %v2340
      %v2343 = vpack.c.bf16 %v2341, %v2341
      %v2344 = vpack.c.bf16 %v2342, %v2342
      %2345 = vrot.lane.b32.xlu0 %v665, 16
      %v2346 = vpop.permute.xlu0 %2345
      %v2348 = vsel %vm787, %v2343, 0
      %v2351 = vsel %vm791, %v2346, 0
      %2353 = vmatprep.subr.bf16.mxu0 0
      %2354 = vmatpush1.bf16.msra.mxu0 0
      %2355 = vmatprep.subr.bf16.mxu0 0
      %2356 = vmatpush1.bf16.msra.mxu0 0
      %2357 = vmatprep.subr.bf16.mxu0 0
      %2358 = vmatpush1.bf16.msra.mxu0 0
      %2359 = vmatprep.subr.bf16.mxu0 0
      %2360 = vmatpush1.bf16.msra.mxu0 0
      %2361 = vmatprep.subr.bf16.mxu0 0
      %2362 = vmatpush1.bf16.msra.mxu0 0
      %2363 = vmatprep.subr.bf16.mxu0 0
      %2364 = vmatpush1.bf16.msra.mxu0 0
      %2365 = vmatprep.subr.bf16.mxu0 0
      %2366 = vmatpush1.bf16.msra.mxu0 0
      %2367 = vmatprep.subr.bf16.mxu0 0
      %2368 = vmatpush1.bf16.msra.mxu0 %v2351
      %2369 = vmatprep.subr.bf16.mxu0 0
      %2370 = vmatpush2.bf16.msra.mxu0 0
      %2371 = vmatprep.subr.bf16.mxu0 0
      %2372 = vmatpush2.bf16.msra.mxu0 0
      %2373 = vmatprep.subr.bf16.mxu0 0
      %2374 = vmatpush2.bf16.msra.mxu0 0
      %2375 = vmatprep.subr.bf16.mxu0 0
      %2376 = vmatpush2.bf16.msra.mxu0 0
      %2377 = vmatprep.subr.bf16.mxu0 0
      %2378 = vmatpush2.bf16.msra.mxu0 0
      %2379 = vmatprep.subr.bf16.mxu0 0
      %2380 = vmatpush2.bf16.msra.mxu0 0
      %2381 = vmatprep.subr.bf16.mxu0 0
      %2382 = vmatpush2.bf16.msra.mxu0 0
      %2383 = vmatprep.subr.bf16.mxu0 0
      %2384 = vmatpush2.bf16.msra.mxu0 0
      %2385 = vmatprep.mubr.bf16.mxu0 0
      %2386 = vmatmul.mubr.bf16.gmra.mxu0 %v2348
      %v2387 = vpop.f32.mrf.mxu0
      %v2388 = vadd.f32 0.0, %v2387
      %v2389 = vpop.f32.mrf.mxu0
      %v2390 = vpop.f32.mrf.mxu0
      %v2391 = vpop.f32.mrf.mxu0
      %2392 = vdwg.mxu0
      %2393 = vrot.lane.b32.xlu0 %v666, 16
      %v2394 = vpop.permute.xlu0 %2393
      %v2396 = vsel %vm787, %v2344, 0
      %v2399 = vsel %vm791, %v2394, 0
      %2401 = vmatprep.subr.bf16.mxu0 0
      %2402 = vmatpush1.bf16.msra.mxu0 0
      %2403 = vmatprep.subr.bf16.mxu0 0
      %2404 = vmatpush1.bf16.msra.mxu0 0
      %2405 = vmatprep.subr.bf16.mxu0 0
      %2406 = vmatpush1.bf16.msra.mxu0 0
      %2407 = vmatprep.subr.bf16.mxu0 0
      %2408 = vmatpush1.bf16.msra.mxu0 0
      %2409 = vmatprep.subr.bf16.mxu0 0
      %2410 = vmatpush1.bf16.msra.mxu0 0
      %2411 = vmatprep.subr.bf16.mxu0 0
      %2412 = vmatpush1.bf16.msra.mxu0 0
      %2413 = vmatprep.subr.bf16.mxu0 0
      %2414 = vmatpush1.bf16.msra.mxu0 0
      %2415 = vmatprep.subr.bf16.mxu0 0
      %2416 = vmatpush1.bf16.msra.mxu0 %v2399
      %2417 = vmatprep.subr.bf16.mxu0 0
      %2418 = vmatpush2.bf16.msra.mxu0 0
      %2419 = vmatprep.subr.bf16.mxu0 0
      %2420 = vmatpush2.bf16.msra.mxu0 0
      %2421 = vmatprep.subr.bf16.mxu0 0
      %2422 = vmatpush2.bf16.msra.mxu0 0
      %2423 = vmatprep.subr.bf16.mxu0 0
      %2424 = vmatpush2.bf16.msra.mxu0 0
      %2425 = vmatprep.subr.bf16.mxu0 0
      %2426 = vmatpush2.bf16.msra.mxu0 0
      %2427 = vmatprep.subr.bf16.mxu0 0
      %2428 = vmatpush2.bf16.msra.mxu0 0
      %2429 = vmatprep.subr.bf16.mxu0 0
      %2430 = vmatpush2.bf16.msra.mxu0 0
      %2431 = vmatprep.subr.bf16.mxu0 0
      %2432 = vmatpush2.bf16.msra.mxu0 0
      %2433 = vmatprep.mubr.bf16.mxu0 0
      %2434 = vmatmul.mubr.bf16.gmra.mxu0 %v2396
      %v2435 = vpop.f32.mrf.mxu0
      %v2436 = vadd.f32 0.0, %v2435
      %v2437 = vpop.f32.mrf.mxu0
      %v2438 = vpop.f32.mrf.mxu0
      %v2439 = vpop.f32.mrf.mxu0
      %2440 = vdwg.mxu0
      %2443 = vrot.lane.b32.xlu0 %v1055, 16
      %v2444 = vpop.permute.xlu0 %2443
      %2445 = vrot.lane.b32.xlu0 %v1104, 16
      %v2446 = vpop.permute.xlu0 %2445
      %2451 = vrot.lane.b32.xlu0 %v1278, 32
      %v2452 = vpop.permute.xlu0 %2451
      %2453 = vrot.lane.b32.xlu0 %v1326, 32
      %v2454 = vpop.permute.xlu0 %2453
      %2459 = vrot.lane.b32.xlu0 %v1500, 48
      %v2460 = vpop.permute.xlu0 %2459
      %2461 = vrot.lane.b32.xlu0 %v1548, 48
      %v2462 = vpop.permute.xlu0 %2461
      %2467 = vrot.lane.b32.xlu0 %v1722, 64
      %v2468 = vpop.permute.xlu0 %2467
      %2469 = vrot.lane.b32.xlu0 %v1770, 64
      %v2470 = vpop.permute.xlu0 %2469
      %2475 = vrot.lane.b32.xlu0 %v1944, 80
      %v2476 = vpop.permute.xlu0 %2475
      %2477 = vrot.lane.b32.xlu0 %v1992, 80
      %v2478 = vpop.permute.xlu0 %2477
      %2483 = vrot.lane.b32.xlu0 %v2166, 96
      %v2484 = vpop.permute.xlu0 %2483
      %2485 = vrot.lane.b32.xlu0 %v2214, 96
      %v2486 = vpop.permute.xlu0 %2485
      %2491 = vrot.lane.b32.xlu0 %v2388, 112
      %v2492 = vpop.permute.xlu0 %2491
      %2493 = vrot.lane.b32.xlu0 %v2436, 112
      %v2494 = vpop.permute.xlu0 %2493
      %v2497 = vsel %vm667, %v830, %v2444
      %v2498 = vsel %vm667, %v876, %v2446
      %vm2499 = vcmask 261120
      %v2500 = vsel %vm2499, %v2497, %v2452
      %v2501 = vsel %vm2499, %v2498, %v2454
      %vm2502 = vcmask 392192
      %v2503 = vsel %vm2502, %v2500, %v2460
      %v2504 = vsel %vm2502, %v2501, %v2462
      %vm2505 = vcmask 523264
      %v2506 = vsel %vm2505, %v2503, %v2468
      %v2507 = vsel %vm2505, %v2504, %v2470
      %vm2508 = vcmask 654336
      %v2509 = vsel %vm2508, %v2506, %v2476
      %v2510 = vsel %vm2508, %v2507, %v2478
      %vm2511 = vcmask 785408
      %v2512 = vsel %vm2511, %v2509, %v2484
      %v2513 = vsel %vm2511, %v2510, %v2486
      %vm2514 = vcmask 916480
      %v2515 = vsel %vm2514, %v2512, %v2492
      %v2516 = vsel %vm2514, %v2513, %v2494
      %v2519 = vcombine.low %v2515, %v2516
      %v2521 = vpack.c.bf16 %v2519, %v2519
      %v2522 = vld [vmem:[%s341] sm:$0xf]
      %v2523 = vld [vmem:[%s341 + $0x4] sm:$0xf]
      %v2524 = vld [vmem:[%s341 + $0x8] sm:$0xf]
      %v2525 = vld [vmem:[%s341 + $0xc] sm:$0xf]
      %v2526 = vld [vmem:[%s341 + $0x10] sm:$0xf]
      %v2527 = vld [vmem:[%s341 + $0x14] sm:$0xf]
      %v2528 = vld [vmem:[%s341 + $0x18] sm:$0xf]
      %v2529 = vld [vmem:[%s341 + $0x1c] sm:$0xf]
      %v2530 = vld [vmem:[%s341 + $0x20] sm:$0xf]
      %v2531 = vld [vmem:[%s341 + $0x24] sm:$0xf]
      %v2532 = vld [vmem:[%s341 + $0x28] sm:$0xf]
      %v2533 = vld [vmem:[%s341 + $0x2c] sm:$0xf]
      %v2534 = vld [vmem:[%s341 + $0x30] sm:$0xf]
      %v2535 = vld [vmem:[%s341 + $0x34] sm:$0xf]
      %v2536 = vld [vmem:[%s341 + $0x38] sm:$0xf]
      %v2537 = vld [vmem:[%s341 + $0x3c] sm:$0xf]
      %v2554 = vunpack.c.l.b16 %v2522
      %v2555 = vunpack.c.l.b16 %v2523
      %v2556 = vunpack.c.l.b16 %v2524
      %v2557 = vunpack.c.l.b16 %v2525
      %v2558 = vunpack.c.l.b16 %v2526
      %v2559 = vunpack.c.l.b16 %v2527
      %v2560 = vunpack.c.l.b16 %v2528
      %v2561 = vunpack.c.l.b16 %v2529
      %v2562 = vunpack.c.l.b16 %v2530
      %v2563 = vunpack.c.l.b16 %v2531
      %v2564 = vunpack.c.l.b16 %v2532
      %v2565 = vunpack.c.l.b16 %v2533
      %v2566 = vunpack.c.l.b16 %v2534
      %v2567 = vunpack.c.l.b16 %v2535
      %v2568 = vunpack.c.l.b16 %v2536
      %v2569 = vunpack.c.l.b16 %v2537
      %v2570 = vpack.c.b16 %v2555, %v2554
      %v2571 = vpack.c.b16 %v2557, %v2556
      %v2572 = vpack.c.b16 %v2559, %v2558
      %v2573 = vpack.c.b16 %v2561, %v2560
      %v2574 = vpack.c.b16 %v2563, %v2562
      %v2575 = vpack.c.b16 %v2565, %v2564
      %v2576 = vpack.c.b16 %v2567, %v2566
      %v2577 = vpack.c.b16 %v2569, %v2568
      %2586 = vmatprep.subr.bf16.mxu0 0
      %2587 = vmatpush1.bf16.msra.mxu0 %v2577
      %2588 = vmatprep.subr.bf16.mxu0 0
      %2589 = vmatpush1.bf16.msra.mxu0 %v2576
      %2590 = vmatprep.subr.bf16.mxu0 0
      %2591 = vmatpush1.bf16.msra.mxu0 %v2575
      %2592 = vmatprep.subr.bf16.mxu0 0
      %2593 = vmatpush1.bf16.msra.mxu0 %v2574
      %2594 = vmatprep.subr.bf16.mxu0 0
      %2595 = vmatpush1.bf16.msra.mxu0 %v2573
      %2596 = vmatprep.subr.bf16.mxu0 0
      %2597 = vmatpush1.bf16.msra.mxu0 %v2572
      %2598 = vmatprep.subr.bf16.mxu0 0
      %2599 = vmatpush1.bf16.msra.mxu0 %v2571
      %2600 = vmatprep.subr.bf16.mxu0 0
      %2601 = vmatpush1.bf16.msra.mxu0 %v2570
      %2602 = vmatprep.subr.bf16.mxu0 0
      %2603 = vmatpush2.bf16.msra.mxu0 0
      %2604 = vmatprep.subr.bf16.mxu0 0
      %2605 = vmatpush2.bf16.msra.mxu0 0
      %2606 = vmatprep.subr.bf16.mxu0 0
      %2607 = vmatpush2.bf16.msra.mxu0 0
      %2608 = vmatprep.subr.bf16.mxu0 0
      %2609 = vmatpush2.bf16.msra.mxu0 0
      %2610 = vmatprep.subr.bf16.mxu0 0
      %2611 = vmatpush2.bf16.msra.mxu0 0
      %2612 = vmatprep.subr.bf16.mxu0 0
      %2613 = vmatpush2.bf16.msra.mxu0 0
      %2614 = vmatprep.subr.bf16.mxu0 0
      %2615 = vmatpush2.bf16.msra.mxu0 0
      %2616 = vmatprep.subr.bf16.mxu0 0
      %2617 = vmatpush2.bf16.msra.mxu0 0
      %2618 = vmatprep.mubr.bf16.mxu0 0
      %2619 = vmatmul.mubr.bf16.gmra.mxu0 %v2521
      %v2620 = vpop.f32.mrf.mxu0
      %v2621 = vadd.f32 0.0, %v2620
      %v2622 = vpop.f32.mrf.mxu0
      %v2623 = vpop.f32.mrf.mxu0
      %v2624 = vpop.f32.mrf.mxu0
      %2625 = vdwg.mxu0
      %v2626 = vadd.f32 %v369, %v2621
      %v2627 = vlaneseq
      %v2628 = vshrl.u32 %v2627, 7
      %v2629 = vsub.s32 7, %v2628
      %v2630 = vrot.slane %v370, %v2629
      %v2631 = vadd.f32 %v2626, %v2630
      %2632 = vadd.xlane.f32.xlu0 %v2631
      %v2633 = vpop.xlane.xlu0 %2632
      %v2634 = vmul.f32 %v2633, %v375
      %v2635 = vsub.f32 %v2631, %v2634
      %v2636 = vmul.f32 %v2635, %v2635
      %2637 = vadd.xlane.f32.xlu0 %v2636
      %v2638 = vpop.xlane.xlu0 %2637
      %v2639 = vmul.f32 %v2638, %v375
      %v2640 = vadd.f32 %v2639, 1e-05
      %v2641 = vrsqrt.pop %v2640
      %v2642 = vmul.f32 %v2635, %v2641
      %v2643 = vlaneseq
      %v2644 = vshrl.u32 %v2643, 7
      %v2645 = vsub.s32 2, %v2644
      %v2646 = vrot.slane %v370, %v2645
      %v2647 = vmul.f32 %v2642, %v2646
      %v2648 = vlaneseq
      %v2649 = vshrl.u32 %v2648, 7
      %v2650 = vsub.s32 3, %v2649
      %v2651 = vrot.slane %v370, %v2650
      %v2652 = vadd.f32 %v2647, %v2651
      %v2653 = vpack.c.bf16 %v2652, %v2652
      %v2654 = vld [vmem:[%s346] sm:$0xff]
      %v2655 = vld [vmem:[%s346 + $0x8] sm:$0xff]
      %v2656 = vld [vmem:[%s346 + $0x10] sm:$0xff]
      %v2657 = vld [vmem:[%s346 + $0x18] sm:$0xff]
      %v2658 = vld [vmem:[%s346 + $0x20] sm:$0xff]
      %v2659 = vld [vmem:[%s346 + $0x28] sm:$0xff]
      %v2660 = vld [vmem:[%s346 + $0x30] sm:$0xff]
      %v2661 = vld [vmem:[%s346 + $0x38] sm:$0xff]
      %v2662 = vld [vmem:[%s346 + $0x40] sm:$0xff]
      %v2663 = vld [vmem:[%s346 + $0x48] sm:$0xff]
      %v2664 = vld [vmem:[%s346 + $0x50] sm:$0xff]
      %v2665 = vld [vmem:[%s346 + $0x58] sm:$0xff]
      %v2666 = vld [vmem:[%s346 + $0x60] sm:$0xff]
      %v2667 = vld [vmem:[%s346 + $0x68] sm:$0xff]
      %v2668 = vld [vmem:[%s346 + $0x70] sm:$0xff]
      %v2669 = vld [vmem:[%s346 + $0x78] sm:$0xff]
      %v2670 = vld [vmem:[%s346 + $0x80] sm:$0xff]
      %v2671 = vld [vmem:[%s346 + $0x88] sm:$0xff]
      %v2672 = vld [vmem:[%s346 + $0x90] sm:$0xff]
      %v2673 = vld [vmem:[%s346 + $0x98] sm:$0xff]
      %v2674 = vld [vmem:[%s346 + $0xa0] sm:$0xff]
      %v2675 = vld [vmem:[%s346 + $0xa8] sm:$0xff]
      %v2676 = vld [vmem:[%s346 + $0xb0] sm:$0xff]
      %v2677 = vld [vmem:[%s346 + $0xb8] sm:$0xff]
      %v2678 = vld [vmem:[%s346 + $0xc0] sm:$0xff]
      %v2679 = vld [vmem:[%s346 + $0xc8] sm:$0xff]
      %v2680 = vld [vmem:[%s346 + $0xd0] sm:$0xff]
      %v2681 = vld [vmem:[%s346 + $0xd8] sm:$0xff]
      %v2682 = vld [vmem:[%s346 + $0xe0] sm:$0xff]
      %v2683 = vld [vmem:[%s346 + $0xe8] sm:$0xff]
      %v2684 = vld [vmem:[%s346 + $0xf0] sm:$0xff]
      %v2685 = vld [vmem:[%s346 + $0xf8] sm:$0xff]
      %v2687 = vlaneseq
      %v2688 = vshrl.u32 %v2687, 7
      %v2689 = vsub.s32 0, %v2688
      %v2690 = vrot.slane %v372, %v2689
      %v2691 = vlaneseq
      %v2692 = vshrl.u32 %v2691, 7
      %v2693 = vsub.s32 1, %v2692
      %v2694 = vrot.slane %v372, %v2693
      %v2695 = vlaneseq
      %v2696 = vshrl.u32 %v2695, 7
      %v2697 = vsub.s32 2, %v2696
      %v2698 = vrot.slane %v372, %v2697
      %v2699 = vlaneseq
      %v2700 = vshrl.u32 %v2699, 7
      %v2701 = vsub.s32 3, %v2700
      %v2702 = vrot.slane %v372, %v2701
      %v2739 = vunpack.c.l.b16 %v2654
      %v2740 = vunpack.c.h.b16 %v2654
      %v2741 = vunpack.c.l.b16 %v2655
      %v2742 = vunpack.c.h.b16 %v2655
      %v2743 = vunpack.c.l.b16 %v2656
      %v2744 = vunpack.c.h.b16 %v2656
      %v2745 = vunpack.c.l.b16 %v2657
      %v2746 = vunpack.c.h.b16 %v2657
      %v2747 = vunpack.c.l.b16 %v2658
      %v2748 = vunpack.c.h.b16 %v2658
      %v2749 = vunpack.c.l.b16 %v2659
      %v2750 = vunpack.c.h.b16 %v2659
      %v2751 = vunpack.c.l.b16 %v2660
      %v2752 = vunpack.c.h.b16 %v2660
      %v2753 = vunpack.c.l.b16 %v2661
      %v2754 = vunpack.c.h.b16 %v2661
      %v2755 = vunpack.c.l.b16 %v2662
      %v2756 = vunpack.c.h.b16 %v2662
      %v2757 = vunpack.c.l.b16 %v2663
      %v2758 = vunpack.c.h.b16 %v2663
      %v2759 = vunpack.c.l.b16 %v2664
      %v2760 = vunpack.c.h.b16 %v2664
      %v2761 = vunpack.c.l.b16 %v2665
      %v2762 = vunpack.c.h.b16 %v2665
      %v2763 = vunpack.c.l.b16 %v2666
      %v2764 = vunpack.c.h.b16 %v2666
      %v2765 = vunpack.c.l.b16 %v2667
      %v2766 = vunpack.c.h.b16 %v2667
      %v2767 = vunpack.c.l.b16 %v2668
      %v2768 = vunpack.c.h.b16 %v2668
      %v2769 = vunpack.c.l.b16 %v2669
      %v2770 = vunpack.c.h.b16 %v2669
      %v2771 = vunpack.c.l.b16 %v2670
      %v2772 = vunpack.c.h.b16 %v2670
      %v2773 = vunpack.c.l.b16 %v2671
      %v2774 = vunpack.c.h.b16 %v2671
      %v2775 = vunpack.c.l.b16 %v2672
      %v2776 = vunpack.c.h.b16 %v2672
      %v2777 = vunpack.c.l.b16 %v2673
      %v2778 = vunpack.c.h.b16 %v2673
      %v2779 = vunpack.c.l.b16 %v2674
      %v2780 = vunpack.c.h.b16 %v2674
      %v2781 = vunpack.c.l.b16 %v2675
      %v2782 = vunpack.c.h.b16 %v2675
      %v2783 = vunpack.c.l.b16 %v2676
      %v2784 = vunpack.c.h.b16 %v2676
      %v2785 = vunpack.c.l.b16 %v2677
      %v2786 = vunpack.c.h.b16 %v2677
      %v2787 = vunpack.c.l.b16 %v2678
      %v2788 = vunpack.c.h.b16 %v2678
      %v2789 = vunpack.c.l.b16 %v2679
      %v2790 = vunpack.c.h.b16 %v2679
      %v2791 = vunpack.c.l.b16 %v2680
      %v2792 = vunpack.c.h.b16 %v2680
      %v2793 = vunpack.c.l.b16 %v2681
      %v2794 = vunpack.c.h.b16 %v2681
      %v2795 = vunpack.c.l.b16 %v2682
      %v2796 = vunpack.c.h.b16 %v2682
      %v2797 = vunpack.c.l.b16 %v2683
      %v2798 = vunpack.c.h.b16 %v2683
      %v2799 = vunpack.c.l.b16 %v2684
      %v2800 = vunpack.c.h.b16 %v2684
      %v2801 = vunpack.c.l.b16 %v2685
      %v2802 = vunpack.c.h.b16 %v2685
      %v2803 = vpack.c.b16 %v2743, %v2739
      %v2804 = vpack.c.b16 %v2744, %v2740
      %v2805 = vpack.c.b16 %v2745, %v2741
      %v2806 = vpack.c.b16 %v2746, %v2742
      %v2807 = vpack.c.b16 %v2751, %v2747
      %v2808 = vpack.c.b16 %v2752, %v2748
      %v2809 = vpack.c.b16 %v2753, %v2749
      %v2810 = vpack.c.b16 %v2754, %v2750
      %v2811 = vpack.c.b16 %v2759, %v2755
      %v2812 = vpack.c.b16 %v2760, %v2756
      %v2813 = vpack.c.b16 %v2761, %v2757
      %v2814 = vpack.c.b16 %v2762, %v2758
      %v2815 = vpack.c.b16 %v2767, %v2763
      %v2816 = vpack.c.b16 %v2768, %v2764
      %v2817 = vpack.c.b16 %v2769, %v2765
      %v2818 = vpack.c.b16 %v2770, %v2766
      %v2819 = vpack.c.b16 %v2775, %v2771
      %v2820 = vpack.c.b16 %v2776, %v2772
      %v2821 = vpack.c.b16 %v2777, %v2773
      %v2822 = vpack.c.b16 %v2778, %v2774
      %v2823 = vpack.c.b16 %v2783, %v2779
      %v2824 = vpack.c.b16 %v2784, %v2780
      %v2825 = vpack.c.b16 %v2785, %v2781
      %v2826 = vpack.c.b16 %v2786, %v2782
      %v2827 = vpack.c.b16 %v2791, %v2787
      %v2828 = vpack.c.b16 %v2792, %v2788
      %v2829 = vpack.c.b16 %v2793, %v2789
      %v2830 = vpack.c.b16 %v2794, %v2790
      %v2831 = vpack.c.b16 %v2799, %v2795
      %v2832 = vpack.c.b16 %v2800, %v2796
      %v2833 = vpack.c.b16 %v2801, %v2797
      %v2834 = vpack.c.b16 %v2802, %v2798
      %2867 = vmatprep.subr.bf16.mxu0 %v2832
      %2868 = vmatpush1.bf16.msra.mxu0 %v2831
      %2869 = vmatprep.subr.bf16.mxu0 %v2828
      %2870 = vmatpush1.bf16.msra.mxu0 %v2827
      %2871 = vmatprep.subr.bf16.mxu0 %v2824
      %2872 = vmatpush1.bf16.msra.mxu0 %v2823
      %2873 = vmatprep.subr.bf16.mxu0 %v2820
      %2874 = vmatpush1.bf16.msra.mxu0 %v2819
      %2875 = vmatprep.subr.bf16.mxu0 %v2816
      %2876 = vmatpush1.bf16.msra.mxu0 %v2815
      %2877 = vmatprep.subr.bf16.mxu0 %v2812
      %2878 = vmatpush1.bf16.msra.mxu0 %v2811
      %2879 = vmatprep.subr.bf16.mxu0 %v2808
      %2880 = vmatpush1.bf16.msra.mxu0 %v2807
      %2881 = vmatprep.subr.bf16.mxu0 %v2804
      %2882 = vmatpush1.bf16.msra.mxu0 %v2803
      %2883 = vmatprep.subr.bf16.mxu0 0
      %2884 = vmatpush2.bf16.msra.mxu0 0
      %2885 = vmatprep.subr.bf16.mxu0 0
      %2886 = vmatpush2.bf16.msra.mxu0 0
      %2887 = vmatprep.subr.bf16.mxu0 0
      %2888 = vmatpush2.bf16.msra.mxu0 0
      %2889 = vmatprep.subr.bf16.mxu0 0
      %2890 = vmatpush2.bf16.msra.mxu0 0
      %2891 = vmatprep.subr.bf16.mxu0 0
      %2892 = vmatpush2.bf16.msra.mxu0 0
      %2893 = vmatprep.subr.bf16.mxu0 0
      %2894 = vmatpush2.bf16.msra.mxu0 0
      %2895 = vmatprep.subr.bf16.mxu0 0
      %2896 = vmatpush2.bf16.msra.mxu0 0
      %2897 = vmatprep.subr.bf16.mxu0 0
      %2898 = vmatpush2.bf16.msra.mxu0 0
      %2899 = vmatprep.mubr.bf16.mxu0 0
      %2900 = vmatmul.mubr.bf16.gmra.mxu0 %v2653
      %v2901 = vpop.f32.mrf.mxu0
      %v2902 = vadd.f32 %v2690, %v2901
      %v2903 = vpop.f32.mrf.mxu0
      %v2904 = vadd.f32 %v2694, %v2903
      %v2905 = vpop.f32.mrf.mxu0
      %v2906 = vpop.f32.mrf.mxu0
      %2907 = vdwg.mxu0
      %2908 = vmatprep.subr.bf16.mxu0 %v2834
      %2909 = vmatpush1.bf16.msra.mxu0 %v2833
      %2910 = vmatprep.subr.bf16.mxu0 %v2830
      %2911 = vmatpush1.bf16.msra.mxu0 %v2829
      %2912 = vmatprep.subr.bf16.mxu0 %v2826
      %2913 = vmatpush1.bf16.msra.mxu0 %v2825
      %2914 = vmatprep.subr.bf16.mxu0 %v2822
      %2915 = vmatpush1.bf16.msra.mxu0 %v2821
      %2916 = vmatprep.subr.bf16.mxu0 %v2818
      %2917 = vmatpush1.bf16.msra.mxu0 %v2817
      %2918 = vmatprep.subr.bf16.mxu0 %v2814
      %2919 = vmatpush1.bf16.msra.mxu0 %v2813
      %2920 = vmatprep.subr.bf16.mxu0 %v2810
      %2921 = vmatpush1.bf16.msra.mxu0 %v2809
      %2922 = vmatprep.subr.bf16.mxu0 %v2806
      %2923 = vmatpush1.bf16.msra.mxu0 %v2805
      %2924 = vmatprep.subr.bf16.mxu0 0
      %2925 = vmatpush2.bf16.msra.mxu0 0
      %2926 = vmatprep.subr.bf16.mxu0 0
      %2927 = vmatpush2.bf16.msra.mxu0 0
      %2928 = vmatprep.subr.bf16.mxu0 0
      %2929 = vmatpush2.bf16.msra.mxu0 0
      %2930 = vmatprep.subr.bf16.mxu0 0
      %2931 = vmatpush2.bf16.msra.mxu0 0
      %2932 = vmatprep.subr.bf16.mxu0 0
      %2933 = vmatpush2.bf16.msra.mxu0 0
      %2934 = vmatprep.subr.bf16.mxu0 0
      %2935 = vmatpush2.bf16.msra.mxu0 0
      %2936 = vmatprep.subr.bf16.mxu0 0
      %2937 = vmatpush2.bf16.msra.mxu0 0
      %2938 = vmatprep.subr.bf16.mxu0 0
      %2939 = vmatpush2.bf16.msra.mxu0 0
      %2940 = vmatprep.mubr.bf16.mxu0 0
      %2941 = vmatmul.mubr.bf16.gmra.mxu0 %v2653
      %v2942 = vpop.f32.mrf.mxu0
      %v2943 = vadd.f32 %v2698, %v2942
      %v2944 = vpop.f32.mrf.mxu0
      %v2945 = vadd.f32 %v2702, %v2944
      %v2946 = vpop.f32.mrf.mxu0
      %v2947 = vpop.f32.mrf.mxu0
      %2948 = vdwg.mxu0
      %v2949 = vmul.f32 %v2902, 0.5
      %v2950 = vmul.f32 %v2904, 0.5
      %v2951 = vmul.f32 %v2943, 0.5
      %v2952 = vmul.f32 %v2945, 0.5
      %v2953 = vmul.f32 %v2902, 0.044715
      %v2954 = vmul.f32 %v2904, 0.044715
      %v2955 = vmul.f32 %v2943, 0.044715
      %v2956 = vmul.f32 %v2945, 0.044715
      %v2957 = vmul.f32 %v2953, %v2902
      %v2958 = vmul.f32 %v2954, %v2904
      %v2959 = vmul.f32 %v2955, %v2943
      %v2960 = vmul.f32 %v2956, %v2945
      %v2961 = vmul.f32 %v2957, %v2902
      %v2962 = vmul.f32 %v2958, %v2904
      %v2963 = vmul.f32 %v2959, %v2943
      %v2964 = vmul.f32 %v2960, %v2945
      %v2965 = vadd.f32 %v2902, %v2961
      %v2966 = vadd.f32 %v2904, %v2962
      %v2967 = vadd.f32 %v2943, %v2963
      %v2968 = vadd.f32 %v2945, %v2964
      %v2969 = vmul.f32 %v2965, 0.7978846
      %v2970 = vmul.f32 %v2966, 0.7978846
      %v2971 = vmul.f32 %v2967, 0.7978846
      %v2972 = vmul.f32 %v2968, 0.7978846
      %v2973 = vtanh.pop %v2969
      %v2974 = vtanh.pop %v2970
      %v2975 = vtanh.pop %v2971
      %v2976 = vtanh.pop %v2972
      %v2977 = vadd.f32 %v2973, 1.0
      %v2978 = vadd.f32 %v2974, 1.0
      %v2979 = vadd.f32 %v2975, 1.0
      %v2980 = vadd.f32 %v2976, 1.0
      %v2981 = vmul.f32 %v2949, %v2977
      %v2982 = vmul.f32 %v2950, %v2978
      %v2983 = vmul.f32 %v2951, %v2979
      %v2984 = vmul.f32 %v2952, %v2980
      %v2985 = vpack.c.bf16 %v2981, %v2981
      %v2986 = vpack.c.bf16 %v2982, %v2982
      %v2987 = vpack.c.bf16 %v2983, %v2983
      %v2988 = vpack.c.bf16 %v2984, %v2984
      %v2989 = vld [vmem:[%s351] sm:$0xf]
      %v2990 = vld [vmem:[%s351 + $0x4] sm:$0xf]
      %v2991 = vld [vmem:[%s351 + $0x8] sm:$0xf]
      %v2992 = vld [vmem:[%s351 + $0xc] sm:$0xf]
      %v2993 = vld [vmem:[%s351 + $0x10] sm:$0xf]
      %v2994 = vld [vmem:[%s351 + $0x14] sm:$0xf]
      %v2995 = vld [vmem:[%s351 + $0x18] sm:$0xf]
      %v2996 = vld [vmem:[%s351 + $0x1c] sm:$0xf]
      %v2997 = vld [vmem:[%s351 + $0x20] sm:$0xf]
      %v2998 = vld [vmem:[%s351 + $0x24] sm:$0xf]
      %v2999 = vld [vmem:[%s351 + $0x28] sm:$0xf]
      %v3000 = vld [vmem:[%s351 + $0x2c] sm:$0xf]
      %v3001 = vld [vmem:[%s351 + $0x30] sm:$0xf]
      %v3002 = vld [vmem:[%s351 + $0x34] sm:$0xf]
      %v3003 = vld [vmem:[%s351 + $0x38] sm:$0xf]
      %v3004 = vld [vmem:[%s351 + $0x3c] sm:$0xf]
      %v3005 = vld [vmem:[%s351 + $0x40] sm:$0xf]
      %v3006 = vld [vmem:[%s351 + $0x44] sm:$0xf]
      %v3007 = vld [vmem:[%s351 + $0x48] sm:$0xf]
      %v3008 = vld [vmem:[%s351 + $0x4c] sm:$0xf]
      %v3009 = vld [vmem:[%s351 + $0x50] sm:$0xf]
      %v3010 = vld [vmem:[%s351 + $0x54] sm:$0xf]
      %v3011 = vld [vmem:[%s351 + $0x58] sm:$0xf]
      %v3012 = vld [vmem:[%s351 + $0x5c] sm:$0xf]
      %v3013 = vld [vmem:[%s351 + $0x60] sm:$0xf]
      %v3014 = vld [vmem:[%s351 + $0x64] sm:$0xf]
      %v3015 = vld [vmem:[%s351 + $0x68] sm:$0xf]
      %v3016 = vld [vmem:[%s351 + $0x6c] sm:$0xf]
      %v3017 = vld [vmem:[%s351 + $0x70] sm:$0xf]
      %v3018 = vld [vmem:[%s351 + $0x74] sm:$0xf]
      %v3019 = vld [vmem:[%s351 + $0x78] sm:$0xf]
      %v3020 = vld [vmem:[%s351 + $0x7c] sm:$0xf]
      %v3021 = vld [vmem:[%s351 + $0x80] sm:$0xf]
      %v3022 = vld [vmem:[%s351 + $0x84] sm:$0xf]
      %v3023 = vld [vmem:[%s351 + $0x88] sm:$0xf]
      %v3024 = vld [vmem:[%s351 + $0x8c] sm:$0xf]
      %v3025 = vld [vmem:[%s351 + $0x90] sm:$0xf]
      %v3026 = vld [vmem:[%s351 + $0x94] sm:$0xf]
      %v3027 = vld [vmem:[%s351 + $0x98] sm:$0xf]
      %v3028 = vld [vmem:[%s351 + $0x9c] sm:$0xf]
      %v3029 = vld [vmem:[%s351 + $0xa0] sm:$0xf]
      %v3030 = vld [vmem:[%s351 + $0xa4] sm:$0xf]
      %v3031 = vld [vmem:[%s351 + $0xa8] sm:$0xf]
      %v3032 = vld [vmem:[%s351 + $0xac] sm:$0xf]
      %v3033 = vld [vmem:[%s351 + $0xb0] sm:$0xf]
      %v3034 = vld [vmem:[%s351 + $0xb4] sm:$0xf]
      %v3035 = vld [vmem:[%s351 + $0xb8] sm:$0xf]
      %v3036 = vld [vmem:[%s351 + $0xbc] sm:$0xf]
      %v3037 = vld [vmem:[%s351 + $0xc0] sm:$0xf]
      %v3038 = vld [vmem:[%s351 + $0xc4] sm:$0xf]
      %v3039 = vld [vmem:[%s351 + $0xc8] sm:$0xf]
      %v3040 = vld [vmem:[%s351 + $0xcc] sm:$0xf]
      %v3041 = vld [vmem:[%s351 + $0xd0] sm:$0xf]
      %v3042 = vld [vmem:[%s351 + $0xd4] sm:$0xf]
      %v3043 = vld [vmem:[%s351 + $0xd8] sm:$0xf]
      %v3044 = vld [vmem:[%s351 + $0xdc] sm:$0xf]
      %v3045 = vld [vmem:[%s351 + $0xe0] sm:$0xf]
      %v3046 = vld [vmem:[%s351 + $0xe4] sm:$0xf]
      %v3047 = vld [vmem:[%s351 + $0xe8] sm:$0xf]
      %v3048 = vld [vmem:[%s351 + $0xec] sm:$0xf]
      %v3049 = vld [vmem:[%s351 + $0xf0] sm:$0xf]
      %v3050 = vld [vmem:[%s351 + $0xf4] sm:$0xf]
      %v3051 = vld [vmem:[%s351 + $0xf8] sm:$0xf]
      %v3052 = vld [vmem:[%s351 + $0xfc] sm:$0xf]
      %v3117 = vunpack.c.l.b16 %v2989
      %v3118 = vunpack.c.l.b16 %v2990
      %v3119 = vunpack.c.l.b16 %v2991
      %v3120 = vunpack.c.l.b16 %v2992
      %v3121 = vunpack.c.l.b16 %v2993
      %v3122 = vunpack.c.l.b16 %v2994
      %v3123 = vunpack.c.l.b16 %v2995
      %v3124 = vunpack.c.l.b16 %v2996
      %v3125 = vunpack.c.l.b16 %v2997
      %v3126 = vunpack.c.l.b16 %v2998
      %v3127 = vunpack.c.l.b16 %v2999
      %v3128 = vunpack.c.l.b16 %v3000
      %v3129 = vunpack.c.l.b16 %v3001
      %v3130 = vunpack.c.l.b16 %v3002
      %v3131 = vunpack.c.l.b16 %v3003
      %v3132 = vunpack.c.l.b16 %v3004
      %v3133 = vunpack.c.l.b16 %v3005
      %v3134 = vunpack.c.l.b16 %v3006
      %v3135 = vunpack.c.l.b16 %v3007
      %v3136 = vunpack.c.l.b16 %v3008
      %v3137 = vunpack.c.l.b16 %v3009
      %v3138 = vunpack.c.l.b16 %v3010
      %v3139 = vunpack.c.l.b16 %v3011
      %v3140 = vunpack.c.l.b16 %v3012
      %v3141 = vunpack.c.l.b16 %v3013
      %v3142 = vunpack.c.l.b16 %v3014
      %v3143 = vunpack.c.l.b16 %v3015
      %v3144 = vunpack.c.l.b16 %v3016
      %v3145 = vunpack.c.l.b16 %v3017
      %v3146 = vunpack.c.l.b16 %v3018
      %v3147 = vunpack.c.l.b16 %v3019
      %v3148 = vunpack.c.l.b16 %v3020
      %v3149 = vunpack.c.l.b16 %v3021
      %v3150 = vunpack.c.l.b16 %v3022
      %v3151 = vunpack.c.l.b16 %v3023
      %v3152 = vunpack.c.l.b16 %v3024
      %v3153 = vunpack.c.l.b16 %v3025
      %v3154 = vunpack.c.l.b16 %v3026
      %v3155 = vunpack.c.l.b16 %v3027
      %v3156 = vunpack.c.l.b16 %v3028
      %v3157 = vunpack.c.l.b16 %v3029
      %v3158 = vunpack.c.l.b16 %v3030
      %v3159 = vunpack.c.l.b16 %v3031
      %v3160 = vunpack.c.l.b16 %v3032
      %v3161 = vunpack.c.l.b16 %v3033
      %v3162 = vunpack.c.l.b16 %v3034
      %v3163 = vunpack.c.l.b16 %v3035
      %v3164 = vunpack.c.l.b16 %v3036
      %v3165 = vunpack.c.l.b16 %v3037
      %v3166 = vunpack.c.l.b16 %v3038
      %v3167 = vunpack.c.l.b16 %v3039
      %v3168 = vunpack.c.l.b16 %v3040
      %v3169 = vunpack.c.l.b16 %v3041
      %v3170 = vunpack.c.l.b16 %v3042
      %v3171 = vunpack.c.l.b16 %v3043
      %v3172 = vunpack.c.l.b16 %v3044
      %v3173 = vunpack.c.l.b16 %v3045
      %v3174 = vunpack.c.l.b16 %v3046
      %v3175 = vunpack.c.l.b16 %v3047
      %v3176 = vunpack.c.l.b16 %v3048
      %v3177 = vunpack.c.l.b16 %v3049
      %v3178 = vunpack.c.l.b16 %v3050
      %v3179 = vunpack.c.l.b16 %v3051
      %v3180 = vunpack.c.l.b16 %v3052
      %v3181 = vpack.c.b16 %v3118, %v3117
      %v3182 = vpack.c.b16 %v3120, %v3119
      %v3183 = vpack.c.b16 %v3122, %v3121
      %v3184 = vpack.c.b16 %v3124, %v3123
      %v3185 = vpack.c.b16 %v3126, %v3125
      %v3186 = vpack.c.b16 %v3128, %v3127
      %v3187 = vpack.c.b16 %v3130, %v3129
      %v3188 = vpack.c.b16 %v3132, %v3131
      %v3189 = vpack.c.b16 %v3134, %v3133
      %v3190 = vpack.c.b16 %v3136, %v3135
      %v3191 = vpack.c.b16 %v3138, %v3137
      %v3192 = vpack.c.b16 %v3140, %v3139
      %v3193 = vpack.c.b16 %v3142, %v3141
      %v3194 = vpack.c.b16 %v3144, %v3143
      %v3195 = vpack.c.b16 %v3146, %v3145
      %v3196 = vpack.c.b16 %v3148, %v3147
      %v3197 = vpack.c.b16 %v3150, %v3149
      %v3198 = vpack.c.b16 %v3152, %v3151
      %v3199 = vpack.c.b16 %v3154, %v3153
      %v3200 = vpack.c.b16 %v3156, %v3155
      %v3201 = vpack.c.b16 %v3158, %v3157
      %v3202 = vpack.c.b16 %v3160, %v3159
      %v3203 = vpack.c.b16 %v3162, %v3161
      %v3204 = vpack.c.b16 %v3164, %v3163
      %v3205 = vpack.c.b16 %v3166, %v3165
      %v3206 = vpack.c.b16 %v3168, %v3167
      %v3207 = vpack.c.b16 %v3170, %v3169
      %v3208 = vpack.c.b16 %v3172, %v3171
      %v3209 = vpack.c.b16 %v3174, %v3173
      %v3210 = vpack.c.b16 %v3176, %v3175
      %v3211 = vpack.c.b16 %v3178, %v3177
      %v3212 = vpack.c.b16 %v3180, %v3179
      %3245 = vmatprep.subr.bf16.mxu0 0
      %3246 = vmatpush1.bf16.msra.mxu0 %v3188
      %3247 = vmatprep.subr.bf16.mxu0 0
      %3248 = vmatpush1.bf16.msra.mxu0 %v3187
      %3249 = vmatprep.subr.bf16.mxu0 0
      %3250 = vmatpush1.bf16.msra.mxu0 %v3186
      %3251 = vmatprep.subr.bf16.mxu0 0
      %3252 = vmatpush1.bf16.msra.mxu0 %v3185
      %3253 = vmatprep.subr.bf16.mxu0 0
      %3254 = vmatpush1.bf16.msra.mxu0 %v3184
      %3255 = vmatprep.subr.bf16.mxu0 0
      %3256 = vmatpush1.bf16.msra.mxu0 %v3183
      %3257 = vmatprep.subr.bf16.mxu0 0
      %3258 = vmatpush1.bf16.msra.mxu0 %v3182
      %3259 = vmatprep.subr.bf16.mxu0 0
      %3260 = vmatpush1.bf16.msra.mxu0 %v3181
      %3261 = vmatprep.subr.bf16.mxu0 0
      %3262 = vmatpush2.bf16.msra.mxu0 %v3196
      %3263 = vmatprep.subr.bf16.mxu0 0
      %3264 = vmatpush2.bf16.msra.mxu0 %v3195
      %3265 = vmatprep.subr.bf16.mxu0 0
      %3266 = vmatpush2.bf16.msra.mxu0 %v3194
      %3267 = vmatprep.subr.bf16.mxu0 0
      %3268 = vmatpush2.bf16.msra.mxu0 %v3193
      %3269 = vmatprep.subr.bf16.mxu0 0
      %3270 = vmatpush2.bf16.msra.mxu0 %v3192
      %3271 = vmatprep.subr.bf16.mxu0 0
      %3272 = vmatpush2.bf16.msra.mxu0 %v3191
      %3273 = vmatprep.subr.bf16.mxu0 0
      %3274 = vmatpush2.bf16.msra.mxu0 %v3190
      %3275 = vmatprep.subr.bf16.mxu0 0
      %3276 = vmatpush2.bf16.msra.mxu0 %v3189
      %3277 = vmatprep.mubr.bf16.mxu0 %v2986
      %3278 = vmatmul.mubr.bf16.gmra.mxu0 %v2985
      %v3279 = vpop.f32.mrf.mxu0
      %v3280 = vadd.f32 0.0, %v3279
      %v3281 = vpop.f32.mrf.mxu0
      %v3282 = vpop.f32.mrf.mxu0
      %v3283 = vpop.f32.mrf.mxu0
      %3284 = vdwg.mxu0
      %3285 = vmatprep.subr.bf16.mxu0 0
      %3286 = vmatpush1.bf16.msra.mxu0 %v3204
      %3287 = vmatprep.subr.bf16.mxu0 0
      %3288 = vmatpush1.bf16.msra.mxu0 %v3203
      %3289 = vmatprep.subr.bf16.mxu0 0
      %3290 = vmatpush1.bf16.msra.mxu0 %v3202
      %3291 = vmatprep.subr.bf16.mxu0 0
      %3292 = vmatpush1.bf16.msra.mxu0 %v3201
      %3293 = vmatprep.subr.bf16.mxu0 0
      %3294 = vmatpush1.bf16.msra.mxu0 %v3200
      %3295 = vmatprep.subr.bf16.mxu0 0
      %3296 = vmatpush1.bf16.msra.mxu0 %v3199
      %3297 = vmatprep.subr.bf16.mxu0 0
      %3298 = vmatpush1.bf16.msra.mxu0 %v3198
      %3299 = vmatprep.subr.bf16.mxu0 0
      %3300 = vmatpush1.bf16.msra.mxu0 %v3197
      %3301 = vmatprep.subr.bf16.mxu0 0
      %3302 = vmatpush2.bf16.msra.mxu0 %v3212
      %3303 = vmatprep.subr.bf16.mxu0 0
      %3304 = vmatpush2.bf16.msra.mxu0 %v3211
      %3305 = vmatprep.subr.bf16.mxu0 0
      %3306 = vmatpush2.bf16.msra.mxu0 %v3210
      %3307 = vmatprep.subr.bf16.mxu0 0
      %3308 = vmatpush2.bf16.msra.mxu0 %v3209
      %3309 = vmatprep.subr.bf16.mxu0 0
      %3310 = vmatpush2.bf16.msra.mxu0 %v3208
      %3311 = vmatprep.subr.bf16.mxu0 0
      %3312 = vmatpush2.bf16.msra.mxu0 %v3207
      %3313 = vmatprep.subr.bf16.mxu0 0
      %3314 = vmatpush2.bf16.msra.mxu0 %v3206
      %3315 = vmatprep.subr.bf16.mxu0 0
      %3316 = vmatpush2.bf16.msra.mxu0 %v3205
      %3317 = vmatprep.mubr.bf16.mxu0 %v2988
      %3318 = vmatmul.mubr.bf16.gmra.mxu0 %v2987
      %v3319 = vpop.f32.mrf.mxu0
      %v3320 = vadd.f32 %v3280, %v3319
      %v3321 = vpop.f32.mrf.mxu0
      %v3322 = vpop.f32.mrf.mxu0
      %v3323 = vpop.f32.mrf.mxu0
      %3324 = vdwg.mxu0
      %v3325 = vadd.f32 %v2631, %v3320
      %v3326 = vlaneseq
      %v3327 = vshrl.u32 %v3326, 7
      %v3328 = vsub.s32 0, %v3327
      %v3329 = vrot.slane %v371, %v3328
      %v3330 = vadd.f32 %v3325, %v3329
      %v3331 = vpack.c.bf16 %v3330, %v3330
      %3332 = vst [vmem:[%s7] sm:$0xf] %v3331
      // Predicated region
      $region53: #{multi_encoder_forward.11} parent=47 // pred_check
        %p3333 = pneg %p208
      $region54: #{multi_encoder_forward.11} parent=47 // pred_check_branch
        %3335 = sbr.rel (%p3333) target = $region56
      $region55: #{multi_encoder_forward.11} parent=47 // pred_region
        _
      $region56: #{multi_encoder_forward.11} parent=47 // pred_fallthru
        _
      // Predicated region
      $region57: #{multi_encoder_forward.11} parent=47 // pred_check
        %p3336 = pneg %p208
      $region58: #{multi_encoder_forward.11} parent=47 // pred_check_branch
        %3338 = sbr.rel (%p3336) target = $region60
      $region59: #{multi_encoder_forward.11} parent=47 // pred_region
        _
      $region60: #{multi_encoder_forward.11} parent=47 // pred_fallthru
        _
    $region48: #{multi_encoder_forward.11} parent=5 // pred_fallthru
      _
    %p3339 = scmp.le.s32.totalorder 2, %s13
    // Predicated region
    $region61: #{multi_encoder_forward.11} parent=5 // pred_check
      %p3340 = pneg %p3339
    $region62: #{multi_encoder_forward.11} parent=5 // pred_check_branch
      %3342 = sbr.rel (%p3340) target = $region64
    $region63: #{multi_encoder_forward.11} parent=5 // pred_region
      %s3343 = ssub.s32 %s13, 2
    $region64: #{multi_encoder_forward.11} parent=5 // pred_fallthru
      _
  $region6: #{multi_encoder_forward.11} parent=0 // loop_footer
    %s17 = sadd.s32 1, %s13
  $region7: #{multi_encoder_forward.11} parent=0 // loop_footer_branch
    %12 = sbr.rel target = $region3
  $region8: #{multi_encoder_forward.11} parent=0 // loop_exit
    _

// kernel: multi_encoder_forward.13
$region0: #{multi_encoder_forward.13}
  #allocation0 [shape = 'u32[]', space=smem, size = 0x4, offset = 0x4, fixed_abs, tag = 'smem constant byte address 0x4 - core index']
  #allocation1 [shape = 'u32[144,128]{1,0:T(1,128)}', space=vmem, size = 0x12000, scoped, tag = 'internal scratch']
  %s0 = inlined_call_operand.vmem [shape: bf16[8,64], index: 0, kind: input, shape index: {}]
  %s1 = inlined_call_operand.vmem [shape: bf16[2,64,192], index: 1, kind: input, shape index: {}]
  %s2 = inlined_call_operand.vmem [shape: bf16[2,64,64], index: 2, kind: input, shape index: {}]
  %s3 = inlined_call_operand.vmem [shape: bf16[2,64,256], index: 3, kind: input, shape index: {}]
  %s4 = inlined_call_operand.vmem [shape: bf16[2,256,64], index: 4, kind: input, shape index: {}]
  %s5 = inlined_call_operand.vmem [shape: f32[2,9,64], index: 5, kind: input, shape index: {}]
  %s6 = inlined_call_operand.vmem [shape: f32[2,1,256], index: 6, kind: input, shape index: {}]
  %s7 = inlined_call_operand.vmem [shape: bf16[8,64], index: 7, kind: output, shape index: {}]
  %s8 = sld [smem:[#allocation0]]
  $region65: #{multi_encoder_forward.13} parent=0
    _
  %s10 = ssub.s32 1, %s8
  %s11 = scalar_select 0, %s10, %s8
  loop: start=0, step=1, limit=4
  $region2: #{multi_encoder_forward.13} parent=0 // loop_pre_header
    _
  $region3: #{multi_encoder_forward.13} parent=0 // loop_header
    %s13 = sphi 0, %s17
    %p14 = scmp.ge.s32.totalorder %s13, 4
    %s21 = sphi 0, %s21
    %s23 = sphi 0, %s21
    %s24 = sphi 0, %s23
    %s38 = sphi 0, %s24
    %s44 = sphi 0, %s46
    %s47 = sphi 0, %s44
    %s48 = sphi 0, %s47
    %s64 = sphi 0, %s48
    %s70 = sphi 0, %s72
    %s73 = sphi 0, %s70
    %s74 = sphi 0, %s73
    %s90 = sphi 0, %s74
    %s96 = sphi 0, %s98
    %s99 = sphi 0, %s96
    %s100 = sphi 0, %s99
    %s116 = sphi 0, %s100
    %s122 = sphi 0, %s124
    %s125 = sphi 0, %s122
    %s126 = sphi 0, %s125
    %s142 = sphi 0, %s126
    %s148 = sphi 0, %s150
    %s151 = sphi 0, %s148
    %s152 = sphi 0, %s151
    %s168 = sphi 0, %s152
    %s174 = sphi 0, %s176
    %s177 = sphi 0, %s174
    %s178 = sphi 0, %s177
    %s194 = sphi 0, %s178
    %s198 = sphi 0, %s198
    %s200 = sphi 0, %s198
    %s201 = sphi 0, %s200
    %s215 = sphi 0, %s201
  $region4: #{multi_encoder_forward.13} parent=0 // loop_header_branch
    %16 = sbr.rel (%p14) target = $region8
  $region5: #{multi_encoder_forward.13} parent=0 // loop_body
    %s18 = ssub.s32 %s13, 1
    %s19 = ssub.s32 %s13, 2
    %s20 = sadd.s32 %s13, 1
    %s22 = sadd.s32 %s21, 1
    %p25 = scmp.eq.s32.totalorder %s13, 1
    %p26 = scmp.ne.s32.totalorder %s21, %s23
    %p27 = scmp.eq.s32.totalorder %s13, 0
    %p28 = por %p26, %p27
    %p29 = scmp.ne.s32.totalorder %s21, %s23
    %p30 = scmp.eq.s32.totalorder %s18, 1
    %p31 = por %p29, %p30
    %p32 = scmp.ne.s32.totalorder %s23, %s24
    %p33 = scmp.eq.s32.totalorder %s18, 0
    %p34 = por %p32, %p33
    %p35 = scmp.ne.s32.totalorder %s23, %s24
    %p36 = scmp.eq.s32.totalorder %s19, 1
    %p37 = por %p35, %p36
    %p39 = scmp.ne.s32.totalorder %s24, %s38
    %p40 = scmp.eq.s32.totalorder %s19, 0
    %p41 = por %p39, %p40
    %s42 = ssub.s32 %s13, %s20
    %p43 = scmp.eq.s32.totalorder %s42, 0
    %s45 = sadd.s32 %s44, 1
    %s46 = scalar_select %p43, %s44, %s45
    %p49 = pneg %p43
    %p50 = scmp.eq.s32.totalorder %s13, 1
    %p51 = por %p49, %p50
    %p52 = scmp.ne.s32.totalorder %s44, %s47
    %p53 = scmp.eq.s32.totalorder %s13, 0
    %p54 = por %p52, %p53
    %p55 = scmp.ne.s32.totalorder %s44, %s47
    %p56 = scmp.eq.s32.totalorder %s18, 1
    %p57 = por %p55, %p56
    %p58 = scmp.ne.s32.totalorder %s47, %s48
    %p59 = scmp.eq.s32.totalorder %s18, 0
    %p60 = por %p58, %p59
    %p61 = scmp.ne.s32.totalorder %s47, %s48
    %p62 = scmp.eq.s32.totalorder %s19, 1
    %p63 = por %p61, %p62
    %p65 = scmp.ne.s32.totalorder %s48, %s64
    %p66 = scmp.eq.s32.totalorder %s19, 0
    %p67 = por %p65, %p66
    %s68 = ssub.s32 %s13, %s20
    %p69 = scmp.eq.s32.totalorder %s68, 0
    %s71 = sadd.s32 %s70, 1
    %s72 = scalar_select %p69, %s70, %s71
    %p75 = pneg %p69
    %p76 = scmp.eq.s32.totalorder %s13, 1
    %p77 = por %p75, %p76
    %p78 = scmp.ne.s32.totalorder %s70, %s73
    %p79 = scmp.eq.s32.totalorder %s13, 0
    %p80 = por %p78, %p79
    %p81 = scmp.ne.s32.totalorder %s70, %s73
    %p82 = scmp.eq.s32.totalorder %s18, 1
    %p83 = por %p81, %p82
    %p84 = scmp.ne.s32.totalorder %s73, %s74
    %p85 = scmp.eq.s32.totalorder %s18, 0
    %p86 = por %p84, %p85
    %p87 = scmp.ne.s32.totalorder %s73, %s74
    %p88 = scmp.eq.s32.totalorder %s19, 1
    %p89 = por %p87, %p88
    %p91 = scmp.ne.s32.totalorder %s74, %s90
    %p92 = scmp.eq.s32.totalorder %s19, 0
    %p93 = por %p91, %p92
    %s94 = ssub.s32 %s13, %s20
    %p95 = scmp.eq.s32.totalorder %s94, 0
    %s97 = sadd.s32 %s96, 1
    %s98 = scalar_select %p95, %s96, %s97
    %p101 = pneg %p95
    %p102 = scmp.eq.s32.totalorder %s13, 1
    %p103 = por %p101, %p102
    %p104 = scmp.ne.s32.totalorder %s96, %s99
    %p105 = scmp.eq.s32.totalorder %s13, 0
    %p106 = por %p104, %p105
    %p107 = scmp.ne.s32.totalorder %s96, %s99
    %p108 = scmp.eq.s32.totalorder %s18, 1
    %p109 = por %p107, %p108
    %p110 = scmp.ne.s32.totalorder %s99, %s100
    %p111 = scmp.eq.s32.totalorder %s18, 0
    %p112 = por %p110, %p111
    %p113 = scmp.ne.s32.totalorder %s99, %s100
    %p114 = scmp.eq.s32.totalorder %s19, 1
    %p115 = por %p113, %p114
    %p117 = scmp.ne.s32.totalorder %s100, %s116
    %p118 = scmp.eq.s32.totalorder %s19, 0
    %p119 = por %p117, %p118
    %s120 = ssub.s32 %s13, %s20
    %p121 = scmp.eq.s32.totalorder %s120, 0
    %s123 = sadd.s32 %s122, 1
    %s124 = scalar_select %p121, %s122, %s123
    %p127 = pneg %p121
    %p128 = scmp.eq.s32.totalorder %s13, 1
    %p129 = por %p127, %p128
    %p130 = scmp.ne.s32.totalorder %s122, %s125
    %p131 = scmp.eq.s32.totalorder %s13, 0
    %p132 = por %p130, %p131
    %p133 = scmp.ne.s32.totalorder %s122, %s125
    %p134 = scmp.eq.s32.totalorder %s18, 1
    %p135 = por %p133, %p134
    %p136 = scmp.ne.s32.totalorder %s125, %s126
    %p137 = scmp.eq.s32.totalorder %s18, 0
    %p138 = por %p136, %p137
    %p139 = scmp.ne.s32.totalorder %s125, %s126
    %p140 = scmp.eq.s32.totalorder %s19, 1
    %p141 = por %p139, %p140
    %p143 = scmp.ne.s32.totalorder %s126, %s142
    %p144 = scmp.eq.s32.totalorder %s19, 0
    %p145 = por %p143, %p144
    %s146 = ssub.s32 %s13, %s20
    %p147 = scmp.eq.s32.totalorder %s146, 0
    %s149 = sadd.s32 %s148, 1
    %s150 = scalar_select %p147, %s148, %s149
    %p153 = pneg %p147
    %p154 = scmp.eq.s32.totalorder %s13, 1
    %p155 = por %p153, %p154
    %p156 = scmp.ne.s32.totalorder %s148, %s151
    %p157 = scmp.eq.s32.totalorder %s13, 0
    %p158 = por %p156, %p157
    %p159 = scmp.ne.s32.totalorder %s148, %s151
    %p160 = scmp.eq.s32.totalorder %s18, 1
    %p161 = por %p159, %p160
    %p162 = scmp.ne.s32.totalorder %s151, %s152
    %p163 = scmp.eq.s32.totalorder %s18, 0
    %p164 = por %p162, %p163
    %p165 = scmp.ne.s32.totalorder %s151, %s152
    %p166 = scmp.eq.s32.totalorder %s19, 1
    %p167 = por %p165, %p166
    %p169 = scmp.ne.s32.totalorder %s152, %s168
    %p170 = scmp.eq.s32.totalorder %s19, 0
    %p171 = por %p169, %p170
    %s172 = ssub.s32 %s13, %s20
    %p173 = scmp.eq.s32.totalorder %s172, 0
    %s175 = sadd.s32 %s174, 1
    %s176 = scalar_select %p173, %s174, %s175
    %p179 = pneg %p173
    %p180 = scmp.eq.s32.totalorder %s13, 1
    %p181 = por %p179, %p180
    %p182 = scmp.ne.s32.totalorder %s174, %s177
    %p183 = scmp.eq.s32.totalorder %s13, 0
    %p184 = por %p182, %p183
    %p185 = scmp.ne.s32.totalorder %s174, %s177
    %p186 = scmp.eq.s32.totalorder %s18, 1
    %p187 = por %p185, %p186
    %p188 = scmp.ne.s32.totalorder %s177, %s178
    %p189 = scmp.eq.s32.totalorder %s18, 0
    %p190 = por %p188, %p189
    %p191 = scmp.ne.s32.totalorder %s177, %s178
    %p192 = scmp.eq.s32.totalorder %s19, 1
    %p193 = por %p191, %p192
    %p195 = scmp.ne.s32.totalorder %s178, %s194
    %p196 = scmp.eq.s32.totalorder %s19, 0
    %p197 = por %p195, %p196
    %s199 = sadd.s32 %s198, 1
    %p202 = scmp.eq.s32.totalorder %s13, 1
    %p203 = scmp.ne.s32.totalorder %s198, %s200
    %p204 = scmp.eq.s32.totalorder %s13, 0
    %p205 = por %p203, %p204
    %p206 = scmp.ne.s32.totalorder %s198, %s200
    %p207 = scmp.eq.s32.totalorder %s18, 1
    %p208 = por %p206, %p207
    %p209 = scmp.ne.s32.totalorder %s200, %s201
    %p210 = scmp.eq.s32.totalorder %s18, 0
    %p211 = por %p209, %p210
    %p212 = scmp.ne.s32.totalorder %s200, %s201
    %p213 = scmp.eq.s32.totalorder %s19, 1
    %p214 = por %p212, %p213
    %p216 = scmp.ne.s32.totalorder %s201, %s215
    %p217 = scmp.eq.s32.totalorder %s19, 0
    %p218 = por %p216, %p217
    %p219 = scmp.le.s32.totalorder 1, %s13
    %p220 = scmp.lt.s32.totalorder %s13, 3
    %p221 = pnand %p219, %p220
    %p222 = pneg %p221
    // Predicated region
    $region9: #{multi_encoder_forward.13} parent=5 // pred_check
      _
    $region10: #{multi_encoder_forward.13} parent=5 // pred_check_branch
      %224 = sbr.rel (%p221) target = $region12
    $region11: #{multi_encoder_forward.13} parent=5 // pred_region
      %s225 = ssub.s32 %s13, 1
      // Predicated region
      $region13: #{multi_encoder_forward.13} parent=11 // pred_check
        %p226 = pneg %p34
      $region14: #{multi_encoder_forward.13} parent=11 // pred_check_branch
        %228 = sbr.rel (%p226) target = $region16
      $region15: #{multi_encoder_forward.13} parent=11 // pred_region
        _
      $region16: #{multi_encoder_forward.13} parent=11 // pred_fallthru
        _
    $region12: #{multi_encoder_forward.13} parent=5 // pred_fallthru
      _
    %p229 = scmp.lt.s32.totalorder %s13, 2
    // Predicated region
    $region17: #{multi_encoder_forward.13} parent=5 // pred_check
      %p230 = pneg %p229
    $region18: #{multi_encoder_forward.13} parent=5 // pred_check_branch
      %232 = sbr.rel (%p230) target = $region20
    $region19: #{multi_encoder_forward.13} parent=5 // pred_region
      // Predicated region
      $region21: #{multi_encoder_forward.13} parent=19 // pred_check
        %p233 = pneg %p54
      $region22: #{multi_encoder_forward.13} parent=19 // pred_check_branch
        %235 = sbr.rel (%p233) target = $region24
      $region23: #{multi_encoder_forward.13} parent=19 // pred_region
        %p236 = scmp.lt.s32.totalorder %s13, 1
        %s237 = scalar_select %p236, %s13, 1
        %s238 = smul.addr %s237, 16
        %s239 = smul.addr %s238, 4
        %s240 = scalar_lea.vmem %s1, %s239
      $region24: #{multi_encoder_forward.13} parent=19 // pred_fallthru
        _
      // Predicated region
      $region25: #{multi_encoder_forward.13} parent=19 // pred_check
        %p241 = pneg %p80
      $region26: #{multi_encoder_forward.13} parent=19 // pred_check_branch
        %243 = sbr.rel (%p241) target = $region28
      $region27: #{multi_encoder_forward.13} parent=19 // pred_region
        %p244 = scmp.lt.s32.totalorder %s13, 1
        %s245 = scalar_select %p244, %s13, 1
        %s246 = smul.addr %s245, 8
        %s247 = smul.addr %s246, 4
        %s248 = scalar_lea.vmem %s2, %s247
      $region28: #{multi_encoder_forward.13} parent=19 // pred_fallthru
        _
      // Predicated region
      $region29: #{multi_encoder_forward.13} parent=19 // pred_check
        %p249 = pneg %p106
      $region30: #{multi_encoder_forward.13} parent=19 // pred_check_branch
        %251 = sbr.rel (%p249) target = $region32
      $region31: #{multi_encoder_forward.13} parent=19 // pred_region
        %p252 = scmp.lt.s32.totalorder %s13, 1
        %s253 = scalar_select %p252, %s13, 1
        %s254 = smul.addr %s253, 16
        %s255 = smul.addr %s254, 4
        %s256 = scalar_lea.vmem %s3, %s255
      $region32: #{multi_encoder_forward.13} parent=19 // pred_fallthru
        _
      // Predicated region
      $region33: #{multi_encoder_forward.13} parent=19 // pred_check
        %p257 = pneg %p132
      $region34: #{multi_encoder_forward.13} parent=19 // pred_check_branch
        %259 = sbr.rel (%p257) target = $region36
      $region35: #{multi_encoder_forward.13} parent=19 // pred_region
        %p260 = scmp.lt.s32.totalorder %s13, 1
        %s261 = scalar_select %p260, %s13, 1
        %s262 = smul.addr %s261, 32
        %s263 = smul.addr %s262, 4
        %s264 = scalar_lea.vmem %s4, %s263
      $region36: #{multi_encoder_forward.13} parent=19 // pred_fallthru
        _
      // Predicated region
      $region37: #{multi_encoder_forward.13} parent=19 // pred_check
        %p265 = pneg %p158
      $region38: #{multi_encoder_forward.13} parent=19 // pred_check_branch
        %267 = sbr.rel (%p265) target = $region40
      $region39: #{multi_encoder_forward.13} parent=19 // pred_region
        %p268 = scmp.lt.s32.totalorder %s13, 1
        %s269 = scalar_select %p268, %s13, 1
        %s270 = smul.addr %s269, 2
        %s271 = smul.addr %s270, 8
        %s272 = scalar_lea.vmem %s5, %s271
      $region40: #{multi_encoder_forward.13} parent=19 // pred_fallthru
        _
      // Predicated region
      $region41: #{multi_encoder_forward.13} parent=19 // pred_check
        %p273 = pneg %p184
      $region42: #{multi_encoder_forward.13} parent=19 // pred_check_branch
        %275 = sbr.rel (%p273) target = $region44
      $region43: #{multi_encoder_forward.13} parent=19 // pred_region
        %p276 = scmp.lt.s32.totalorder %s13, 1
        %s277 = scalar_select %p276, %s13, 1
        %s278 = smul.addr %s277, 2
        %s279 = scalar_lea.vmem %s6, %s278
      $region44: #{multi_encoder_forward.13} parent=19 // pred_fallthru
        _
    $region20: #{multi_encoder_forward.13} parent=5 // pred_fallthru
      _
    %p280 = scmp.le.s32.totalorder 1, %s13
    %p281 = scmp.lt.s32.totalorder %s13, 3
    %p282 = pnand %p280, %p281
    %p283 = pneg %p282
    // Predicated region
    $region45: #{multi_encoder_forward.13} parent=5 // pred_check
      _
    $region46: #{multi_encoder_forward.13} parent=5 // pred_check_branch
      %285 = sbr.rel (%p282) target = $region48
    $region47: #{multi_encoder_forward.13} parent=5 // pred_region
      %s286 = ssub.s32 %s13, 1
      %p287 = pneg %p34
      %p288 = pneg %p31
      %p289 = scmp.lt.s32.totalorder %s18, 1
      %s290 = scalar_select %p289, %s18, 1
      %s291 = smul.addr %s290, 16
      %s292 = smul.addr %s291, 4
      %s293 = scalar_lea.vmem %s1, %s292
      %p294 = pneg %p60
      %p295 = pneg %p57
      %p296 = scmp.lt.s32.totalorder %s18, 1
      %s297 = scalar_select %p296, %s18, 1
      %s298 = smul.addr %s297, 8
      %s299 = smul.addr %s298, 4
      %s300 = scalar_lea.vmem %s2, %s299
      %p301 = pneg %p86
      %p302 = pneg %p83
      %p303 = scmp.lt.s32.totalorder %s18, 1
      %s304 = scalar_select %p303, %s18, 1
      %s305 = smul.addr %s304, 16
      %s306 = smul.addr %s305, 4
      %s307 = scalar_lea.vmem %s3, %s306
      %p308 = pneg %p112
      %p309 = pneg %p109
      %p310 = scmp.lt.s32.totalorder %s18, 1
      %s311 = scalar_select %p310, %s18, 1
      %s312 = smul.addr %s311, 32
      %s313 = smul.addr %s312, 4
      %s314 = scalar_lea.vmem %s4, %s313
      %p315 = pneg %p138
      %p316 = pneg %p135
      %p317 = scmp.lt.s32.totalorder %s18, 1
      %s318 = scalar_select %p317, %s18, 1
      %s319 = smul.addr %s318, 2
      %s320 = smul.addr %s319, 8
      %s321 = scalar_lea.vmem %s5, %s320
      %p322 = pneg %p164
      %p323 = pneg %p161
      %p324 = scmp.lt.s32.totalorder %s18, 1
      %s325 = scalar_select %p324, %s18, 1
      %s326 = smul.addr %s325, 2
      %s327 = scalar_lea.vmem %s6, %s326
      %p328 = pneg %p190
      %p329 = pneg %p187
      %p330 = pneg %p211
      %p331 = pneg %p208
      %p332 = scmp.lt.s32.totalorder %s18, 1
      %s333 = scalar_select %p332, %s18, 1
      %s334 = smul.addr %s333, 16
      %s335 = smul.addr %s334, 4
      %s336 = scalar_lea.vmem %s1, %s335
      %p337 = scmp.lt.s32.totalorder %s18, 1
      %s338 = scalar_select %p337, %s18, 1
      %s339 = smul.addr %s338, 8
      %s340 = smul.addr %s339, 4
      %s341 = scalar_lea.vmem %s2, %s340
      %p342 = scmp.lt.s32.totalorder %s18, 1
      %s343 = scalar_select %p342, %s18, 1
      %s344 = smul.addr %s343, 16
      %s345 = smul.addr %s344, 4
      %s346 = scalar_lea.vmem %s3, %s345
      %p347 = scmp.lt.s32.totalorder %s18, 1
      %s348 = scalar_select %p347, %s18, 1
      %s349 = smul.addr %s348, 32
      %s350 = smul.addr %s349, 4
      %s351 = scalar_lea.vmem %s4, %s350
      %p352 = scmp.lt.s32.totalorder %s18, 1
      %s353 = scalar_select %p352, %s18, 1
      %s354 = smul.addr %s353, 2
      %s355 = smul.addr %s354, 8
      %s356 = scalar_lea.vmem %s5, %s355
      %p357 = scmp.lt.s32.totalorder %s18, 1
      %s358 = scalar_select %p357, %s18, 1
      %s359 = smul.addr %s358, 2
      %s360 = scalar_lea.vmem %s6, %s359
      %p362 = scmp.eq.s32.totalorder %s18, 0
      // Predicated region
      $region49: #{multi_encoder_forward.13} parent=47 // pred_check
        %p363 = pneg %p362
      $region50: #{multi_encoder_forward.13} parent=47 // pred_check_branch
        %365 = sbr.rel (%p363) target = $region52
      $region51: #{multi_encoder_forward.13} parent=47 // pred_region
        %v366 = vld [vmem:[%s0] sm:$0xf]
        %vm367 = vcmask 519168
        %368 = vst.msk [vmem:[%s7] sm:$0xf] %vm367, %v366
      $region52: #{multi_encoder_forward.13} parent=47 // pred_fallthru
        _
      %v369 = vld [vmem:[%s7] sm:$0xf]
      %v370 = vunpack.c.l.bf16 %v369
      %v371 = vld [vmem:[%s356] sm:$0xff]
      %v372 = vld [vmem:[%s356 + $0x8] sm:$0x1]
      %v373 = vld [vmem:[%s360] sm:$0x3]
      %vm374 = vcmask 523264
      %v375 = vsel %vm374, %v370, 0.0
      %376 = vadd.xlane.f32.xlu0 %v375
      %v377 = vpop.xlane.xlu0 %376
      %v378 = vrcp.pop 64.0
      %v379 = vmul.f32 %v377, %v378
      %v380 = vsub.f32 %v370, %v379
      %v381 = vmul.f32 %v380, %v380
      %v382 = vsel %vm374, %v381, 0.0
      %383 = vadd.xlane.f32.xlu0 %v382
      %v384 = vpop.xlane.xlu0 %383
      %v385 = vmul.f32 %v384, %v378
      %v386 = vadd.f32 %v385, 1e-05
      %v387 = vrsqrt.pop %v386
      %v388 = vmul.f32 %v380, %v387
      %v389 = vlaneseq
      %v390 = vshrl.u32 %v389, 7
      %v391 = vsub.s32 0, %v390
      %v392 = vrot.slane %v371, %v391
      %v393 = vmul.f32 %v388, %v392
      %v394 = vlaneseq
      %v395 = vshrl.u32 %v394, 7
      %v396 = vsub.s32 1, %v395
      %v397 = vrot.slane %v371, %v396
      %v398 = vadd.f32 %v393, %v397
      %v399 = vpack.c.bf16 %v398, %v398
      %v400 = vld [vmem:[%s336] sm:$0xff]
      %v401 = vld [vmem:[%s336 + $0x8] sm:$0xff]
      %v402 = vld [vmem:[%s336 + $0x10] sm:$0xff]
      %v403 = vld [vmem:[%s336 + $0x18] sm:$0xff]
      %v404 = vld [vmem:[%s336 + $0x20] sm:$0xff]
      %v405 = vld [vmem:[%s336 + $0x28] sm:$0xff]
      %v406 = vld [vmem:[%s336 + $0x30] sm:$0xff]
      %v407 = vld [vmem:[%s336 + $0x38] sm:$0xff]
      %v416 = vunpack.c.l.b16 %v400
      %v417 = vunpack.c.h.b16 %v400
      %v418 = vunpack.c.l.b16 %v401
      %v419 = vunpack.c.h.b16 %v401
      %v420 = vunpack.c.l.b16 %v402
      %v421 = vunpack.c.h.b16 %v402
      %v422 = vunpack.c.l.b16 %v403
      %v423 = vunpack.c.h.b16 %v403
      %v424 = vunpack.c.l.b16 %v404
      %v425 = vunpack.c.h.b16 %v404
      %v426 = vunpack.c.l.b16 %v405
      %v427 = vunpack.c.h.b16 %v405
      %v428 = vunpack.c.l.b16 %v406
      %v429 = vunpack.c.h.b16 %v406
      %v430 = vunpack.c.l.b16 %v407
      %v431 = vunpack.c.h.b16 %v407
      %v432 = vpack.c.b16 %v418, %v416
      %v433 = vpack.c.b16 %v419, %v417
      %v434 = vpack.c.b16 %v422, %v420
      %v435 = vpack.c.b16 %v423, %v421
      %v436 = vpack.c.b16 %v426, %v424
      %v437 = vpack.c.b16 %v427, %v425
      %v438 = vpack.c.b16 %v430, %v428
      %v439 = vpack.c.b16 %v431, %v429
      %v449 = vsel %vm374, %v399, 0
      %451 = vmatprep.subr.bf16.mxu0 0
      %452 = vmatpush1.bf16.msra.mxu0 0
      %453 = vmatprep.subr.bf16.mxu0 0
      %454 = vmatpush1.bf16.msra.mxu0 0
      %455 = vmatprep.subr.bf16.mxu0 0
      %456 = vmatpush1.bf16.msra.mxu0 0
      %457 = vmatprep.subr.bf16.mxu0 0
      %458 = vmatpush1.bf16.msra.mxu0 0
      %459 = vmatprep.subr.bf16.mxu0 %v439
      %460 = vmatpush1.bf16.msra.mxu0 %v438
      %461 = vmatprep.subr.bf16.mxu0 %v437
      %462 = vmatpush1.bf16.msra.mxu0 %v436
      %463 = vmatprep.subr.bf16.mxu0 %v435
      %464 = vmatpush1.bf16.msra.mxu0 %v434
      %465 = vmatprep.subr.bf16.mxu0 %v433
      %466 = vmatpush1.bf16.msra.mxu0 %v432
      %467 = vmatprep.subr.bf16.mxu0 0
      %468 = vmatpush2.bf16.msra.mxu0 0
      %469 = vmatprep.subr.bf16.mxu0 0
      %470 = vmatpush2.bf16.msra.mxu0 0
      %471 = vmatprep.subr.bf16.mxu0 0
      %472 = vmatpush2.bf16.msra.mxu0 0
      %473 = vmatprep.subr.bf16.mxu0 0
      %474 = vmatpush2.bf16.msra.mxu0 0
      %475 = vmatprep.subr.bf16.mxu0 0
      %476 = vmatpush2.bf16.msra.mxu0 0
      %477 = vmatprep.subr.bf16.mxu0 0
      %478 = vmatpush2.bf16.msra.mxu0 0
      %479 = vmatprep.subr.bf16.mxu0 0
      %480 = vmatpush2.bf16.msra.mxu0 0
      %481 = vmatprep.subr.bf16.mxu0 0
      %482 = vmatpush2.bf16.msra.mxu0 0
      %483 = vmatprep.mubr.bf16.mxu0 0
      %484 = vmatmul.mubr.bf16.gmra.mxu0 %v449
      %v485 = vpop.f32.mrf.mxu0
      %v486 = vadd.f32 0.0, %v485
      %v487 = vpop.f32.mrf.mxu0
      %v488 = vadd.f32 0.0, %v487
      %v489 = vpop.f32.mrf.mxu0
      %v490 = vpop.f32.mrf.mxu0
      %491 = vdwg.mxu0
      %v492 = vlaneseq
      %v493 = vshrl.u32 %v492, 7
      %v494 = vsub.s32 4, %v493
      %v495 = vrot.slane %v371, %v494
      %v496 = vadd.f32 %v486, %v495
      %v498 = vcombine.high %v496, %v496
      %v500 = vlaneseq
      %v501 = vshrl.u32 %v500, 7
      %v502 = vsub.s32 5, %v501
      %v503 = vrot.slane %v371, %v502
      %505 = vrot.lane.b32.xlu0 %v503, 64
      %v506 = vpop.permute.xlu0 %505
      %v508 = vadd.f32 %v486, %v506
      %v510 = vcombine.high %v508, %v508
      %v512 = vlaneseq
      %v513 = vshrl.u32 %v512, 7
      %v514 = vsub.s32 6, %v513
      %v515 = vrot.slane %v371, %v514
      %v516 = vadd.f32 %v488, %v515
      %v518 = vcombine.high %v516, %v516
      %v520 = vpack.c.bf16 %v496, %v496
      %v521 = vpack.c.bf16 %v498, %v498
      %v522 = vpack.c.bf16 %v508, %v508
      %v523 = vpack.c.bf16 %v510, %v510
      %v524 = vpack.c.bf16 %v516, %v516
      %v525 = vpack.c.bf16 %v518, %v518
      %527 = vrot.lane.b32.xlu0 %v522, 64
      %v528 = vpop.permute.xlu0 %527
      %vm529 = vcmask 130048
      %v531 = vsel %vm529, %v520, 0
      %v534 = vsel %vm529, %v528, 0
      %536 = vmatprep.subr.bf16.mxu0 0
      %537 = vmatpush1.bf16.xpose.msra.mxu0 0
      %538 = vmatprep.subr.bf16.mxu0 0
      %539 = vmatpush1.bf16.xpose.msra.mxu0 0
      %540 = vmatprep.subr.bf16.mxu0 0
      %541 = vmatpush1.bf16.xpose.msra.mxu0 0
      %542 = vmatprep.subr.bf16.mxu0 0
      %543 = vmatpush1.bf16.xpose.msra.mxu0 0
      %544 = vmatprep.subr.bf16.mxu0 0
      %545 = vmatpush1.bf16.xpose.msra.mxu0 0
      %546 = vmatprep.subr.bf16.mxu0 0
      %547 = vmatpush1.bf16.xpose.msra.mxu0 0
      %548 = vmatprep.subr.bf16.mxu0 0
      %549 = vmatpush1.bf16.xpose.msra.mxu0 0
      %550 = vmatprep.subr.bf16.mxu0 0
      %551 = vmatpush1.bf16.xpose.msra.mxu0 %v534
      %552 = vmatprep.subr.bf16.mxu0 0
      %553 = vmatpush2.bf16.xpose.msra.mxu0 0
      %554 = vmatprep.subr.bf16.mxu0 0
      %555 = vmatpush2.bf16.xpose.msra.mxu0 0
      %556 = vmatprep.subr.bf16.mxu0 0
      %557 = vmatpush2.bf16.xpose.msra.mxu0 0
      %558 = vmatprep.subr.bf16.mxu0 0
      %559 = vmatpush2.bf16.xpose.msra.mxu0 0
      %560 = vmatprep.subr.bf16.mxu0 0
      %561 = vmatpush2.bf16.xpose.msra.mxu0 0
      %562 = vmatprep.subr.bf16.mxu0 0
      %563 = vmatpush2.bf16.xpose.msra.mxu0 0
      %564 = vmatprep.subr.bf16.mxu0 0
      %565 = vmatpush2.bf16.xpose.msra.mxu0 0
      %566 = vmatprep.subr.bf16.mxu0 0
      %567 = vmatpush2.bf16.xpose.msra.mxu0 0
      %568 = vmatprep.mubr.bf16.mxu0 0
      %569 = vmatmul.mubr.bf16.gmra.mxu0 %v531
      %v570 = vpop.f32.mrf.mxu0
      %v571 = vadd.f32 0.0, %v570
      %v572 = vpop.f32.mrf.mxu0
      %v573 = vpop.f32.mrf.mxu0
      %v574 = vpop.f32.mrf.mxu0
      %575 = vdwg.mxu0
      %577 = vrot.lane.b32.xlu0 %v523, 64
      %v578 = vpop.permute.xlu0 %577
      %v580 = vsel %vm529, %v521, 0
      %v583 = vsel %vm529, %v578, 0
      %585 = vmatprep.subr.bf16.mxu0 0
      %586 = vmatpush1.bf16.xpose.msra.mxu0 0
      %587 = vmatprep.subr.bf16.mxu0 0
      %588 = vmatpush1.bf16.xpose.msra.mxu0 0
      %589 = vmatprep.subr.bf16.mxu0 0
      %590 = vmatpush1.bf16.xpose.msra.mxu0 0
      %591 = vmatprep.subr.bf16.mxu0 0
      %592 = vmatpush1.bf16.xpose.msra.mxu0 0
      %593 = vmatprep.subr.bf16.mxu0 0
      %594 = vmatpush1.bf16.xpose.msra.mxu0 0
      %595 = vmatprep.subr.bf16.mxu0 0
      %596 = vmatpush1.bf16.xpose.msra.mxu0 0
      %597 = vmatprep.subr.bf16.mxu0 0
      %598 = vmatpush1.bf16.xpose.msra.mxu0 0
      %599 = vmatprep.subr.bf16.mxu0 0
      %600 = vmatpush1.bf16.xpose.msra.mxu0 %v583
      %601 = vmatprep.subr.bf16.mxu0 0
      %602 = vmatpush2.bf16.xpose.msra.mxu0 0
      %603 = vmatprep.subr.bf16.mxu0 0
      %604 = vmatpush2.bf16.xpose.msra.mxu0 0
      %605 = vmatprep.subr.bf16.mxu0 0
      %606 = vmatpush2.bf16.xpose.msra.mxu0 0
      %607 = vmatprep.subr.bf16.mxu0 0
      %608 = vmatpush2.bf16.xpose.msra.mxu0 0
      %609 = vmatprep.subr.bf16.mxu0 0
      %610 = vmatpush2.bf16.xpose.msra.mxu0 0
      %611 = vmatprep.subr.bf16.mxu0 0
      %612 = vmatpush2.bf16.xpose.msra.mxu0 0
      %613 = vmatprep.subr.bf16.mxu0 0
      %614 = vmatpush2.bf16.xpose.msra.mxu0 0
      %615 = vmatprep.subr.bf16.mxu0 0
      %616 = vmatpush2.bf16.xpose.msra.mxu0 0
      %617 = vmatprep.mubr.bf16.mxu0 0
      %618 = vmatmul.mubr.bf16.gmra.mxu0 %v580
      %v619 = vpop.f32.mrf.mxu0
      %v620 = vadd.f32 0.0, %v619
      %v621 = vpop.f32.mrf.mxu0
      %v622 = vpop.f32.mrf.mxu0
      %v623 = vpop.f32.mrf.mxu0
      %624 = vdwg.mxu0
      %v625 = vmul.f32 %v571, 0.25
      %v626 = vmul.f32 %v620, 0.25
      %vm627 = vcmask 27648
      %v628 = vsel %vm627, %v625, -inf
      %629 = vmax.xlane.f32.xlu0 %v628
      %v630 = vpop.xlane.xlu0 %629
      %v631 = vsel %vm627, %v626, -inf
      %632 = vmax.xlane.f32.xlu0 %v631
      %v633 = vpop.xlane.xlu0 %632
      %v634 = vsub.f32 %v625, %v630
      %v635 = vsub.f32 %v626, %v633
      %v636 = vmul.f32 %v634, 1.442695
      %v637 = vpow.pop %v636
      %v638 = vmul.f32 %v635, 1.442695
      %v639 = vpow.pop %v638
      %v640 = vsel %vm627, %v637, 0.0
      %641 = vadd.xlane.f32.xlu0 %v640
      %v642 = vpop.xlane.xlu0 %641
      %v643 = vsel %vm627, %v639, 0.0
      %644 = vadd.xlane.f32.xlu0 %v643
      %v645 = vpop.xlane.xlu0 %644
      %v646 = vrcp.pop %v642
      %v647 = vrcp.pop %v645
      %v648 = vmul.f32 %v637, %v646
      %v649 = vmul.f32 %v639, %v647
      %v650 = vpack.c.bf16 %v648, %v648
      %v651 = vpack.c.bf16 %v649, %v649
      %vm652 = vcmask 31744
      %v654 = vsel %vm652, %v650, 0
      %vm656 = vcmask 1041408
      %v658 = vsel %vm656, %v524, 0
      %660 = vmatprep.subr.bf16.mxu0 0
      %661 = vmatpush1.bf16.msra.mxu0 0
      %662 = vmatprep.subr.bf16.mxu0 0
      %663 = vmatpush1.bf16.msra.mxu0 0
      %664 = vmatprep.subr.bf16.mxu0 0
      %665 = vmatpush1.bf16.msra.mxu0 0
      %666 = vmatprep.subr.bf16.mxu0 0
      %667 = vmatpush1.bf16.msra.mxu0 0
      %668 = vmatprep.subr.bf16.mxu0 0
      %669 = vmatpush1.bf16.msra.mxu0 0
      %670 = vmatprep.subr.bf16.mxu0 0
      %671 = vmatpush1.bf16.msra.mxu0 0
      %672 = vmatprep.subr.bf16.mxu0 0
      %673 = vmatpush1.bf16.msra.mxu0 0
      %674 = vmatprep.subr.bf16.mxu0 0
      %675 = vmatpush1.bf16.msra.mxu0 %v658
      %676 = vmatprep.subr.bf16.mxu0 0
      %677 = vmatpush2.bf16.msra.mxu0 0
      %678 = vmatprep.subr.bf16.mxu0 0
      %679 = vmatpush2.bf16.msra.mxu0 0
      %680 = vmatprep.subr.bf16.mxu0 0
      %681 = vmatpush2.bf16.msra.mxu0 0
      %682 = vmatprep.subr.bf16.mxu0 0
      %683 = vmatpush2.bf16.msra.mxu0 0
      %684 = vmatprep.subr.bf16.mxu0 0
      %685 = vmatpush2.bf16.msra.mxu0 0
      %686 = vmatprep.subr.bf16.mxu0 0
      %687 = vmatpush2.bf16.msra.mxu0 0
      %688 = vmatprep.subr.bf16.mxu0 0
      %689 = vmatpush2.bf16.msra.mxu0 0
      %690 = vmatprep.subr.bf16.mxu0 0
      %691 = vmatpush2.bf16.msra.mxu0 0
      %692 = vmatprep.mubr.bf16.mxu0 0
      %693 = vmatmul.mubr.bf16.gmra.mxu0 %v654
      %v694 = vpop.f32.mrf.mxu0
      %v695 = vadd.f32 0.0, %v694
      %v696 = vpop.f32.mrf.mxu0
      %v697 = vpop.f32.mrf.mxu0
      %v698 = vpop.f32.mrf.mxu0
      %699 = vdwg.mxu0
      %v701 = vsel %vm652, %v651, 0
      %v704 = vsel %vm656, %v525, 0
      %706 = vmatprep.subr.bf16.mxu0 0
      %707 = vmatpush1.bf16.msra.mxu0 0
      %708 = vmatprep.subr.bf16.mxu0 0
      %709 = vmatpush1.bf16.msra.mxu0 0
      %710 = vmatprep.subr.bf16.mxu0 0
      %711 = vmatpush1.bf16.msra.mxu0 0
      %712 = vmatprep.subr.bf16.mxu0 0
      %713 = vmatpush1.bf16.msra.mxu0 0
      %714 = vmatprep.subr.bf16.mxu0 0
      %715 = vmatpush1.bf16.msra.mxu0 0
      %716 = vmatprep.subr.bf16.mxu0 0
      %717 = vmatpush1.bf16.msra.mxu0 0
      %718 = vmatprep.subr.bf16.mxu0 0
      %719 = vmatpush1.bf16.msra.mxu0 0
      %720 = vmatprep.subr.bf16.mxu0 0
      %721 = vmatpush1.bf16.msra.mxu0 %v704
      %722 = vmatprep.subr.bf16.mxu0 0
      %723 = vmatpush2.bf16.msra.mxu0 0
      %724 = vmatprep.subr.bf16.mxu0 0
      %725 = vmatpush2.bf16.msra.mxu0 0
      %726 = vmatprep.subr.bf16.mxu0 0
      %727 = vmatpush2.bf16.msra.mxu0 0
      %728 = vmatprep.subr.bf16.mxu0 0
      %729 = vmatpush2.bf16.msra.mxu0 0
      %730 = vmatprep.subr.bf16.mxu0 0
      %731 = vmatpush2.bf16.msra.mxu0 0
      %732 = vmatprep.subr.bf16.mxu0 0
      %733 = vmatpush2.bf16.msra.mxu0 0
      %734 = vmatprep.subr.bf16.mxu0 0
      %735 = vmatpush2.bf16.msra.mxu0 0
      %736 = vmatprep.subr.bf16.mxu0 0
      %737 = vmatpush2.bf16.msra.mxu0 0
      %738 = vmatprep.mubr.bf16.mxu0 0
      %739 = vmatmul.mubr.bf16.gmra.mxu0 %v701
      %v740 = vpop.f32.mrf.mxu0
      %v741 = vadd.f32 0.0, %v740
      %v742 = vpop.f32.mrf.mxu0
      %v743 = vpop.f32.mrf.mxu0
      %v744 = vpop.f32.mrf.mxu0
      %745 = vdwg.mxu0
      %747 = vrot.lane.b32.xlu0 %v520, 112
      %v748 = vpop.permute.xlu0 %747
      %749 = vrot.lane.b32.xlu0 %v522, 48
      %v750 = vpop.permute.xlu0 %749
      %v752 = vsel %vm529, %v748, 0
      %v755 = vsel %vm529, %v750, 0
      %757 = vmatprep.subr.bf16.mxu0 0
      %758 = vmatpush1.bf16.xpose.msra.mxu0 0
      %759 = vmatprep.subr.bf16.mxu0 0
      %760 = vmatpush1.bf16.xpose.msra.mxu0 0
      %761 = vmatprep.subr.bf16.mxu0 0
      %762 = vmatpush1.bf16.xpose.msra.mxu0 0
      %763 = vmatprep.subr.bf16.mxu0 0
      %764 = vmatpush1.bf16.xpose.msra.mxu0 0
      %765 = vmatprep.subr.bf16.mxu0 0
      %766 = vmatpush1.bf16.xpose.msra.mxu0 0
      %767 = vmatprep.subr.bf16.mxu0 0
      %768 = vmatpush1.bf16.xpose.msra.mxu0 0
      %769 = vmatprep.subr.bf16.mxu0 0
      %770 = vmatpush1.bf16.xpose.msra.mxu0 0
      %771 = vmatprep.subr.bf16.mxu0 0
      %772 = vmatpush1.bf16.xpose.msra.mxu0 %v755
      %773 = vmatprep.subr.bf16.mxu0 0
      %774 = vmatpush2.bf16.xpose.msra.mxu0 0
      %775 = vmatprep.subr.bf16.mxu0 0
      %776 = vmatpush2.bf16.xpose.msra.mxu0 0
      %777 = vmatprep.subr.bf16.mxu0 0
      %778 = vmatpush2.bf16.xpose.msra.mxu0 0
      %779 = vmatprep.subr.bf16.mxu0 0
      %780 = vmatpush2.bf16.xpose.msra.mxu0 0
      %781 = vmatprep.subr.bf16.mxu0 0
      %782 = vmatpush2.bf16.xpose.msra.mxu0 0
      %783 = vmatprep.subr.bf16.mxu0 0
      %784 = vmatpush2.bf16.xpose.msra.mxu0 0
      %785 = vmatprep.subr.bf16.mxu0 0
      %786 = vmatpush2.bf16.xpose.msra.mxu0 0
      %787 = vmatprep.subr.bf16.mxu0 0
      %788 = vmatpush2.bf16.xpose.msra.mxu0 0
      %789 = vmatprep.mubr.bf16.mxu0 0
      %790 = vmatmul.mubr.bf16.gmra.mxu0 %v752
      %v791 = vpop.f32.mrf.mxu0
      %v792 = vadd.f32 0.0, %v791
      %v793 = vpop.f32.mrf.mxu0
      %v794 = vpop.f32.mrf.mxu0
      %v795 = vpop.f32.mrf.mxu0
      %796 = vdwg.mxu0
      %798 = vrot.lane.b32.xlu0 %v521, 112
      %v799 = vpop.permute.xlu0 %798
      %800 = vrot.lane.b32.xlu0 %v523, 48
      %v801 = vpop.permute.xlu0 %800
      %v803 = vsel %vm529, %v799, 0
      %v806 = vsel %vm529, %v801, 0
      %808 = vmatprep.subr.bf16.mxu0 0
      %809 = vmatpush1.bf16.xpose.msra.mxu0 0
      %810 = vmatprep.subr.bf16.mxu0 0
      %811 = vmatpush1.bf16.xpose.msra.mxu0 0
      %812 = vmatprep.subr.bf16.mxu0 0
      %813 = vmatpush1.bf16.xpose.msra.mxu0 0
      %814 = vmatprep.subr.bf16.mxu0 0
      %815 = vmatpush1.bf16.xpose.msra.mxu0 0
      %816 = vmatprep.subr.bf16.mxu0 0
      %817 = vmatpush1.bf16.xpose.msra.mxu0 0
      %818 = vmatprep.subr.bf16.mxu0 0
      %819 = vmatpush1.bf16.xpose.msra.mxu0 0
      %820 = vmatprep.subr.bf16.mxu0 0
      %821 = vmatpush1.bf16.xpose.msra.mxu0 0
      %822 = vmatprep.subr.bf16.mxu0 0
      %823 = vmatpush1.bf16.xpose.msra.mxu0 %v806
      %824 = vmatprep.subr.bf16.mxu0 0
      %825 = vmatpush2.bf16.xpose.msra.mxu0 0
      %826 = vmatprep.subr.bf16.mxu0 0
      %827 = vmatpush2.bf16.xpose.msra.mxu0 0
      %828 = vmatprep.subr.bf16.mxu0 0
      %829 = vmatpush2.bf16.xpose.msra.mxu0 0
      %830 = vmatprep.subr.bf16.mxu0 0
      %831 = vmatpush2.bf16.xpose.msra.mxu0 0
      %832 = vmatprep.subr.bf16.mxu0 0
      %833 = vmatpush2.bf16.xpose.msra.mxu0 0
      %834 = vmatprep.subr.bf16.mxu0 0
      %835 = vmatpush2.bf16.xpose.msra.mxu0 0
      %836 = vmatprep.subr.bf16.mxu0 0
      %837 = vmatpush2.bf16.xpose.msra.mxu0 0
      %838 = vmatprep.subr.bf16.mxu0 0
      %839 = vmatpush2.bf16.xpose.msra.mxu0 0
      %840 = vmatprep.mubr.bf16.mxu0 0
      %841 = vmatmul.mubr.bf16.gmra.mxu0 %v803
      %v842 = vpop.f32.mrf.mxu0
      %v843 = vadd.f32 0.0, %v842
      %v844 = vpop.f32.mrf.mxu0
      %v845 = vpop.f32.mrf.mxu0
      %v846 = vpop.f32.mrf.mxu0
      %847 = vdwg.mxu0
      %v848 = vmul.f32 %v792, 0.25
      %v849 = vmul.f32 %v843, 0.25
      %v850 = vsel %vm627, %v848, -inf
      %851 = vmax.xlane.f32.xlu0 %v850
      %v852 = vpop.xlane.xlu0 %851
      %v853 = vsel %vm627, %v849, -inf
      %854 = vmax.xlane.f32.xlu0 %v853
      %v855 = vpop.xlane.xlu0 %854
      %v856 = vsub.f32 %v848, %v852
      %v857 = vsub.f32 %v849, %v855
      %v858 = vmul.f32 %v856, 1.442695
      %v859 = vpow.pop %v858
      %v860 = vmul.f32 %v857, 1.442695
      %v861 = vpow.pop %v860
      %v862 = vsel %vm627, %v859, 0.0
      %863 = vadd.xlane.f32.xlu0 %v862
      %v864 = vpop.xlane.xlu0 %863
      %v865 = vsel %vm627, %v861, 0.0
      %866 = vadd.xlane.f32.xlu0 %v865
      %v867 = vpop.xlane.xlu0 %866
      %v868 = vrcp.pop %v864
      %v869 = vrcp.pop %v867
      %v870 = vmul.f32 %v859, %v868
      %v871 = vmul.f32 %v861, %v869
      %v872 = vpack.c.bf16 %v870, %v870
      %v873 = vpack.c.bf16 %v871, %v871
      %875 = vrot.lane.b32.xlu0 %v524, 112
      %v876 = vpop.permute.xlu0 %875
      %v878 = vsel %vm652, %v872, 0
      %v881 = vsel %vm656, %v876, 0
      %883 = vmatprep.subr.bf16.mxu0 0
      %884 = vmatpush1.bf16.msra.mxu0 0
      %885 = vmatprep.subr.bf16.mxu0 0
      %886 = vmatpush1.bf16.msra.mxu0 0
      %887 = vmatprep.subr.bf16.mxu0 0
      %888 = vmatpush1.bf16.msra.mxu0 0
      %889 = vmatprep.subr.bf16.mxu0 0
      %890 = vmatpush1.bf16.msra.mxu0 0
      %891 = vmatprep.subr.bf16.mxu0 0
      %892 = vmatpush1.bf16.msra.mxu0 0
      %893 = vmatprep.subr.bf16.mxu0 0
      %894 = vmatpush1.bf16.msra.mxu0 0
      %895 = vmatprep.subr.bf16.mxu0 0
      %896 = vmatpush1.bf16.msra.mxu0 0
      %897 = vmatprep.subr.bf16.mxu0 0
      %898 = vmatpush1.bf16.msra.mxu0 %v881
      %899 = vmatprep.subr.bf16.mxu0 0
      %900 = vmatpush2.bf16.msra.mxu0 0
      %901 = vmatprep.subr.bf16.mxu0 0
      %902 = vmatpush2.bf16.msra.mxu0 0
      %903 = vmatprep.subr.bf16.mxu0 0
      %904 = vmatpush2.bf16.msra.mxu0 0
      %905 = vmatprep.subr.bf16.mxu0 0
      %906 = vmatpush2.bf16.msra.mxu0 0
      %907 = vmatprep.subr.bf16.mxu0 0
      %908 = vmatpush2.bf16.msra.mxu0 0
      %909 = vmatprep.subr.bf16.mxu0 0
      %910 = vmatpush2.bf16.msra.mxu0 0
      %911 = vmatprep.subr.bf16.mxu0 0
      %912 = vmatpush2.bf16.msra.mxu0 0
      %913 = vmatprep.subr.bf16.mxu0 0
      %914 = vmatpush2.bf16.msra.mxu0 0
      %915 = vmatprep.mubr.bf16.mxu0 0
      %916 = vmatmul.mubr.bf16.gmra.mxu0 %v878
      %v917 = vpop.f32.mrf.mxu0
      %v918 = vadd.f32 0.0, %v917
      %v919 = vpop.f32.mrf.mxu0
      %v920 = vpop.f32.mrf.mxu0
      %v921 = vpop.f32.mrf.mxu0
      %922 = vdwg.mxu0
      %924 = vrot.lane.b32.xlu0 %v525, 112
      %v925 = vpop.permute.xlu0 %924
      %v927 = vsel %vm652, %v873, 0
      %v930 = vsel %vm656, %v925, 0
      %932 = vmatprep.subr.bf16.mxu0 0
      %933 = vmatpush1.bf16.msra.mxu0 0
      %934 = vmatprep.subr.bf16.mxu0 0
      %935 = vmatpush1.bf16.msra.mxu0 0
      %936 = vmatprep.subr.bf16.mxu0 0
      %937 = vmatpush1.bf16.msra.mxu0 0
      %938 = vmatprep.subr.bf16.mxu0 0
      %939 = vmatpush1.bf16.msra.mxu0 0
      %940 = vmatprep.subr.bf16.mxu0 0
      %941 = vmatpush1.bf16.msra.mxu0 0
      %942 = vmatprep.subr.bf16.mxu0 0
      %943 = vmatpush1.bf16.msra.mxu0 0
      %944 = vmatprep.subr.bf16.mxu0 0
      %945 = vmatpush1.bf16.msra.mxu0 0
      %946 = vmatprep.subr.bf16.mxu0 0
      %947 = vmatpush1.bf16.msra.mxu0 %v930
      %948 = vmatprep.subr.bf16.mxu0 0
      %949 = vmatpush2.bf16.msra.mxu0 0
      %950 = vmatprep.subr.bf16.mxu0 0
      %951 = vmatpush2.bf16.msra.mxu0 0
      %952 = vmatprep.subr.bf16.mxu0 0
      %953 = vmatpush2.bf16.msra.mxu0 0
      %954 = vmatprep.subr.bf16.mxu0 0
      %955 = vmatpush2.bf16.msra.mxu0 0
      %956 = vmatprep.subr.bf16.mxu0 0
      %957 = vmatpush2.bf16.msra.mxu0 0
      %958 = vmatprep.subr.bf16.mxu0 0
      %959 = vmatpush2.bf16.msra.mxu0 0
      %960 = vmatprep.subr.bf16.mxu0 0
      %961 = vmatpush2.bf16.msra.mxu0 0
      %962 = vmatprep.subr.bf16.mxu0 0
      %963 = vmatpush2.bf16.msra.mxu0 0
      %964 = vmatprep.mubr.bf16.mxu0 0
      %965 = vmatmul.mubr.bf16.gmra.mxu0 %v927
      %v966 = vpop.f32.mrf.mxu0
      %v967 = vadd.f32 0.0, %v966
      %v968 = vpop.f32.mrf.mxu0
      %v969 = vpop.f32.mrf.mxu0
      %v970 = vpop.f32.mrf.mxu0
      %971 = vdwg.mxu0
      %972 = vrot.lane.b32.xlu0 %v520, 96
      %v973 = vpop.permute.xlu0 %972
      %974 = vrot.lane.b32.xlu0 %v522, 32
      %v975 = vpop.permute.xlu0 %974
      %v977 = vsel %vm529, %v973, 0
      %v980 = vsel %vm529, %v975, 0
      %982 = vmatprep.subr.bf16.mxu0 0
      %983 = vmatpush1.bf16.xpose.msra.mxu0 0
      %984 = vmatprep.subr.bf16.mxu0 0
      %985 = vmatpush1.bf16.xpose.msra.mxu0 0
      %986 = vmatprep.subr.bf16.mxu0 0
      %987 = vmatpush1.bf16.xpose.msra.mxu0 0
      %988 = vmatprep.subr.bf16.mxu0 0
      %989 = vmatpush1.bf16.xpose.msra.mxu0 0
      %990 = vmatprep.subr.bf16.mxu0 0
      %991 = vmatpush1.bf16.xpose.msra.mxu0 0
      %992 = vmatprep.subr.bf16.mxu0 0
      %993 = vmatpush1.bf16.xpose.msra.mxu0 0
      %994 = vmatprep.subr.bf16.mxu0 0
      %995 = vmatpush1.bf16.xpose.msra.mxu0 0
      %996 = vmatprep.subr.bf16.mxu0 0
      %997 = vmatpush1.bf16.xpose.msra.mxu0 %v980
      %998 = vmatprep.subr.bf16.mxu0 0
      %999 = vmatpush2.bf16.xpose.msra.mxu0 0
      %1000 = vmatprep.subr.bf16.mxu0 0
      %1001 = vmatpush2.bf16.xpose.msra.mxu0 0
      %1002 = vmatprep.subr.bf16.mxu0 0
      %1003 = vmatpush2.bf16.xpose.msra.mxu0 0
      %1004 = vmatprep.subr.bf16.mxu0 0
      %1005 = vmatpush2.bf16.xpose.msra.mxu0 0
      %1006 = vmatprep.subr.bf16.mxu0 0
      %1007 = vmatpush2.bf16.xpose.msra.mxu0 0
      %1008 = vmatprep.subr.bf16.mxu0 0
      %1009 = vmatpush2.bf16.xpose.msra.mxu0 0
      %1010 = vmatprep.subr.bf16.mxu0 0
      %1011 = vmatpush2.bf16.xpose.msra.mxu0 0
      %1012 = vmatprep.subr.bf16.mxu0 0
      %1013 = vmatpush2.bf16.xpose.msra.mxu0 0
      %1014 = vmatprep.mubr.bf16.mxu0 0
      %1015 = vmatmul.mubr.bf16.gmra.mxu0 %v977
      %v1016 = vpop.f32.mrf.mxu0
      %v1017 = vadd.f32 0.0, %v1016
      %v1018 = vpop.f32.mrf.mxu0
      %v1019 = vpop.f32.mrf.mxu0
      %v1020 = vpop.f32.mrf.mxu0
      %1021 = vdwg.mxu0
      %1022 = vrot.lane.b32.xlu0 %v521, 96
      %v1023 = vpop.permute.xlu0 %1022
      %1024 = vrot.lane.b32.xlu0 %v523, 32
      %v1025 = vpop.permute.xlu0 %1024
      %v1027 = vsel %vm529, %v1023, 0
      %v1030 = vsel %vm529, %v1025, 0
      %1032 = vmatprep.subr.bf16.mxu0 0
      %1033 = vmatpush1.bf16.xpose.msra.mxu0 0
      %1034 = vmatprep.subr.bf16.mxu0 0
      %1035 = vmatpush1.bf16.xpose.msra.mxu0 0
      %1036 = vmatprep.subr.bf16.mxu0 0
      %1037 = vmatpush1.bf16.xpose.msra.mxu0 0
      %1038 = vmatprep.subr.bf16.mxu0 0
      %1039 = vmatpush1.bf16.xpose.msra.mxu0 0
      %1040 = vmatprep.subr.bf16.mxu0 0
      %1041 = vmatpush1.bf16.xpose.msra.mxu0 0
      %1042 = vmatprep.subr.bf16.mxu0 0
      %1043 = vmatpush1.bf16.xpose.msra.mxu0 0
      %1044 = vmatprep.subr.bf16.mxu0 0
      %1045 = vmatpush1.bf16.xpose.msra.mxu0 0
      %1046 = vmatprep.subr.bf16.mxu0 0
      %1047 = vmatpush1.bf16.xpose.msra.mxu0 %v1030
      %1048 = vmatprep.subr.bf16.mxu0 0
      %1049 = vmatpush2.bf16.xpose.msra.mxu0 0
      %1050 = vmatprep.subr.bf16.mxu0 0
      %1051 = vmatpush2.bf16.xpose.msra.mxu0 0
      %1052 = vmatprep.subr.bf16.mxu0 0
      %1053 = vmatpush2.bf16.xpose.msra.mxu0 0
      %1054 = vmatprep.subr.bf16.mxu0 0
      %1055 = vmatpush2.bf16.xpose.msra.mxu0 0
      %1056 = vmatprep.subr.bf16.mxu0 0
      %1057 = vmatpush2.bf16.xpose.msra.mxu0 0
      %1058 = vmatprep.subr.bf16.mxu0 0
      %1059 = vmatpush2.bf16.xpose.msra.mxu0 0
      %1060 = vmatprep.subr.bf16.mxu0 0
      %1061 = vmatpush2.bf16.xpose.msra.mxu0 0
      %1062 = vmatprep.subr.bf16.mxu0 0
      %1063 = vmatpush2.bf16.xpose.msra.mxu0 0
      %1064 = vmatprep.mubr.bf16.mxu0 0
      %1065 = vmatmul.mubr.bf16.gmra.mxu0 %v1027
      %v1066 = vpop.f32.mrf.mxu0
      %v1067 = vadd.f32 0.0, %v1066
      %v1068 = vpop.f32.mrf.mxu0
      %v1069 = vpop.f32.mrf.mxu0
      %v1070 = vpop.f32.mrf.mxu0
      %1071 = vdwg.mxu0
      %v1072 = vmul.f32 %v1017, 0.25
      %v1073 = vmul.f32 %v1067, 0.25
      %v1074 = vsel %vm627, %v1072, -inf
      %1075 = vmax.xlane.f32.xlu0 %v1074
      %v1076 = vpop.xlane.xlu0 %1075
      %v1077 = vsel %vm627, %v1073, -inf
      %1078 = vmax.xlane.f32.xlu0 %v1077
      %v1079 = vpop.xlane.xlu0 %1078
      %v1080 = vsub.f32 %v1072, %v1076
      %v1081 = vsub.f32 %v1073, %v1079
      %v1082 = vmul.f32 %v1080, 1.442695
      %v1083 = vpow.pop %v1082
      %v1084 = vmul.f32 %v1081, 1.442695
      %v1085 = vpow.pop %v1084
      %v1086 = vsel %vm627, %v1083, 0.0
      %1087 = vadd.xlane.f32.xlu0 %v1086
      %v1088 = vpop.xlane.xlu0 %1087
      %v1089 = vsel %vm627, %v1085, 0.0
      %1090 = vadd.xlane.f32.xlu0 %v1089
      %v1091 = vpop.xlane.xlu0 %1090
      %v1092 = vrcp.pop %v1088
      %v1093 = vrcp.pop %v1091
      %v1094 = vmul.f32 %v1083, %v1092
      %v1095 = vmul.f32 %v1085, %v1093
      %v1096 = vpack.c.bf16 %v1094, %v1094
      %v1097 = vpack.c.bf16 %v1095, %v1095
      %1098 = vrot.lane.b32.xlu0 %v524, 96
      %v1099 = vpop.permute.xlu0 %1098
      %v1101 = vsel %vm652, %v1096, 0
      %v1104 = vsel %vm656, %v1099, 0
      %1106 = vmatprep.subr.bf16.mxu0 0
      %1107 = vmatpush1.bf16.msra.mxu0 0
      %1108 = vmatprep.subr.bf16.mxu0 0
      %1109 = vmatpush1.bf16.msra.mxu0 0
      %1110 = vmatprep.subr.bf16.mxu0 0
      %1111 = vmatpush1.bf16.msra.mxu0 0
      %1112 = vmatprep.subr.bf16.mxu0 0
      %1113 = vmatpush1.bf16.msra.mxu0 0
      %1114 = vmatprep.subr.bf16.mxu0 0
      %1115 = vmatpush1.bf16.msra.mxu0 0
      %1116 = vmatprep.subr.bf16.mxu0 0
      %1117 = vmatpush1.bf16.msra.mxu0 0
      %1118 = vmatprep.subr.bf16.mxu0 0
      %1119 = vmatpush1.bf16.msra.mxu0 0
      %1120 = vmatprep.subr.bf16.mxu0 0
      %1121 = vmatpush1.bf16.msra.mxu0 %v1104
      %1122 = vmatprep.subr.bf16.mxu0 0
      %1123 = vmatpush2.bf16.msra.mxu0 0
      %1124 = vmatprep.subr.bf16.mxu0 0
      %1125 = vmatpush2.bf16.msra.mxu0 0
      %1126 = vmatprep.subr.bf16.mxu0 0
      %1127 = vmatpush2.bf16.msra.mxu0 0
      %1128 = vmatprep.subr.bf16.mxu0 0
      %1129 = vmatpush2.bf16.msra.mxu0 0
      %1130 = vmatprep.subr.bf16.mxu0 0
      %1131 = vmatpush2.bf16.msra.mxu0 0
      %1132 = vmatprep.subr.bf16.mxu0 0
      %1133 = vmatpush2.bf16.msra.mxu0 0
      %1134 = vmatprep.subr.bf16.mxu0 0
      %1135 = vmatpush2.bf16.msra.mxu0 0
      %1136 = vmatprep.subr.bf16.mxu0 0
      %1137 = vmatpush2.bf16.msra.mxu0 0
      %1138 = vmatprep.mubr.bf16.mxu0 0
      %1139 = vmatmul.mubr.bf16.gmra.mxu0 %v1101
      %v1140 = vpop.f32.mrf.mxu0
      %v1141 = vadd.f32 0.0, %v1140
      %v1142 = vpop.f32.mrf.mxu0
      %v1143 = vpop.f32.mrf.mxu0
      %v1144 = vpop.f32.mrf.mxu0
      %1145 = vdwg.mxu0
      %1146 = vrot.lane.b32.xlu0 %v525, 96
      %v1147 = vpop.permute.xlu0 %1146
      %v1149 = vsel %vm652, %v1097, 0
      %v1152 = vsel %vm656, %v1147, 0
      %1154 = vmatprep.subr.bf16.mxu0 0
      %1155 = vmatpush1.bf16.msra.mxu0 0
      %1156 = vmatprep.subr.bf16.mxu0 0
      %1157 = vmatpush1.bf16.msra.mxu0 0
      %1158 = vmatprep.subr.bf16.mxu0 0
      %1159 = vmatpush1.bf16.msra.mxu0 0
      %1160 = vmatprep.subr.bf16.mxu0 0
      %1161 = vmatpush1.bf16.msra.mxu0 0
      %1162 = vmatprep.subr.bf16.mxu0 0
      %1163 = vmatpush1.bf16.msra.mxu0 0
      %1164 = vmatprep.subr.bf16.mxu0 0
      %1165 = vmatpush1.bf16.msra.mxu0 0
      %1166 = vmatprep.subr.bf16.mxu0 0
      %1167 = vmatpush1.bf16.msra.mxu0 0
      %1168 = vmatprep.subr.bf16.mxu0 0
      %1169 = vmatpush1.bf16.msra.mxu0 %v1152
      %1170 = vmatprep.subr.bf16.mxu0 0
      %1171 = vmatpush2.bf16.msra.mxu0 0
      %1172 = vmatprep.subr.bf16.mxu0 0
      %1173 = vmatpush2.bf16.msra.mxu0 0
      %1174 = vmatprep.subr.bf16.mxu0 0
      %1175 = vmatpush2.bf16.msra.mxu0 0
      %1176 = vmatprep.subr.bf16.mxu0 0
      %1177 = vmatpush2.bf16.msra.mxu0 0
      %1178 = vmatprep.subr.bf16.mxu0 0
      %1179 = vmatpush2.bf16.msra.mxu0 0
      %1180 = vmatprep.subr.bf16.mxu0 0
      %1181 = vmatpush2.bf16.msra.mxu0 0
      %1182 = vmatprep.subr.bf16.mxu0 0
      %1183 = vmatpush2.bf16.msra.mxu0 0
      %1184 = vmatprep.subr.bf16.mxu0 0
      %1185 = vmatpush2.bf16.msra.mxu0 0
      %1186 = vmatprep.mubr.bf16.mxu0 0
      %1187 = vmatmul.mubr.bf16.gmra.mxu0 %v1149
      %v1188 = vpop.f32.mrf.mxu0
      %v1189 = vadd.f32 0.0, %v1188
      %v1190 = vpop.f32.mrf.mxu0
      %v1191 = vpop.f32.mrf.mxu0
      %v1192 = vpop.f32.mrf.mxu0
      %1193 = vdwg.mxu0
      %1194 = vrot.lane.b32.xlu0 %v520, 80
      %v1195 = vpop.permute.xlu0 %1194
      %1196 = vrot.lane.b32.xlu0 %v522, 16
      %v1197 = vpop.permute.xlu0 %1196
      %v1199 = vsel %vm529, %v1195, 0
      %v1202 = vsel %vm529, %v1197, 0
      %1204 = vmatprep.subr.bf16.mxu0 0
      %1205 = vmatpush1.bf16.xpose.msra.mxu0 0
      %1206 = vmatprep.subr.bf16.mxu0 0
      %1207 = vmatpush1.bf16.xpose.msra.mxu0 0
      %1208 = vmatprep.subr.bf16.mxu0 0
      %1209 = vmatpush1.bf16.xpose.msra.mxu0 0
      %1210 = vmatprep.subr.bf16.mxu0 0
      %1211 = vmatpush1.bf16.xpose.msra.mxu0 0
      %1212 = vmatprep.subr.bf16.mxu0 0
      %1213 = vmatpush1.bf16.xpose.msra.mxu0 0
      %1214 = vmatprep.subr.bf16.mxu0 0
      %1215 = vmatpush1.bf16.xpose.msra.mxu0 0
      %1216 = vmatprep.subr.bf16.mxu0 0
      %1217 = vmatpush1.bf16.xpose.msra.mxu0 0
      %1218 = vmatprep.subr.bf16.mxu0 0
      %1219 = vmatpush1.bf16.xpose.msra.mxu0 %v1202
      %1220 = vmatprep.subr.bf16.mxu0 0
      %1221 = vmatpush2.bf16.xpose.msra.mxu0 0
      %1222 = vmatprep.subr.bf16.mxu0 0
      %1223 = vmatpush2.bf16.xpose.msra.mxu0 0
      %1224 = vmatprep.subr.bf16.mxu0 0
      %1225 = vmatpush2.bf16.xpose.msra.mxu0 0
      %1226 = vmatprep.subr.bf16.mxu0 0
      %1227 = vmatpush2.bf16.xpose.msra.mxu0 0
      %1228 = vmatprep.subr.bf16.mxu0 0
      %1229 = vmatpush2.bf16.xpose.msra.mxu0 0
      %1230 = vmatprep.subr.bf16.mxu0 0
      %1231 = vmatpush2.bf16.xpose.msra.mxu0 0
      %1232 = vmatprep.subr.bf16.mxu0 0
      %1233 = vmatpush2.bf16.xpose.msra.mxu0 0
      %1234 = vmatprep.subr.bf16.mxu0 0
      %1235 = vmatpush2.bf16.xpose.msra.mxu0 0
      %1236 = vmatprep.mubr.bf16.mxu0 0
      %1237 = vmatmul.mubr.bf16.gmra.mxu0 %v1199
      %v1238 = vpop.f32.mrf.mxu0
      %v1239 = vadd.f32 0.0, %v1238
      %v1240 = vpop.f32.mrf.mxu0
      %v1241 = vpop.f32.mrf.mxu0
      %v1242 = vpop.f32.mrf.mxu0
      %1243 = vdwg.mxu0
      %1244 = vrot.lane.b32.xlu0 %v521, 80
      %v1245 = vpop.permute.xlu0 %1244
      %1246 = vrot.lane.b32.xlu0 %v523, 16
      %v1247 = vpop.permute.xlu0 %1246
      %v1249 = vsel %vm529, %v1245, 0
      %v1252 = vsel %vm529, %v1247, 0
      %1254 = vmatprep.subr.bf16.mxu0 0
      %1255 = vmatpush1.bf16.xpose.msra.mxu0 0
      %1256 = vmatprep.subr.bf16.mxu0 0
      %1257 = vmatpush1.bf16.xpose.msra.mxu0 0
      %1258 = vmatprep.subr.bf16.mxu0 0
      %1259 = vmatpush1.bf16.xpose.msra.mxu0 0
      %1260 = vmatprep.subr.bf16.mxu0 0
      %1261 = vmatpush1.bf16.xpose.msra.mxu0 0
      %1262 = vmatprep.subr.bf16.mxu0 0
      %1263 = vmatpush1.bf16.xpose.msra.mxu0 0
      %1264 = vmatprep.subr.bf16.mxu0 0
      %1265 = vmatpush1.bf16.xpose.msra.mxu0 0
      %1266 = vmatprep.subr.bf16.mxu0 0
      %1267 = vmatpush1.bf16.xpose.msra.mxu0 0
      %1268 = vmatprep.subr.bf16.mxu0 0
      %1269 = vmatpush1.bf16.xpose.msra.mxu0 %v1252
      %1270 = vmatprep.subr.bf16.mxu0 0
      %1271 = vmatpush2.bf16.xpose.msra.mxu0 0
      %1272 = vmatprep.subr.bf16.mxu0 0
      %1273 = vmatpush2.bf16.xpose.msra.mxu0 0
      %1274 = vmatprep.subr.bf16.mxu0 0
      %1275 = vmatpush2.bf16.xpose.msra.mxu0 0
      %1276 = vmatprep.subr.bf16.mxu0 0
      %1277 = vmatpush2.bf16.xpose.msra.mxu0 0
      %1278 = vmatprep.subr.bf16.mxu0 0
      %1279 = vmatpush2.bf16.xpose.msra.mxu0 0
      %1280 = vmatprep.subr.bf16.mxu0 0
      %1281 = vmatpush2.bf16.xpose.msra.mxu0 0
      %1282 = vmatprep.subr.bf16.mxu0 0
      %1283 = vmatpush2.bf16.xpose.msra.mxu0 0
      %1284 = vmatprep.subr.bf16.mxu0 0
      %1285 = vmatpush2.bf16.xpose.msra.mxu0 0
      %1286 = vmatprep.mubr.bf16.mxu0 0
      %1287 = vmatmul.mubr.bf16.gmra.mxu0 %v1249
      %v1288 = vpop.f32.mrf.mxu0
      %v1289 = vadd.f32 0.0, %v1288
      %v1290 = vpop.f32.mrf.mxu0
      %v1291 = vpop.f32.mrf.mxu0
      %v1292 = vpop.f32.mrf.mxu0
      %1293 = vdwg.mxu0
      %v1294 = vmul.f32 %v1239, 0.25
      %v1295 = vmul.f32 %v1289, 0.25
      %v1296 = vsel %vm627, %v1294, -inf
      %1297 = vmax.xlane.f32.xlu0 %v1296
      %v1298 = vpop.xlane.xlu0 %1297
      %v1299 = vsel %vm627, %v1295, -inf
      %1300 = vmax.xlane.f32.xlu0 %v1299
      %v1301 = vpop.xlane.xlu0 %1300
      %v1302 = vsub.f32 %v1294, %v1298
      %v1303 = vsub.f32 %v1295, %v1301
      %v1304 = vmul.f32 %v1302, 1.442695
      %v1305 = vpow.pop %v1304
      %v1306 = vmul.f32 %v1303, 1.442695
      %v1307 = vpow.pop %v1306
      %v1308 = vsel %vm627, %v1305, 0.0
      %1309 = vadd.xlane.f32.xlu0 %v1308
      %v1310 = vpop.xlane.xlu0 %1309
      %v1311 = vsel %vm627, %v1307, 0.0
      %1312 = vadd.xlane.f32.xlu0 %v1311
      %v1313 = vpop.xlane.xlu0 %1312
      %v1314 = vrcp.pop %v1310
      %v1315 = vrcp.pop %v1313
      %v1316 = vmul.f32 %v1305, %v1314
      %v1317 = vmul.f32 %v1307, %v1315
      %v1318 = vpack.c.bf16 %v1316, %v1316
      %v1319 = vpack.c.bf16 %v1317, %v1317
      %1320 = vrot.lane.b32.xlu0 %v524, 80
      %v1321 = vpop.permute.xlu0 %1320
      %v1323 = vsel %vm652, %v1318, 0
      %v1326 = vsel %vm656, %v1321, 0
      %1328 = vmatprep.subr.bf16.mxu0 0
      %1329 = vmatpush1.bf16.msra.mxu0 0
      %1330 = vmatprep.subr.bf16.mxu0 0
      %1331 = vmatpush1.bf16.msra.mxu0 0
      %1332 = vmatprep.subr.bf16.mxu0 0
      %1333 = vmatpush1.bf16.msra.mxu0 0
      %1334 = vmatprep.subr.bf16.mxu0 0
      %1335 = vmatpush1.bf16.msra.mxu0 0
      %1336 = vmatprep.subr.bf16.mxu0 0
      %1337 = vmatpush1.bf16.msra.mxu0 0
      %1338 = vmatprep.subr.bf16.mxu0 0
      %1339 = vmatpush1.bf16.msra.mxu0 0
      %1340 = vmatprep.subr.bf16.mxu0 0
      %1341 = vmatpush1.bf16.msra.mxu0 0
      %1342 = vmatprep.subr.bf16.mxu0 0
      %1343 = vmatpush1.bf16.msra.mxu0 %v1326
      %1344 = vmatprep.subr.bf16.mxu0 0
      %1345 = vmatpush2.bf16.msra.mxu0 0
      %1346 = vmatprep.subr.bf16.mxu0 0
      %1347 = vmatpush2.bf16.msra.mxu0 0
      %1348 = vmatprep.subr.bf16.mxu0 0
      %1349 = vmatpush2.bf16.msra.mxu0 0
      %1350 = vmatprep.subr.bf16.mxu0 0
      %1351 = vmatpush2.bf16.msra.mxu0 0
      %1352 = vmatprep.subr.bf16.mxu0 0
      %1353 = vmatpush2.bf16.msra.mxu0 0
      %1354 = vmatprep.subr.bf16.mxu0 0
      %1355 = vmatpush2.bf16.msra.mxu0 0
      %1356 = vmatprep.subr.bf16.mxu0 0
      %1357 = vmatpush2.bf16.msra.mxu0 0
      %1358 = vmatprep.subr.bf16.mxu0 0
      %1359 = vmatpush2.bf16.msra.mxu0 0
      %1360 = vmatprep.mubr.bf16.mxu0 0
      %1361 = vmatmul.mubr.bf16.gmra.mxu0 %v1323
      %v1362 = vpop.f32.mrf.mxu0
      %v1363 = vadd.f32 0.0, %v1362
      %v1364 = vpop.f32.mrf.mxu0
      %v1365 = vpop.f32.mrf.mxu0
      %v1366 = vpop.f32.mrf.mxu0
      %1367 = vdwg.mxu0
      %1368 = vrot.lane.b32.xlu0 %v525, 80
      %v1369 = vpop.permute.xlu0 %1368
      %v1371 = vsel %vm652, %v1319, 0
      %v1374 = vsel %vm656, %v1369, 0
      %1376 = vmatprep.subr.bf16.mxu0 0
      %1377 = vmatpush1.bf16.msra.mxu0 0
      %1378 = vmatprep.subr.bf16.mxu0 0
      %1379 = vmatpush1.bf16.msra.mxu0 0
      %1380 = vmatprep.subr.bf16.mxu0 0
      %1381 = vmatpush1.bf16.msra.mxu0 0
      %1382 = vmatprep.subr.bf16.mxu0 0
      %1383 = vmatpush1.bf16.msra.mxu0 0
      %1384 = vmatprep.subr.bf16.mxu0 0
      %1385 = vmatpush1.bf16.msra.mxu0 0
      %1386 = vmatprep.subr.bf16.mxu0 0
      %1387 = vmatpush1.bf16.msra.mxu0 0
      %1388 = vmatprep.subr.bf16.mxu0 0
      %1389 = vmatpush1.bf16.msra.mxu0 0
      %1390 = vmatprep.subr.bf16.mxu0 0
      %1391 = vmatpush1.bf16.msra.mxu0 %v1374
      %1392 = vmatprep.subr.bf16.mxu0 0
      %1393 = vmatpush2.bf16.msra.mxu0 0
      %1394 = vmatprep.subr.bf16.mxu0 0
      %1395 = vmatpush2.bf16.msra.mxu0 0
      %1396 = vmatprep.subr.bf16.mxu0 0
      %1397 = vmatpush2.bf16.msra.mxu0 0
      %1398 = vmatprep.subr.bf16.mxu0 0
      %1399 = vmatpush2.bf16.msra.mxu0 0
      %1400 = vmatprep.subr.bf16.mxu0 0
      %1401 = vmatpush2.bf16.msra.mxu0 0
      %1402 = vmatprep.subr.bf16.mxu0 0
      %1403 = vmatpush2.bf16.msra.mxu0 0
      %1404 = vmatprep.subr.bf16.mxu0 0
      %1405 = vmatpush2.bf16.msra.mxu0 0
      %1406 = vmatprep.subr.bf16.mxu0 0
      %1407 = vmatpush2.bf16.msra.mxu0 0
      %1408 = vmatprep.mubr.bf16.mxu0 0
      %1409 = vmatmul.mubr.bf16.gmra.mxu0 %v1371
      %v1410 = vpop.f32.mrf.mxu0
      %v1411 = vadd.f32 0.0, %v1410
      %v1412 = vpop.f32.mrf.mxu0
      %v1413 = vpop.f32.mrf.mxu0
      %v1414 = vpop.f32.mrf.mxu0
      %1415 = vdwg.mxu0
      %1418 = vrot.lane.b32.xlu0 %v918, 16
      %v1419 = vpop.permute.xlu0 %1418
      %1420 = vrot.lane.b32.xlu0 %v967, 16
      %v1421 = vpop.permute.xlu0 %1420
      %1426 = vrot.lane.b32.xlu0 %v1141, 32
      %v1427 = vpop.permute.xlu0 %1426
      %1428 = vrot.lane.b32.xlu0 %v1189, 32
      %v1429 = vpop.permute.xlu0 %1428
      %1434 = vrot.lane.b32.xlu0 %v1363, 48
      %v1435 = vpop.permute.xlu0 %1434
      %1436 = vrot.lane.b32.xlu0 %v1411, 48
      %v1437 = vpop.permute.xlu0 %1436
      %v1440 = vsel %vm529, %v695, %v1419
      %v1441 = vsel %vm529, %v741, %v1421
      %vm1442 = vcmask 261120
      %v1443 = vsel %vm1442, %v1440, %v1427
      %v1444 = vsel %vm1442, %v1441, %v1429
      %vm1445 = vcmask 392192
      %v1446 = vsel %vm1445, %v1443, %v1435
      %v1447 = vsel %vm1445, %v1444, %v1437
      %v1450 = vcombine.low %v1446, %v1447
      %v1452 = vpack.c.bf16 %v1450, %v1450
      %v1453 = vld [vmem:[%s341] sm:$0xf]
      %v1454 = vld [vmem:[%s341 + $0x4] sm:$0xf]
      %v1455 = vld [vmem:[%s341 + $0x8] sm:$0xf]
      %v1456 = vld [vmem:[%s341 + $0xc] sm:$0xf]
      %v1457 = vld [vmem:[%s341 + $0x10] sm:$0xf]
      %v1458 = vld [vmem:[%s341 + $0x14] sm:$0xf]
      %v1459 = vld [vmem:[%s341 + $0x18] sm:$0xf]
      %v1460 = vld [vmem:[%s341 + $0x1c] sm:$0xf]
      %v1469 = vunpack.c.l.b16 %v1453
      %v1470 = vunpack.c.l.b16 %v1454
      %v1471 = vunpack.c.l.b16 %v1455
      %v1472 = vunpack.c.l.b16 %v1456
      %v1473 = vunpack.c.l.b16 %v1457
      %v1474 = vunpack.c.l.b16 %v1458
      %v1475 = vunpack.c.l.b16 %v1459
      %v1476 = vunpack.c.l.b16 %v1460
      %v1477 = vpack.c.b16 %v1470, %v1469
      %v1478 = vpack.c.b16 %v1472, %v1471
      %v1479 = vpack.c.b16 %v1474, %v1473
      %v1480 = vpack.c.b16 %v1476, %v1475
      %v1486 = vsel %vm374, %v1452, 0
      %1488 = vmatprep.subr.bf16.mxu0 0
      %1489 = vmatpush1.bf16.msra.mxu0 0
      %1490 = vmatprep.subr.bf16.mxu0 0
      %1491 = vmatpush1.bf16.msra.mxu0 0
      %1492 = vmatprep.subr.bf16.mxu0 0
      %1493 = vmatpush1.bf16.msra.mxu0 0
      %1494 = vmatprep.subr.bf16.mxu0 0
      %1495 = vmatpush1.bf16.msra.mxu0 0
      %1496 = vmatprep.subr.bf16.mxu0 0
      %1497 = vmatpush1.bf16.msra.mxu0 %v1480
      %1498 = vmatprep.subr.bf16.mxu0 0
      %1499 = vmatpush1.bf16.msra.mxu0 %v1479
      %1500 = vmatprep.subr.bf16.mxu0 0
      %1501 = vmatpush1.bf16.msra.mxu0 %v1478
      %1502 = vmatprep.subr.bf16.mxu0 0
      %1503 = vmatpush1.bf16.msra.mxu0 %v1477
      %1504 = vmatprep.subr.bf16.mxu0 0
      %1505 = vmatpush2.bf16.msra.mxu0 0
      %1506 = vmatprep.subr.bf16.mxu0 0
      %1507 = vmatpush2.bf16.msra.mxu0 0
      %1508 = vmatprep.subr.bf16.mxu0 0
      %1509 = vmatpush2.bf16.msra.mxu0 0
      %1510 = vmatprep.subr.bf16.mxu0 0
      %1511 = vmatpush2.bf16.msra.mxu0 0
      %1512 = vmatprep.subr.bf16.mxu0 0
      %1513 = vmatpush2.bf16.msra.mxu0 0
      %1514 = vmatprep.subr.bf16.mxu0 0
      %1515 = vmatpush2.bf16.msra.mxu0 0
      %1516 = vmatprep.subr.bf16.mxu0 0
      %1517 = vmatpush2.bf16.msra.mxu0 0
      %1518 = vmatprep.subr.bf16.mxu0 0
      %1519 = vmatpush2.bf16.msra.mxu0 0
      %1520 = vmatprep.mubr.bf16.mxu0 0
      %1521 = vmatmul.mubr.bf16.gmra.mxu0 %v1486
      %v1522 = vpop.f32.mrf.mxu0
      %v1523 = vadd.f32 0.0, %v1522
      %v1524 = vpop.f32.mrf.mxu0
      %v1525 = vpop.f32.mrf.mxu0
      %v1526 = vpop.f32.mrf.mxu0
      %1527 = vdwg.mxu0
      %v1528 = vadd.f32 %v370, %v1523
      %v1529 = vlaneseq
      %v1530 = vshrl.u32 %v1529, 7
      %v1531 = vsub.s32 7, %v1530
      %v1532 = vrot.slane %v371, %v1531
      %v1533 = vadd.f32 %v1528, %v1532
      %v1534 = vsel %vm374, %v1533, 0.0
      %1535 = vadd.xlane.f32.xlu0 %v1534
      %v1536 = vpop.xlane.xlu0 %1535
      %v1537 = vmul.f32 %v1536, %v378
      %v1538 = vsub.f32 %v1533, %v1537
      %v1539 = vmul.f32 %v1538, %v1538
      %v1540 = vsel %vm374, %v1539, 0.0
      %1541 = vadd.xlane.f32.xlu0 %v1540
      %v1542 = vpop.xlane.xlu0 %1541
      %v1543 = vmul.f32 %v1542, %v378
      %v1544 = vadd.f32 %v1543, 1e-05
      %v1545 = vrsqrt.pop %v1544
      %v1546 = vmul.f32 %v1538, %v1545
      %v1547 = vlaneseq
      %v1548 = vshrl.u32 %v1547, 7
      %v1549 = vsub.s32 2, %v1548
      %v1550 = vrot.slane %v371, %v1549
      %v1551 = vmul.f32 %v1546, %v1550
      %v1552 = vlaneseq
      %v1553 = vshrl.u32 %v1552, 7
      %v1554 = vsub.s32 3, %v1553
      %v1555 = vrot.slane %v371, %v1554
      %v1556 = vadd.f32 %v1551, %v1555
      %v1557 = vpack.c.bf16 %v1556, %v1556
      %v1558 = vld [vmem:[%s346] sm:$0xff]
      %v1559 = vld [vmem:[%s346 + $0x8] sm:$0xff]
      %v1560 = vld [vmem:[%s346 + $0x10] sm:$0xff]
      %v1561 = vld [vmem:[%s346 + $0x18] sm:$0xff]
      %v1562 = vld [vmem:[%s346 + $0x20] sm:$0xff]
      %v1563 = vld [vmem:[%s346 + $0x28] sm:$0xff]
      %v1564 = vld [vmem:[%s346 + $0x30] sm:$0xff]
      %v1565 = vld [vmem:[%s346 + $0x38] sm:$0xff]
      %v1567 = vlaneseq
      %v1568 = vshrl.u32 %v1567, 7
      %v1569 = vsub.s32 0, %v1568
      %v1570 = vrot.slane %v373, %v1569
      %v1571 = vlaneseq
      %v1572 = vshrl.u32 %v1571, 7
      %v1573 = vsub.s32 1, %v1572
      %v1574 = vrot.slane %v373, %v1573
      %v1585 = vunpack.c.l.b16 %v1558
      %v1586 = vunpack.c.h.b16 %v1558
      %v1587 = vunpack.c.l.b16 %v1559
      %v1588 = vunpack.c.h.b16 %v1559
      %v1589 = vunpack.c.l.b16 %v1560
      %v1590 = vunpack.c.h.b16 %v1560
      %v1591 = vunpack.c.l.b16 %v1561
      %v1592 = vunpack.c.h.b16 %v1561
      %v1593 = vunpack.c.l.b16 %v1562
      %v1594 = vunpack.c.h.b16 %v1562
      %v1595 = vunpack.c.l.b16 %v1563
      %v1596 = vunpack.c.h.b16 %v1563
      %v1597 = vunpack.c.l.b16 %v1564
      %v1598 = vunpack.c.h.b16 %v1564
      %v1599 = vunpack.c.l.b16 %v1565
      %v1600 = vunpack.c.h.b16 %v1565
      %v1601 = vpack.c.b16 %v1587, %v1585
      %v1602 = vpack.c.b16 %v1588, %v1586
      %v1603 = vpack.c.b16 %v1591, %v1589
      %v1604 = vpack.c.b16 %v1592, %v1590
      %v1605 = vpack.c.b16 %v1595, %v1593
      %v1606 = vpack.c.b16 %v1596, %v1594
      %v1607 = vpack.c.b16 %v1599, %v1597
      %v1608 = vpack.c.b16 %v1600, %v1598
      %v1618 = vsel %vm374, %v1557, 0
      %1620 = vmatprep.subr.bf16.mxu0 0
      %1621 = vmatpush1.bf16.msra.mxu0 0
      %1622 = vmatprep.subr.bf16.mxu0 0
      %1623 = vmatpush1.bf16.msra.mxu0 0
      %1624 = vmatprep.subr.bf16.mxu0 0
      %1625 = vmatpush1.bf16.msra.mxu0 0
      %1626 = vmatprep.subr.bf16.mxu0 0
      %1627 = vmatpush1.bf16.msra.mxu0 0
      %1628 = vmatprep.subr.bf16.mxu0 %v1608
      %1629 = vmatpush1.bf16.msra.mxu0 %v1607
      %1630 = vmatprep.subr.bf16.mxu0 %v1606
      %1631 = vmatpush1.bf16.msra.mxu0 %v1605
      %1632 = vmatprep.subr.bf16.mxu0 %v1604
      %1633 = vmatpush1.bf16.msra.mxu0 %v1603
      %1634 = vmatprep.subr.bf16.mxu0 %v1602
      %1635 = vmatpush1.bf16.msra.mxu0 %v1601
      %1636 = vmatprep.subr.bf16.mxu0 0
      %1637 = vmatpush2.bf16.msra.mxu0 0
      %1638 = vmatprep.subr.bf16.mxu0 0
      %1639 = vmatpush2.bf16.msra.mxu0 0
      %1640 = vmatprep.subr.bf16.mxu0 0
      %1641 = vmatpush2.bf16.msra.mxu0 0
      %1642 = vmatprep.subr.bf16.mxu0 0
      %1643 = vmatpush2.bf16.msra.mxu0 0
      %1644 = vmatprep.subr.bf16.mxu0 0
      %1645 = vmatpush2.bf16.msra.mxu0 0
      %1646 = vmatprep.subr.bf16.mxu0 0
      %1647 = vmatpush2.bf16.msra.mxu0 0
      %1648 = vmatprep.subr.bf16.mxu0 0
      %1649 = vmatpush2.bf16.msra.mxu0 0
      %1650 = vmatprep.subr.bf16.mxu0 0
      %1651 = vmatpush2.bf16.msra.mxu0 0
      %1652 = vmatprep.mubr.bf16.mxu0 0
      %1653 = vmatmul.mubr.bf16.gmra.mxu0 %v1618
      %v1654 = vpop.f32.mrf.mxu0
      %v1655 = vadd.f32 %v1570, %v1654
      %v1656 = vpop.f32.mrf.mxu0
      %v1657 = vadd.f32 %v1574, %v1656
      %v1658 = vpop.f32.mrf.mxu0
      %v1659 = vpop.f32.mrf.mxu0
      %1660 = vdwg.mxu0
      %v1661 = vmul.f32 %v1655, 0.5
      %v1662 = vmul.f32 %v1657, 0.5
      %v1663 = vmul.f32 %v1655, 0.044715
      %v1664 = vmul.f32 %v1657, 0.044715
      %v1665 = vmul.f32 %v1663, %v1655
      %v1666 = vmul.f32 %v1664, %v1657
      %v1667 = vmul.f32 %v1665, %v1655
      %v1668 = vmul.f32 %v1666, %v1657
      %v1669 = vadd.f32 %v1655, %v1667
      %v1670 = vadd.f32 %v1657, %v1668
      %v1671 = vmul.f32 %v1669, 0.7978846
      %v1672 = vmul.f32 %v1670, 0.7978846
      %v1673 = vtanh.pop %v1671
      %v1674 = vtanh.pop %v1672
      %v1675 = vadd.f32 %v1673, 1.0
      %v1676 = vadd.f32 %v1674, 1.0
      %v1677 = vmul.f32 %v1661, %v1675
      %v1678 = vmul.f32 %v1662, %v1676
      %v1679 = vpack.c.bf16 %v1677, %v1677
      %v1680 = vpack.c.bf16 %v1678, %v1678
      %v1681 = vld [vmem:[%s351] sm:$0xf]
      %v1682 = vld [vmem:[%s351 + $0x4] sm:$0xf]
      %v1683 = vld [vmem:[%s351 + $0x8] sm:$0xf]
      %v1684 = vld [vmem:[%s351 + $0xc] sm:$0xf]
      %v1685 = vld [vmem:[%s351 + $0x10] sm:$0xf]
      %v1686 = vld [vmem:[%s351 + $0x14] sm:$0xf]
      %v1687 = vld [vmem:[%s351 + $0x18] sm:$0xf]
      %v1688 = vld [vmem:[%s351 + $0x1c] sm:$0xf]
      %v1689 = vld [vmem:[%s351 + $0x20] sm:$0xf]
      %v1690 = vld [vmem:[%s351 + $0x24] sm:$0xf]
      %v1691 = vld [vmem:[%s351 + $0x28] sm:$0xf]
      %v1692 = vld [vmem:[%s351 + $0x2c] sm:$0xf]
      %v1693 = vld [vmem:[%s351 + $0x30] sm:$0xf]
      %v1694 = vld [vmem:[%s351 + $0x34] sm:$0xf]
      %v1695 = vld [vmem:[%s351 + $0x38] sm:$0xf]
      %v1696 = vld [vmem:[%s351 + $0x3c] sm:$0xf]
      %v1697 = vld [vmem:[%s351 + $0x40] sm:$0xf]
      %v1698 = vld [vmem:[%s351 + $0x44] sm:$0xf]
      %v1699 = vld [vmem:[%s351 + $0x48] sm:$0xf]
      %v1700 = vld [vmem:[%s351 + $0x4c] sm:$0xf]
      %v1701 = vld [vmem:[%s351 + $0x50] sm:$0xf]
      %v1702 = vld [vmem:[%s351 + $0x54] sm:$0xf]
      %v1703 = vld [vmem:[%s351 + $0x58] sm:$0xf]
      %v1704 = vld [vmem:[%s351 + $0x5c] sm:$0xf]
      %v1705 = vld [vmem:[%s351 + $0x60] sm:$0xf]
      %v1706 = vld [vmem:[%s351 + $0x64] sm:$0xf]
      %v1707 = vld [vmem:[%s351 + $0x68] sm:$0xf]
      %v1708 = vld [vmem:[%s351 + $0x6c] sm:$0xf]
      %v1709 = vld [vmem:[%s351 + $0x70] sm:$0xf]
      %v1710 = vld [vmem:[%s351 + $0x74] sm:$0xf]
      %v1711 = vld [vmem:[%s351 + $0x78] sm:$0xf]
      %v1712 = vld [vmem:[%s351 + $0x7c] sm:$0xf]
      %v1745 = vunpack.c.l.b16 %v1681
      %v1746 = vunpack.c.l.b16 %v1682
      %v1747 = vunpack.c.l.b16 %v1683
      %v1748 = vunpack.c.l.b16 %v1684
      %v1749 = vunpack.c.l.b16 %v1685
      %v1750 = vunpack.c.l.b16 %v1686
      %v1751 = vunpack.c.l.b16 %v1687
      %v1752 = vunpack.c.l.b16 %v1688
      %v1753 = vunpack.c.l.b16 %v1689
      %v1754 = vunpack.c.l.b16 %v1690
      %v1755 = vunpack.c.l.b16 %v1691
      %v1756 = vunpack.c.l.b16 %v1692
      %v1757 = vunpack.c.l.b16 %v1693
      %v1758 = vunpack.c.l.b16 %v1694
      %v1759 = vunpack.c.l.b16 %v1695
      %v1760 = vunpack.c.l.b16 %v1696
      %v1761 = vunpack.c.l.b16 %v1697
      %v1762 = vunpack.c.l.b16 %v1698
      %v1763 = vunpack.c.l.b16 %v1699
      %v1764 = vunpack.c.l.b16 %v1700
      %v1765 = vunpack.c.l.b16 %v1701
      %v1766 = vunpack.c.l.b16 %v1702
      %v1767 = vunpack.c.l.b16 %v1703
      %v1768 = vunpack.c.l.b16 %v1704
      %v1769 = vunpack.c.l.b16 %v1705
      %v1770 = vunpack.c.l.b16 %v1706
      %v1771 = vunpack.c.l.b16 %v1707
      %v1772 = vunpack.c.l.b16 %v1708
      %v1773 = vunpack.c.l.b16 %v1709
      %v1774 = vunpack.c.l.b16 %v1710
      %v1775 = vunpack.c.l.b16 %v1711
      %v1776 = vunpack.c.l.b16 %v1712
      %v1777 = vpack.c.b16 %v1746, %v1745
      %v1778 = vpack.c.b16 %v1748, %v1747
      %v1779 = vpack.c.b16 %v1750, %v1749
      %v1780 = vpack.c.b16 %v1752, %v1751
      %v1781 = vpack.c.b16 %v1754, %v1753
      %v1782 = vpack.c.b16 %v1756, %v1755
      %v1783 = vpack.c.b16 %v1758, %v1757
      %v1784 = vpack.c.b16 %v1760, %v1759
      %v1785 = vpack.c.b16 %v1762, %v1761
      %v1786 = vpack.c.b16 %v1764, %v1763
      %v1787 = vpack.c.b16 %v1766, %v1765
      %v1788 = vpack.c.b16 %v1768, %v1767
      %v1789 = vpack.c.b16 %v1770, %v1769
      %v1790 = vpack.c.b16 %v1772, %v1771
      %v1791 = vpack.c.b16 %v1774, %v1773
      %v1792 = vpack.c.b16 %v1776, %v1775
      %1809 = vmatprep.subr.bf16.mxu0 0
      %1810 = vmatpush1.bf16.msra.mxu0 %v1784
      %1811 = vmatprep.subr.bf16.mxu0 0
      %1812 = vmatpush1.bf16.msra.mxu0 %v1783
      %1813 = vmatprep.subr.bf16.mxu0 0
      %1814 = vmatpush1.bf16.msra.mxu0 %v1782
      %1815 = vmatprep.subr.bf16.mxu0 0
      %1816 = vmatpush1.bf16.msra.mxu0 %v1781
      %1817 = vmatprep.subr.bf16.mxu0 0
      %1818 = vmatpush1.bf16.msra.mxu0 %v1780
      %1819 = vmatprep.subr.bf16.mxu0 0
      %1820 = vmatpush1.bf16.msra.mxu0 %v1779
      %1821 = vmatprep.subr.bf16.mxu0 0
      %1822 = vmatpush1.bf16.msra.mxu0 %v1778
      %1823 = vmatprep.subr.bf16.mxu0 0
      %1824 = vmatpush1.bf16.msra.mxu0 %v1777
      %1825 = vmatprep.subr.bf16.mxu0 0
      %1826 = vmatpush2.bf16.msra.mxu0 %v1792
      %1827 = vmatprep.subr.bf16.mxu0 0
      %1828 = vmatpush2.bf16.msra.mxu0 %v1791
      %1829 = vmatprep.subr.bf16.mxu0 0
      %1830 = vmatpush2.bf16.msra.mxu0 %v1790
      %1831 = vmatprep.subr.bf16.mxu0 0
      %1832 = vmatpush2.bf16.msra.mxu0 %v1789
      %1833 = vmatprep.subr.bf16.mxu0 0
      %1834 = vmatpush2.bf16.msra.mxu0 %v1788
      %1835 = vmatprep.subr.bf16.mxu0 0
      %1836 = vmatpush2.bf16.msra.mxu0 %v1787
      %1837 = vmatprep.subr.bf16.mxu0 0
      %1838 = vmatpush2.bf16.msra.mxu0 %v1786
      %1839 = vmatprep.subr.bf16.mxu0 0
      %1840 = vmatpush2.bf16.msra.mxu0 %v1785
      %1841 = vmatprep.mubr.bf16.mxu0 %v1680
      %1842 = vmatmul.mubr.bf16.gmra.mxu0 %v1679
      %v1843 = vpop.f32.mrf.mxu0
      %v1844 = vadd.f32 0.0, %v1843
      %v1845 = vpop.f32.mrf.mxu0
      %v1846 = vpop.f32.mrf.mxu0
      %v1847 = vpop.f32.mrf.mxu0
      %1848 = vdwg.mxu0
      %v1849 = vadd.f32 %v1533, %v1844
      %v1850 = vlaneseq
      %v1851 = vshrl.u32 %v1850, 7
      %v1852 = vsub.s32 0, %v1851
      %v1853 = vrot.slane %v372, %v1852
      %v1854 = vadd.f32 %v1849, %v1853
      %v1855 = vpack.c.bf16 %v1854, %v1854
      %vm1856 = vcmask 519168
      %1857 = vst.msk [vmem:[%s7] sm:$0xf] %vm1856, %v1855
      // Predicated region
      $region53: #{multi_encoder_forward.13} parent=47 // pred_check
        %p1858 = pneg %p208
      $region54: #{multi_encoder_forward.13} parent=47 // pred_check_branch
        %1860 = sbr.rel (%p1858) target = $region56
      $region55: #{multi_encoder_forward.13} parent=47 // pred_region
        _
      $region56: #{multi_encoder_forward.13} parent=47 // pred_fallthru
        _
      // Predicated region
      $region57: #{multi_encoder_forward.13} parent=47 // pred_check
        %p1861 = pneg %p208
      $region58: #{multi_encoder_forward.13} parent=47 // pred_check_branch
        %1863 = sbr.rel (%p1861) target = $region60
      $region59: #{multi_encoder_forward.13} parent=47 // pred_region
        _
      $region60: #{multi_encoder_forward.13} parent=47 // pred_fallthru
        _
    $region48: #{multi_encoder_forward.13} parent=5 // pred_fallthru
      _
    %p1864 = scmp.le.s32.totalorder 2, %s13
    // Predicated region
    $region61: #{multi_encoder_forward.13} parent=5 // pred_check
      %p1865 = pneg %p1864
    $region62: #{multi_encoder_forward.13} parent=5 // pred_check_branch
      %1867 = sbr.rel (%p1865) target = $region64
    $region63: #{multi_encoder_forward.13} parent=5 // pred_region
      %s1868 = ssub.s32 %s13, 2
    $region64: #{multi_encoder_forward.13} parent=5 // pred_fallthru
      _
  $region6: #{multi_encoder_forward.13} parent=0 // loop_footer
    %s17 = sadd.s32 1, %s13
  $region7: #{multi_encoder_forward.13} parent=0 // loop_footer_branch
    %12 = sbr.rel target = $region3
  $region8: #{multi_encoder_forward.13} parent=0 // loop_exit
    _

// kernel: multi_encoder_forward.15
$region0: #{multi_encoder_forward.15}
  #allocation0 [shape = 'u32[]', space=smem, size = 0x4, offset = 0x4, fixed_abs, tag = 'smem constant byte address 0x4 - core index']
  #allocation1 [shape = 'u32[144,128]{1,0:T(1,128)}', space=vmem, size = 0x12000, scoped, tag = 'internal scratch']
  %s0 = inlined_call_operand.vmem [shape: f32[2,2,128], index: 0, kind: input, shape index: {}]
  %s1 = inlined_call_operand.vmem [shape: f32[2,2,64], index: 1, kind: input, shape index: {}]
  %s2 = inlined_call_operand.vmem [shape: bf16[2,128,128], index: 2, kind: input, shape index: {}]
  %s3 = inlined_call_operand.vmem [shape: f32[2,1,128], index: 3, kind: input, shape index: {}]
  %s4 = inlined_call_operand.vmem [shape: bf16[2,128,128], index: 4, kind: input, shape index: {}]
  %s5 = inlined_call_operand.vmem [shape: f32[2,1,128], index: 5, kind: input, shape index: {}]
  %s6 = inlined_call_operand.hbm [shape: f32[2,64], index: 6, kind: output, shape index: {0}]
  %s7 = inlined_call_operand.hbm [shape: f32[2,64], index: 7, kind: output, shape index: {1}]
  %s8 = inlined_call_operand.hbm [shape: f32[1,1], index: 8, kind: output, shape index: {2}]
  %9 = xla_tuple %s6, %s7, %s8
  %s10 = sld [smem:[#allocation0]]
  $region50: #{multi_encoder_forward.15} parent=0
    _
  %s12 = ssub.s32 1, %s10
  %s13 = scalar_select 0, %s12, %s10
  $region1: #{multi_encoder_forward.15} parent=0
    #allocation2 [shape = 'u8[1024]{0}', space=vmem, size = 0x400, scoped, tag = 'output window, operand 0, single buffered']
    #allocation3 [shape = 's32[1]{0}', space=sflag, size = 0x4, scoped, tag = 'scoped memory for multi_encoder_forward.15']
    #allocation4 [shape = 'u8[1024]{0}', space=vmem, size = 0x400, scoped, tag = 'output window, operand 1, single buffered']
    #allocation5 [shape = 's32[1]{0}', space=sflag, size = 0x4, scoped, tag = 'scoped memory for multi_encoder_forward.15']
    #allocation6 [shape = 'u8[512]{0}', space=vmem, size = 0x400, scoped, tag = 'output window, operand 2, single buffered']
    %14 = vsyncpa [#allocation3], 0
    %15 = vsyncpa [#allocation5], 0
    // Predicated region
    $region2: #{multi_encoder_forward.15} parent=1 // pred_check
      _
    $region3: #{multi_encoder_forward.15} parent=1 // pred_check_branch
      %17 = sbr.rel (0) target = $region5
    $region4: #{multi_encoder_forward.15} parent=1 // pred_region
      _
    $region5: #{multi_encoder_forward.15} parent=1 // pred_fallthru
      _
    // Predicated region
    $region6: #{multi_encoder_forward.15} parent=1 // pred_check
      _
    $region7: #{multi_encoder_forward.15} parent=1 // pred_check_branch
      %19 = sbr.rel (0) target = $region9
    $region8: #{multi_encoder_forward.15} parent=1 // pred_region
      _
    $region9: #{multi_encoder_forward.15} parent=1 // pred_fallthru
      _
    // Predicated region
    $region10: #{multi_encoder_forward.15} parent=1 // pred_check
      _
    $region11: #{multi_encoder_forward.15} parent=1 // pred_check_branch
      %21 = sbr.rel (0) target = $region13
    $region12: #{multi_encoder_forward.15} parent=1 // pred_region
      _
    $region13: #{multi_encoder_forward.15} parent=1 // pred_fallthru
      _
    // Predicated region
    $region14: #{multi_encoder_forward.15} parent=1 // pred_check
      _
    $region15: #{multi_encoder_forward.15} parent=1 // pred_check_branch
      %23 = sbr.rel (0) target = $region17
    $region16: #{multi_encoder_forward.15} parent=1 // pred_region
      _
    $region17: #{multi_encoder_forward.15} parent=1 // pred_fallthru
      _
    // Predicated region
    $region18: #{multi_encoder_forward.15} parent=1 // pred_check
      _
    $region19: #{multi_encoder_forward.15} parent=1 // pred_check_branch
      %25 = sbr.rel (0) target = $region21
    $region20: #{multi_encoder_forward.15} parent=1 // pred_region
      _
    $region21: #{multi_encoder_forward.15} parent=1 // pred_fallthru
      _
    // Predicated region
    $region22: #{multi_encoder_forward.15} parent=1 // pred_check
      _
    $region23: #{multi_encoder_forward.15} parent=1 // pred_check_branch
      %27 = sbr.rel (0) target = $region25
    $region24: #{multi_encoder_forward.15} parent=1 // pred_region
      _
    $region25: #{multi_encoder_forward.15} parent=1 // pred_fallthru
      _
    %v29 = vld [vmem:[%s0] sm:$0x3]
    %v30 = vld [vmem:[%s0 + $0x2] sm:$0x3]
    %v31 = vpack.c.bf16 %v29, %v29
    %v32 = vpack.c.bf16 %v30, %v30
    %v33 = vld [vmem:[%s2] sm:$0xf]
    %v34 = vld [vmem:[%s2 + $0x4] sm:$0xf]
    %v35 = vld [vmem:[%s2 + $0x8] sm:$0xf]
    %v36 = vld [vmem:[%s2 + $0xc] sm:$0xf]
    %v37 = vld [vmem:[%s2 + $0x10] sm:$0xf]
    %v38 = vld [vmem:[%s2 + $0x14] sm:$0xf]
    %v39 = vld [vmem:[%s2 + $0x18] sm:$0xf]
    %v40 = vld [vmem:[%s2 + $0x1c] sm:$0xf]
    %v41 = vld [vmem:[%s2 + $0x20] sm:$0xf]
    %v42 = vld [vmem:[%s2 + $0x24] sm:$0xf]
    %v43 = vld [vmem:[%s2 + $0x28] sm:$0xf]
    %v44 = vld [vmem:[%s2 + $0x2c] sm:$0xf]
    %v45 = vld [vmem:[%s2 + $0x30] sm:$0xf]
    %v46 = vld [vmem:[%s2 + $0x34] sm:$0xf]
    %v47 = vld [vmem:[%s2 + $0x38] sm:$0xf]
    %v48 = vld [vmem:[%s2 + $0x3c] sm:$0xf]
    %v49 = vld [vmem:[%s2 + $0x40] sm:$0xf]
    %v50 = vld [vmem:[%s2 + $0x44] sm:$0xf]
    %v51 = vld [vmem:[%s2 + $0x48] sm:$0xf]
    %v52 = vld [vmem:[%s2 + $0x4c] sm:$0xf]
    %v53 = vld [vmem:[%s2 + $0x50] sm:$0xf]
    %v54 = vld [vmem:[%s2 + $0x54] sm:$0xf]
    %v55 = vld [vmem:[%s2 + $0x58] sm:$0xf]
    %v56 = vld [vmem:[%s2 + $0x5c] sm:$0xf]
    %v57 = vld [vmem:[%s2 + $0x60] sm:$0xf]
    %v58 = vld [vmem:[%s2 + $0x64] sm:$0xf]
    %v59 = vld [vmem:[%s2 + $0x68] sm:$0xf]
    %v60 = vld [vmem:[%s2 + $0x6c] sm:$0xf]
    %v61 = vld [vmem:[%s2 + $0x70] sm:$0xf]
    %v62 = vld [vmem:[%s2 + $0x74] sm:$0xf]
    %v63 = vld [vmem:[%s2 + $0x78] sm:$0xf]
    %v64 = vld [vmem:[%s2 + $0x7c] sm:$0xf]
    %v65 = vld [vmem:[%s3] sm:$0x1]
    %v66 = vld [vmem:[%s3 + $0x1] sm:$0x1]
    %v69 = vlaneseq
    %v70 = vshrl.u32 %v69, 7
    %v71 = vsub.s32 0, %v70
    %v72 = vrot.slane %v65, %v71
    %v73 = vlaneseq
    %v74 = vshrl.u32 %v73, 7
    %v75 = vsub.s32 0, %v74
    %v76 = vrot.slane %v66, %v75
    %v95 = vunpack.c.l.b16 %v33
    %v96 = vunpack.c.l.b16 %v34
    %v97 = vunpack.c.l.b16 %v35
    %v98 = vunpack.c.l.b16 %v36
    %v99 = vunpack.c.l.b16 %v37
    %v100 = vunpack.c.l.b16 %v38
    %v101 = vunpack.c.l.b16 %v39
    %v102 = vunpack.c.l.b16 %v40
    %v103 = vunpack.c.l.b16 %v41
    %v104 = vunpack.c.l.b16 %v42
    %v105 = vunpack.c.l.b16 %v43
    %v106 = vunpack.c.l.b16 %v44
    %v107 = vunpack.c.l.b16 %v45
    %v108 = vunpack.c.l.b16 %v46
    %v109 = vunpack.c.l.b16 %v47
    %v110 = vunpack.c.l.b16 %v48
    %v111 = vpack.c.b16 %v96, %v95
    %v112 = vpack.c.b16 %v98, %v97
    %v113 = vpack.c.b16 %v100, %v99
    %v114 = vpack.c.b16 %v102, %v101
    %v115 = vpack.c.b16 %v104, %v103
    %v116 = vpack.c.b16 %v106, %v105
    %v117 = vpack.c.b16 %v108, %v107
    %v118 = vpack.c.b16 %v110, %v109
    %127 = vmatprep.subr.bf16.mxu0 0
    %128 = vmatpush1.bf16.msra.mxu0 %v118
    %129 = vmatprep.subr.bf16.mxu0 0
    %130 = vmatpush1.bf16.msra.mxu0 %v117
    %131 = vmatprep.subr.bf16.mxu0 0
    %132 = vmatpush1.bf16.msra.mxu0 %v116
    %133 = vmatprep.subr.bf16.mxu0 0
    %134 = vmatpush1.bf16.msra.mxu0 %v115
    %135 = vmatprep.subr.bf16.mxu0 0
    %136 = vmatpush1.bf16.msra.mxu0 %v114
    %137 = vmatprep.subr.bf16.mxu0 0
    %138 = vmatpush1.bf16.msra.mxu0 %v113
    %139 = vmatprep.subr.bf16.mxu0 0
    %140 = vmatpush1.bf16.msra.mxu0 %v112
    %141 = vmatprep.subr.bf16.mxu0 0
    %142 = vmatpush1.bf16.msra.mxu0 %v111
    %143 = vmatprep.subr.bf16.mxu0 0
    %144 = vmatpush2.bf16.msra.mxu0 0
    %145 = vmatprep.subr.bf16.mxu0 0
    %146 = vmatpush2.bf16.msra.mxu0 0
    %147 = vmatprep.subr.bf16.mxu0 0
    %148 = vmatpush2.bf16.msra.mxu0 0
    %149 = vmatprep.subr.bf16.mxu0 0
    %150 = vmatpush2.bf16.msra.mxu0 0
    %151 = vmatprep.subr.bf16.mxu0 0
    %152 = vmatpush2.bf16.msra.mxu0 0
    %153 = vmatprep.subr.bf16.mxu0 0
    %154 = vmatpush2.bf16.msra.mxu0 0
    %155 = vmatprep.subr.bf16.mxu0 0
    %156 = vmatpush2.bf16.msra.mxu0 0
    %157 = vmatprep.subr.bf16.mxu0 0
    %158 = vmatpush2.bf16.msra.mxu0 0
    %159 = vmatprep.mubr.bf16.mxu0 0
    %160 = vmatmul.mubr.bf16.gmra.mxu0 %v31
    %v161 = vpop.f32.mrf.mxu0
    %v162 = vadd.f32 %v72, %v161
    %v163 = vpop.f32.mrf.mxu0
    %v164 = vpop.f32.mrf.mxu0
    %v165 = vpop.f32.mrf.mxu0
    %166 = vdwg.mxu0
    %v183 = vunpack.c.l.b16 %v49
    %v184 = vunpack.c.l.b16 %v50
    %v185 = vunpack.c.l.b16 %v51
    %v186 = vunpack.c.l.b16 %v52
    %v187 = vunpack.c.l.b16 %v53
    %v188 = vunpack.c.l.b16 %v54
    %v189 = vunpack.c.l.b16 %v55
    %v190 = vunpack.c.l.b16 %v56
    %v191 = vunpack.c.l.b16 %v57
    %v192 = vunpack.c.l.b16 %v58
    %v193 = vunpack.c.l.b16 %v59
    %v194 = vunpack.c.l.b16 %v60
    %v195 = vunpack.c.l.b16 %v61
    %v196 = vunpack.c.l.b16 %v62
    %v197 = vunpack.c.l.b16 %v63
    %v198 = vunpack.c.l.b16 %v64
    %v199 = vpack.c.b16 %v184, %v183
    %v200 = vpack.c.b16 %v186, %v185
    %v201 = vpack.c.b16 %v188, %v187
    %v202 = vpack.c.b16 %v190, %v189
    %v203 = vpack.c.b16 %v192, %v191
    %v204 = vpack.c.b16 %v194, %v193
    %v205 = vpack.c.b16 %v196, %v195
    %v206 = vpack.c.b16 %v198, %v197
    %215 = vmatprep.subr.bf16.mxu0 0
    %216 = vmatpush1.bf16.msra.mxu0 %v206
    %217 = vmatprep.subr.bf16.mxu0 0
    %218 = vmatpush1.bf16.msra.mxu0 %v205
    %219 = vmatprep.subr.bf16.mxu0 0
    %220 = vmatpush1.bf16.msra.mxu0 %v204
    %221 = vmatprep.subr.bf16.mxu0 0
    %222 = vmatpush1.bf16.msra.mxu0 %v203
    %223 = vmatprep.subr.bf16.mxu0 0
    %224 = vmatpush1.bf16.msra.mxu0 %v202
    %225 = vmatprep.subr.bf16.mxu0 0
    %226 = vmatpush1.bf16.msra.mxu0 %v201
    %227 = vmatprep.subr.bf16.mxu0 0
    %228 = vmatpush1.bf16.msra.mxu0 %v200
    %229 = vmatprep.subr.bf16.mxu0 0
    %230 = vmatpush1.bf16.msra.mxu0 %v199
    %231 = vmatprep.subr.bf16.mxu0 0
    %232 = vmatpush2.bf16.msra.mxu0 0
    %233 = vmatprep.subr.bf16.mxu0 0
    %234 = vmatpush2.bf16.msra.mxu0 0
    %235 = vmatprep.subr.bf16.mxu0 0
    %236 = vmatpush2.bf16.msra.mxu0 0
    %237 = vmatprep.subr.bf16.mxu0 0
    %238 = vmatpush2.bf16.msra.mxu0 0
    %239 = vmatprep.subr.bf16.mxu0 0
    %240 = vmatpush2.bf16.msra.mxu0 0
    %241 = vmatprep.subr.bf16.mxu0 0
    %242 = vmatpush2.bf16.msra.mxu0 0
    %243 = vmatprep.subr.bf16.mxu0 0
    %244 = vmatpush2.bf16.msra.mxu0 0
    %245 = vmatprep.subr.bf16.mxu0 0
    %246 = vmatpush2.bf16.msra.mxu0 0
    %247 = vmatprep.mubr.bf16.mxu0 0
    %248 = vmatmul.mubr.bf16.gmra.mxu0 %v32
    %v249 = vpop.f32.mrf.mxu0
    %v250 = vadd.f32 %v76, %v249
    %v251 = vpop.f32.mrf.mxu0
    %v252 = vpop.f32.mrf.mxu0
    %v253 = vpop.f32.mrf.mxu0
    %254 = vdwg.mxu0
    %v255 = vmax.f32 %v162, 0.0
    %v256 = vmax.f32 %v250, 0.0
    %v257 = vpack.c.bf16 %v255, %v255
    %v258 = vpack.c.bf16 %v256, %v256
    %v259 = vld [vmem:[%s4] sm:$0xf]
    %v260 = vld [vmem:[%s4 + $0x4] sm:$0xf]
    %v261 = vld [vmem:[%s4 + $0x8] sm:$0xf]
    %v262 = vld [vmem:[%s4 + $0xc] sm:$0xf]
    %v263 = vld [vmem:[%s4 + $0x10] sm:$0xf]
    %v264 = vld [vmem:[%s4 + $0x14] sm:$0xf]
    %v265 = vld [vmem:[%s4 + $0x18] sm:$0xf]
    %v266 = vld [vmem:[%s4 + $0x1c] sm:$0xf]
    %v267 = vld [vmem:[%s4 + $0x20] sm:$0xf]
    %v268 = vld [vmem:[%s4 + $0x24] sm:$0xf]
    %v269 = vld [vmem:[%s4 + $0x28] sm:$0xf]
    %v270 = vld [vmem:[%s4 + $0x2c] sm:$0xf]
    %v271 = vld [vmem:[%s4 + $0x30] sm:$0xf]
    %v272 = vld [vmem:[%s4 + $0x34] sm:$0xf]
    %v273 = vld [vmem:[%s4 + $0x38] sm:$0xf]
    %v274 = vld [vmem:[%s4 + $0x3c] sm:$0xf]
    %v275 = vld [vmem:[%s4 + $0x40] sm:$0xf]
    %v276 = vld [vmem:[%s4 + $0x44] sm:$0xf]
    %v277 = vld [vmem:[%s4 + $0x48] sm:$0xf]
    %v278 = vld [vmem:[%s4 + $0x4c] sm:$0xf]
    %v279 = vld [vmem:[%s4 + $0x50] sm:$0xf]
    %v280 = vld [vmem:[%s4 + $0x54] sm:$0xf]
    %v281 = vld [vmem:[%s4 + $0x58] sm:$0xf]
    %v282 = vld [vmem:[%s4 + $0x5c] sm:$0xf]
    %v283 = vld [vmem:[%s4 + $0x60] sm:$0xf]
    %v284 = vld [vmem:[%s4 + $0x64] sm:$0xf]
    %v285 = vld [vmem:[%s4 + $0x68] sm:$0xf]
    %v286 = vld [vmem:[%s4 + $0x6c] sm:$0xf]
    %v287 = vld [vmem:[%s4 + $0x70] sm:$0xf]
    %v288 = vld [vmem:[%s4 + $0x74] sm:$0xf]
    %v289 = vld [vmem:[%s4 + $0x78] sm:$0xf]
    %v290 = vld [vmem:[%s4 + $0x7c] sm:$0xf]
    %v291 = vld [vmem:[%s5] sm:$0x1]
    %v292 = vld [vmem:[%s5 + $0x1] sm:$0x1]
    %v295 = vlaneseq
    %v296 = vshrl.u32 %v295, 7
    %v297 = vsub.s32 0, %v296
    %v298 = vrot.slane %v291, %v297
    %v299 = vlaneseq
    %v300 = vshrl.u32 %v299, 7
    %v301 = vsub.s32 0, %v300
    %v302 = vrot.slane %v292, %v301
    %v321 = vunpack.c.l.b16 %v259
    %v322 = vunpack.c.l.b16 %v260
    %v323 = vunpack.c.l.b16 %v261
    %v324 = vunpack.c.l.b16 %v262
    %v325 = vunpack.c.l.b16 %v263
    %v326 = vunpack.c.l.b16 %v264
    %v327 = vunpack.c.l.b16 %v265
    %v328 = vunpack.c.l.b16 %v266
    %v329 = vunpack.c.l.b16 %v267
    %v330 = vunpack.c.l.b16 %v268
    %v331 = vunpack.c.l.b16 %v269
    %v332 = vunpack.c.l.b16 %v270
    %v333 = vunpack.c.l.b16 %v271
    %v334 = vunpack.c.l.b16 %v272
    %v335 = vunpack.c.l.b16 %v273
    %v336 = vunpack.c.l.b16 %v274
    %v337 = vpack.c.b16 %v322, %v321
    %v338 = vpack.c.b16 %v324, %v323
    %v339 = vpack.c.b16 %v326, %v325
    %v340 = vpack.c.b16 %v328, %v327
    %v341 = vpack.c.b16 %v330, %v329
    %v342 = vpack.c.b16 %v332, %v331
    %v343 = vpack.c.b16 %v334, %v333
    %v344 = vpack.c.b16 %v336, %v335
    %353 = vmatprep.subr.bf16.mxu0 0
    %354 = vmatpush1.bf16.msra.mxu0 %v344
    %355 = vmatprep.subr.bf16.mxu0 0
    %356 = vmatpush1.bf16.msra.mxu0 %v343
    %357 = vmatprep.subr.bf16.mxu0 0
    %358 = vmatpush1.bf16.msra.mxu0 %v342
    %359 = vmatprep.subr.bf16.mxu0 0
    %360 = vmatpush1.bf16.msra.mxu0 %v341
    %361 = vmatprep.subr.bf16.mxu0 0
    %362 = vmatpush1.bf16.msra.mxu0 %v340
    %363 = vmatprep.subr.bf16.mxu0 0
    %364 = vmatpush1.bf16.msra.mxu0 %v339
    %365 = vmatprep.subr.bf16.mxu0 0
    %366 = vmatpush1.bf16.msra.mxu0 %v338
    %367 = vmatprep.subr.bf16.mxu0 0
    %368 = vmatpush1.bf16.msra.mxu0 %v337
    %369 = vmatprep.subr.bf16.mxu0 0
    %370 = vmatpush2.bf16.msra.mxu0 0
    %371 = vmatprep.subr.bf16.mxu0 0
    %372 = vmatpush2.bf16.msra.mxu0 0
    %373 = vmatprep.subr.bf16.mxu0 0
    %374 = vmatpush2.bf16.msra.mxu0 0
    %375 = vmatprep.subr.bf16.mxu0 0
    %376 = vmatpush2.bf16.msra.mxu0 0
    %377 = vmatprep.subr.bf16.mxu0 0
    %378 = vmatpush2.bf16.msra.mxu0 0
    %379 = vmatprep.subr.bf16.mxu0 0
    %380 = vmatpush2.bf16.msra.mxu0 0
    %381 = vmatprep.subr.bf16.mxu0 0
    %382 = vmatpush2.bf16.msra.mxu0 0
    %383 = vmatprep.subr.bf16.mxu0 0
    %384 = vmatpush2.bf16.msra.mxu0 0
    %385 = vmatprep.mubr.bf16.mxu0 0
    %386 = vmatmul.mubr.bf16.gmra.mxu0 %v257
    %v387 = vpop.f32.mrf.mxu0
    %v388 = vadd.f32 %v298, %v387
    %v389 = vpop.f32.mrf.mxu0
    %v390 = vpop.f32.mrf.mxu0
    %v391 = vpop.f32.mrf.mxu0
    %392 = vdwg.mxu0
    %v409 = vunpack.c.l.b16 %v275
    %v410 = vunpack.c.l.b16 %v276
    %v411 = vunpack.c.l.b16 %v277
    %v412 = vunpack.c.l.b16 %v278
    %v413 = vunpack.c.l.b16 %v279
    %v414 = vunpack.c.l.b16 %v280
    %v415 = vunpack.c.l.b16 %v281
    %v416 = vunpack.c.l.b16 %v282
    %v417 = vunpack.c.l.b16 %v283
    %v418 = vunpack.c.l.b16 %v284
    %v419 = vunpack.c.l.b16 %v285
    %v420 = vunpack.c.l.b16 %v286
    %v421 = vunpack.c.l.b16 %v287
    %v422 = vunpack.c.l.b16 %v288
    %v423 = vunpack.c.l.b16 %v289
    %v424 = vunpack.c.l.b16 %v290
    %v425 = vpack.c.b16 %v410, %v409
    %v426 = vpack.c.b16 %v412, %v411
    %v427 = vpack.c.b16 %v414, %v413
    %v428 = vpack.c.b16 %v416, %v415
    %v429 = vpack.c.b16 %v418, %v417
    %v430 = vpack.c.b16 %v420, %v419
    %v431 = vpack.c.b16 %v422, %v421
    %v432 = vpack.c.b16 %v424, %v423
    %441 = vmatprep.subr.bf16.mxu0 0
    %442 = vmatpush1.bf16.msra.mxu0 %v432
    %443 = vmatprep.subr.bf16.mxu0 0
    %444 = vmatpush1.bf16.msra.mxu0 %v431
    %445 = vmatprep.subr.bf16.mxu0 0
    %446 = vmatpush1.bf16.msra.mxu0 %v430
    %447 = vmatprep.subr.bf16.mxu0 0
    %448 = vmatpush1.bf16.msra.mxu0 %v429
    %449 = vmatprep.subr.bf16.mxu0 0
    %450 = vmatpush1.bf16.msra.mxu0 %v428
    %451 = vmatprep.subr.bf16.mxu0 0
    %452 = vmatpush1.bf16.msra.mxu0 %v427
    %453 = vmatprep.subr.bf16.mxu0 0
    %454 = vmatpush1.bf16.msra.mxu0 %v426
    %455 = vmatprep.subr.bf16.mxu0 0
    %456 = vmatpush1.bf16.msra.mxu0 %v425
    %457 = vmatprep.subr.bf16.mxu0 0
    %458 = vmatpush2.bf16.msra.mxu0 0
    %459 = vmatprep.subr.bf16.mxu0 0
    %460 = vmatpush2.bf16.msra.mxu0 0
    %461 = vmatprep.subr.bf16.mxu0 0
    %462 = vmatpush2.bf16.msra.mxu0 0
    %463 = vmatprep.subr.bf16.mxu0 0
    %464 = vmatpush2.bf16.msra.mxu0 0
    %465 = vmatprep.subr.bf16.mxu0 0
    %466 = vmatpush2.bf16.msra.mxu0 0
    %467 = vmatprep.subr.bf16.mxu0 0
    %468 = vmatpush2.bf16.msra.mxu0 0
    %469 = vmatprep.subr.bf16.mxu0 0
    %470 = vmatpush2.bf16.msra.mxu0 0
    %471 = vmatprep.subr.bf16.mxu0 0
    %472 = vmatpush2.bf16.msra.mxu0 0
    %473 = vmatprep.mubr.bf16.mxu0 0
    %474 = vmatmul.mubr.bf16.gmra.mxu0 %v258
    %v475 = vpop.f32.mrf.mxu0
    %v476 = vadd.f32 %v302, %v475
    %v477 = vpop.f32.mrf.mxu0
    %v478 = vpop.f32.mrf.mxu0
    %v479 = vpop.f32.mrf.mxu0
    %480 = vdwg.mxu0
    %v481 = vmax.f32 %v388, 0.0
    %v482 = vmax.f32 %v476, 0.0
    %v483 = vand.u32 2147483647, %v388
    %v484 = vand.u32 2147483647, %v476
    %v485 = vsub.f32 0.0, %v483
    %v486 = vsub.f32 0.0, %v484
    %v487 = vmul.f32 %v485, 1.442695
    %v488 = vpow.pop %v487
    %v489 = vmul.f32 %v486, 1.442695
    %v490 = vpow.pop %v489
    %v491 = vadd.f32 %v488, 1.0
    %v492 = vadd.f32 %v490, 1.0
    %v493 = vlog2.pop %v491
    %v494 = vmul.f32 %v493, 0.6931472
    %v495 = vlog2.pop %v492
    %v496 = vmul.f32 %v495, 0.6931472
    %v497 = vadd.f32 %v481, %v494
    %v498 = vadd.f32 %v482, %v496
    %v499 = vadd.f32 %v497, 1e-06
    %v500 = vadd.f32 %v498, 1e-06
    %v501 = vld [vmem:[%s1] sm:$0x3]
    %v502 = vld [vmem:[%s1 + $0x2] sm:$0x3]
    %505 = vrot.lane.b32.xlu0 %v501, 64
    %v506 = vpop.permute.xlu0 %505
    %507 = vrot.lane.b32.xlu0 %v502, 64
    %v508 = vpop.permute.xlu0 %507
    %v511 = vmul.f32 %v499, %v506
    %v512 = vmul.f32 %v500, %v508
    %515 = vrot.lane.b32.xlu0 %v511, 64
    %v516 = vpop.permute.xlu0 %515
    %517 = vrot.lane.b32.xlu0 %v512, 64
    %v518 = vpop.permute.xlu0 %517
    %v521 = vadd.f32 %v388, %v516
    %v522 = vadd.f32 %v476, %v518
    %vm523 = vcmask 517120
    %524 = vst.msk [vmem:[#allocation2] sm:$0x3] %vm523, %v521
    %525 = vst.msk [vmem:[#allocation4] sm:$0x3] %vm523, %v522
    %v526 = vmul.f32 %v499, %v499
    %v527 = vadd.f32 %v526, 1e-08
    %v528 = vmul.f32 %v500, %v500
    %v529 = vadd.f32 %v528, 1e-08
    %v530 = vlog2.pop %v529
    %v531 = vmul.f32 %v530, 0.6931472
    %v532 = vlog2.pop %v527
    %v533 = vmul.f32 %v532, 0.6931472
    %v534 = vsub.f32 %v531, %v533
    %v535 = vmul.f32 %v534, 0.5
    %v536 = vsub.f32 %v388, %v476
    %v537 = vmul.f32 %v536, %v536
    %539 = vrot.lane.b32.xlu0 %v537, 64
    %v540 = vpop.permute.xlu0 %539
    %v542 = vadd.f32 %v527, %v540
    %v543 = vmul.f32 %v529, 2.0
    %v544 = vrcp.pop %v543
    %v545 = vmul.f32 %v542, %v544
    %v546 = vadd.f32 %v535, %v545
    %v547 = vsub.f32 %v546, 0.5
    %v548 = vsub.f32 %v533, %v531
    %v549 = vmul.f32 %v548, 0.5
    %v550 = vsub.f32 %v476, %v388
    %v551 = vmul.f32 %v550, %v550
    %553 = vrot.lane.b32.xlu0 %v551, 64
    %v554 = vpop.permute.xlu0 %553
    %v556 = vadd.f32 %v529, %v554
    %v557 = vmul.f32 %v527, 2.0
    %v558 = vrcp.pop %v557
    %v559 = vmul.f32 %v556, %v558
    %v560 = vadd.f32 %v549, %v559
    %v561 = vsub.f32 %v560, 0.5
    %563 = vrot.lane.b32.xlu0 %v547, 64
    %v564 = vpop.permute.xlu0 %563
    %v566 = vsel %vm523, %v564, 0.0
    %567 = vadd.xlane.f32.xlu0 %v566
    %v568 = vpop.xlane.xlu0 %567
    %v569 = vrot.slane %v568, 4
    %v570 = vadd.f32 %v568, %v569
    %v571 = vrot.slane %v570, 2
    %v572 = vadd.f32 %v570, %v571
    %v573 = vrot.slane %v572, 1
    %v574 = vadd.f32 %v572, %v573
    %s575 = vtos %v574
    %v576 = vstv %s575
    %v577 = vrcp.pop 128.0
    %v578 = vmul.f32 %v576, %v577
    %580 = vrot.lane.b32.xlu0 %v561, 64
    %v581 = vpop.permute.xlu0 %580
    %v583 = vsel %vm523, %v581, 0.0
    %584 = vadd.xlane.f32.xlu0 %v583
    %v585 = vpop.xlane.xlu0 %584
    %v586 = vrot.slane %v585, 4
    %v587 = vadd.f32 %v585, %v586
    %v588 = vrot.slane %v587, 2
    %v589 = vadd.f32 %v587, %v588
    %v590 = vrot.slane %v589, 1
    %v591 = vadd.f32 %v589, %v590
    %s592 = vtos %v591
    %v593 = vstv %s592
    %v594 = vmul.f32 %v593, %v577
    %v595 = vadd.f32 %v578, %v594
    %v596 = vmul.f32 %v595, 0.5
    %vm597 = vcmask 0
    %598 = vst.msk [vmem:[#allocation6] sm:$0x1] %vm597, %v596
    // Predicated region
    $region26: #{multi_encoder_forward.15} parent=1 // pred_check
      _
    $region27: #{multi_encoder_forward.15} parent=1 // pred_check_branch
      %600 = sbr.rel (0) target = $region29
    $region28: #{multi_encoder_forward.15} parent=1 // pred_region
      %s602 = ssub.s32 32, 32
      %603 = vsyncadd [#allocation3], %s602
      %s605 = sshll.u32 [#allocation2], 4
      %s606 = int_to_ptr.vmem [resolvable:$true] %s605
      %608 = dma.vmem_to_hbm [thread:$0]  %s606, 32, %s6, [#allocation3]
    $region29: #{multi_encoder_forward.15} parent=1 // pred_fallthru
      _
    // Predicated region
    $region30: #{multi_encoder_forward.15} parent=1 // pred_check
      _
    $region31: #{multi_encoder_forward.15} parent=1 // pred_check_branch
      %610 = sbr.rel (0) target = $region33
    $region32: #{multi_encoder_forward.15} parent=1 // pred_region
      %s612 = ssub.s32 32, 32
      %613 = vsyncadd [#allocation5], %s612
      %s615 = sshll.u32 [#allocation4], 4
      %s616 = int_to_ptr.vmem [resolvable:$true] %s615
      %618 = dma.vmem_to_hbm [thread:$0]  %s616, 32, %s7, [#allocation5]
    $region33: #{multi_encoder_forward.15} parent=1 // pred_fallthru
      _
    // Predicated region
    $region34: #{multi_encoder_forward.15} parent=1 // pred_check
      _
    $region35: #{multi_encoder_forward.15} parent=1 // pred_check_branch
      %620 = sbr.rel (0) target = $region37
    $region36: #{multi_encoder_forward.15} parent=1 // pred_region
      %s622 = ssub.s32 16, 16
      %623 = vsyncadd [#allocation5], %s622
      %s625 = sshll.u32 [#allocation6], 4
      %s626 = int_to_ptr.vmem [resolvable:$true] %s625
      %628 = dma.vmem_to_hbm [thread:$0]  %s626, 16, %s8, [#allocation5]
    $region37: #{multi_encoder_forward.15} parent=1 // pred_fallthru
      _
    // Predicated region
    $region38: #{multi_encoder_forward.15} parent=1 // pred_check
      _
    $region39: #{multi_encoder_forward.15} parent=1 // pred_check_branch
      %630 = sbr.rel (0) target = $region41
    $region40: #{multi_encoder_forward.15} parent=1 // pred_region
      %631 = dma.done [#allocation3], 32
    $region41: #{multi_encoder_forward.15} parent=1 // pred_fallthru
      _
    // Predicated region
    $region42: #{multi_encoder_forward.15} parent=1 // pred_check
      _
    $region43: #{multi_encoder_forward.15} parent=1 // pred_check_branch
      %633 = sbr.rel (0) target = $region45
    $region44: #{multi_encoder_forward.15} parent=1 // pred_region
      %634 = dma.done [#allocation5], 32
    $region45: #{multi_encoder_forward.15} parent=1 // pred_fallthru
      _
    // Predicated region
    $region46: #{multi_encoder_forward.15} parent=1 // pred_check
      _
    $region47: #{multi_encoder_forward.15} parent=1 // pred_check_branch
      %636 = sbr.rel (0) target = $region49
    $region48: #{multi_encoder_forward.15} parent=1 // pred_region
      %637 = dma.done [#allocation5], 16
    $region49: #{multi_encoder_forward.15} parent=1 // pred_fallthru
      _
    %638 = vsyncpa [#allocation3], 1
    %639 = vsyncpa [#allocation5], 1

// kernel: multi_encoder_forward.14
$region0: #{multi_encoder_forward.14}
  #allocation0 [shape = 'u32[]', space=smem, size = 0x4, offset = 0x4, fixed_abs, tag = 'smem constant byte address 0x4 - core index']
  #allocation1 [shape = 'u32[144,128]{1,0:T(1,128)}', space=vmem, size = 0x12000, scoped, tag = 'internal scratch']
  %s0 = inlined_call_operand.vmem [shape: bf16[8,128], index: 0, kind: input, shape index: {}]
  %s1 = inlined_call_operand.vmem [shape: bf16[8,64], index: 1, kind: input, shape index: {}]
  %s2 = inlined_call_operand.vmem [shape: f32[3,128], index: 2, kind: input, shape index: {}]
  %s3 = inlined_call_operand.vmem [shape: f32[2,64], index: 3, kind: input, shape index: {}]
  %s4 = inlined_call_operand.vmem [shape: bf16[64,128], index: 4, kind: input, shape index: {}]
  %s5 = inlined_call_operand.vmem [shape: bf16[2,128,128], index: 5, kind: input, shape index: {}]
  %s6 = inlined_call_operand.vmem [shape: bf16[2,128,128], index: 6, kind: input, shape index: {}]
  %s7 = inlined_call_operand.vmem [shape: bf16[2,128,256], index: 7, kind: input, shape index: {}]
  %s8 = inlined_call_operand.vmem [shape: bf16[2,256,128], index: 8, kind: input, shape index: {}]
  %s9 = inlined_call_operand.vmem [shape: f32[2,7,128], index: 9, kind: input, shape index: {}]
  %s10 = inlined_call_operand.vmem [shape: f32[2,1,256], index: 10, kind: input, shape index: {}]
  %s11 = inlined_call_operand.vmem [shape: f32[2,128], index: 11, kind: output, shape index: {0}]
  %s12 = inlined_call_operand.vmem [shape: f32[2,128], index: 12, kind: output, shape index: {1}]
  %13 = xla_tuple %s11, %s12
  %s14 = sld [smem:[#allocation0]]
  $region62: #{multi_encoder_forward.14} parent=0
    _
  %s16 = ssub.s32 1, %s14
  %s17 = scalar_select 0, %s16, %s14
  // Predicated region
  $region2: #{multi_encoder_forward.14} parent=0 // pred_check
    _
  $region3: #{multi_encoder_forward.14} parent=0 // pred_check_branch
    %19 = sbr.rel (0) target = $region5
  $region4: #{multi_encoder_forward.14} parent=0 // pred_region
    _
  $region5: #{multi_encoder_forward.14} parent=0 // pred_fallthru
    _
  // Predicated region
  $region6: #{multi_encoder_forward.14} parent=0 // pred_check
    _
  $region7: #{multi_encoder_forward.14} parent=0 // pred_check_branch
    %21 = sbr.rel (0) target = $region9
  $region8: #{multi_encoder_forward.14} parent=0 // pred_region
    _
  $region9: #{multi_encoder_forward.14} parent=0 // pred_fallthru
    _
  // Predicated region
  $region10: #{multi_encoder_forward.14} parent=0 // pred_check
    _
  $region11: #{multi_encoder_forward.14} parent=0 // pred_check_branch
    %23 = sbr.rel (0) target = $region13
  $region12: #{multi_encoder_forward.14} parent=0 // pred_region
    _
  $region13: #{multi_encoder_forward.14} parent=0 // pred_fallthru
    _
  // Predicated region
  $region14: #{multi_encoder_forward.14} parent=0 // pred_check
    _
  $region15: #{multi_encoder_forward.14} parent=0 // pred_check_branch
    %25 = sbr.rel (0) target = $region17
  $region16: #{multi_encoder_forward.14} parent=0 // pred_region
    _
  $region17: #{multi_encoder_forward.14} parent=0 // pred_fallthru
    _
  // Predicated region
  $region18: #{multi_encoder_forward.14} parent=0 // pred_check
    _
  $region19: #{multi_encoder_forward.14} parent=0 // pred_check_branch
    %27 = sbr.rel (0) target = $region21
  $region20: #{multi_encoder_forward.14} parent=0 // pred_region
    _
  $region21: #{multi_encoder_forward.14} parent=0 // pred_fallthru
    _
  // Predicated region
  $region22: #{multi_encoder_forward.14} parent=0 // pred_check
    _
  $region23: #{multi_encoder_forward.14} parent=0 // pred_check_branch
    %29 = sbr.rel (0) target = $region25
  $region24: #{multi_encoder_forward.14} parent=0 // pred_region
    _
  $region25: #{multi_encoder_forward.14} parent=0 // pred_fallthru
    _
  // Predicated region
  $region26: #{multi_encoder_forward.14} parent=0 // pred_check
    _
  $region27: #{multi_encoder_forward.14} parent=0 // pred_check_branch
    %31 = sbr.rel (0) target = $region29
  $region28: #{multi_encoder_forward.14} parent=0 // pred_region
    _
  $region29: #{multi_encoder_forward.14} parent=0 // pred_fallthru
    _
  // Predicated region
  $region30: #{multi_encoder_forward.14} parent=0 // pred_check
    _
  $region31: #{multi_encoder_forward.14} parent=0 // pred_check_branch
    %33 = sbr.rel (0) target = $region33
  $region32: #{multi_encoder_forward.14} parent=0 // pred_region
    _
  $region33: #{multi_encoder_forward.14} parent=0 // pred_fallthru
    _
  // Predicated region
  $region34: #{multi_encoder_forward.14} parent=0 // pred_check
    _
  $region35: #{multi_encoder_forward.14} parent=0 // pred_check_branch
    %35 = sbr.rel (0) target = $region37
  $region36: #{multi_encoder_forward.14} parent=0 // pred_region
    _
  $region37: #{multi_encoder_forward.14} parent=0 // pred_fallthru
    _
  // Predicated region
  $region38: #{multi_encoder_forward.14} parent=0 // pred_check
    _
  $region39: #{multi_encoder_forward.14} parent=0 // pred_check_branch
    %37 = sbr.rel (0) target = $region41
  $region40: #{multi_encoder_forward.14} parent=0 // pred_region
    _
  $region41: #{multi_encoder_forward.14} parent=0 // pred_fallthru
    _
  // Predicated region
  $region42: #{multi_encoder_forward.14} parent=0 // pred_check
    _
  $region43: #{multi_encoder_forward.14} parent=0 // pred_check_branch
    %39 = sbr.rel (0) target = $region45
  $region44: #{multi_encoder_forward.14} parent=0 // pred_region
    _
  $region45: #{multi_encoder_forward.14} parent=0 // pred_fallthru
    _
  %v41 = vld [vmem:[%s0] sm:$0xf]
  %v42 = vunpack.c.l.bf16 %v41
  %v43 = vld [vmem:[%s1] sm:$0xf]
  %v44 = vunpack.c.l.bf16 %v43
  %v45 = vld [vmem:[%s2] sm:$0x7]
  %v46 = vld [vmem:[%s3] sm:$0x3]
  %v47 = vld [vmem:[%s4] sm:$0xf]
  %v48 = vld [vmem:[%s4 + $0x4] sm:$0xf]
  %v49 = vld [vmem:[%s4 + $0x8] sm:$0xf]
  %v50 = vld [vmem:[%s4 + $0xc] sm:$0xf]
  %v51 = vld [vmem:[%s4 + $0x10] sm:$0xf]
  %v52 = vld [vmem:[%s4 + $0x14] sm:$0xf]
  %v53 = vld [vmem:[%s4 + $0x18] sm:$0xf]
  %v54 = vld [vmem:[%s4 + $0x1c] sm:$0xf]
  %v56 = vcombine.high %v42, %v42
  %vm58 = vcmask 1043456
  %v59 = vsel %vm58, %v42, 0.0
  %v60 = vrot.slane %v59, 4
  %v61 = vadd.f32 %v59, %v60
  %v62 = vrot.slane %v61, 2
  %v63 = vadd.f32 %v61, %v62
  %v64 = vrot.slane %v63, 1
  %v65 = vadd.f32 %v63, %v64
  %v66 = vsel %vm58, %v56, 0.0
  %v67 = vrot.slane %v66, 4
  %v68 = vadd.f32 %v66, %v67
  %v69 = vrot.slane %v68, 2
  %v70 = vadd.f32 %v68, %v69
  %v71 = vrot.slane %v70, 1
  %v72 = vadd.f32 %v70, %v71
  %v73 = vrcp.pop 4.0
  %v74 = vmul.f32 %v65, %v73
  %v75 = vmul.f32 %v72, %v73
  %vm78 = vcmask 1041409
  %v79 = vsel %vm78, %v75, %v74
  %vm81 = vcmask 1041408
  %v82 = vsel %vm81, %v79, 0.0
  %83 = vadd.xlane.f32.xlu0 %v82
  %v84 = vpop.xlane.xlu0 %83
  %v85 = vrcp.pop 128.0
  %v86 = vmul.f32 %v84, %v85
  %v88 = vrot.slane %v86, 1
  %v91 = vsub.f32 %v74, %v86
  %v92 = vsub.f32 %v75, %v88
  %v93 = vmul.f32 %v91, %v91
  %v94 = vmul.f32 %v92, %v92
  %v97 = vrot.slane %v94, 7
  %v98 = vsel %vm78, %v97, %v93
  %v100 = vsel %vm81, %v98, 0.0
  %101 = vadd.xlane.f32.xlu0 %v100
  %v102 = vpop.xlane.xlu0 %101
  %v103 = vmul.f32 %v102, %v85
  %v104 = vadd.f32 %v103, 1e-05
  %v105 = vrsqrt.pop %v104
  %v107 = vrot.slane %v105, 1
  %v110 = vmul.f32 %v91, %v105
  %v111 = vmul.f32 %v92, %v107
  %v112 = vlaneseq
  %v113 = vshrl.u32 %v112, 7
  %v114 = vsub.s32 0, %v113
  %v115 = vrot.slane %v45, %v114
  %v116 = vmul.f32 %v110, %v115
  %v117 = vmul.f32 %v111, %v115
  %v118 = vlaneseq
  %v119 = vshrl.u32 %v118, 7
  %v120 = vsub.s32 1, %v119
  %v121 = vrot.slane %v45, %v120
  %v122 = vadd.f32 %v116, %v121
  %v123 = vadd.f32 %v117, %v121
  %v125 = vcombine.high %v44, %v44
  %vm127 = vcmask 519168
  %v128 = vsel %vm127, %v44, 0.0
  %v129 = vrot.slane %v128, 4
  %v130 = vadd.f32 %v128, %v129
  %v131 = vrot.slane %v130, 2
  %v132 = vadd.f32 %v130, %v131
  %v133 = vrot.slane %v132, 1
  %v134 = vadd.f32 %v132, %v133
  %v135 = vsel %vm127, %v125, 0.0
  %v136 = vrot.slane %v135, 4
  %v137 = vadd.f32 %v135, %v136
  %v138 = vrot.slane %v137, 2
  %v139 = vadd.f32 %v137, %v138
  %v140 = vrot.slane %v139, 1
  %v141 = vadd.f32 %v139, %v140
  %v142 = vmul.f32 %v134, %v73
  %v143 = vmul.f32 %v141, %v73
  %v146 = vsel %vm78, %v143, %v142
  %vm148 = vcmask 517120
  %v149 = vsel %vm148, %v146, 0.0
  %150 = vadd.xlane.f32.xlu0 %v149
  %v151 = vpop.xlane.xlu0 %150
  %v152 = vrcp.pop 64.0
  %v153 = vmul.f32 %v151, %v152
  %v155 = vrot.slane %v153, 1
  %v158 = vsub.f32 %v142, %v153
  %v159 = vsub.f32 %v143, %v155
  %v160 = vmul.f32 %v158, %v158
  %v161 = vmul.f32 %v159, %v159
  %v164 = vrot.slane %v161, 7
  %v165 = vsel %vm78, %v164, %v160
  %v167 = vsel %vm148, %v165, 0.0
  %168 = vadd.xlane.f32.xlu0 %v167
  %v169 = vpop.xlane.xlu0 %168
  %v170 = vmul.f32 %v169, %v152
  %v171 = vadd.f32 %v170, 1e-05
  %v172 = vrsqrt.pop %v171
  %v174 = vrot.slane %v172, 1
  %v177 = vmul.f32 %v158, %v172
  %v178 = vmul.f32 %v159, %v174
  %v179 = vlaneseq
  %v180 = vshrl.u32 %v179, 7
  %v181 = vsub.s32 0, %v180
  %v182 = vrot.slane %v46, %v181
  %v183 = vmul.f32 %v177, %v182
  %v184 = vmul.f32 %v178, %v182
  %v185 = vlaneseq
  %v186 = vshrl.u32 %v185, 7
  %v187 = vsub.s32 1, %v186
  %v188 = vrot.slane %v46, %v187
  %v189 = vadd.f32 %v183, %v188
  %v190 = vadd.f32 %v184, %v188
  %v191 = vpack.c.bf16 %v189, %v189
  %v192 = vpack.c.bf16 %v190, %v190
  %v193 = vlaneseq
  %v194 = vshrl.u32 %v193, 7
  %v195 = vsub.s32 2, %v194
  %v196 = vrot.slane %v45, %v195
  %v199 = vunpack.c.l.b16 %v191
  %v200 = vunpack.c.l.b16 %v192
  %v201 = vrot.slane %v200, 7
  %v202 = vsel %vm78, %v201, %v199
  %v203 = vpack.c.b16 %v202, %v202
  %v212 = vunpack.c.l.b16 %v47
  %v213 = vunpack.c.l.b16 %v48
  %v214 = vunpack.c.l.b16 %v49
  %v215 = vunpack.c.l.b16 %v50
  %v216 = vunpack.c.l.b16 %v51
  %v217 = vunpack.c.l.b16 %v52
  %v218 = vunpack.c.l.b16 %v53
  %v219 = vunpack.c.l.b16 %v54
  %v220 = vpack.c.b16 %v213, %v212
  %v221 = vpack.c.b16 %v215, %v214
  %v222 = vpack.c.b16 %v217, %v216
  %v223 = vpack.c.b16 %v219, %v218
  %vm228 = vcmask 523264
  %v230 = vsel %vm228, %v203, 0
  %232 = vmatprep.subr.bf16.mxu0 0
  %233 = vmatpush1.bf16.msra.mxu0 0
  %234 = vmatprep.subr.bf16.mxu0 0
  %235 = vmatpush1.bf16.msra.mxu0 0
  %236 = vmatprep.subr.bf16.mxu0 0
  %237 = vmatpush1.bf16.msra.mxu0 0
  %238 = vmatprep.subr.bf16.mxu0 0
  %239 = vmatpush1.bf16.msra.mxu0 0
  %240 = vmatprep.subr.bf16.mxu0 0
  %241 = vmatpush1.bf16.msra.mxu0 %v223
  %242 = vmatprep.subr.bf16.mxu0 0
  %243 = vmatpush1.bf16.msra.mxu0 %v222
  %244 = vmatprep.subr.bf16.mxu0 0
  %245 = vmatpush1.bf16.msra.mxu0 %v221
  %246 = vmatprep.subr.bf16.mxu0 0
  %247 = vmatpush1.bf16.msra.mxu0 %v220
  %248 = vmatprep.subr.bf16.mxu0 0
  %249 = vmatpush2.bf16.msra.mxu0 0
  %250 = vmatprep.subr.bf16.mxu0 0
  %251 = vmatpush2.bf16.msra.mxu0 0
  %252 = vmatprep.subr.bf16.mxu0 0
  %253 = vmatpush2.bf16.msra.mxu0 0
  %254 = vmatprep.subr.bf16.mxu0 0
  %255 = vmatpush2.bf16.msra.mxu0 0
  %256 = vmatprep.subr.bf16.mxu0 0
  %257 = vmatpush2.bf16.msra.mxu0 0
  %258 = vmatprep.subr.bf16.mxu0 0
  %259 = vmatpush2.bf16.msra.mxu0 0
  %260 = vmatprep.subr.bf16.mxu0 0
  %261 = vmatpush2.bf16.msra.mxu0 0
  %262 = vmatprep.subr.bf16.mxu0 0
  %263 = vmatpush2.bf16.msra.mxu0 0
  %264 = vmatprep.mubr.bf16.mxu0 0
  %265 = vmatmul.mubr.bf16.gmra.mxu0 %v230
  %v266 = vpop.f32.mrf.mxu0
  %v267 = vadd.f32 %v196, %v266
  %v268 = vpop.f32.mrf.mxu0
  %v269 = vpop.f32.mrf.mxu0
  %v270 = vpop.f32.mrf.mxu0
  %271 = vdwg.mxu0
  %v272 = vld [vmem:[%s5] sm:$0xf]
  %v273 = vld [vmem:[%s5 + $0x4] sm:$0xf]
  %v274 = vld [vmem:[%s5 + $0x8] sm:$0xf]
  %v275 = vld [vmem:[%s5 + $0xc] sm:$0xf]
  %v276 = vld [vmem:[%s5 + $0x10] sm:$0xf]
  %v277 = vld [vmem:[%s5 + $0x14] sm:$0xf]
  %v278 = vld [vmem:[%s5 + $0x18] sm:$0xf]
  %v279 = vld [vmem:[%s5 + $0x1c] sm:$0xf]
  %v280 = vld [vmem:[%s5 + $0x20] sm:$0xf]
  %v281 = vld [vmem:[%s5 + $0x24] sm:$0xf]
  %v282 = vld [vmem:[%s5 + $0x28] sm:$0xf]
  %v283 = vld [vmem:[%s5 + $0x2c] sm:$0xf]
  %v284 = vld [vmem:[%s5 + $0x30] sm:$0xf]
  %v285 = vld [vmem:[%s5 + $0x34] sm:$0xf]
  %v286 = vld [vmem:[%s5 + $0x38] sm:$0xf]
  %v287 = vld [vmem:[%s5 + $0x3c] sm:$0xf]
  %v288 = vld [vmem:[%s5 + $0x40] sm:$0xf]
  %v289 = vld [vmem:[%s5 + $0x44] sm:$0xf]
  %v290 = vld [vmem:[%s5 + $0x48] sm:$0xf]
  %v291 = vld [vmem:[%s5 + $0x4c] sm:$0xf]
  %v292 = vld [vmem:[%s5 + $0x50] sm:$0xf]
  %v293 = vld [vmem:[%s5 + $0x54] sm:$0xf]
  %v294 = vld [vmem:[%s5 + $0x58] sm:$0xf]
  %v295 = vld [vmem:[%s5 + $0x5c] sm:$0xf]
  %v296 = vld [vmem:[%s5 + $0x60] sm:$0xf]
  %v297 = vld [vmem:[%s5 + $0x64] sm:$0xf]
  %v298 = vld [vmem:[%s5 + $0x68] sm:$0xf]
  %v299 = vld [vmem:[%s5 + $0x6c] sm:$0xf]
  %v300 = vld [vmem:[%s5 + $0x70] sm:$0xf]
  %v301 = vld [vmem:[%s5 + $0x74] sm:$0xf]
  %v302 = vld [vmem:[%s5 + $0x78] sm:$0xf]
  %v303 = vld [vmem:[%s5 + $0x7c] sm:$0xf]
  %v304 = vld [vmem:[%s6] sm:$0xf]
  %v305 = vld [vmem:[%s6 + $0x4] sm:$0xf]
  %v306 = vld [vmem:[%s6 + $0x8] sm:$0xf]
  %v307 = vld [vmem:[%s6 + $0xc] sm:$0xf]
  %v308 = vld [vmem:[%s6 + $0x10] sm:$0xf]
  %v309 = vld [vmem:[%s6 + $0x14] sm:$0xf]
  %v310 = vld [vmem:[%s6 + $0x18] sm:$0xf]
  %v311 = vld [vmem:[%s6 + $0x1c] sm:$0xf]
  %v312 = vld [vmem:[%s6 + $0x20] sm:$0xf]
  %v313 = vld [vmem:[%s6 + $0x24] sm:$0xf]
  %v314 = vld [vmem:[%s6 + $0x28] sm:$0xf]
  %v315 = vld [vmem:[%s6 + $0x2c] sm:$0xf]
  %v316 = vld [vmem:[%s6 + $0x30] sm:$0xf]
  %v317 = vld [vmem:[%s6 + $0x34] sm:$0xf]
  %v318 = vld [vmem:[%s6 + $0x38] sm:$0xf]
  %v319 = vld [vmem:[%s6 + $0x3c] sm:$0xf]
  %v320 = vld [vmem:[%s6 + $0x40] sm:$0xf]
  %v321 = vld [vmem:[%s6 + $0x44] sm:$0xf]
  %v322 = vld [vmem:[%s6 + $0x48] sm:$0xf]
  %v323 = vld [vmem:[%s6 + $0x4c] sm:$0xf]
  %v324 = vld [vmem:[%s6 + $0x50] sm:$0xf]
  %v325 = vld [vmem:[%s6 + $0x54] sm:$0xf]
  %v326 = vld [vmem:[%s6 + $0x58] sm:$0xf]
  %v327 = vld [vmem:[%s6 + $0x5c] sm:$0xf]
  %v328 = vld [vmem:[%s6 + $0x60] sm:$0xf]
  %v329 = vld [vmem:[%s6 + $0x64] sm:$0xf]
  %v330 = vld [vmem:[%s6 + $0x68] sm:$0xf]
  %v331 = vld [vmem:[%s6 + $0x6c] sm:$0xf]
  %v332 = vld [vmem:[%s6 + $0x70] sm:$0xf]
  %v333 = vld [vmem:[%s6 + $0x74] sm:$0xf]
  %v334 = vld [vmem:[%s6 + $0x78] sm:$0xf]
  %v335 = vld [vmem:[%s6 + $0x7c] sm:$0xf]
  %v336 = vld [vmem:[%s7] sm:$0xff]
  %v337 = vld [vmem:[%s7 + $0x8] sm:$0xff]
  %v338 = vld [vmem:[%s7 + $0x10] sm:$0xff]
  %v339 = vld [vmem:[%s7 + $0x18] sm:$0xff]
  %v340 = vld [vmem:[%s7 + $0x20] sm:$0xff]
  %v341 = vld [vmem:[%s7 + $0x28] sm:$0xff]
  %v342 = vld [vmem:[%s7 + $0x30] sm:$0xff]
  %v343 = vld [vmem:[%s7 + $0x38] sm:$0xff]
  %v344 = vld [vmem:[%s7 + $0x40] sm:$0xff]
  %v345 = vld [vmem:[%s7 + $0x48] sm:$0xff]
  %v346 = vld [vmem:[%s7 + $0x50] sm:$0xff]
  %v347 = vld [vmem:[%s7 + $0x58] sm:$0xff]
  %v348 = vld [vmem:[%s7 + $0x60] sm:$0xff]
  %v349 = vld [vmem:[%s7 + $0x68] sm:$0xff]
  %v350 = vld [vmem:[%s7 + $0x70] sm:$0xff]
  %v351 = vld [vmem:[%s7 + $0x78] sm:$0xff]
  %v352 = vld [vmem:[%s7 + $0x80] sm:$0xff]
  %v353 = vld [vmem:[%s7 + $0x88] sm:$0xff]
  %v354 = vld [vmem:[%s7 + $0x90] sm:$0xff]
  %v355 = vld [vmem:[%s7 + $0x98] sm:$0xff]
  %v356 = vld [vmem:[%s7 + $0xa0] sm:$0xff]
  %v357 = vld [vmem:[%s7 + $0xa8] sm:$0xff]
  %v358 = vld [vmem:[%s7 + $0xb0] sm:$0xff]
  %v359 = vld [vmem:[%s7 + $0xb8] sm:$0xff]
  %v360 = vld [vmem:[%s7 + $0xc0] sm:$0xff]
  %v361 = vld [vmem:[%s7 + $0xc8] sm:$0xff]
  %v362 = vld [vmem:[%s7 + $0xd0] sm:$0xff]
  %v363 = vld [vmem:[%s7 + $0xd8] sm:$0xff]
  %v364 = vld [vmem:[%s7 + $0xe0] sm:$0xff]
  %v365 = vld [vmem:[%s7 + $0xe8] sm:$0xff]
  %v366 = vld [vmem:[%s7 + $0xf0] sm:$0xff]
  %v367 = vld [vmem:[%s7 + $0xf8] sm:$0xff]
  %v368 = vld [vmem:[%s8] sm:$0xf]
  %v369 = vld [vmem:[%s8 + $0x4] sm:$0xf]
  %v370 = vld [vmem:[%s8 + $0x8] sm:$0xf]
  %v371 = vld [vmem:[%s8 + $0xc] sm:$0xf]
  %v372 = vld [vmem:[%s8 + $0x10] sm:$0xf]
  %v373 = vld [vmem:[%s8 + $0x14] sm:$0xf]
  %v374 = vld [vmem:[%s8 + $0x18] sm:$0xf]
  %v375 = vld [vmem:[%s8 + $0x1c] sm:$0xf]
  %v376 = vld [vmem:[%s8 + $0x20] sm:$0xf]
  %v377 = vld [vmem:[%s8 + $0x24] sm:$0xf]
  %v378 = vld [vmem:[%s8 + $0x28] sm:$0xf]
  %v379 = vld [vmem:[%s8 + $0x2c] sm:$0xf]
  %v380 = vld [vmem:[%s8 + $0x30] sm:$0xf]
  %v381 = vld [vmem:[%s8 + $0x34] sm:$0xf]
  %v382 = vld [vmem:[%s8 + $0x38] sm:$0xf]
  %v383 = vld [vmem:[%s8 + $0x3c] sm:$0xf]
  %v384 = vld [vmem:[%s8 + $0x40] sm:$0xf]
  %v385 = vld [vmem:[%s8 + $0x44] sm:$0xf]
  %v386 = vld [vmem:[%s8 + $0x48] sm:$0xf]
  %v387 = vld [vmem:[%s8 + $0x4c] sm:$0xf]
  %v388 = vld [vmem:[%s8 + $0x50] sm:$0xf]
  %v389 = vld [vmem:[%s8 + $0x54] sm:$0xf]
  %v390 = vld [vmem:[%s8 + $0x58] sm:$0xf]
  %v391 = vld [vmem:[%s8 + $0x5c] sm:$0xf]
  %v392 = vld [vmem:[%s8 + $0x60] sm:$0xf]
  %v393 = vld [vmem:[%s8 + $0x64] sm:$0xf]
  %v394 = vld [vmem:[%s8 + $0x68] sm:$0xf]
  %v395 = vld [vmem:[%s8 + $0x6c] sm:$0xf]
  %v396 = vld [vmem:[%s8 + $0x70] sm:$0xf]
  %v397 = vld [vmem:[%s8 + $0x74] sm:$0xf]
  %v398 = vld [vmem:[%s8 + $0x78] sm:$0xf]
  %v399 = vld [vmem:[%s8 + $0x7c] sm:$0xf]
  %v400 = vld [vmem:[%s8 + $0x80] sm:$0xf]
  %v401 = vld [vmem:[%s8 + $0x84] sm:$0xf]
  %v402 = vld [vmem:[%s8 + $0x88] sm:$0xf]
  %v403 = vld [vmem:[%s8 + $0x8c] sm:$0xf]
  %v404 = vld [vmem:[%s8 + $0x90] sm:$0xf]
  %v405 = vld [vmem:[%s8 + $0x94] sm:$0xf]
  %v406 = vld [vmem:[%s8 + $0x98] sm:$0xf]
  %v407 = vld [vmem:[%s8 + $0x9c] sm:$0xf]
  %v408 = vld [vmem:[%s8 + $0xa0] sm:$0xf]
  %v409 = vld [vmem:[%s8 + $0xa4] sm:$0xf]
  %v410 = vld [vmem:[%s8 + $0xa8] sm:$0xf]
  %v411 = vld [vmem:[%s8 + $0xac] sm:$0xf]
  %v412 = vld [vmem:[%s8 + $0xb0] sm:$0xf]
  %v413 = vld [vmem:[%s8 + $0xb4] sm:$0xf]
  %v414 = vld [vmem:[%s8 + $0xb8] sm:$0xf]
  %v415 = vld [vmem:[%s8 + $0xbc] sm:$0xf]
  %v416 = vld [vmem:[%s8 + $0xc0] sm:$0xf]
  %v417 = vld [vmem:[%s8 + $0xc4] sm:$0xf]
  %v418 = vld [vmem:[%s8 + $0xc8] sm:$0xf]
  %v419 = vld [vmem:[%s8 + $0xcc] sm:$0xf]
  %v420 = vld [vmem:[%s8 + $0xd0] sm:$0xf]
  %v421 = vld [vmem:[%s8 + $0xd4] sm:$0xf]
  %v422 = vld [vmem:[%s8 + $0xd8] sm:$0xf]
  %v423 = vld [vmem:[%s8 + $0xdc] sm:$0xf]
  %v424 = vld [vmem:[%s8 + $0xe0] sm:$0xf]
  %v425 = vld [vmem:[%s8 + $0xe4] sm:$0xf]
  %v426 = vld [vmem:[%s8 + $0xe8] sm:$0xf]
  %v427 = vld [vmem:[%s8 + $0xec] sm:$0xf]
  %v428 = vld [vmem:[%s8 + $0xf0] sm:$0xf]
  %v429 = vld [vmem:[%s8 + $0xf4] sm:$0xf]
  %v430 = vld [vmem:[%s8 + $0xf8] sm:$0xf]
  %v431 = vld [vmem:[%s8 + $0xfc] sm:$0xf]
  %v432 = vld [vmem:[%s9] sm:$0x7f]
  %v433 = vld [vmem:[%s9 + $0x8] sm:$0x7f]
  %v434 = vld [vmem:[%s10] sm:$0x3]
  %v435 = vld [vmem:[%s10 + $0x2] sm:$0x3]
  %v438 = vrot.slane %v123, 7
  %v439 = vsel %vm78, %v438, %v122
  %v441 = vsel %vm81, %v439, 0.0
  %442 = vadd.xlane.f32.xlu0 %v441
  %v443 = vpop.xlane.xlu0 %442
  %v444 = vmul.f32 %v443, %v85
  %v446 = vrot.slane %v444, 1
  %v449 = vsub.f32 %v122, %v444
  %v450 = vsub.f32 %v123, %v446
  %v451 = vmul.f32 %v449, %v449
  %v452 = vmul.f32 %v450, %v450
  %v455 = vrot.slane %v452, 7
  %v456 = vsel %vm78, %v455, %v451
  %v458 = vsel %vm81, %v456, 0.0
  %459 = vadd.xlane.f32.xlu0 %v458
  %v460 = vpop.xlane.xlu0 %459
  %v461 = vmul.f32 %v460, %v85
  %v462 = vadd.f32 %v461, 1e-05
  %v463 = vrsqrt.pop %v462
  %v465 = vrot.slane %v463, 1
  %v468 = vmul.f32 %v449, %v463
  %v469 = vmul.f32 %v450, %v465
  %v470 = vlaneseq
  %v471 = vshrl.u32 %v470, 7
  %v472 = vsub.s32 0, %v471
  %v473 = vrot.slane %v432, %v472
  %v474 = vmul.f32 %v468, %v473
  %v475 = vmul.f32 %v469, %v473
  %v476 = vlaneseq
  %v477 = vshrl.u32 %v476, 7
  %v478 = vsub.s32 1, %v477
  %v479 = vrot.slane %v432, %v478
  %v480 = vadd.f32 %v474, %v479
  %v481 = vadd.f32 %v475, %v479
  %v482 = vsel %vm81, %v267, 0.0
  %483 = vadd.xlane.f32.xlu0 %v482
  %v484 = vpop.xlane.xlu0 %483
  %v485 = vmul.f32 %v484, %v85
  %v486 = vsub.f32 %v267, %v485
  %v487 = vmul.f32 %v486, %v486
  %v488 = vsel %vm81, %v487, 0.0
  %489 = vadd.xlane.f32.xlu0 %v488
  %v490 = vpop.xlane.xlu0 %489
  %v491 = vmul.f32 %v490, %v85
  %v492 = vadd.f32 %v491, 1e-05
  %v493 = vrsqrt.pop %v492
  %v494 = vmul.f32 %v486, %v493
  %v495 = vlaneseq
  %v496 = vshrl.u32 %v495, 7
  %v497 = vsub.s32 0, %v496
  %v498 = vrot.slane %v433, %v497
  %v499 = vmul.f32 %v494, %v498
  %v500 = vlaneseq
  %v501 = vshrl.u32 %v500, 7
  %v502 = vsub.s32 1, %v501
  %v503 = vrot.slane %v433, %v502
  %v504 = vadd.f32 %v499, %v503
  %v507 = vrot.slane %v481, 7
  %v508 = vsel %vm78, %v507, %v480
  %v510 = vpack.c.bf16 %v504, %v504
  %v511 = vpack.c.bf16 %v508, %v508
  %v512 = vlaneseq
  %v513 = vshrl.u32 %v512, 7
  %v514 = vsub.s32 2, %v513
  %v515 = vrot.slane %v432, %v514
  %v516 = vlaneseq
  %v517 = vshrl.u32 %v516, 7
  %v518 = vsub.s32 2, %v517
  %v519 = vrot.slane %v433, %v518
  %v536 = vunpack.c.l.b16 %v272
  %v537 = vunpack.c.l.b16 %v273
  %v538 = vunpack.c.l.b16 %v274
  %v539 = vunpack.c.l.b16 %v275
  %v540 = vunpack.c.l.b16 %v276
  %v541 = vunpack.c.l.b16 %v277
  %v542 = vunpack.c.l.b16 %v278
  %v543 = vunpack.c.l.b16 %v279
  %v544 = vunpack.c.l.b16 %v280
  %v545 = vunpack.c.l.b16 %v281
  %v546 = vunpack.c.l.b16 %v282
  %v547 = vunpack.c.l.b16 %v283
  %v548 = vunpack.c.l.b16 %v284
  %v549 = vunpack.c.l.b16 %v285
  %v550 = vunpack.c.l.b16 %v286
  %v551 = vunpack.c.l.b16 %v287
  %v552 = vpack.c.b16 %v537, %v536
  %v553 = vpack.c.b16 %v539, %v538
  %v554 = vpack.c.b16 %v541, %v540
  %v555 = vpack.c.b16 %v543, %v542
  %v556 = vpack.c.b16 %v545, %v544
  %v557 = vpack.c.b16 %v547, %v546
  %v558 = vpack.c.b16 %v549, %v548
  %v559 = vpack.c.b16 %v551, %v550
  %568 = vmatprep.subr.bf16.mxu0 0
  %569 = vmatpush1.bf16.msra.mxu0 %v559
  %570 = vmatprep.subr.bf16.mxu0 0
  %571 = vmatpush1.bf16.msra.mxu0 %v558
  %572 = vmatprep.subr.bf16.mxu0 0
  %573 = vmatpush1.bf16.msra.mxu0 %v557
  %574 = vmatprep.subr.bf16.mxu0 0
  %575 = vmatpush1.bf16.msra.mxu0 %v556
  %576 = vmatprep.subr.bf16.mxu0 0
  %577 = vmatpush1.bf16.msra.mxu0 %v555
  %578 = vmatprep.subr.bf16.mxu0 0
  %579 = vmatpush1.bf16.msra.mxu0 %v554
  %580 = vmatprep.subr.bf16.mxu0 0
  %581 = vmatpush1.bf16.msra.mxu0 %v553
  %582 = vmatprep.subr.bf16.mxu0 0
  %583 = vmatpush1.bf16.msra.mxu0 %v552
  %584 = vmatprep.subr.bf16.mxu0 0
  %585 = vmatpush2.bf16.msra.mxu0 0
  %586 = vmatprep.subr.bf16.mxu0 0
  %587 = vmatpush2.bf16.msra.mxu0 0
  %588 = vmatprep.subr.bf16.mxu0 0
  %589 = vmatpush2.bf16.msra.mxu0 0
  %590 = vmatprep.subr.bf16.mxu0 0
  %591 = vmatpush2.bf16.msra.mxu0 0
  %592 = vmatprep.subr.bf16.mxu0 0
  %593 = vmatpush2.bf16.msra.mxu0 0
  %594 = vmatprep.subr.bf16.mxu0 0
  %595 = vmatpush2.bf16.msra.mxu0 0
  %596 = vmatprep.subr.bf16.mxu0 0
  %597 = vmatpush2.bf16.msra.mxu0 0
  %598 = vmatprep.subr.bf16.mxu0 0
  %599 = vmatpush2.bf16.msra.mxu0 0
  %600 = vmatprep.mubr.bf16.mxu0 0
  %601 = vmatmul.mubr.bf16.gmra.mxu0 %v510
  %v602 = vpop.f32.mrf.mxu0
  %v603 = vadd.f32 %v515, %v602
  %v604 = vpop.f32.mrf.mxu0
  %v605 = vpop.f32.mrf.mxu0
  %v606 = vpop.f32.mrf.mxu0
  %607 = vdwg.mxu0
  %v624 = vunpack.c.l.b16 %v288
  %v625 = vunpack.c.l.b16 %v289
  %v626 = vunpack.c.l.b16 %v290
  %v627 = vunpack.c.l.b16 %v291
  %v628 = vunpack.c.l.b16 %v292
  %v629 = vunpack.c.l.b16 %v293
  %v630 = vunpack.c.l.b16 %v294
  %v631 = vunpack.c.l.b16 %v295
  %v632 = vunpack.c.l.b16 %v296
  %v633 = vunpack.c.l.b16 %v297
  %v634 = vunpack.c.l.b16 %v298
  %v635 = vunpack.c.l.b16 %v299
  %v636 = vunpack.c.l.b16 %v300
  %v637 = vunpack.c.l.b16 %v301
  %v638 = vunpack.c.l.b16 %v302
  %v639 = vunpack.c.l.b16 %v303
  %v640 = vpack.c.b16 %v625, %v624
  %v641 = vpack.c.b16 %v627, %v626
  %v642 = vpack.c.b16 %v629, %v628
  %v643 = vpack.c.b16 %v631, %v630
  %v644 = vpack.c.b16 %v633, %v632
  %v645 = vpack.c.b16 %v635, %v634
  %v646 = vpack.c.b16 %v637, %v636
  %v647 = vpack.c.b16 %v639, %v638
  %656 = vmatprep.subr.bf16.mxu0 0
  %657 = vmatpush1.bf16.msra.mxu0 %v647
  %658 = vmatprep.subr.bf16.mxu0 0
  %659 = vmatpush1.bf16.msra.mxu0 %v646
  %660 = vmatprep.subr.bf16.mxu0 0
  %661 = vmatpush1.bf16.msra.mxu0 %v645
  %662 = vmatprep.subr.bf16.mxu0 0
  %663 = vmatpush1.bf16.msra.mxu0 %v644
  %664 = vmatprep.subr.bf16.mxu0 0
  %665 = vmatpush1.bf16.msra.mxu0 %v643
  %666 = vmatprep.subr.bf16.mxu0 0
  %667 = vmatpush1.bf16.msra.mxu0 %v642
  %668 = vmatprep.subr.bf16.mxu0 0
  %669 = vmatpush1.bf16.msra.mxu0 %v641
  %670 = vmatprep.subr.bf16.mxu0 0
  %671 = vmatpush1.bf16.msra.mxu0 %v640
  %672 = vmatprep.subr.bf16.mxu0 0
  %673 = vmatpush2.bf16.msra.mxu0 0
  %674 = vmatprep.subr.bf16.mxu0 0
  %675 = vmatpush2.bf16.msra.mxu0 0
  %676 = vmatprep.subr.bf16.mxu0 0
  %677 = vmatpush2.bf16.msra.mxu0 0
  %678 = vmatprep.subr.bf16.mxu0 0
  %679 = vmatpush2.bf16.msra.mxu0 0
  %680 = vmatprep.subr.bf16.mxu0 0
  %681 = vmatpush2.bf16.msra.mxu0 0
  %682 = vmatprep.subr.bf16.mxu0 0
  %683 = vmatpush2.bf16.msra.mxu0 0
  %684 = vmatprep.subr.bf16.mxu0 0
  %685 = vmatpush2.bf16.msra.mxu0 0
  %686 = vmatprep.subr.bf16.mxu0 0
  %687 = vmatpush2.bf16.msra.mxu0 0
  %688 = vmatprep.mubr.bf16.mxu0 0
  %689 = vmatmul.mubr.bf16.gmra.mxu0 %v511
  %v690 = vpop.f32.mrf.mxu0
  %v691 = vadd.f32 %v519, %v690
  %v692 = vpop.f32.mrf.mxu0
  %v693 = vpop.f32.mrf.mxu0
  %v694 = vpop.f32.mrf.mxu0
  %695 = vdwg.mxu0
  %v696 = vpack.c.bf16 %v603, %v603
  %v697 = vpack.c.bf16 %v691, %v691
  %v698 = vlaneseq
  %v699 = vshrl.u32 %v698, 7
  %v700 = vsub.s32 3, %v699
  %v701 = vrot.slane %v432, %v700
  %v702 = vlaneseq
  %v703 = vshrl.u32 %v702, 7
  %v704 = vsub.s32 3, %v703
  %v705 = vrot.slane %v433, %v704
  %v722 = vunpack.c.l.b16 %v304
  %v723 = vunpack.c.l.b16 %v305
  %v724 = vunpack.c.l.b16 %v306
  %v725 = vunpack.c.l.b16 %v307
  %v726 = vunpack.c.l.b16 %v308
  %v727 = vunpack.c.l.b16 %v309
  %v728 = vunpack.c.l.b16 %v310
  %v729 = vunpack.c.l.b16 %v311
  %v730 = vunpack.c.l.b16 %v312
  %v731 = vunpack.c.l.b16 %v313
  %v732 = vunpack.c.l.b16 %v314
  %v733 = vunpack.c.l.b16 %v315
  %v734 = vunpack.c.l.b16 %v316
  %v735 = vunpack.c.l.b16 %v317
  %v736 = vunpack.c.l.b16 %v318
  %v737 = vunpack.c.l.b16 %v319
  %v738 = vpack.c.b16 %v723, %v722
  %v739 = vpack.c.b16 %v725, %v724
  %v740 = vpack.c.b16 %v727, %v726
  %v741 = vpack.c.b16 %v729, %v728
  %v742 = vpack.c.b16 %v731, %v730
  %v743 = vpack.c.b16 %v733, %v732
  %v744 = vpack.c.b16 %v735, %v734
  %v745 = vpack.c.b16 %v737, %v736
  %754 = vmatprep.subr.bf16.mxu0 0
  %755 = vmatpush1.bf16.msra.mxu0 %v745
  %756 = vmatprep.subr.bf16.mxu0 0
  %757 = vmatpush1.bf16.msra.mxu0 %v744
  %758 = vmatprep.subr.bf16.mxu0 0
  %759 = vmatpush1.bf16.msra.mxu0 %v743
  %760 = vmatprep.subr.bf16.mxu0 0
  %761 = vmatpush1.bf16.msra.mxu0 %v742
  %762 = vmatprep.subr.bf16.mxu0 0
  %763 = vmatpush1.bf16.msra.mxu0 %v741
  %764 = vmatprep.subr.bf16.mxu0 0
  %765 = vmatpush1.bf16.msra.mxu0 %v740
  %766 = vmatprep.subr.bf16.mxu0 0
  %767 = vmatpush1.bf16.msra.mxu0 %v739
  %768 = vmatprep.subr.bf16.mxu0 0
  %769 = vmatpush1.bf16.msra.mxu0 %v738
  %770 = vmatprep.subr.bf16.mxu0 0
  %771 = vmatpush2.bf16.msra.mxu0 0
  %772 = vmatprep.subr.bf16.mxu0 0
  %773 = vmatpush2.bf16.msra.mxu0 0
  %774 = vmatprep.subr.bf16.mxu0 0
  %775 = vmatpush2.bf16.msra.mxu0 0
  %776 = vmatprep.subr.bf16.mxu0 0
  %777 = vmatpush2.bf16.msra.mxu0 0
  %778 = vmatprep.subr.bf16.mxu0 0
  %779 = vmatpush2.bf16.msra.mxu0 0
  %780 = vmatprep.subr.bf16.mxu0 0
  %781 = vmatpush2.bf16.msra.mxu0 0
  %782 = vmatprep.subr.bf16.mxu0 0
  %783 = vmatpush2.bf16.msra.mxu0 0
  %784 = vmatprep.subr.bf16.mxu0 0
  %785 = vmatpush2.bf16.msra.mxu0 0
  %786 = vmatprep.mubr.bf16.mxu0 0
  %787 = vmatmul.mubr.bf16.gmra.mxu0 %v696
  %v788 = vpop.f32.mrf.mxu0
  %v789 = vadd.f32 %v701, %v788
  %v790 = vpop.f32.mrf.mxu0
  %v791 = vpop.f32.mrf.mxu0
  %v792 = vpop.f32.mrf.mxu0
  %793 = vdwg.mxu0
  %v810 = vunpack.c.l.b16 %v320
  %v811 = vunpack.c.l.b16 %v321
  %v812 = vunpack.c.l.b16 %v322
  %v813 = vunpack.c.l.b16 %v323
  %v814 = vunpack.c.l.b16 %v324
  %v815 = vunpack.c.l.b16 %v325
  %v816 = vunpack.c.l.b16 %v326
  %v817 = vunpack.c.l.b16 %v327
  %v818 = vunpack.c.l.b16 %v328
  %v819 = vunpack.c.l.b16 %v329
  %v820 = vunpack.c.l.b16 %v330
  %v821 = vunpack.c.l.b16 %v331
  %v822 = vunpack.c.l.b16 %v332
  %v823 = vunpack.c.l.b16 %v333
  %v824 = vunpack.c.l.b16 %v334
  %v825 = vunpack.c.l.b16 %v335
  %v826 = vpack.c.b16 %v811, %v810
  %v827 = vpack.c.b16 %v813, %v812
  %v828 = vpack.c.b16 %v815, %v814
  %v829 = vpack.c.b16 %v817, %v816
  %v830 = vpack.c.b16 %v819, %v818
  %v831 = vpack.c.b16 %v821, %v820
  %v832 = vpack.c.b16 %v823, %v822
  %v833 = vpack.c.b16 %v825, %v824
  %842 = vmatprep.subr.bf16.mxu0 0
  %843 = vmatpush1.bf16.msra.mxu0 %v833
  %844 = vmatprep.subr.bf16.mxu0 0
  %845 = vmatpush1.bf16.msra.mxu0 %v832
  %846 = vmatprep.subr.bf16.mxu0 0
  %847 = vmatpush1.bf16.msra.mxu0 %v831
  %848 = vmatprep.subr.bf16.mxu0 0
  %849 = vmatpush1.bf16.msra.mxu0 %v830
  %850 = vmatprep.subr.bf16.mxu0 0
  %851 = vmatpush1.bf16.msra.mxu0 %v829
  %852 = vmatprep.subr.bf16.mxu0 0
  %853 = vmatpush1.bf16.msra.mxu0 %v828
  %854 = vmatprep.subr.bf16.mxu0 0
  %855 = vmatpush1.bf16.msra.mxu0 %v827
  %856 = vmatprep.subr.bf16.mxu0 0
  %857 = vmatpush1.bf16.msra.mxu0 %v826
  %858 = vmatprep.subr.bf16.mxu0 0
  %859 = vmatpush2.bf16.msra.mxu0 0
  %860 = vmatprep.subr.bf16.mxu0 0
  %861 = vmatpush2.bf16.msra.mxu0 0
  %862 = vmatprep.subr.bf16.mxu0 0
  %863 = vmatpush2.bf16.msra.mxu0 0
  %864 = vmatprep.subr.bf16.mxu0 0
  %865 = vmatpush2.bf16.msra.mxu0 0
  %866 = vmatprep.subr.bf16.mxu0 0
  %867 = vmatpush2.bf16.msra.mxu0 0
  %868 = vmatprep.subr.bf16.mxu0 0
  %869 = vmatpush2.bf16.msra.mxu0 0
  %870 = vmatprep.subr.bf16.mxu0 0
  %871 = vmatpush2.bf16.msra.mxu0 0
  %872 = vmatprep.subr.bf16.mxu0 0
  %873 = vmatpush2.bf16.msra.mxu0 0
  %874 = vmatprep.mubr.bf16.mxu0 0
  %875 = vmatmul.mubr.bf16.gmra.mxu0 %v697
  %v876 = vpop.f32.mrf.mxu0
  %v877 = vadd.f32 %v705, %v876
  %v878 = vpop.f32.mrf.mxu0
  %v879 = vpop.f32.mrf.mxu0
  %v880 = vpop.f32.mrf.mxu0
  %881 = vdwg.mxu0
  %v883 = vrot.slane %v789, 1
  %v886 = vadd.f32 %v122, %v789
  %v887 = vadd.f32 %v123, %v883
  %v888 = vadd.f32 %v267, %v877
  %v891 = vrot.slane %v887, 7
  %v892 = vsel %vm78, %v891, %v886
  %v894 = vsel %vm81, %v892, 0.0
  %895 = vadd.xlane.f32.xlu0 %v894
  %v896 = vpop.xlane.xlu0 %895
  %v897 = vmul.f32 %v896, %v85
  %v899 = vrot.slane %v897, 1
  %v902 = vsub.f32 %v886, %v897
  %v903 = vsub.f32 %v887, %v899
  %v904 = vmul.f32 %v902, %v902
  %v905 = vmul.f32 %v903, %v903
  %v908 = vrot.slane %v905, 7
  %v909 = vsel %vm78, %v908, %v904
  %v911 = vsel %vm81, %v909, 0.0
  %912 = vadd.xlane.f32.xlu0 %v911
  %v913 = vpop.xlane.xlu0 %912
  %v914 = vmul.f32 %v913, %v85
  %v915 = vadd.f32 %v914, 1e-05
  %v916 = vrsqrt.pop %v915
  %v918 = vrot.slane %v916, 1
  %v921 = vmul.f32 %v902, %v916
  %v922 = vmul.f32 %v903, %v918
  %v923 = vlaneseq
  %v924 = vshrl.u32 %v923, 7
  %v925 = vsub.s32 4, %v924
  %v926 = vrot.slane %v432, %v925
  %v927 = vmul.f32 %v921, %v926
  %v928 = vmul.f32 %v922, %v926
  %v929 = vlaneseq
  %v930 = vshrl.u32 %v929, 7
  %v931 = vsub.s32 5, %v930
  %v932 = vrot.slane %v432, %v931
  %v933 = vadd.f32 %v927, %v932
  %v934 = vadd.f32 %v928, %v932
  %v935 = vsel %vm81, %v888, 0.0
  %936 = vadd.xlane.f32.xlu0 %v935
  %v937 = vpop.xlane.xlu0 %936
  %v938 = vmul.f32 %v937, %v85
  %v939 = vsub.f32 %v888, %v938
  %v940 = vmul.f32 %v939, %v939
  %v941 = vsel %vm81, %v940, 0.0
  %942 = vadd.xlane.f32.xlu0 %v941
  %v943 = vpop.xlane.xlu0 %942
  %v944 = vmul.f32 %v943, %v85
  %v945 = vadd.f32 %v944, 1e-05
  %v946 = vrsqrt.pop %v945
  %v947 = vmul.f32 %v939, %v946
  %v948 = vlaneseq
  %v949 = vshrl.u32 %v948, 7
  %v950 = vsub.s32 4, %v949
  %v951 = vrot.slane %v433, %v950
  %v952 = vmul.f32 %v947, %v951
  %v953 = vlaneseq
  %v954 = vshrl.u32 %v953, 7
  %v955 = vsub.s32 5, %v954
  %v956 = vrot.slane %v433, %v955
  %v957 = vadd.f32 %v952, %v956
  %v959 = vrot.slane %v957, 1
  %v962 = vpack.c.bf16 %v933, %v933
  %v963 = vpack.c.bf16 %v934, %v934
  %v964 = vpack.c.bf16 %v957, %v957
  %v965 = vpack.c.bf16 %v959, %v959
  %v968 = vlaneseq
  %v969 = vshrl.u32 %v968, 7
  %v970 = vsub.s32 0, %v969
  %v971 = vrot.slane %v434, %v970
  %v972 = vlaneseq
  %v973 = vshrl.u32 %v972, 7
  %v974 = vsub.s32 1, %v973
  %v975 = vrot.slane %v434, %v974
  %v976 = vlaneseq
  %v977 = vshrl.u32 %v976, 7
  %v978 = vsub.s32 0, %v977
  %v979 = vrot.slane %v435, %v978
  %v980 = vlaneseq
  %v981 = vshrl.u32 %v980, 7
  %v982 = vsub.s32 1, %v981
  %v983 = vrot.slane %v435, %v982
  %v990 = vunpack.c.l.b16 %v962
  %v991 = vunpack.c.l.b16 %v963
  %v992 = vrot.slane %v991, 7
  %v993 = vsel %vm78, %v992, %v990
  %v994 = vpack.c.b16 %v993, %v993
  %v1012 = vunpack.c.l.b16 %v336
  %v1013 = vunpack.c.h.b16 %v336
  %v1014 = vunpack.c.l.b16 %v337
  %v1015 = vunpack.c.h.b16 %v337
  %v1016 = vunpack.c.l.b16 %v338
  %v1017 = vunpack.c.h.b16 %v338
  %v1018 = vunpack.c.l.b16 %v339
  %v1019 = vunpack.c.h.b16 %v339
  %v1020 = vunpack.c.l.b16 %v340
  %v1021 = vunpack.c.h.b16 %v340
  %v1022 = vunpack.c.l.b16 %v341
  %v1023 = vunpack.c.h.b16 %v341
  %v1024 = vunpack.c.l.b16 %v342
  %v1025 = vunpack.c.h.b16 %v342
  %v1026 = vunpack.c.l.b16 %v343
  %v1027 = vunpack.c.h.b16 %v343
  %v1028 = vunpack.c.l.b16 %v344
  %v1029 = vunpack.c.h.b16 %v344
  %v1030 = vunpack.c.l.b16 %v345
  %v1031 = vunpack.c.h.b16 %v345
  %v1032 = vunpack.c.l.b16 %v346
  %v1033 = vunpack.c.h.b16 %v346
  %v1034 = vunpack.c.l.b16 %v347
  %v1035 = vunpack.c.h.b16 %v347
  %v1036 = vunpack.c.l.b16 %v348
  %v1037 = vunpack.c.h.b16 %v348
  %v1038 = vunpack.c.l.b16 %v349
  %v1039 = vunpack.c.h.b16 %v349
  %v1040 = vunpack.c.l.b16 %v350
  %v1041 = vunpack.c.h.b16 %v350
  %v1042 = vunpack.c.l.b16 %v351
  %v1043 = vunpack.c.h.b16 %v351
  %v1044 = vpack.c.b16 %v1014, %v1012
  %v1045 = vpack.c.b16 %v1015, %v1013
  %v1046 = vpack.c.b16 %v1018, %v1016
  %v1047 = vpack.c.b16 %v1019, %v1017
  %v1048 = vpack.c.b16 %v1022, %v1020
  %v1049 = vpack.c.b16 %v1023, %v1021
  %v1050 = vpack.c.b16 %v1026, %v1024
  %v1051 = vpack.c.b16 %v1027, %v1025
  %v1052 = vpack.c.b16 %v1030, %v1028
  %v1053 = vpack.c.b16 %v1031, %v1029
  %v1054 = vpack.c.b16 %v1034, %v1032
  %v1055 = vpack.c.b16 %v1035, %v1033
  %v1056 = vpack.c.b16 %v1038, %v1036
  %v1057 = vpack.c.b16 %v1039, %v1037
  %v1058 = vpack.c.b16 %v1042, %v1040
  %v1059 = vpack.c.b16 %v1043, %v1041
  %1076 = vmatprep.subr.bf16.mxu0 %v1059
  %1077 = vmatpush1.bf16.msra.mxu0 %v1058
  %1078 = vmatprep.subr.bf16.mxu0 %v1057
  %1079 = vmatpush1.bf16.msra.mxu0 %v1056
  %1080 = vmatprep.subr.bf16.mxu0 %v1055
  %1081 = vmatpush1.bf16.msra.mxu0 %v1054
  %1082 = vmatprep.subr.bf16.mxu0 %v1053
  %1083 = vmatpush1.bf16.msra.mxu0 %v1052
  %1084 = vmatprep.subr.bf16.mxu0 %v1051
  %1085 = vmatpush1.bf16.msra.mxu0 %v1050
  %1086 = vmatprep.subr.bf16.mxu0 %v1049
  %1087 = vmatpush1.bf16.msra.mxu0 %v1048
  %1088 = vmatprep.subr.bf16.mxu0 %v1047
  %1089 = vmatpush1.bf16.msra.mxu0 %v1046
  %1090 = vmatprep.subr.bf16.mxu0 %v1045
  %1091 = vmatpush1.bf16.msra.mxu0 %v1044
  %1092 = vmatprep.subr.bf16.mxu0 0
  %1093 = vmatpush2.bf16.msra.mxu0 0
  %1094 = vmatprep.subr.bf16.mxu0 0
  %1095 = vmatpush2.bf16.msra.mxu0 0
  %1096 = vmatprep.subr.bf16.mxu0 0
  %1097 = vmatpush2.bf16.msra.mxu0 0
  %1098 = vmatprep.subr.bf16.mxu0 0
  %1099 = vmatpush2.bf16.msra.mxu0 0
  %1100 = vmatprep.subr.bf16.mxu0 0
  %1101 = vmatpush2.bf16.msra.mxu0 0
  %1102 = vmatprep.subr.bf16.mxu0 0
  %1103 = vmatpush2.bf16.msra.mxu0 0
  %1104 = vmatprep.subr.bf16.mxu0 0
  %1105 = vmatpush2.bf16.msra.mxu0 0
  %1106 = vmatprep.subr.bf16.mxu0 0
  %1107 = vmatpush2.bf16.msra.mxu0 0
  %1108 = vmatprep.mubr.bf16.mxu0 0
  %1109 = vmatmul.mubr.bf16.gmra.mxu0 %v994
  %v1110 = vpop.f32.mrf.mxu0
  %v1111 = vadd.f32 %v971, %v1110
  %v1112 = vpop.f32.mrf.mxu0
  %v1113 = vadd.f32 %v975, %v1112
  %v1114 = vpop.f32.mrf.mxu0
  %v1115 = vpop.f32.mrf.mxu0
  %1116 = vdwg.mxu0
  %v1119 = vunpack.c.l.b16 %v964
  %v1120 = vunpack.c.l.b16 %v965
  %v1121 = vrot.slane %v1120, 7
  %v1122 = vsel %vm78, %v1121, %v1119
  %v1123 = vpack.c.b16 %v1122, %v1122
  %v1141 = vunpack.c.l.b16 %v352
  %v1142 = vunpack.c.h.b16 %v352
  %v1143 = vunpack.c.l.b16 %v353
  %v1144 = vunpack.c.h.b16 %v353
  %v1145 = vunpack.c.l.b16 %v354
  %v1146 = vunpack.c.h.b16 %v354
  %v1147 = vunpack.c.l.b16 %v355
  %v1148 = vunpack.c.h.b16 %v355
  %v1149 = vunpack.c.l.b16 %v356
  %v1150 = vunpack.c.h.b16 %v356
  %v1151 = vunpack.c.l.b16 %v357
  %v1152 = vunpack.c.h.b16 %v357
  %v1153 = vunpack.c.l.b16 %v358
  %v1154 = vunpack.c.h.b16 %v358
  %v1155 = vunpack.c.l.b16 %v359
  %v1156 = vunpack.c.h.b16 %v359
  %v1157 = vunpack.c.l.b16 %v360
  %v1158 = vunpack.c.h.b16 %v360
  %v1159 = vunpack.c.l.b16 %v361
  %v1160 = vunpack.c.h.b16 %v361
  %v1161 = vunpack.c.l.b16 %v362
  %v1162 = vunpack.c.h.b16 %v362
  %v1163 = vunpack.c.l.b16 %v363
  %v1164 = vunpack.c.h.b16 %v363
  %v1165 = vunpack.c.l.b16 %v364
  %v1166 = vunpack.c.h.b16 %v364
  %v1167 = vunpack.c.l.b16 %v365
  %v1168 = vunpack.c.h.b16 %v365
  %v1169 = vunpack.c.l.b16 %v366
  %v1170 = vunpack.c.h.b16 %v366
  %v1171 = vunpack.c.l.b16 %v367
  %v1172 = vunpack.c.h.b16 %v367
  %v1173 = vpack.c.b16 %v1143, %v1141
  %v1174 = vpack.c.b16 %v1144, %v1142
  %v1175 = vpack.c.b16 %v1147, %v1145
  %v1176 = vpack.c.b16 %v1148, %v1146
  %v1177 = vpack.c.b16 %v1151, %v1149
  %v1178 = vpack.c.b16 %v1152, %v1150
  %v1179 = vpack.c.b16 %v1155, %v1153
  %v1180 = vpack.c.b16 %v1156, %v1154
  %v1181 = vpack.c.b16 %v1159, %v1157
  %v1182 = vpack.c.b16 %v1160, %v1158
  %v1183 = vpack.c.b16 %v1163, %v1161
  %v1184 = vpack.c.b16 %v1164, %v1162
  %v1185 = vpack.c.b16 %v1167, %v1165
  %v1186 = vpack.c.b16 %v1168, %v1166
  %v1187 = vpack.c.b16 %v1171, %v1169
  %v1188 = vpack.c.b16 %v1172, %v1170
  %1205 = vmatprep.subr.bf16.mxu0 %v1188
  %1206 = vmatpush1.bf16.msra.mxu0 %v1187
  %1207 = vmatprep.subr.bf16.mxu0 %v1186
  %1208 = vmatpush1.bf16.msra.mxu0 %v1185
  %1209 = vmatprep.subr.bf16.mxu0 %v1184
  %1210 = vmatpush1.bf16.msra.mxu0 %v1183
  %1211 = vmatprep.subr.bf16.mxu0 %v1182
  %1212 = vmatpush1.bf16.msra.mxu0 %v1181
  %1213 = vmatprep.subr.bf16.mxu0 %v1180
  %1214 = vmatpush1.bf16.msra.mxu0 %v1179
  %1215 = vmatprep.subr.bf16.mxu0 %v1178
  %1216 = vmatpush1.bf16.msra.mxu0 %v1177
  %1217 = vmatprep.subr.bf16.mxu0 %v1176
  %1218 = vmatpush1.bf16.msra.mxu0 %v1175
  %1219 = vmatprep.subr.bf16.mxu0 %v1174
  %1220 = vmatpush1.bf16.msra.mxu0 %v1173
  %1221 = vmatprep.subr.bf16.mxu0 0
  %1222 = vmatpush2.bf16.msra.mxu0 0
  %1223 = vmatprep.subr.bf16.mxu0 0
  %1224 = vmatpush2.bf16.msra.mxu0 0
  %1225 = vmatprep.subr.bf16.mxu0 0
  %1226 = vmatpush2.bf16.msra.mxu0 0
  %1227 = vmatprep.subr.bf16.mxu0 0
  %1228 = vmatpush2.bf16.msra.mxu0 0
  %1229 = vmatprep.subr.bf16.mxu0 0
  %1230 = vmatpush2.bf16.msra.mxu0 0
  %1231 = vmatprep.subr.bf16.mxu0 0
  %1232 = vmatpush2.bf16.msra.mxu0 0
  %1233 = vmatprep.subr.bf16.mxu0 0
  %1234 = vmatpush2.bf16.msra.mxu0 0
  %1235 = vmatprep.subr.bf16.mxu0 0
  %1236 = vmatpush2.bf16.msra.mxu0 0
  %1237 = vmatprep.mubr.bf16.mxu0 0
  %1238 = vmatmul.mubr.bf16.gmra.mxu0 %v1123
  %v1239 = vpop.f32.mrf.mxu0
  %v1240 = vadd.f32 %v979, %v1239
  %v1241 = vpop.f32.mrf.mxu0
  %v1242 = vadd.f32 %v983, %v1241
  %v1243 = vpop.f32.mrf.mxu0
  %v1244 = vpop.f32.mrf.mxu0
  %1245 = vdwg.mxu0
  %v1246 = vmul.f32 %v1111, 0.5
  %v1247 = vmul.f32 %v1113, 0.5
  %v1248 = vmul.f32 %v1240, 0.5
  %v1249 = vmul.f32 %v1242, 0.5
  %v1250 = vmul.f32 %v1111, 0.044715
  %v1251 = vmul.f32 %v1113, 0.044715
  %v1252 = vmul.f32 %v1240, 0.044715
  %v1253 = vmul.f32 %v1242, 0.044715
  %v1254 = vmul.f32 %v1250, %v1111
  %v1255 = vmul.f32 %v1251, %v1113
  %v1256 = vmul.f32 %v1252, %v1240
  %v1257 = vmul.f32 %v1253, %v1242
  %v1258 = vmul.f32 %v1254, %v1111
  %v1259 = vmul.f32 %v1255, %v1113
  %v1260 = vmul.f32 %v1256, %v1240
  %v1261 = vmul.f32 %v1257, %v1242
  %v1262 = vadd.f32 %v1111, %v1258
  %v1263 = vadd.f32 %v1113, %v1259
  %v1264 = vadd.f32 %v1240, %v1260
  %v1265 = vadd.f32 %v1242, %v1261
  %v1266 = vmul.f32 %v1262, 0.7978846
  %v1267 = vmul.f32 %v1263, 0.7978846
  %v1268 = vmul.f32 %v1264, 0.7978846
  %v1269 = vmul.f32 %v1265, 0.7978846
  %v1270 = vtanh.pop %v1266
  %v1271 = vtanh.pop %v1267
  %v1272 = vtanh.pop %v1268
  %v1273 = vtanh.pop %v1269
  %v1274 = vadd.f32 %v1270, 1.0
  %v1275 = vadd.f32 %v1271, 1.0
  %v1276 = vadd.f32 %v1272, 1.0
  %v1277 = vadd.f32 %v1273, 1.0
  %v1278 = vmul.f32 %v1246, %v1274
  %v1279 = vmul.f32 %v1247, %v1275
  %v1280 = vmul.f32 %v1248, %v1276
  %v1281 = vmul.f32 %v1249, %v1277
  %v1282 = vpack.c.bf16 %v1278, %v1278
  %v1283 = vpack.c.bf16 %v1279, %v1279
  %v1284 = vpack.c.bf16 %v1280, %v1280
  %v1285 = vpack.c.bf16 %v1281, %v1281
  %v1286 = vlaneseq
  %v1287 = vshrl.u32 %v1286, 7
  %v1288 = vsub.s32 6, %v1287
  %v1289 = vrot.slane %v432, %v1288
  %v1290 = vlaneseq
  %v1291 = vshrl.u32 %v1290, 7
  %v1292 = vsub.s32 6, %v1291
  %v1293 = vrot.slane %v433, %v1292
  %v1326 = vunpack.c.l.b16 %v368
  %v1327 = vunpack.c.l.b16 %v369
  %v1328 = vunpack.c.l.b16 %v370
  %v1329 = vunpack.c.l.b16 %v371
  %v1330 = vunpack.c.l.b16 %v372
  %v1331 = vunpack.c.l.b16 %v373
  %v1332 = vunpack.c.l.b16 %v374
  %v1333 = vunpack.c.l.b16 %v375
  %v1334 = vunpack.c.l.b16 %v376
  %v1335 = vunpack.c.l.b16 %v377
  %v1336 = vunpack.c.l.b16 %v378
  %v1337 = vunpack.c.l.b16 %v379
  %v1338 = vunpack.c.l.b16 %v380
  %v1339 = vunpack.c.l.b16 %v381
  %v1340 = vunpack.c.l.b16 %v382
  %v1341 = vunpack.c.l.b16 %v383
  %v1342 = vunpack.c.l.b16 %v384
  %v1343 = vunpack.c.l.b16 %v385
  %v1344 = vunpack.c.l.b16 %v386
  %v1345 = vunpack.c.l.b16 %v387
  %v1346 = vunpack.c.l.b16 %v388
  %v1347 = vunpack.c.l.b16 %v389
  %v1348 = vunpack.c.l.b16 %v390
  %v1349 = vunpack.c.l.b16 %v391
  %v1350 = vunpack.c.l.b16 %v392
  %v1351 = vunpack.c.l.b16 %v393
  %v1352 = vunpack.c.l.b16 %v394
  %v1353 = vunpack.c.l.b16 %v395
  %v1354 = vunpack.c.l.b16 %v396
  %v1355 = vunpack.c.l.b16 %v397
  %v1356 = vunpack.c.l.b16 %v398
  %v1357 = vunpack.c.l.b16 %v399
  %v1358 = vpack.c.b16 %v1327, %v1326
  %v1359 = vpack.c.b16 %v1329, %v1328
  %v1360 = vpack.c.b16 %v1331, %v1330
  %v1361 = vpack.c.b16 %v1333, %v1332
  %v1362 = vpack.c.b16 %v1335, %v1334
  %v1363 = vpack.c.b16 %v1337, %v1336
  %v1364 = vpack.c.b16 %v1339, %v1338
  %v1365 = vpack.c.b16 %v1341, %v1340
  %v1366 = vpack.c.b16 %v1343, %v1342
  %v1367 = vpack.c.b16 %v1345, %v1344
  %v1368 = vpack.c.b16 %v1347, %v1346
  %v1369 = vpack.c.b16 %v1349, %v1348
  %v1370 = vpack.c.b16 %v1351, %v1350
  %v1371 = vpack.c.b16 %v1353, %v1352
  %v1372 = vpack.c.b16 %v1355, %v1354
  %v1373 = vpack.c.b16 %v1357, %v1356
  %1390 = vmatprep.subr.bf16.mxu0 0
  %1391 = vmatpush1.bf16.msra.mxu0 %v1365
  %1392 = vmatprep.subr.bf16.mxu0 0
  %1393 = vmatpush1.bf16.msra.mxu0 %v1364
  %1394 = vmatprep.subr.bf16.mxu0 0
  %1395 = vmatpush1.bf16.msra.mxu0 %v1363
  %1396 = vmatprep.subr.bf16.mxu0 0
  %1397 = vmatpush1.bf16.msra.mxu0 %v1362
  %1398 = vmatprep.subr.bf16.mxu0 0
  %1399 = vmatpush1.bf16.msra.mxu0 %v1361
  %1400 = vmatprep.subr.bf16.mxu0 0
  %1401 = vmatpush1.bf16.msra.mxu0 %v1360
  %1402 = vmatprep.subr.bf16.mxu0 0
  %1403 = vmatpush1.bf16.msra.mxu0 %v1359
  %1404 = vmatprep.subr.bf16.mxu0 0
  %1405 = vmatpush1.bf16.msra.mxu0 %v1358
  %1406 = vmatprep.subr.bf16.mxu0 0
  %1407 = vmatpush2.bf16.msra.mxu0 %v1373
  %1408 = vmatprep.subr.bf16.mxu0 0
  %1409 = vmatpush2.bf16.msra.mxu0 %v1372
  %1410 = vmatprep.subr.bf16.mxu0 0
  %1411 = vmatpush2.bf16.msra.mxu0 %v1371
  %1412 = vmatprep.subr.bf16.mxu0 0
  %1413 = vmatpush2.bf16.msra.mxu0 %v1370
  %1414 = vmatprep.subr.bf16.mxu0 0
  %1415 = vmatpush2.bf16.msra.mxu0 %v1369
  %1416 = vmatprep.subr.bf16.mxu0 0
  %1417 = vmatpush2.bf16.msra.mxu0 %v1368
  %1418 = vmatprep.subr.bf16.mxu0 0
  %1419 = vmatpush2.bf16.msra.mxu0 %v1367
  %1420 = vmatprep.subr.bf16.mxu0 0
  %1421 = vmatpush2.bf16.msra.mxu0 %v1366
  %1422 = vmatprep.mubr.bf16.mxu0 %v1283
  %1423 = vmatmul.mubr.bf16.gmra.mxu0 %v1282
  %v1424 = vpop.f32.mrf.mxu0
  %v1425 = vadd.f32 %v1289, %v1424
  %v1426 = vpop.f32.mrf.mxu0
  %v1427 = vpop.f32.mrf.mxu0
  %v1428 = vpop.f32.mrf.mxu0
  %1429 = vdwg.mxu0
  %v1462 = vunpack.c.l.b16 %v400
  %v1463 = vunpack.c.l.b16 %v401
  %v1464 = vunpack.c.l.b16 %v402
  %v1465 = vunpack.c.l.b16 %v403
  %v1466 = vunpack.c.l.b16 %v404
  %v1467 = vunpack.c.l.b16 %v405
  %v1468 = vunpack.c.l.b16 %v406
  %v1469 = vunpack.c.l.b16 %v407
  %v1470 = vunpack.c.l.b16 %v408
  %v1471 = vunpack.c.l.b16 %v409
  %v1472 = vunpack.c.l.b16 %v410
  %v1473 = vunpack.c.l.b16 %v411
  %v1474 = vunpack.c.l.b16 %v412
  %v1475 = vunpack.c.l.b16 %v413
  %v1476 = vunpack.c.l.b16 %v414
  %v1477 = vunpack.c.l.b16 %v415
  %v1478 = vunpack.c.l.b16 %v416
  %v1479 = vunpack.c.l.b16 %v417
  %v1480 = vunpack.c.l.b16 %v418
  %v1481 = vunpack.c.l.b16 %v419
  %v1482 = vunpack.c.l.b16 %v420
  %v1483 = vunpack.c.l.b16 %v421
  %v1484 = vunpack.c.l.b16 %v422
  %v1485 = vunpack.c.l.b16 %v423
  %v1486 = vunpack.c.l.b16 %v424
  %v1487 = vunpack.c.l.b16 %v425
  %v1488 = vunpack.c.l.b16 %v426
  %v1489 = vunpack.c.l.b16 %v427
  %v1490 = vunpack.c.l.b16 %v428
  %v1491 = vunpack.c.l.b16 %v429
  %v1492 = vunpack.c.l.b16 %v430
  %v1493 = vunpack.c.l.b16 %v431
  %v1494 = vpack.c.b16 %v1463, %v1462
  %v1495 = vpack.c.b16 %v1465, %v1464
  %v1496 = vpack.c.b16 %v1467, %v1466
  %v1497 = vpack.c.b16 %v1469, %v1468
  %v1498 = vpack.c.b16 %v1471, %v1470
  %v1499 = vpack.c.b16 %v1473, %v1472
  %v1500 = vpack.c.b16 %v1475, %v1474
  %v1501 = vpack.c.b16 %v1477, %v1476
  %v1502 = vpack.c.b16 %v1479, %v1478
  %v1503 = vpack.c.b16 %v1481, %v1480
  %v1504 = vpack.c.b16 %v1483, %v1482
  %v1505 = vpack.c.b16 %v1485, %v1484
  %v1506 = vpack.c.b16 %v1487, %v1486
  %v1507 = vpack.c.b16 %v1489, %v1488
  %v1508 = vpack.c.b16 %v1491, %v1490
  %v1509 = vpack.c.b16 %v1493, %v1492
  %1526 = vmatprep.subr.bf16.mxu0 0
  %1527 = vmatpush1.bf16.msra.mxu0 %v1501
  %1528 = vmatprep.subr.bf16.mxu0 0
  %1529 = vmatpush1.bf16.msra.mxu0 %v1500
  %1530 = vmatprep.subr.bf16.mxu0 0
  %1531 = vmatpush1.bf16.msra.mxu0 %v1499
  %1532 = vmatprep.subr.bf16.mxu0 0
  %1533 = vmatpush1.bf16.msra.mxu0 %v1498
  %1534 = vmatprep.subr.bf16.mxu0 0
  %1535 = vmatpush1.bf16.msra.mxu0 %v1497
  %1536 = vmatprep.subr.bf16.mxu0 0
  %1537 = vmatpush1.bf16.msra.mxu0 %v1496
  %1538 = vmatprep.subr.bf16.mxu0 0
  %1539 = vmatpush1.bf16.msra.mxu0 %v1495
  %1540 = vmatprep.subr.bf16.mxu0 0
  %1541 = vmatpush1.bf16.msra.mxu0 %v1494
  %1542 = vmatprep.subr.bf16.mxu0 0
  %1543 = vmatpush2.bf16.msra.mxu0 %v1509
  %1544 = vmatprep.subr.bf16.mxu0 0
  %1545 = vmatpush2.bf16.msra.mxu0 %v1508
  %1546 = vmatprep.subr.bf16.mxu0 0
  %1547 = vmatpush2.bf16.msra.mxu0 %v1507
  %1548 = vmatprep.subr.bf16.mxu0 0
  %1549 = vmatpush2.bf16.msra.mxu0 %v1506
  %1550 = vmatprep.subr.bf16.mxu0 0
  %1551 = vmatpush2.bf16.msra.mxu0 %v1505
  %1552 = vmatprep.subr.bf16.mxu0 0
  %1553 = vmatpush2.bf16.msra.mxu0 %v1504
  %1554 = vmatprep.subr.bf16.mxu0 0
  %1555 = vmatpush2.bf16.msra.mxu0 %v1503
  %1556 = vmatprep.subr.bf16.mxu0 0
  %1557 = vmatpush2.bf16.msra.mxu0 %v1502
  %1558 = vmatprep.mubr.bf16.mxu0 %v1285
  %1559 = vmatmul.mubr.bf16.gmra.mxu0 %v1284
  %v1560 = vpop.f32.mrf.mxu0
  %v1561 = vadd.f32 %v1293, %v1560
  %v1562 = vpop.f32.mrf.mxu0
  %v1563 = vpop.f32.mrf.mxu0
  %v1564 = vpop.f32.mrf.mxu0
  %1565 = vdwg.mxu0
  %v1567 = vrot.slane %v1425, 1
  %v1570 = vadd.f32 %v886, %v1425
  %v1571 = vadd.f32 %v887, %v1567
  %v1572 = vadd.f32 %v888, %v1561
  %v1575 = vrot.slane %v1571, 7
  %v1576 = vsel %vm78, %v1575, %v1570
  %1578 = vst [vmem:[%s11] sm:$0x3] %v1576
  %1579 = vst [vmem:[%s12] sm:$0x3] %v1572
  // Predicated region
  $region46: #{multi_encoder_forward.14} parent=0 // pred_check
    _
  $region47: #{multi_encoder_forward.14} parent=0 // pred_check_branch
    %1581 = sbr.rel (0) target = $region49
  $region48: #{multi_encoder_forward.14} parent=0 // pred_region
    _
  $region49: #{multi_encoder_forward.14} parent=0 // pred_fallthru
    _
  // Predicated region
  $region50: #{multi_encoder_forward.14} parent=0 // pred_check
    _
  $region51: #{multi_encoder_forward.14} parent=0 // pred_check_branch
    %1583 = sbr.rel (0) target = $region53
  $region52: #{multi_encoder_forward.14} parent=0 // pred_region
    _
  $region53: #{multi_encoder_forward.14} parent=0 // pred_fallthru
    _
  // Predicated region
  $region54: #{multi_encoder_forward.14} parent=0 // pred_check
    _
  $region55: #{multi_encoder_forward.14} parent=0 // pred_check_branch
    %1585 = sbr.rel (0) target = $region57
  $region56: #{multi_encoder_forward.14} parent=0 // pred_region
    _
  $region57: #{multi_encoder_forward.14} parent=0 // pred_fallthru
    _
  // Predicated region
  $region58: #{multi_encoder_forward.14} parent=0 // pred_check
    _
  $region59: #{multi_encoder_forward.14} parent=0 // pred_check_branch
    %1587 = sbr.rel (0) target = $region61
  $region60: #{multi_encoder_forward.14} parent=0 // pred_region
    _
  $region61: #{multi_encoder_forward.14} parent=0 // pred_fallthru
    _

</llo_original>
